<compile_context>
chip_gen: v7x
topology: tpu7x:2x2x1
jax: 0.10.0
libtpu: 0.0.40
codegen_flags: <defaults>
</compile_context>

<pallas_src>
import functools

import jax
import jax.numpy as jnp
from jax import lax
from jax.experimental import pallas as pl
from jax.experimental.pallas import tpu as pltpu

# ----------------------------- model constants ------------------------------
F_DIM = 32                      # synthetic 2D backbone feature width
HEAD_DIM = 8                    # albedo(3) + normal(3) + rough(1) + depth(1)
DEPTH_CH = 7                    # depth channel index inside the packed heads
LIGHT_FEAT = 12                 # Encoder_Light(12)
SG_NUM = 12
LIGHT_HEAD = 3 * SG_NUM + SG_NUM + 3 * SG_NUM   # axis(36)+lambda(12)+weight(36)=84

# lane-dense 128-wide output slab layout
SLAB_DIM = 128
LH_OFF = HEAD_DIM               # 8   : light heads at lanes 8..91
FEAT_OFF = LH_OFF + LIGHT_HEAD  # 92  : backbone feat at lanes 92..123
XC_OFF = FEAT_OFF + F_DIM       # 124 : raw rgb carry lanes 124..126 (unused output)
ONE_OFF = 127                   # 127 : 1.0 bias-carry lane (unused output)

# packed input lane layout: [albedo_gt(3) | normal_gt(3) | rough_gt(1) |
#                            log1p(depth_gt)(1) | rgb(3) | 1.0]
PIN_DIM = 12
PIN_X = 8
PIN_ONE = 11

# Pixel-row tile.  At TM=4096 the double-buffered input (2x2 MiB), bf16 slab
# (2x1 MiB), weights (~0.4 MiB) plus Mosaic intermediates stay well under the
# 48 MiB scoped-VMEM cap requested below (v5e/v6e physical VMEM = 128 MiB,
# v7x = 64 MiB; v5e's DEFAULT scoped limit is only 16 MiB, hence the override).
TM = 4096
VMEM_LIMIT_BYTES = 48 * 1024 * 1024


def _round_up(x, m):
    return ((x + m - 1) // m) * m


# ------------------------------ fused kernel ---------------------------------
def _fused_kernel(pin_ref, w1_ref, w2_ref, w3_ref, w4_ref,
                  slab_ref, loss_ref, *, tm, valid_last):
    pin = pin_ref[...]                                          # (tm, 12) f32

    # Stage 1: backbone 1x1 conv (3->32) with pixel normalization folded into
    # w1; w1 also carries raw rgb (lanes 124..126) and a 1.0 lane (127) forward
    # through the matmul chain so no bias adds are needed.  The ReLU is applied
    # full-width: the non-feat lanes hold zeros, raw rgb (>=0 for images) or
    # the 1.0 carry, so it is a no-op there.
    # TODO(synk): real MnasMulti is a multi-scale FPN; approximated per-pixel.
    t1 = jnp.dot(pin, w1_ref[...], preferred_element_type=jnp.float32)
    f1 = jnp.maximum(t1, 0.0)                                   # feat @ 92..123

    # Stage 2: the 4 decoder heads (32->8) land at lanes 0..7; identity blocks
    # in w2 copy feat/rgb/1.0 forward.  Only the depth head (lane 7) is ReLU'd.
    t2 = jnp.dot(f1, w2_ref[...], preferred_element_type=jnp.float32)
    lane = lax.broadcasted_iota(jnp.int32, t2.shape, 1)
    t2 = jnp.where(lane == DEPTH_CH, jnp.maximum(t2, 0.0), t2)

    # Stage 3: Encoder_Light on concat(rgb, heads) without materializing the
    # concat: w3 reads heads from lanes 0..7 and raw rgb from the carry lanes.
    lf = jnp.maximum(
        jnp.dot(t2, w3_ref[...], preferred_element_type=jnp.float32), 0.0)

    # Stage 4: Axis/Lambda/Weight decoders (12->84) written at lanes 8..91.
    lh = jnp.dot(lf, w4_ref[...], preferred_element_type=jnp.float32)

    # Lane-dense 128-wide bf16 slab: heads | light heads | feat | carry junk.
    slab_ref[...] = (t2 + lh).astype(slab_ref.dtype)

    # Fused loss partials: a single packed 8-lane pipeline, lane-aligned with
    # the packed GT (whose depth lane was log1p'd in the wrapper).
    heads8 = t2[:, 0:HEAD_DIM]
    gt8 = pin[:, 0:HEAD_DIM]
    lane8 = lax.broadcasted_iota(jnp.int32, heads8.shape, 1)
    pred8 = jnp.where(lane8 == DEPTH_CH,
                      jnp.log1p(jnp.maximum(heads8, 0.0)), heads8)
    diff = pred8 - gt8
    d2 = diff * diff

    def _write(v):
        loss_ref[...] = jnp.sum(v, axis=0, keepdims=True).reshape(1, 1, HEAD_DIM)

    if valid_last is None:                       # no padded tail rows anywhere
        _write(d2)
    else:                                        # mask only on the last tile
        is_last = pl.program_id(0) == pl.num_programs(0) - 1

        @pl.when(is_last)
        def _():
            row = lax.broadcasted_iota(jnp.int32, (tm, 1), 0)
            _write(d2 * (row < valid_last).astype(d2.dtype))

        @pl.when(jnp.logical_not(is_last))
        def _():
            _write(d2)


# --------------------------- weight / input packing ---------------------------
def _pack_weights(params, pixel_mean, pixel_std):
    """Fold normalization + biases + lane placement into 4 padded matrices."""
    f32 = jnp.float32
    wbb, bbb = params["wbb"], params["bbb"]          # (3,32), (1,32)
    wh, bh = params["wh"], params["bh"]              # (32,8), (1,8)
    we_l, be_l = params["we_l"], params["be_l"]      # (11,12), (1,12)
    wh_l, bh_l = params["wh_l"], params["bh_l"]      # (12,84), (1,84)

    inv_std = 1.0 / pixel_std                        # (1,3)
    wbb_f = wbb * inv_std.reshape(3, 1)              # fold /std into weights
    bbb_f = bbb - (pixel_mean * inv_std) @ wbb       # fold -mean/std into bias

    w1 = jnp.zeros((PIN_DIM, SLAB_DIM), f32)
    w1 = w1.at[PIN_X:PIN_X + 3, FEAT_OFF:FEAT_OFF + F_DIM].set(wbb_f)
    w1 = w1.at[PIN_ONE, FEAT_OFF:FEAT_OFF + F_DIM].set(bbb_f[0])
    w1 = w1.at[PIN_X:PIN_X + 3, XC_OFF:XC_OFF + 3].set(jnp.eye(3, dtype=f32))
    w1 = w1.at[PIN_ONE, ONE_OFF].set(1.0)

    w2 = jnp.zeros((SLAB_DIM, SLAB_DIM), f32)
    w2 = w2.at[FEAT_OFF:FEAT_OFF + F_DIM, 0:HEAD_DIM].set(wh)
    w2 = w2.at[ONE_OFF, 0:HEAD_DIM].set(bh[0])
    w2 = w2.at[FEAT_OFF:FEAT_OFF + F_DIM,
               FEAT_OFF:FEAT_OFF + F_DIM].set(jnp.eye(F_DIM, dtype=f32))
    w2 = w2.at[XC_OFF:XC_OFF + 3, XC_OFF:XC_OFF + 3].set(jnp.eye(3, dtype=f32))
    w2 = w2.at[ONE_OFF, ONE_OFF].set(1.0)

    w3 = jnp.zeros((SLAB_DIM, SLAB_DIM), f32)
    w3 = w3.at[0:HEAD_DIM, 0:LIGHT_FEAT].set(we_l[3:])          # heads part
    w3 = w3.at[XC_OFF:XC_OFF + 3, 0:LIGHT_FEAT].set(we_l[:3])   # raw rgb part
    w3 = w3.at[ONE_OFF, 0:LIGHT_FEAT].set(be_l[0])
    w3 = w3.at[ONE_OFF, ONE_OFF].set(1.0)

    w4 = jnp.zeros((SLAB_DIM, SLAB_DIM), f32)
    w4 = w4.at[0:LIGHT_FEAT, LH_OFF:LH_OFF + LIGHT_HEAD].set(wh_l)
    w4 = w4.at[ONE_OFF, LH_OFF:LH_OFF + LIGHT_HEAD].set(bh_l[0])
    return w1, w2, w3, w4


# ------------------------------ Pallas wrapper --------------------------------
def _fused_call(packed, w1, w2, w3, w4, *, tm=TM):
    M = packed.shape[0]
    tm = min(tm, _round_up(M, 8))
    g = pl.cdiv(M, tm)
    m_pad = g * tm
    if m_pad != M:                       # pad tail tile (masked on last tile)
        packed = jnp.pad(packed, ((0, m_pad - M), (0, 0)))
        valid_last = M - (g - 1) * tm    # static python int
    else:
        valid_last = None

    flops = int(m_pad) * 2 * SLAB_DIM * (PIN_DIM + 3 * SLAB_DIM)
    cost = pl.CostEstimate(
        flops=flops,
        transcendentals=int(m_pad) * HEAD_DIM,
        bytes_accessed=int(m_pad) * (PIN_DIM * 4 + SLAB_DIM * 2) + 4 * SLAB_DIM * SLAB_DIM * 4)

    kernel = functools.partial(_fused_kernel, tm=tm, valid_last=valid_last)
    w_spec = lambda r: pl.BlockSpec((r, SLAB_DIM), lambda i: (0, 0))

    slab, loss_part = pl.pallas_call(
        kernel,
        out_shape=(jax.ShapeDtypeStruct((m_pad, SLAB_DIM), jnp.bfloat16),
                   jax.ShapeDtypeStruct((g, 1, HEAD_DIM), jnp.float32)),
        grid_spec=pltpu.PrefetchScalarGridSpec(
            num_scalar_prefetch=0,
            grid=(g,),
            in_specs=[pl.BlockSpec((tm, PIN_DIM), lambda i: (i, 0)),   # packed rows
                      w_spec(PIN_DIM),                                 # W1
                      w_spec(SLAB_DIM),                                # W2
                      w_spec(SLAB_DIM),                                # W3
                      w_spec(SLAB_DIM)],                               # W4
            out_specs=(pl.BlockSpec((tm, SLAB_DIM), lambda i: (i, 0)),
                       pl.BlockSpec((1, 1, HEAD_DIM), lambda i: (i, 0, 0)))),
        compiler_params=pltpu.CompilerParams(
            dimension_semantics=("parallel",),
            vmem_limit_bytes=VMEM_LIMIT_BYTES),
        cost_estimate=cost,
    )(packed, w1, w2, w3, w4)
    return slab, loss_part


# ------------------------------- forward pass ---------------------------------
@jax.jit
def neuralrecon_forward(imgs, pixel_mean, pixel_std, params,
                        albedo_gt, normal_gt, rough_gt, depth_gt):
    # imgs / GT are channels-last (B, V, H, W, C): flatten to pixel rows is free.
    B, V, H, W, C = imgs.shape
    M = B * V * H * W
    x = imgs.reshape(M, C)

    # Single packed (M, 12) input: [gt8 | rgb | 1.0].  depth GT is assumed >= 0
    # (its loss uses log1p); losses are raw sums, matching torch.sum in the spec.
    packed = jnp.concatenate([
        albedo_gt.reshape(M, 3),
        normal_gt.reshape(M, 3),
        rough_gt.reshape(M, 1),
        jnp.log1p(depth_gt.reshape(M, 1)),
        x,
        jnp.ones((M, 1), jnp.float32),
    ], axis=1)

    w1, w2, w3, w4 = _pack_weights(params, pixel_mean, pixel_std)
    slab, loss_part = _fused_call(packed, w1, w2, w3, w4)
    slab = slab[:M]
    loss_sums = jnp.sum(loss_part, axis=(0, 1))             # (8,) f32

    def img(t):
        return t.reshape(B, V, H, W, t.shape[-1])

    outputs = {
        "albedo": img(slab[:, 0:3]),
        "normal": img(slab[:, 3:6]),
        "rough": img(slab[:, 6:7]),
        "depth": img(slab[:, 7:8]),
        "light_axis": img(slab[:, LH_OFF:LH_OFF + 3 * SG_NUM]),
        "light_lambda": img(slab[:, LH_OFF + 3 * SG_NUM:LH_OFF + 4 * SG_NUM]),
        "light_weight": img(slab[:, LH_OFF + 4 * SG_NUM:LH_OFF + LIGHT_HEAD]),
        "features_2d": img(slab[:, FEAT_OFF:FEAT_OFF + F_DIM]),
    }

    albedo_loss = jnp.sum(loss_sums[0:3])
    normal_loss = jnp.sum(loss_sums[3:6])
    rough_loss = loss_sums[6]
    depth_loss = loss_sums[7]

    # TODO(synk): output2img.cvt2img + LSregression (lighting image loss) are
    # external, undefined modules; lighting_loss is left as 0.
    lighting_loss = jnp.float32(0.0)
    # TODO(synk): neucon_net (sparse 3D TSDF reconstruction) and fuse_to_global
    # (GRUFusion) have no provided definition; the cfg.LW-weighted total loss
    # over their per-level losses is therefore 0.
    total_loss = jnp.float32(0.0)

    loss_dict = {
        "total_loss": total_loss,
        "lighting_loss": lighting_loss,
        "albedo_loss": albedo_loss,
        "normal_loss": normal_loss,
        "rough_loss": rough_loss,
        "depth_loss": depth_loss,
    }
    return outputs, loss_dict


# ----------------------------------- main --------------------------------------
if __name__ == "__main__":
    key = jax.random.PRNGKey(0)
    ks = jax.random.split(key, 16)

    B, V, C, H, W = 2, 2, 3, 16, 16

    # channels-last layout (B, V, H, W, C): same values as the PyTorch NCHW
    # tensors, TPU-friendly layout so no pre-kernel transpose is needed.
    imgs = jax.random.uniform(ks[0], (B, V, H, W, C), jnp.float32)
    albedo_gt = jax.random.uniform(ks[1], (B, V, H, W, 3), jnp.float32)
    normal_gt = jax.random.uniform(ks[2], (B, V, H, W, 3), jnp.float32)
    rough_gt = jax.random.uniform(ks[3], (B, V, H, W, 1), jnp.float32)
    depth_gt = jax.random.uniform(ks[4], (B, V, H, W, 1), jnp.float32) * 2.0

    pixel_mean = jnp.array([[0.485, 0.456, 0.406]], jnp.float32)   # (1, 3)
    pixel_std = jnp.array([[0.229, 0.224, 0.225]], jnp.float32)    # (1, 3)

    def init(k, shape, scale=0.1):
        return (scale * jax.random.normal(k, shape)).astype(jnp.float32)

    LIGHT_IN = 3 + HEAD_DIM   # rgb + decoder heads = 11
    params = {
        "wbb": init(ks[5], (C, F_DIM)),
        "bbb": init(ks[6], (1, F_DIM)),
        "wh": init(ks[7], (F_DIM, HEAD_DIM)),
        "bh": init(ks[8], (1, HEAD_DIM)),
        "we_l": init(ks[9], (LIGHT_IN, LIGHT_FEAT)),
        "be_l": init(ks[10], (1, LIGHT_FEAT)),
        "wh_l": init(ks[11], (LIGHT_FEAT, LIGHT_HEAD)),
        "bh_l": init(ks[12], (1, LIGHT_HEAD)),
    }

    outputs, loss_dict = neuralrecon_forward(
        imgs, pixel_mean, pixel_std, params,
        albedo_gt, normal_gt, rough_gt, depth_gt)

    jax.block_until_ready(outputs["albedo"])
    jax.block_until_ready(loss_dict["depth_loss"])
    print("KERNEL_OK")
</pallas_src>

<mosaic_0001>
module attributes {stable_mosaic.version = 11 : i64} {
  func.func @_fused_kernel(%arg0: i32, %arg1: memref<1024x12xf32, #tpu.memory_space<vmem>>, %arg2: memref<12x128xf32, #tpu.memory_space<vmem>>, %arg3: memref<128x128xf32, #tpu.memory_space<vmem>>, %arg4: memref<128x128xf32, #tpu.memory_space<vmem>>, %arg5: memref<128x128xf32, #tpu.memory_space<vmem>>, %arg6: memref<1024x128xbf16, #tpu.memory_space<vmem>>, %arg7: memref<1x1x8xf32, #tpu.memory_space<vmem>>) attributes {dimension_semantics = [#tpu.dimension_semantics<parallel>], iteration_bounds = array<i64: 1>, scalar_prefetch = 0 : i64, scratch_operands = 0 : i64, tpu.core_type = #tpu.core_type<tc>, window_params = [{transform_indices = @transform_0, window_bounds = array<i64: 1024, 12>}, {pipeline_mode = #tpu.pipeline_mode<synchronous>, transform_indices = @transform_1, window_bounds = array<i64: 12, 128>}, {pipeline_mode = #tpu.pipeline_mode<synchronous>, transform_indices = @transform_2, window_bounds = array<i64: 128, 128>}, {pipeline_mode = #tpu.pipeline_mode<synchronous>, transform_indices = @transform_3, window_bounds = array<i64: 128, 128>}, {pipeline_mode = #tpu.pipeline_mode<synchronous>, transform_indices = @transform_4, window_bounds = array<i64: 128, 128>}, {transform_indices = @transform_5, window_bounds = array<i64: 1024, 128>}, {transform_indices = @transform_6, window_bounds = array<i64: 1, 1, 8>}]} {
    %c0 = arith.constant 0 : index
    %c0_0 = arith.constant 0 : index
    %0 = vector.load %arg1[%c0, %c0_0] : memref<1024x12xf32, #tpu.memory_space<vmem>>, vector<1024x12xf32>
    %c0_1 = arith.constant 0 : index
    %c0_2 = arith.constant 0 : index
    %1 = vector.load %arg2[%c0_1, %c0_2] : memref<12x128xf32, #tpu.memory_space<vmem>>, vector<12x128xf32>
    %cst = arith.constant dense<0.000000e+00> : vector<1024x128xf32>
    %2 = tpu.matmul %0, %1, %cst {dimension_numbers = #tpu.dot_dimension_numbers<[1], [0], [0], [1], [0, 0, 1, 1], [], []>} : vector<1024x12xf32>, vector<12x128xf32>, vector<1024x128xf32> -> vector<1024x128xf32>
    %cst_3 = arith.constant 0.000000e+00 : f32
    %3 = vector.broadcast %cst_3 : f32 to vector<1024x128xf32>
    %4 = arith.maximumf %2, %3 : vector<1024x128xf32>
    %c0_4 = arith.constant 0 : index
    %c0_5 = arith.constant 0 : index
    %5 = vector.load %arg3[%c0_4, %c0_5] : memref<128x128xf32, #tpu.memory_space<vmem>>, vector<128x128xf32>
    %cst_6 = arith.constant dense<0.000000e+00> : vector<1024x128xf32>
    %6 = tpu.matmul %4, %5, %cst_6 {dimension_numbers = #tpu.dot_dimension_numbers<[1], [0], [0], [1], [0, 0, 1, 1], [], []>} : vector<1024x128xf32>, vector<128x128xf32>, vector<1024x128xf32> -> vector<1024x128xf32>
    %7 = tpu.iota {dimensions = array<i32: 1>} : vector<1024x128xi32>
    %c7_i32 = arith.constant 7 : i32
    %8 = vector.broadcast %c7_i32 : i32 to vector<1024x128xi32>
    %9 = arith.cmpi eq, %7, %8 : vector<1024x128xi32>
    %cst_7 = arith.constant 0.000000e+00 : f32
    %10 = vector.broadcast %cst_7 : f32 to vector<1024x128xf32>
    %11 = arith.maximumf %6, %10 : vector<1024x128xf32>
    %12 = arith.select %9, %11, %6 : vector<1024x128xi1>, vector<1024x128xf32>
    %c0_8 = arith.constant 0 : index
    %c0_9 = arith.constant 0 : index
    %13 = vector.load %arg4[%c0_8, %c0_9] : memref<128x128xf32, #tpu.memory_space<vmem>>, vector<128x128xf32>
    %cst_10 = arith.constant dense<0.000000e+00> : vector<1024x128xf32>
    %14 = tpu.matmul %12, %13, %cst_10 {dimension_numbers = #tpu.dot_dimension_numbers<[1], [0], [0], [1], [0, 0, 1, 1], [], []>} : vector<1024x128xf32>, vector<128x128xf32>, vector<1024x128xf32> -> vector<1024x128xf32>
    %cst_11 = arith.constant 0.000000e+00 : f32
    %15 = vector.broadcast %cst_11 : f32 to vector<1024x128xf32>
    %16 = arith.maximumf %14, %15 : vector<1024x128xf32>
    %c0_12 = arith.constant 0 : index
    %c0_13 = arith.constant 0 : index
    %17 = vector.load %arg5[%c0_12, %c0_13] : memref<128x128xf32, #tpu.memory_space<vmem>>, vector<128x128xf32>
    %cst_14 = arith.constant dense<0.000000e+00> : vector<1024x128xf32>
    %18 = tpu.matmul %16, %17, %cst_14 {dimension_numbers = #tpu.dot_dimension_numbers<[1], [0], [0], [1], [0, 0, 1, 1], [], []>} : vector<1024x128xf32>, vector<128x128xf32>, vector<1024x128xf32> -> vector<1024x128xf32>
    %19 = arith.addf %12, %18 : vector<1024x128xf32>
    %20 = arith.truncf %19 : vector<1024x128xf32> to vector<1024x128xbf16>
    %c0_15 = arith.constant 0 : index
    %c0_16 = arith.constant 0 : index
    %21 = vector.load %arg6[%c0_15, %c0_16] : memref<1024x128xbf16, #tpu.memory_space<vmem>>, vector<1024x128xbf16>
    tpu.vector_store %arg6[%c0_15, %c0_16], %20 {strides = array<i32>} : memref<1024x128xbf16, #tpu.memory_space<vmem>>, vector<1024x128xbf16>,
    %22 = vector.extract_strided_slice %12 {offsets = [0, 0], sizes = [1024, 8], strides = [1, 1]} : vector<1024x128xf32> to vector<1024x8xf32>
    %23 = vector.extract_strided_slice %0 {offsets = [0, 0], sizes = [1024, 8], strides = [1, 1]} : vector<1024x12xf32> to vector<1024x8xf32>
    %24 = tpu.iota {dimensions = array<i32: 1>} : vector<1024x8xi32>
    %c7_i32_17 = arith.constant 7 : i32
    %25 = vector.broadcast %c7_i32_17 : i32 to vector<1024x8xi32>
    %26 = arith.cmpi eq, %24, %25 : vector<1024x8xi32>
    %cst_18 = arith.constant 0.000000e+00 : f32
    %27 = vector.broadcast %cst_18 : f32 to vector<1024x8xf32>
    %28 = arith.maximumf %22, %27 : vector<1024x8xf32>
    %29 = math.log1p %28 : vector<1024x8xf32>
    %30 = arith.select %26, %29, %22 : vector<1024x8xi1>, vector<1024x8xf32>
    %31 = arith.subf %30, %23 : vector<1024x8xf32>
    %32 = arith.mulf %31, %31 : vector<1024x8xf32>
    %cst_19 = arith.constant dense<0.000000e+00> : vector<8xf32>
    %33 = vector.multi_reduction <add>, %32, %cst_19 [0] : vector<1024x8xf32> to vector<8xf32>
    %34 = vector.shape_cast %33 : vector<8xf32> to vector<1x8xf32>
    %35 = vector.shape_cast %34 : vector<1x8xf32> to vector<1x1x8xf32>
    %c0_20 = arith.constant 0 : index
    %c0_21 = arith.constant 0 : index
    %c0_22 = arith.constant 0 : index
    %36 = vector.load %arg7[%c0_20, %c0_21, %c0_22] : memref<1x1x8xf32, #tpu.memory_space<vmem>>, vector<1x1x8xf32>
    tpu.vector_store %arg7[%c0_20, %c0_21, %c0_22], %35 {strides = array<i32>} : memref<1x1x8xf32, #tpu.memory_space<vmem>>, vector<1x1x8xf32>,
    return
  }
  func.func @transform_0(%arg0: i32) -> (i32, i32) {
    %c0_i32 = arith.constant 0 : i32
    %c0_i32_0 = arith.constant 0 : i32
    return %arg0, %c0_i32 : i32, i32
  }
  func.func @transform_1(%arg0: i32) -> (i32, i32) {
    %c0_i32 = arith.constant 0 : i32
    %c0_i32_0 = arith.constant 0 : i32
    %c0_i32_1 = arith.constant 0 : i32
    return %c0_i32, %c0_i32_0 : i32, i32
  }
  func.func @transform_2(%arg0: i32) -> (i32, i32) {
    %c0_i32 = arith.constant 0 : i32
    %c0_i32_0 = arith.constant 0 : i32
    %c0_i32_1 = arith.constant 0 : i32
    return %c0_i32, %c0_i32_0 : i32, i32
  }
  func.func @transform_3(%arg0: i32) -> (i32, i32) {
    %c0_i32 = arith.constant 0 : i32
    %c0_i32_0 = arith.constant 0 : i32
    %c0_i32_1 = arith.constant 0 : i32
    return %c0_i32, %c0_i32_0 : i32, i32
  }
  func.func @transform_4(%arg0: i32) -> (i32, i32) {
    %c0_i32 = arith.constant 0 : i32
    %c0_i32_0 = arith.constant 0 : i32
    %c0_i32_1 = arith.constant 0 : i32
    return %c0_i32, %c0_i32_0 : i32, i32
  }
  func.func @transform_5(%arg0: i32) -> (i32, i32) {
    %c0_i32 = arith.constant 0 : i32
    %c0_i32_0 = arith.constant 0 : i32
    return %arg0, %c0_i32 : i32, i32
  }
  func.func @transform_6(%arg0: i32) -> (i32, i32, i32) {
    %c0_i32 = arith.constant 0 : i32
    %c0_i32_0 = arith.constant 0 : i32
    %c0_i32_1 = arith.constant 0 : i32
    return %arg0, %c0_i32, %c0_i32_0 : i32, i32, i32
  }
}

</mosaic_0001>

<llo_original>
// kernel: neuralrecon_forward.1
$region0: #{neuralrecon_forward.1}
  #allocation0 [shape = 'u32[]', space=smem, size = 0x4, offset = 0x4, fixed_abs, tag = 'smem constant byte address 0x4 - core index']
  #allocation1 [shape = 'u32[144,128]{1,0:T(1,128)}', space=vmem, size = 0x12000, scoped, tag = 'internal scratch']
  %s0 = inlined_call_operand.vmem [shape: f32[1024,12], index: 0, kind: input, shape index: {}]
  %s1 = inlined_call_operand.vmem [shape: f32[12,128], index: 1, kind: input, shape index: {}]
  %s2 = inlined_call_operand.vmem [shape: f32[128,128], index: 2, kind: input, shape index: {}]
  %s3 = inlined_call_operand.vmem [shape: f32[128,128], index: 3, kind: input, shape index: {}]
  %s4 = inlined_call_operand.vmem [shape: f32[128,128], index: 4, kind: input, shape index: {}]
  %s5 = inlined_call_operand.vmem [shape: bf16[1024,128], index: 5, kind: output, shape index: {0}]
  %s6 = inlined_call_operand.vmem [shape: f32[1,1,8], index: 6, kind: output, shape index: {1}]
  %7 = xla_tuple %s5, %s6
  %s8 = sld [smem:[#allocation0]]
  $region38: #{neuralrecon_forward.1} parent=0
    _
  %s10 = ssub.s32 1, %s8
  %s11 = scalar_select 0, %s10, %s8
  // Predicated region
  $region2: #{neuralrecon_forward.1} parent=0 // pred_check
    _
  $region3: #{neuralrecon_forward.1} parent=0 // pred_check_branch
    %13 = sbr.rel (0) target = $region5
  $region4: #{neuralrecon_forward.1} parent=0 // pred_region
    _
  $region5: #{neuralrecon_forward.1} parent=0 // pred_fallthru
    _
  // Predicated region
  $region6: #{neuralrecon_forward.1} parent=0 // pred_check
    _
  $region7: #{neuralrecon_forward.1} parent=0 // pred_check_branch
    %15 = sbr.rel (0) target = $region9
  $region8: #{neuralrecon_forward.1} parent=0 // pred_region
    _
  $region9: #{neuralrecon_forward.1} parent=0 // pred_fallthru
    _
  // Predicated region
  $region10: #{neuralrecon_forward.1} parent=0 // pred_check
    _
  $region11: #{neuralrecon_forward.1} parent=0 // pred_check_branch
    %17 = sbr.rel (0) target = $region13
  $region12: #{neuralrecon_forward.1} parent=0 // pred_region
    _
  $region13: #{neuralrecon_forward.1} parent=0 // pred_fallthru
    _
  // Predicated region
  $region14: #{neuralrecon_forward.1} parent=0 // pred_check
    _
  $region15: #{neuralrecon_forward.1} parent=0 // pred_check_branch
    %19 = sbr.rel (0) target = $region17
  $region16: #{neuralrecon_forward.1} parent=0 // pred_region
    _
  $region17: #{neuralrecon_forward.1} parent=0 // pred_fallthru
    _
  // Predicated region
  $region18: #{neuralrecon_forward.1} parent=0 // pred_check
    _
  $region19: #{neuralrecon_forward.1} parent=0 // pred_check_branch
    %21 = sbr.rel (0) target = $region21
  $region20: #{neuralrecon_forward.1} parent=0 // pred_region
    _
  $region21: #{neuralrecon_forward.1} parent=0 // pred_fallthru
    _
  %v22 = vld [vmem:[%s0] sm:$0xff]
  %v23 = vld [vmem:[%s0 + $0x8] sm:$0xff]
  %v24 = vld [vmem:[%s0 + $0x10] sm:$0xff]
  %v25 = vld [vmem:[%s0 + $0x18] sm:$0xff]
  %v26 = vld [vmem:[%s0 + $0x20] sm:$0xff]
  %v27 = vld [vmem:[%s0 + $0x28] sm:$0xff]
  %v28 = vld [vmem:[%s0 + $0x30] sm:$0xff]
  %v29 = vld [vmem:[%s0 + $0x38] sm:$0xff]
  %v30 = vld [vmem:[%s0 + $0x40] sm:$0xff]
  %v31 = vld [vmem:[%s0 + $0x48] sm:$0xff]
  %v32 = vld [vmem:[%s0 + $0x50] sm:$0xff]
  %v33 = vld [vmem:[%s0 + $0x58] sm:$0xff]
  %v34 = vld [vmem:[%s0 + $0x60] sm:$0xff]
  %v35 = vld [vmem:[%s0 + $0x68] sm:$0xff]
  %v36 = vld [vmem:[%s0 + $0x70] sm:$0xff]
  %v37 = vld [vmem:[%s0 + $0x78] sm:$0xff]
  %v38 = vld [vmem:[%s0 + $0x80] sm:$0xff]
  %v39 = vld [vmem:[%s0 + $0x88] sm:$0xff]
  %v40 = vld [vmem:[%s0 + $0x90] sm:$0xff]
  %v41 = vld [vmem:[%s0 + $0x98] sm:$0xff]
  %v42 = vld [vmem:[%s0 + $0xa0] sm:$0xff]
  %v43 = vld [vmem:[%s0 + $0xa8] sm:$0xff]
  %v44 = vld [vmem:[%s0 + $0xb0] sm:$0xff]
  %v45 = vld [vmem:[%s0 + $0xb8] sm:$0xff]
  %v46 = vld [vmem:[%s0 + $0xc0] sm:$0xff]
  %v47 = vld [vmem:[%s0 + $0xc8] sm:$0xff]
  %v48 = vld [vmem:[%s0 + $0xd0] sm:$0xff]
  %v49 = vld [vmem:[%s0 + $0xd8] sm:$0xff]
  %v50 = vld [vmem:[%s0 + $0xe0] sm:$0xff]
  %v51 = vld [vmem:[%s0 + $0xe8] sm:$0xff]
  %v52 = vld [vmem:[%s0 + $0xf0] sm:$0xff]
  %v53 = vld [vmem:[%s0 + $0xf8] sm:$0xff]
  %v54 = vld [vmem:[%s0 + $0x100] sm:$0xff]
  %v55 = vld [vmem:[%s0 + $0x108] sm:$0xff]
  %v56 = vld [vmem:[%s0 + $0x110] sm:$0xff]
  %v57 = vld [vmem:[%s0 + $0x118] sm:$0xff]
  %v58 = vld [vmem:[%s0 + $0x120] sm:$0xff]
  %v59 = vld [vmem:[%s0 + $0x128] sm:$0xff]
  %v60 = vld [vmem:[%s0 + $0x130] sm:$0xff]
  %v61 = vld [vmem:[%s0 + $0x138] sm:$0xff]
  %v62 = vld [vmem:[%s0 + $0x140] sm:$0xff]
  %v63 = vld [vmem:[%s0 + $0x148] sm:$0xff]
  %v64 = vld [vmem:[%s0 + $0x150] sm:$0xff]
  %v65 = vld [vmem:[%s0 + $0x158] sm:$0xff]
  %v66 = vld [vmem:[%s0 + $0x160] sm:$0xff]
  %v67 = vld [vmem:[%s0 + $0x168] sm:$0xff]
  %v68 = vld [vmem:[%s0 + $0x170] sm:$0xff]
  %v69 = vld [vmem:[%s0 + $0x178] sm:$0xff]
  %v70 = vld [vmem:[%s0 + $0x180] sm:$0xff]
  %v71 = vld [vmem:[%s0 + $0x188] sm:$0xff]
  %v72 = vld [vmem:[%s0 + $0x190] sm:$0xff]
  %v73 = vld [vmem:[%s0 + $0x198] sm:$0xff]
  %v74 = vld [vmem:[%s0 + $0x1a0] sm:$0xff]
  %v75 = vld [vmem:[%s0 + $0x1a8] sm:$0xff]
  %v76 = vld [vmem:[%s0 + $0x1b0] sm:$0xff]
  %v77 = vld [vmem:[%s0 + $0x1b8] sm:$0xff]
  %v78 = vld [vmem:[%s0 + $0x1c0] sm:$0xff]
  %v79 = vld [vmem:[%s0 + $0x1c8] sm:$0xff]
  %v80 = vld [vmem:[%s0 + $0x1d0] sm:$0xff]
  %v81 = vld [vmem:[%s0 + $0x1d8] sm:$0xff]
  %v82 = vld [vmem:[%s0 + $0x1e0] sm:$0xff]
  %v83 = vld [vmem:[%s0 + $0x1e8] sm:$0xff]
  %v84 = vld [vmem:[%s0 + $0x1f0] sm:$0xff]
  %v85 = vld [vmem:[%s0 + $0x1f8] sm:$0xff]
  %v86 = vld [vmem:[%s0 + $0x200] sm:$0xff]
  %v87 = vld [vmem:[%s0 + $0x208] sm:$0xff]
  %v88 = vld [vmem:[%s0 + $0x210] sm:$0xff]
  %v89 = vld [vmem:[%s0 + $0x218] sm:$0xff]
  %v90 = vld [vmem:[%s0 + $0x220] sm:$0xff]
  %v91 = vld [vmem:[%s0 + $0x228] sm:$0xff]
  %v92 = vld [vmem:[%s0 + $0x230] sm:$0xff]
  %v93 = vld [vmem:[%s0 + $0x238] sm:$0xff]
  %v94 = vld [vmem:[%s0 + $0x240] sm:$0xff]
  %v95 = vld [vmem:[%s0 + $0x248] sm:$0xff]
  %v96 = vld [vmem:[%s0 + $0x250] sm:$0xff]
  %v97 = vld [vmem:[%s0 + $0x258] sm:$0xff]
  %v98 = vld [vmem:[%s0 + $0x260] sm:$0xff]
  %v99 = vld [vmem:[%s0 + $0x268] sm:$0xff]
  %v100 = vld [vmem:[%s0 + $0x270] sm:$0xff]
  %v101 = vld [vmem:[%s0 + $0x278] sm:$0xff]
  %v102 = vld [vmem:[%s0 + $0x280] sm:$0xff]
  %v103 = vld [vmem:[%s0 + $0x288] sm:$0xff]
  %v104 = vld [vmem:[%s0 + $0x290] sm:$0xff]
  %v105 = vld [vmem:[%s0 + $0x298] sm:$0xff]
  %v106 = vld [vmem:[%s0 + $0x2a0] sm:$0xff]
  %v107 = vld [vmem:[%s0 + $0x2a8] sm:$0xff]
  %v108 = vld [vmem:[%s0 + $0x2b0] sm:$0xff]
  %v109 = vld [vmem:[%s0 + $0x2b8] sm:$0xff]
  %v110 = vld [vmem:[%s0 + $0x2c0] sm:$0xff]
  %v111 = vld [vmem:[%s0 + $0x2c8] sm:$0xff]
  %v112 = vld [vmem:[%s0 + $0x2d0] sm:$0xff]
  %v113 = vld [vmem:[%s0 + $0x2d8] sm:$0xff]
  %v114 = vld [vmem:[%s0 + $0x2e0] sm:$0xff]
  %v115 = vld [vmem:[%s0 + $0x2e8] sm:$0xff]
  %v116 = vld [vmem:[%s0 + $0x2f0] sm:$0xff]
  %v117 = vld [vmem:[%s0 + $0x2f8] sm:$0xff]
  %v118 = vld [vmem:[%s0 + $0x300] sm:$0xff]
  %v119 = vld [vmem:[%s0 + $0x308] sm:$0xff]
  %v120 = vld [vmem:[%s0 + $0x310] sm:$0xff]
  %v121 = vld [vmem:[%s0 + $0x318] sm:$0xff]
  %v122 = vld [vmem:[%s0 + $0x320] sm:$0xff]
  %v123 = vld [vmem:[%s0 + $0x328] sm:$0xff]
  %v124 = vld [vmem:[%s0 + $0x330] sm:$0xff]
  %v125 = vld [vmem:[%s0 + $0x338] sm:$0xff]
  %v126 = vld [vmem:[%s0 + $0x340] sm:$0xff]
  %v127 = vld [vmem:[%s0 + $0x348] sm:$0xff]
  %v128 = vld [vmem:[%s0 + $0x350] sm:$0xff]
  %v129 = vld [vmem:[%s0 + $0x358] sm:$0xff]
  %v130 = vld [vmem:[%s0 + $0x360] sm:$0xff]
  %v131 = vld [vmem:[%s0 + $0x368] sm:$0xff]
  %v132 = vld [vmem:[%s0 + $0x370] sm:$0xff]
  %v133 = vld [vmem:[%s0 + $0x378] sm:$0xff]
  %v134 = vld [vmem:[%s0 + $0x380] sm:$0xff]
  %v135 = vld [vmem:[%s0 + $0x388] sm:$0xff]
  %v136 = vld [vmem:[%s0 + $0x390] sm:$0xff]
  %v137 = vld [vmem:[%s0 + $0x398] sm:$0xff]
  %v138 = vld [vmem:[%s0 + $0x3a0] sm:$0xff]
  %v139 = vld [vmem:[%s0 + $0x3a8] sm:$0xff]
  %v140 = vld [vmem:[%s0 + $0x3b0] sm:$0xff]
  %v141 = vld [vmem:[%s0 + $0x3b8] sm:$0xff]
  %v142 = vld [vmem:[%s0 + $0x3c0] sm:$0xff]
  %v143 = vld [vmem:[%s0 + $0x3c8] sm:$0xff]
  %v144 = vld [vmem:[%s0 + $0x3d0] sm:$0xff]
  %v145 = vld [vmem:[%s0 + $0x3d8] sm:$0xff]
  %v146 = vld [vmem:[%s0 + $0x3e0] sm:$0xff]
  %v147 = vld [vmem:[%s0 + $0x3e8] sm:$0xff]
  %v148 = vld [vmem:[%s0 + $0x3f0] sm:$0xff]
  %v149 = vld [vmem:[%s0 + $0x3f8] sm:$0xff]
  %v150 = vld [vmem:[%s1] sm:$0xff]
  %v151 = vld [vmem:[%s1 + $0x8] sm:$0xf]
  %vm152 = vcmask 97280
  %v154 = vsel %vm152, %v22, 0
  %v157 = vsel %vm152, %v23, 0
  %v160 = vsel %vm152, %v24, 0
  %v163 = vsel %vm152, %v25, 0
  %v166 = vsel %vm152, %v26, 0
  %v169 = vsel %vm152, %v27, 0
  %v172 = vsel %vm152, %v28, 0
  %v175 = vsel %vm152, %v29, 0
  %v178 = vsel %vm152, %v30, 0
  %v181 = vsel %vm152, %v31, 0
  %v184 = vsel %vm152, %v32, 0
  %v187 = vsel %vm152, %v33, 0
  %v190 = vsel %vm152, %v34, 0
  %v193 = vsel %vm152, %v35, 0
  %v196 = vsel %vm152, %v36, 0
  %v199 = vsel %vm152, %v37, 0
  %v202 = vsel %vm152, %v38, 0
  %v205 = vsel %vm152, %v39, 0
  %v208 = vsel %vm152, %v40, 0
  %v211 = vsel %vm152, %v41, 0
  %v214 = vsel %vm152, %v42, 0
  %v217 = vsel %vm152, %v43, 0
  %v220 = vsel %vm152, %v44, 0
  %v223 = vsel %vm152, %v45, 0
  %v226 = vsel %vm152, %v46, 0
  %v229 = vsel %vm152, %v47, 0
  %v232 = vsel %vm152, %v48, 0
  %v235 = vsel %vm152, %v49, 0
  %v238 = vsel %vm152, %v50, 0
  %v241 = vsel %vm152, %v51, 0
  %v244 = vsel %vm152, %v52, 0
  %v247 = vsel %vm152, %v53, 0
  %v250 = vsel %vm152, %v54, 0
  %v253 = vsel %vm152, %v55, 0
  %v256 = vsel %vm152, %v56, 0
  %v259 = vsel %vm152, %v57, 0
  %v262 = vsel %vm152, %v58, 0
  %v265 = vsel %vm152, %v59, 0
  %v268 = vsel %vm152, %v60, 0
  %v271 = vsel %vm152, %v61, 0
  %v274 = vsel %vm152, %v62, 0
  %v277 = vsel %vm152, %v63, 0
  %v280 = vsel %vm152, %v64, 0
  %v283 = vsel %vm152, %v65, 0
  %v286 = vsel %vm152, %v66, 0
  %v289 = vsel %vm152, %v67, 0
  %v292 = vsel %vm152, %v68, 0
  %v295 = vsel %vm152, %v69, 0
  %v298 = vsel %vm152, %v70, 0
  %v301 = vsel %vm152, %v71, 0
  %v304 = vsel %vm152, %v72, 0
  %v307 = vsel %vm152, %v73, 0
  %v310 = vsel %vm152, %v74, 0
  %v313 = vsel %vm152, %v75, 0
  %v316 = vsel %vm152, %v76, 0
  %v319 = vsel %vm152, %v77, 0
  %v322 = vsel %vm152, %v78, 0
  %v325 = vsel %vm152, %v79, 0
  %v328 = vsel %vm152, %v80, 0
  %v331 = vsel %vm152, %v81, 0
  %v334 = vsel %vm152, %v82, 0
  %v337 = vsel %vm152, %v83, 0
  %v340 = vsel %vm152, %v84, 0
  %v343 = vsel %vm152, %v85, 0
  %v346 = vsel %vm152, %v86, 0
  %v349 = vsel %vm152, %v87, 0
  %v352 = vsel %vm152, %v88, 0
  %v355 = vsel %vm152, %v89, 0
  %v358 = vsel %vm152, %v90, 0
  %v361 = vsel %vm152, %v91, 0
  %v364 = vsel %vm152, %v92, 0
  %v367 = vsel %vm152, %v93, 0
  %v370 = vsel %vm152, %v94, 0
  %v373 = vsel %vm152, %v95, 0
  %v376 = vsel %vm152, %v96, 0
  %v379 = vsel %vm152, %v97, 0
  %v382 = vsel %vm152, %v98, 0
  %v385 = vsel %vm152, %v99, 0
  %v388 = vsel %vm152, %v100, 0
  %v391 = vsel %vm152, %v101, 0
  %v394 = vsel %vm152, %v102, 0
  %v397 = vsel %vm152, %v103, 0
  %v400 = vsel %vm152, %v104, 0
  %v403 = vsel %vm152, %v105, 0
  %v406 = vsel %vm152, %v106, 0
  %v409 = vsel %vm152, %v107, 0
  %v412 = vsel %vm152, %v108, 0
  %v415 = vsel %vm152, %v109, 0
  %v418 = vsel %vm152, %v110, 0
  %v421 = vsel %vm152, %v111, 0
  %v424 = vsel %vm152, %v112, 0
  %v427 = vsel %vm152, %v113, 0
  %v430 = vsel %vm152, %v114, 0
  %v433 = vsel %vm152, %v115, 0
  %v436 = vsel %vm152, %v116, 0
  %v439 = vsel %vm152, %v117, 0
  %v442 = vsel %vm152, %v118, 0
  %v445 = vsel %vm152, %v119, 0
  %v448 = vsel %vm152, %v120, 0
  %v451 = vsel %vm152, %v121, 0
  %v454 = vsel %vm152, %v122, 0
  %v457 = vsel %vm152, %v123, 0
  %v460 = vsel %vm152, %v124, 0
  %v463 = vsel %vm152, %v125, 0
  %v466 = vsel %vm152, %v126, 0
  %v469 = vsel %vm152, %v127, 0
  %v472 = vsel %vm152, %v128, 0
  %v475 = vsel %vm152, %v129, 0
  %v478 = vsel %vm152, %v130, 0
  %v481 = vsel %vm152, %v131, 0
  %v484 = vsel %vm152, %v132, 0
  %v487 = vsel %vm152, %v133, 0
  %v490 = vsel %vm152, %v134, 0
  %v493 = vsel %vm152, %v135, 0
  %v496 = vsel %vm152, %v136, 0
  %v499 = vsel %vm152, %v137, 0
  %v502 = vsel %vm152, %v138, 0
  %v505 = vsel %vm152, %v139, 0
  %v508 = vsel %vm152, %v140, 0
  %v511 = vsel %vm152, %v141, 0
  %v514 = vsel %vm152, %v142, 0
  %v517 = vsel %vm152, %v143, 0
  %v520 = vsel %vm152, %v144, 0
  %v523 = vsel %vm152, %v145, 0
  %v526 = vsel %vm152, %v146, 0
  %v529 = vsel %vm152, %v147, 0
  %v532 = vsel %vm152, %v148, 0
  %v535 = vsel %vm152, %v149, 0
  %vm537 = vcmask 1043456
  %v539 = vsel %vm537, %v151, 0
  %541 = vmatprep.subr.mxu0 0.0
  %542 = vmatpush1.msra.mxu0 %v150
  %543 = vmatprep.subr.mxu0 0.0
  %544 = vmatpush1.msra.mxu0 %v539
  %545 = vmatprep.subr.mxu0 0.0
  %546 = vmatpush1.msra.mxu0 0.0
  %547 = vmatprep.subr.mxu0 0.0
  %548 = vmatpush1.msra.mxu0 0.0
  %549 = vmatprep.subr.mxu0 0.0
  %550 = vmatpush1.msra.mxu0 0.0
  %551 = vmatprep.subr.mxu0 0.0
  %552 = vmatpush1.msra.mxu0 0.0
  %553 = vmatprep.subr.mxu0 0.0
  %554 = vmatpush1.msra.mxu0 0.0
  %555 = vmatprep.subr.mxu0 0.0
  %556 = vmatpush1.msra.mxu0 0.0
  %557 = vmatprep.subr.mxu0 0.0
  %558 = vmatpush1.msra.mxu0 0.0
  %559 = vmatprep.subr.mxu0 0.0
  %560 = vmatpush1.msra.mxu0 0.0
  %561 = vmatprep.subr.mxu0 0.0
  %562 = vmatpush1.msra.mxu0 0.0
  %563 = vmatprep.subr.mxu0 0.0
  %564 = vmatpush1.msra.mxu0 0.0
  %565 = vmatprep.subr.mxu0 0.0
  %566 = vmatpush1.msra.mxu0 0.0
  %567 = vmatprep.subr.mxu0 0.0
  %568 = vmatpush1.msra.mxu0 0.0
  %569 = vmatprep.subr.mxu0 0.0
  %570 = vmatpush1.msra.mxu0 0.0
  %571 = vmatprep.subr.mxu0 0.0
  %572 = vmatpush1.msra.mxu0 0.0
  %573 = vmatprep.subr.mxu0 0.0
  %574 = vmatpush1.msra.mxu0 0.0
  %575 = vmatprep.subr.mxu0 0.0
  %576 = vmatpush1.msra.mxu0 0.0
  %577 = vmatprep.subr.mxu0 0.0
  %578 = vmatpush1.msra.mxu0 0.0
  %579 = vmatprep.subr.mxu0 0.0
  %580 = vmatpush1.msra.mxu0 0.0
  %581 = vmatprep.subr.mxu0 0.0
  %582 = vmatpush1.msra.mxu0 0.0
  %583 = vmatprep.subr.mxu0 0.0
  %584 = vmatpush1.msra.mxu0 0.0
  %585 = vmatprep.subr.mxu0 0.0
  %586 = vmatpush1.msra.mxu0 0.0
  %587 = vmatprep.subr.mxu0 0.0
  %588 = vmatpush1.msra.mxu0 0.0
  %589 = vmatprep.subr.mxu0 0.0
  %590 = vmatpush1.msra.mxu0 0.0
  %591 = vmatprep.subr.mxu0 0.0
  %592 = vmatpush1.msra.mxu0 0.0
  %593 = vmatprep.subr.mxu0 0.0
  %594 = vmatpush1.msra.mxu0 0.0
  %595 = vmatprep.subr.mxu0 0.0
  %596 = vmatpush1.msra.mxu0 0.0
  %597 = vmatprep.subr.mxu0 0.0
  %598 = vmatpush1.msra.mxu0 0.0
  %599 = vmatprep.subr.mxu0 0.0
  %600 = vmatpush1.msra.mxu0 0.0
  %601 = vmatprep.subr.mxu0 0.0
  %602 = vmatpush1.msra.mxu0 0.0
  %603 = vmatprep.subr.mxu0 0.0
  %604 = vmatpush1.msra.mxu0 0.0
  %605 = vmatprep.mubr.f32.mxu0 0.0
  %606 = vmatmul.mubr.f32.gmra.mrb[0].mxu0 %v154
  %v607 = vpop.f32.mrb[0].mxu0
  %v608 = vadd.f32 0.0, %v607
  %v609 = vpop.f32.mrb[0].mxu0
  %610 = vmatprep.mubr.f32.mxu0 0.0
  %611 = vmatmul.mubr.f32.gmra.mrb[0].mxu0 %v157
  %v612 = vpop.f32.mrb[0].mxu0
  %v613 = vadd.f32 0.0, %v612
  %v614 = vpop.f32.mrb[0].mxu0
  %615 = vmatprep.mubr.f32.mxu0 0.0
  %616 = vmatmul.mubr.f32.gmra.mrb[0].mxu0 %v160
  %v617 = vpop.f32.mrb[0].mxu0
  %v618 = vadd.f32 0.0, %v617
  %v619 = vpop.f32.mrb[0].mxu0
  %620 = vmatprep.mubr.f32.mxu0 0.0
  %621 = vmatmul.mubr.f32.gmra.mrb[0].mxu0 %v163
  %v622 = vpop.f32.mrb[0].mxu0
  %v623 = vadd.f32 0.0, %v622
  %v624 = vpop.f32.mrb[0].mxu0
  %625 = vmatprep.mubr.f32.mxu0 0.0
  %626 = vmatmul.mubr.f32.gmra.mrb[0].mxu0 %v166
  %v627 = vpop.f32.mrb[0].mxu0
  %v628 = vadd.f32 0.0, %v627
  %v629 = vpop.f32.mrb[0].mxu0
  %630 = vmatprep.mubr.f32.mxu0 0.0
  %631 = vmatmul.mubr.f32.gmra.mrb[0].mxu0 %v169
  %v632 = vpop.f32.mrb[0].mxu0
  %v633 = vadd.f32 0.0, %v632
  %v634 = vpop.f32.mrb[0].mxu0
  %635 = vmatprep.mubr.f32.mxu0 0.0
  %636 = vmatmul.mubr.f32.gmra.mrb[0].mxu0 %v172
  %v637 = vpop.f32.mrb[0].mxu0
  %v638 = vadd.f32 0.0, %v637
  %v639 = vpop.f32.mrb[0].mxu0
  %640 = vmatprep.mubr.f32.mxu0 0.0
  %641 = vmatmul.mubr.f32.gmra.mrb[0].mxu0 %v175
  %v642 = vpop.f32.mrb[0].mxu0
  %v643 = vadd.f32 0.0, %v642
  %v644 = vpop.f32.mrb[0].mxu0
  %645 = vmatprep.mubr.f32.mxu0 0.0
  %646 = vmatmul.mubr.f32.gmra.mrb[0].mxu0 %v178
  %v647 = vpop.f32.mrb[0].mxu0
  %v648 = vadd.f32 0.0, %v647
  %v649 = vpop.f32.mrb[0].mxu0
  %650 = vmatprep.mubr.f32.mxu0 0.0
  %651 = vmatmul.mubr.f32.gmra.mrb[0].mxu0 %v181
  %v652 = vpop.f32.mrb[0].mxu0
  %v653 = vadd.f32 0.0, %v652
  %v654 = vpop.f32.mrb[0].mxu0
  %655 = vmatprep.mubr.f32.mxu0 0.0
  %656 = vmatmul.mubr.f32.gmra.mrb[0].mxu0 %v184
  %v657 = vpop.f32.mrb[0].mxu0
  %v658 = vadd.f32 0.0, %v657
  %v659 = vpop.f32.mrb[0].mxu0
  %660 = vmatprep.mubr.f32.mxu0 0.0
  %661 = vmatmul.mubr.f32.gmra.mrb[0].mxu0 %v187
  %v662 = vpop.f32.mrb[0].mxu0
  %v663 = vadd.f32 0.0, %v662
  %v664 = vpop.f32.mrb[0].mxu0
  %665 = vmatprep.mubr.f32.mxu0 0.0
  %666 = vmatmul.mubr.f32.gmra.mrb[0].mxu0 %v190
  %v667 = vpop.f32.mrb[0].mxu0
  %v668 = vadd.f32 0.0, %v667
  %v669 = vpop.f32.mrb[0].mxu0
  %670 = vmatprep.mubr.f32.mxu0 0.0
  %671 = vmatmul.mubr.f32.gmra.mrb[0].mxu0 %v193
  %v672 = vpop.f32.mrb[0].mxu0
  %v673 = vadd.f32 0.0, %v672
  %v674 = vpop.f32.mrb[0].mxu0
  %675 = vmatprep.mubr.f32.mxu0 0.0
  %676 = vmatmul.mubr.f32.gmra.mrb[0].mxu0 %v196
  %v677 = vpop.f32.mrb[0].mxu0
  %v678 = vadd.f32 0.0, %v677
  %v679 = vpop.f32.mrb[0].mxu0
  %680 = vmatprep.mubr.f32.mxu0 0.0
  %681 = vmatmul.mubr.f32.gmra.mrb[0].mxu0 %v199
  %v682 = vpop.f32.mrb[0].mxu0
  %v683 = vadd.f32 0.0, %v682
  %v684 = vpop.f32.mrb[0].mxu0
  %685 = vmatprep.mubr.f32.mxu0 0.0
  %686 = vmatmul.mubr.f32.gmra.mrb[0].mxu0 %v202
  %v687 = vpop.f32.mrb[0].mxu0
  %v688 = vadd.f32 0.0, %v687
  %v689 = vpop.f32.mrb[0].mxu0
  %690 = vmatprep.mubr.f32.mxu0 0.0
  %691 = vmatmul.mubr.f32.gmra.mrb[0].mxu0 %v205
  %v692 = vpop.f32.mrb[0].mxu0
  %v693 = vadd.f32 0.0, %v692
  %v694 = vpop.f32.mrb[0].mxu0
  %695 = vmatprep.mubr.f32.mxu0 0.0
  %696 = vmatmul.mubr.f32.gmra.mrb[0].mxu0 %v208
  %v697 = vpop.f32.mrb[0].mxu0
  %v698 = vadd.f32 0.0, %v697
  %v699 = vpop.f32.mrb[0].mxu0
  %700 = vmatprep.mubr.f32.mxu0 0.0
  %701 = vmatmul.mubr.f32.gmra.mrb[0].mxu0 %v211
  %v702 = vpop.f32.mrb[0].mxu0
  %v703 = vadd.f32 0.0, %v702
  %v704 = vpop.f32.mrb[0].mxu0
  %705 = vmatprep.mubr.f32.mxu0 0.0
  %706 = vmatmul.mubr.f32.gmra.mrb[0].mxu0 %v214
  %v707 = vpop.f32.mrb[0].mxu0
  %v708 = vadd.f32 0.0, %v707
  %v709 = vpop.f32.mrb[0].mxu0
  %710 = vmatprep.mubr.f32.mxu0 0.0
  %711 = vmatmul.mubr.f32.gmra.mrb[0].mxu0 %v217
  %v712 = vpop.f32.mrb[0].mxu0
  %v713 = vadd.f32 0.0, %v712
  %v714 = vpop.f32.mrb[0].mxu0
  %715 = vmatprep.mubr.f32.mxu0 0.0
  %716 = vmatmul.mubr.f32.gmra.mrb[0].mxu0 %v220
  %v717 = vpop.f32.mrb[0].mxu0
  %v718 = vadd.f32 0.0, %v717
  %v719 = vpop.f32.mrb[0].mxu0
  %720 = vmatprep.mubr.f32.mxu0 0.0
  %721 = vmatmul.mubr.f32.gmra.mrb[0].mxu0 %v223
  %v722 = vpop.f32.mrb[0].mxu0
  %v723 = vadd.f32 0.0, %v722
  %v724 = vpop.f32.mrb[0].mxu0
  %725 = vmatprep.mubr.f32.mxu0 0.0
  %726 = vmatmul.mubr.f32.gmra.mrb[0].mxu0 %v226
  %v727 = vpop.f32.mrb[0].mxu0
  %v728 = vadd.f32 0.0, %v727
  %v729 = vpop.f32.mrb[0].mxu0
  %730 = vmatprep.mubr.f32.mxu0 0.0
  %731 = vmatmul.mubr.f32.gmra.mrb[0].mxu0 %v229
  %v732 = vpop.f32.mrb[0].mxu0
  %v733 = vadd.f32 0.0, %v732
  %v734 = vpop.f32.mrb[0].mxu0
  %735 = vmatprep.mubr.f32.mxu0 0.0
  %736 = vmatmul.mubr.f32.gmra.mrb[0].mxu0 %v232
  %v737 = vpop.f32.mrb[0].mxu0
  %v738 = vadd.f32 0.0, %v737
  %v739 = vpop.f32.mrb[0].mxu0
  %740 = vmatprep.mubr.f32.mxu0 0.0
  %741 = vmatmul.mubr.f32.gmra.mrb[0].mxu0 %v235
  %v742 = vpop.f32.mrb[0].mxu0
  %v743 = vadd.f32 0.0, %v742
  %v744 = vpop.f32.mrb[0].mxu0
  %745 = vmatprep.mubr.f32.mxu0 0.0
  %746 = vmatmul.mubr.f32.gmra.mrb[0].mxu0 %v238
  %v747 = vpop.f32.mrb[0].mxu0
  %v748 = vadd.f32 0.0, %v747
  %v749 = vpop.f32.mrb[0].mxu0
  %750 = vmatprep.mubr.f32.mxu0 0.0
  %751 = vmatmul.mubr.f32.gmra.mrb[0].mxu0 %v241
  %v752 = vpop.f32.mrb[0].mxu0
  %v753 = vadd.f32 0.0, %v752
  %v754 = vpop.f32.mrb[0].mxu0
  %755 = vmatprep.mubr.f32.mxu0 0.0
  %756 = vmatmul.mubr.f32.gmra.mrb[0].mxu0 %v244
  %v757 = vpop.f32.mrb[0].mxu0
  %v758 = vadd.f32 0.0, %v757
  %v759 = vpop.f32.mrb[0].mxu0
  %760 = vmatprep.mubr.f32.mxu0 0.0
  %761 = vmatmul.mubr.f32.gmra.mrb[0].mxu0 %v247
  %v762 = vpop.f32.mrb[0].mxu0
  %v763 = vadd.f32 0.0, %v762
  %v764 = vpop.f32.mrb[0].mxu0
  %765 = vmatprep.mubr.f32.mxu0 0.0
  %766 = vmatmul.mubr.f32.gmra.mrb[0].mxu0 %v250
  %v767 = vpop.f32.mrb[0].mxu0
  %v768 = vadd.f32 0.0, %v767
  %v769 = vpop.f32.mrb[0].mxu0
  %770 = vmatprep.mubr.f32.mxu0 0.0
  %771 = vmatmul.mubr.f32.gmra.mrb[0].mxu0 %v253
  %v772 = vpop.f32.mrb[0].mxu0
  %v773 = vadd.f32 0.0, %v772
  %v774 = vpop.f32.mrb[0].mxu0
  %775 = vmatprep.mubr.f32.mxu0 0.0
  %776 = vmatmul.mubr.f32.gmra.mrb[0].mxu0 %v256
  %v777 = vpop.f32.mrb[0].mxu0
  %v778 = vadd.f32 0.0, %v777
  %v779 = vpop.f32.mrb[0].mxu0
  %780 = vmatprep.mubr.f32.mxu0 0.0
  %781 = vmatmul.mubr.f32.gmra.mrb[0].mxu0 %v259
  %v782 = vpop.f32.mrb[0].mxu0
  %v783 = vadd.f32 0.0, %v782
  %v784 = vpop.f32.mrb[0].mxu0
  %785 = vmatprep.mubr.f32.mxu0 0.0
  %786 = vmatmul.mubr.f32.gmra.mrb[0].mxu0 %v262
  %v787 = vpop.f32.mrb[0].mxu0
  %v788 = vadd.f32 0.0, %v787
  %v789 = vpop.f32.mrb[0].mxu0
  %790 = vmatprep.mubr.f32.mxu0 0.0
  %791 = vmatmul.mubr.f32.gmra.mrb[0].mxu0 %v265
  %v792 = vpop.f32.mrb[0].mxu0
  %v793 = vadd.f32 0.0, %v792
  %v794 = vpop.f32.mrb[0].mxu0
  %795 = vmatprep.mubr.f32.mxu0 0.0
  %796 = vmatmul.mubr.f32.gmra.mrb[0].mxu0 %v268
  %v797 = vpop.f32.mrb[0].mxu0
  %v798 = vadd.f32 0.0, %v797
  %v799 = vpop.f32.mrb[0].mxu0
  %800 = vmatprep.mubr.f32.mxu0 0.0
  %801 = vmatmul.mubr.f32.gmra.mrb[0].mxu0 %v271
  %v802 = vpop.f32.mrb[0].mxu0
  %v803 = vadd.f32 0.0, %v802
  %v804 = vpop.f32.mrb[0].mxu0
  %805 = vmatprep.mubr.f32.mxu0 0.0
  %806 = vmatmul.mubr.f32.gmra.mrb[0].mxu0 %v274
  %v807 = vpop.f32.mrb[0].mxu0
  %v808 = vadd.f32 0.0, %v807
  %v809 = vpop.f32.mrb[0].mxu0
  %810 = vmatprep.mubr.f32.mxu0 0.0
  %811 = vmatmul.mubr.f32.gmra.mrb[0].mxu0 %v277
  %v812 = vpop.f32.mrb[0].mxu0
  %v813 = vadd.f32 0.0, %v812
  %v814 = vpop.f32.mrb[0].mxu0
  %815 = vmatprep.mubr.f32.mxu0 0.0
  %816 = vmatmul.mubr.f32.gmra.mrb[0].mxu0 %v280
  %v817 = vpop.f32.mrb[0].mxu0
  %v818 = vadd.f32 0.0, %v817
  %v819 = vpop.f32.mrb[0].mxu0
  %820 = vmatprep.mubr.f32.mxu0 0.0
  %821 = vmatmul.mubr.f32.gmra.mrb[0].mxu0 %v283
  %v822 = vpop.f32.mrb[0].mxu0
  %v823 = vadd.f32 0.0, %v822
  %v824 = vpop.f32.mrb[0].mxu0
  %825 = vmatprep.mubr.f32.mxu0 0.0
  %826 = vmatmul.mubr.f32.gmra.mrb[0].mxu0 %v286
  %v827 = vpop.f32.mrb[0].mxu0
  %v828 = vadd.f32 0.0, %v827
  %v829 = vpop.f32.mrb[0].mxu0
  %830 = vmatprep.mubr.f32.mxu0 0.0
  %831 = vmatmul.mubr.f32.gmra.mrb[0].mxu0 %v289
  %v832 = vpop.f32.mrb[0].mxu0
  %v833 = vadd.f32 0.0, %v832
  %v834 = vpop.f32.mrb[0].mxu0
  %835 = vmatprep.mubr.f32.mxu0 0.0
  %836 = vmatmul.mubr.f32.gmra.mrb[0].mxu0 %v292
  %v837 = vpop.f32.mrb[0].mxu0
  %v838 = vadd.f32 0.0, %v837
  %v839 = vpop.f32.mrb[0].mxu0
  %840 = vmatprep.mubr.f32.mxu0 0.0
  %841 = vmatmul.mubr.f32.gmra.mrb[0].mxu0 %v295
  %v842 = vpop.f32.mrb[0].mxu0
  %v843 = vadd.f32 0.0, %v842
  %v844 = vpop.f32.mrb[0].mxu0
  %845 = vmatprep.mubr.f32.mxu0 0.0
  %846 = vmatmul.mubr.f32.gmra.mrb[0].mxu0 %v298
  %v847 = vpop.f32.mrb[0].mxu0
  %v848 = vadd.f32 0.0, %v847
  %v849 = vpop.f32.mrb[0].mxu0
  %850 = vmatprep.mubr.f32.mxu0 0.0
  %851 = vmatmul.mubr.f32.gmra.mrb[0].mxu0 %v301
  %v852 = vpop.f32.mrb[0].mxu0
  %v853 = vadd.f32 0.0, %v852
  %v854 = vpop.f32.mrb[0].mxu0
  %855 = vmatprep.mubr.f32.mxu0 0.0
  %856 = vmatmul.mubr.f32.gmra.mrb[0].mxu0 %v304
  %v857 = vpop.f32.mrb[0].mxu0
  %v858 = vadd.f32 0.0, %v857
  %v859 = vpop.f32.mrb[0].mxu0
  %860 = vmatprep.mubr.f32.mxu0 0.0
  %861 = vmatmul.mubr.f32.gmra.mrb[0].mxu0 %v307
  %v862 = vpop.f32.mrb[0].mxu0
  %v863 = vadd.f32 0.0, %v862
  %v864 = vpop.f32.mrb[0].mxu0
  %865 = vmatprep.mubr.f32.mxu0 0.0
  %866 = vmatmul.mubr.f32.gmra.mrb[0].mxu0 %v310
  %v867 = vpop.f32.mrb[0].mxu0
  %v868 = vadd.f32 0.0, %v867
  %v869 = vpop.f32.mrb[0].mxu0
  %870 = vmatprep.mubr.f32.mxu0 0.0
  %871 = vmatmul.mubr.f32.gmra.mrb[0].mxu0 %v313
  %v872 = vpop.f32.mrb[0].mxu0
  %v873 = vadd.f32 0.0, %v872
  %v874 = vpop.f32.mrb[0].mxu0
  %875 = vmatprep.mubr.f32.mxu0 0.0
  %876 = vmatmul.mubr.f32.gmra.mrb[0].mxu0 %v316
  %v877 = vpop.f32.mrb[0].mxu0
  %v878 = vadd.f32 0.0, %v877
  %v879 = vpop.f32.mrb[0].mxu0
  %880 = vmatprep.mubr.f32.mxu0 0.0
  %881 = vmatmul.mubr.f32.gmra.mrb[0].mxu0 %v319
  %v882 = vpop.f32.mrb[0].mxu0
  %v883 = vadd.f32 0.0, %v882
  %v884 = vpop.f32.mrb[0].mxu0
  %885 = vmatprep.mubr.f32.mxu0 0.0
  %886 = vmatmul.mubr.f32.gmra.mrb[0].mxu0 %v322
  %v887 = vpop.f32.mrb[0].mxu0
  %v888 = vadd.f32 0.0, %v887
  %v889 = vpop.f32.mrb[0].mxu0
  %890 = vmatprep.mubr.f32.mxu0 0.0
  %891 = vmatmul.mubr.f32.gmra.mrb[0].mxu0 %v325
  %v892 = vpop.f32.mrb[0].mxu0
  %v893 = vadd.f32 0.0, %v892
  %v894 = vpop.f32.mrb[0].mxu0
  %895 = vmatprep.mubr.f32.mxu0 0.0
  %896 = vmatmul.mubr.f32.gmra.mrb[0].mxu0 %v328
  %v897 = vpop.f32.mrb[0].mxu0
  %v898 = vadd.f32 0.0, %v897
  %v899 = vpop.f32.mrb[0].mxu0
  %900 = vmatprep.mubr.f32.mxu0 0.0
  %901 = vmatmul.mubr.f32.gmra.mrb[0].mxu0 %v331
  %v902 = vpop.f32.mrb[0].mxu0
  %v903 = vadd.f32 0.0, %v902
  %v904 = vpop.f32.mrb[0].mxu0
  %905 = vmatprep.mubr.f32.mxu0 0.0
  %906 = vmatmul.mubr.f32.gmra.mrb[0].mxu0 %v334
  %v907 = vpop.f32.mrb[0].mxu0
  %v908 = vadd.f32 0.0, %v907
  %v909 = vpop.f32.mrb[0].mxu0
  %910 = vmatprep.mubr.f32.mxu0 0.0
  %911 = vmatmul.mubr.f32.gmra.mrb[0].mxu0 %v337
  %v912 = vpop.f32.mrb[0].mxu0
  %v913 = vadd.f32 0.0, %v912
  %v914 = vpop.f32.mrb[0].mxu0
  %915 = vmatprep.mubr.f32.mxu0 0.0
  %916 = vmatmul.mubr.f32.gmra.mrb[0].mxu0 %v340
  %v917 = vpop.f32.mrb[0].mxu0
  %v918 = vadd.f32 0.0, %v917
  %v919 = vpop.f32.mrb[0].mxu0
  %920 = vmatprep.mubr.f32.mxu0 0.0
  %921 = vmatmul.mubr.f32.gmra.mrb[0].mxu0 %v343
  %v922 = vpop.f32.mrb[0].mxu0
  %v923 = vadd.f32 0.0, %v922
  %v924 = vpop.f32.mrb[0].mxu0
  %925 = vmatprep.mubr.f32.mxu0 0.0
  %926 = vmatmul.mubr.f32.gmra.mrb[0].mxu0 %v346
  %v927 = vpop.f32.mrb[0].mxu0
  %v928 = vadd.f32 0.0, %v927
  %v929 = vpop.f32.mrb[0].mxu0
  %930 = vmatprep.mubr.f32.mxu0 0.0
  %931 = vmatmul.mubr.f32.gmra.mrb[0].mxu0 %v349
  %v932 = vpop.f32.mrb[0].mxu0
  %v933 = vadd.f32 0.0, %v932
  %v934 = vpop.f32.mrb[0].mxu0
  %935 = vmatprep.mubr.f32.mxu0 0.0
  %936 = vmatmul.mubr.f32.gmra.mrb[0].mxu0 %v352
  %v937 = vpop.f32.mrb[0].mxu0
  %v938 = vadd.f32 0.0, %v937
  %v939 = vpop.f32.mrb[0].mxu0
  %940 = vmatprep.mubr.f32.mxu0 0.0
  %941 = vmatmul.mubr.f32.gmra.mrb[0].mxu0 %v355
  %v942 = vpop.f32.mrb[0].mxu0
  %v943 = vadd.f32 0.0, %v942
  %v944 = vpop.f32.mrb[0].mxu0
  %945 = vmatprep.mubr.f32.mxu0 0.0
  %946 = vmatmul.mubr.f32.gmra.mrb[0].mxu0 %v358
  %v947 = vpop.f32.mrb[0].mxu0
  %v948 = vadd.f32 0.0, %v947
  %v949 = vpop.f32.mrb[0].mxu0
  %950 = vmatprep.mubr.f32.mxu0 0.0
  %951 = vmatmul.mubr.f32.gmra.mrb[0].mxu0 %v361
  %v952 = vpop.f32.mrb[0].mxu0
  %v953 = vadd.f32 0.0, %v952
  %v954 = vpop.f32.mrb[0].mxu0
  %955 = vmatprep.mubr.f32.mxu0 0.0
  %956 = vmatmul.mubr.f32.gmra.mrb[0].mxu0 %v364
  %v957 = vpop.f32.mrb[0].mxu0
  %v958 = vadd.f32 0.0, %v957
  %v959 = vpop.f32.mrb[0].mxu0
  %960 = vmatprep.mubr.f32.mxu0 0.0
  %961 = vmatmul.mubr.f32.gmra.mrb[0].mxu0 %v367
  %v962 = vpop.f32.mrb[0].mxu0
  %v963 = vadd.f32 0.0, %v962
  %v964 = vpop.f32.mrb[0].mxu0
  %965 = vmatprep.mubr.f32.mxu0 0.0
  %966 = vmatmul.mubr.f32.gmra.mrb[0].mxu0 %v370
  %v967 = vpop.f32.mrb[0].mxu0
  %v968 = vadd.f32 0.0, %v967
  %v969 = vpop.f32.mrb[0].mxu0
  %970 = vmatprep.mubr.f32.mxu0 0.0
  %971 = vmatmul.mubr.f32.gmra.mrb[0].mxu0 %v373
  %v972 = vpop.f32.mrb[0].mxu0
  %v973 = vadd.f32 0.0, %v972
  %v974 = vpop.f32.mrb[0].mxu0
  %975 = vmatprep.mubr.f32.mxu0 0.0
  %976 = vmatmul.mubr.f32.gmra.mrb[0].mxu0 %v376
  %v977 = vpop.f32.mrb[0].mxu0
  %v978 = vadd.f32 0.0, %v977
  %v979 = vpop.f32.mrb[0].mxu0
  %980 = vmatprep.mubr.f32.mxu0 0.0
  %981 = vmatmul.mubr.f32.gmra.mrb[0].mxu0 %v379
  %v982 = vpop.f32.mrb[0].mxu0
  %v983 = vadd.f32 0.0, %v982
  %v984 = vpop.f32.mrb[0].mxu0
  %985 = vmatprep.mubr.f32.mxu0 0.0
  %986 = vmatmul.mubr.f32.gmra.mrb[0].mxu0 %v382
  %v987 = vpop.f32.mrb[0].mxu0
  %v988 = vadd.f32 0.0, %v987
  %v989 = vpop.f32.mrb[0].mxu0
  %990 = vmatprep.mubr.f32.mxu0 0.0
  %991 = vmatmul.mubr.f32.gmra.mrb[0].mxu0 %v385
  %v992 = vpop.f32.mrb[0].mxu0
  %v993 = vadd.f32 0.0, %v992
  %v994 = vpop.f32.mrb[0].mxu0
  %995 = vmatprep.mubr.f32.mxu0 0.0
  %996 = vmatmul.mubr.f32.gmra.mrb[0].mxu0 %v388
  %v997 = vpop.f32.mrb[0].mxu0
  %v998 = vadd.f32 0.0, %v997
  %v999 = vpop.f32.mrb[0].mxu0
  %1000 = vmatprep.mubr.f32.mxu0 0.0
  %1001 = vmatmul.mubr.f32.gmra.mrb[0].mxu0 %v391
  %v1002 = vpop.f32.mrb[0].mxu0
  %v1003 = vadd.f32 0.0, %v1002
  %v1004 = vpop.f32.mrb[0].mxu0
  %1005 = vmatprep.mubr.f32.mxu0 0.0
  %1006 = vmatmul.mubr.f32.gmra.mrb[0].mxu0 %v394
  %v1007 = vpop.f32.mrb[0].mxu0
  %v1008 = vadd.f32 0.0, %v1007
  %v1009 = vpop.f32.mrb[0].mxu0
  %1010 = vmatprep.mubr.f32.mxu0 0.0
  %1011 = vmatmul.mubr.f32.gmra.mrb[0].mxu0 %v397
  %v1012 = vpop.f32.mrb[0].mxu0
  %v1013 = vadd.f32 0.0, %v1012
  %v1014 = vpop.f32.mrb[0].mxu0
  %1015 = vmatprep.mubr.f32.mxu0 0.0
  %1016 = vmatmul.mubr.f32.gmra.mrb[0].mxu0 %v400
  %v1017 = vpop.f32.mrb[0].mxu0
  %v1018 = vadd.f32 0.0, %v1017
  %v1019 = vpop.f32.mrb[0].mxu0
  %1020 = vmatprep.mubr.f32.mxu0 0.0
  %1021 = vmatmul.mubr.f32.gmra.mrb[0].mxu0 %v403
  %v1022 = vpop.f32.mrb[0].mxu0
  %v1023 = vadd.f32 0.0, %v1022
  %v1024 = vpop.f32.mrb[0].mxu0
  %1025 = vmatprep.mubr.f32.mxu0 0.0
  %1026 = vmatmul.mubr.f32.gmra.mrb[0].mxu0 %v406
  %v1027 = vpop.f32.mrb[0].mxu0
  %v1028 = vadd.f32 0.0, %v1027
  %v1029 = vpop.f32.mrb[0].mxu0
  %1030 = vmatprep.mubr.f32.mxu0 0.0
  %1031 = vmatmul.mubr.f32.gmra.mrb[0].mxu0 %v409
  %v1032 = vpop.f32.mrb[0].mxu0
  %v1033 = vadd.f32 0.0, %v1032
  %v1034 = vpop.f32.mrb[0].mxu0
  %1035 = vmatprep.mubr.f32.mxu0 0.0
  %1036 = vmatmul.mubr.f32.gmra.mrb[0].mxu0 %v412
  %v1037 = vpop.f32.mrb[0].mxu0
  %v1038 = vadd.f32 0.0, %v1037
  %v1039 = vpop.f32.mrb[0].mxu0
  %1040 = vmatprep.mubr.f32.mxu0 0.0
  %1041 = vmatmul.mubr.f32.gmra.mrb[0].mxu0 %v415
  %v1042 = vpop.f32.mrb[0].mxu0
  %v1043 = vadd.f32 0.0, %v1042
  %v1044 = vpop.f32.mrb[0].mxu0
  %1045 = vmatprep.mubr.f32.mxu0 0.0
  %1046 = vmatmul.mubr.f32.gmra.mrb[0].mxu0 %v418
  %v1047 = vpop.f32.mrb[0].mxu0
  %v1048 = vadd.f32 0.0, %v1047
  %v1049 = vpop.f32.mrb[0].mxu0
  %1050 = vmatprep.mubr.f32.mxu0 0.0
  %1051 = vmatmul.mubr.f32.gmra.mrb[0].mxu0 %v421
  %v1052 = vpop.f32.mrb[0].mxu0
  %v1053 = vadd.f32 0.0, %v1052
  %v1054 = vpop.f32.mrb[0].mxu0
  %1055 = vmatprep.mubr.f32.mxu0 0.0
  %1056 = vmatmul.mubr.f32.gmra.mrb[0].mxu0 %v424
  %v1057 = vpop.f32.mrb[0].mxu0
  %v1058 = vadd.f32 0.0, %v1057
  %v1059 = vpop.f32.mrb[0].mxu0
  %1060 = vmatprep.mubr.f32.mxu0 0.0
  %1061 = vmatmul.mubr.f32.gmra.mrb[0].mxu0 %v427
  %v1062 = vpop.f32.mrb[0].mxu0
  %v1063 = vadd.f32 0.0, %v1062
  %v1064 = vpop.f32.mrb[0].mxu0
  %1065 = vmatprep.mubr.f32.mxu0 0.0
  %1066 = vmatmul.mubr.f32.gmra.mrb[0].mxu0 %v430
  %v1067 = vpop.f32.mrb[0].mxu0
  %v1068 = vadd.f32 0.0, %v1067
  %v1069 = vpop.f32.mrb[0].mxu0
  %1070 = vmatprep.mubr.f32.mxu0 0.0
  %1071 = vmatmul.mubr.f32.gmra.mrb[0].mxu0 %v433
  %v1072 = vpop.f32.mrb[0].mxu0
  %v1073 = vadd.f32 0.0, %v1072
  %v1074 = vpop.f32.mrb[0].mxu0
  %1075 = vmatprep.mubr.f32.mxu0 0.0
  %1076 = vmatmul.mubr.f32.gmra.mrb[0].mxu0 %v436
  %v1077 = vpop.f32.mrb[0].mxu0
  %v1078 = vadd.f32 0.0, %v1077
  %v1079 = vpop.f32.mrb[0].mxu0
  %1080 = vmatprep.mubr.f32.mxu0 0.0
  %1081 = vmatmul.mubr.f32.gmra.mrb[0].mxu0 %v439
  %v1082 = vpop.f32.mrb[0].mxu0
  %v1083 = vadd.f32 0.0, %v1082
  %v1084 = vpop.f32.mrb[0].mxu0
  %1085 = vmatprep.mubr.f32.mxu0 0.0
  %1086 = vmatmul.mubr.f32.gmra.mrb[0].mxu0 %v442
  %v1087 = vpop.f32.mrb[0].mxu0
  %v1088 = vadd.f32 0.0, %v1087
  %v1089 = vpop.f32.mrb[0].mxu0
  %1090 = vmatprep.mubr.f32.mxu0 0.0
  %1091 = vmatmul.mubr.f32.gmra.mrb[0].mxu0 %v445
  %v1092 = vpop.f32.mrb[0].mxu0
  %v1093 = vadd.f32 0.0, %v1092
  %v1094 = vpop.f32.mrb[0].mxu0
  %1095 = vmatprep.mubr.f32.mxu0 0.0
  %1096 = vmatmul.mubr.f32.gmra.mrb[0].mxu0 %v448
  %v1097 = vpop.f32.mrb[0].mxu0
  %v1098 = vadd.f32 0.0, %v1097
  %v1099 = vpop.f32.mrb[0].mxu0
  %1100 = vmatprep.mubr.f32.mxu0 0.0
  %1101 = vmatmul.mubr.f32.gmra.mrb[0].mxu0 %v451
  %v1102 = vpop.f32.mrb[0].mxu0
  %v1103 = vadd.f32 0.0, %v1102
  %v1104 = vpop.f32.mrb[0].mxu0
  %1105 = vmatprep.mubr.f32.mxu0 0.0
  %1106 = vmatmul.mubr.f32.gmra.mrb[0].mxu0 %v454
  %v1107 = vpop.f32.mrb[0].mxu0
  %v1108 = vadd.f32 0.0, %v1107
  %v1109 = vpop.f32.mrb[0].mxu0
  %1110 = vmatprep.mubr.f32.mxu0 0.0
  %1111 = vmatmul.mubr.f32.gmra.mrb[0].mxu0 %v457
  %v1112 = vpop.f32.mrb[0].mxu0
  %v1113 = vadd.f32 0.0, %v1112
  %v1114 = vpop.f32.mrb[0].mxu0
  %1115 = vmatprep.mubr.f32.mxu0 0.0
  %1116 = vmatmul.mubr.f32.gmra.mrb[0].mxu0 %v460
  %v1117 = vpop.f32.mrb[0].mxu0
  %v1118 = vadd.f32 0.0, %v1117
  %v1119 = vpop.f32.mrb[0].mxu0
  %1120 = vmatprep.mubr.f32.mxu0 0.0
  %1121 = vmatmul.mubr.f32.gmra.mrb[0].mxu0 %v463
  %v1122 = vpop.f32.mrb[0].mxu0
  %v1123 = vadd.f32 0.0, %v1122
  %v1124 = vpop.f32.mrb[0].mxu0
  %1125 = vmatprep.mubr.f32.mxu0 0.0
  %1126 = vmatmul.mubr.f32.gmra.mrb[0].mxu0 %v466
  %v1127 = vpop.f32.mrb[0].mxu0
  %v1128 = vadd.f32 0.0, %v1127
  %v1129 = vpop.f32.mrb[0].mxu0
  %1130 = vmatprep.mubr.f32.mxu0 0.0
  %1131 = vmatmul.mubr.f32.gmra.mrb[0].mxu0 %v469
  %v1132 = vpop.f32.mrb[0].mxu0
  %v1133 = vadd.f32 0.0, %v1132
  %v1134 = vpop.f32.mrb[0].mxu0
  %1135 = vmatprep.mubr.f32.mxu0 0.0
  %1136 = vmatmul.mubr.f32.gmra.mrb[0].mxu0 %v472
  %v1137 = vpop.f32.mrb[0].mxu0
  %v1138 = vadd.f32 0.0, %v1137
  %v1139 = vpop.f32.mrb[0].mxu0
  %1140 = vmatprep.mubr.f32.mxu0 0.0
  %1141 = vmatmul.mubr.f32.gmra.mrb[0].mxu0 %v475
  %v1142 = vpop.f32.mrb[0].mxu0
  %v1143 = vadd.f32 0.0, %v1142
  %v1144 = vpop.f32.mrb[0].mxu0
  %1145 = vmatprep.mubr.f32.mxu0 0.0
  %1146 = vmatmul.mubr.f32.gmra.mrb[0].mxu0 %v478
  %v1147 = vpop.f32.mrb[0].mxu0
  %v1148 = vadd.f32 0.0, %v1147
  %v1149 = vpop.f32.mrb[0].mxu0
  %1150 = vmatprep.mubr.f32.mxu0 0.0
  %1151 = vmatmul.mubr.f32.gmra.mrb[0].mxu0 %v481
  %v1152 = vpop.f32.mrb[0].mxu0
  %v1153 = vadd.f32 0.0, %v1152
  %v1154 = vpop.f32.mrb[0].mxu0
  %1155 = vmatprep.mubr.f32.mxu0 0.0
  %1156 = vmatmul.mubr.f32.gmra.mrb[0].mxu0 %v484
  %v1157 = vpop.f32.mrb[0].mxu0
  %v1158 = vadd.f32 0.0, %v1157
  %v1159 = vpop.f32.mrb[0].mxu0
  %1160 = vmatprep.mubr.f32.mxu0 0.0
  %1161 = vmatmul.mubr.f32.gmra.mrb[0].mxu0 %v487
  %v1162 = vpop.f32.mrb[0].mxu0
  %v1163 = vadd.f32 0.0, %v1162
  %v1164 = vpop.f32.mrb[0].mxu0
  %1165 = vmatprep.mubr.f32.mxu0 0.0
  %1166 = vmatmul.mubr.f32.gmra.mrb[0].mxu0 %v490
  %v1167 = vpop.f32.mrb[0].mxu0
  %v1168 = vadd.f32 0.0, %v1167
  %v1169 = vpop.f32.mrb[0].mxu0
  %1170 = vmatprep.mubr.f32.mxu0 0.0
  %1171 = vmatmul.mubr.f32.gmra.mrb[0].mxu0 %v493
  %v1172 = vpop.f32.mrb[0].mxu0
  %v1173 = vadd.f32 0.0, %v1172
  %v1174 = vpop.f32.mrb[0].mxu0
  %1175 = vmatprep.mubr.f32.mxu0 0.0
  %1176 = vmatmul.mubr.f32.gmra.mrb[0].mxu0 %v496
  %v1177 = vpop.f32.mrb[0].mxu0
  %v1178 = vadd.f32 0.0, %v1177
  %v1179 = vpop.f32.mrb[0].mxu0
  %1180 = vmatprep.mubr.f32.mxu0 0.0
  %1181 = vmatmul.mubr.f32.gmra.mrb[0].mxu0 %v499
  %v1182 = vpop.f32.mrb[0].mxu0
  %v1183 = vadd.f32 0.0, %v1182
  %v1184 = vpop.f32.mrb[0].mxu0
  %1185 = vmatprep.mubr.f32.mxu0 0.0
  %1186 = vmatmul.mubr.f32.gmra.mrb[0].mxu0 %v502
  %v1187 = vpop.f32.mrb[0].mxu0
  %v1188 = vadd.f32 0.0, %v1187
  %v1189 = vpop.f32.mrb[0].mxu0
  %1190 = vmatprep.mubr.f32.mxu0 0.0
  %1191 = vmatmul.mubr.f32.gmra.mrb[0].mxu0 %v505
  %v1192 = vpop.f32.mrb[0].mxu0
  %v1193 = vadd.f32 0.0, %v1192
  %v1194 = vpop.f32.mrb[0].mxu0
  %1195 = vmatprep.mubr.f32.mxu0 0.0
  %1196 = vmatmul.mubr.f32.gmra.mrb[0].mxu0 %v508
  %v1197 = vpop.f32.mrb[0].mxu0
  %v1198 = vadd.f32 0.0, %v1197
  %v1199 = vpop.f32.mrb[0].mxu0
  %1200 = vmatprep.mubr.f32.mxu0 0.0
  %1201 = vmatmul.mubr.f32.gmra.mrb[0].mxu0 %v511
  %v1202 = vpop.f32.mrb[0].mxu0
  %v1203 = vadd.f32 0.0, %v1202
  %v1204 = vpop.f32.mrb[0].mxu0
  %1205 = vmatprep.mubr.f32.mxu0 0.0
  %1206 = vmatmul.mubr.f32.gmra.mrb[0].mxu0 %v514
  %v1207 = vpop.f32.mrb[0].mxu0
  %v1208 = vadd.f32 0.0, %v1207
  %v1209 = vpop.f32.mrb[0].mxu0
  %1210 = vmatprep.mubr.f32.mxu0 0.0
  %1211 = vmatmul.mubr.f32.gmra.mrb[0].mxu0 %v517
  %v1212 = vpop.f32.mrb[0].mxu0
  %v1213 = vadd.f32 0.0, %v1212
  %v1214 = vpop.f32.mrb[0].mxu0
  %1215 = vmatprep.mubr.f32.mxu0 0.0
  %1216 = vmatmul.mubr.f32.gmra.mrb[0].mxu0 %v520
  %v1217 = vpop.f32.mrb[0].mxu0
  %v1218 = vadd.f32 0.0, %v1217
  %v1219 = vpop.f32.mrb[0].mxu0
  %1220 = vmatprep.mubr.f32.mxu0 0.0
  %1221 = vmatmul.mubr.f32.gmra.mrb[0].mxu0 %v523
  %v1222 = vpop.f32.mrb[0].mxu0
  %v1223 = vadd.f32 0.0, %v1222
  %v1224 = vpop.f32.mrb[0].mxu0
  %1225 = vmatprep.mubr.f32.mxu0 0.0
  %1226 = vmatmul.mubr.f32.gmra.mrb[0].mxu0 %v526
  %v1227 = vpop.f32.mrb[0].mxu0
  %v1228 = vadd.f32 0.0, %v1227
  %v1229 = vpop.f32.mrb[0].mxu0
  %1230 = vmatprep.mubr.f32.mxu0 0.0
  %1231 = vmatmul.mubr.f32.gmra.mrb[0].mxu0 %v529
  %v1232 = vpop.f32.mrb[0].mxu0
  %v1233 = vadd.f32 0.0, %v1232
  %v1234 = vpop.f32.mrb[0].mxu0
  %1235 = vmatprep.mubr.f32.mxu0 0.0
  %1236 = vmatmul.mubr.f32.gmra.mrb[0].mxu0 %v532
  %v1237 = vpop.f32.mrb[0].mxu0
  %v1238 = vadd.f32 0.0, %v1237
  %v1239 = vpop.f32.mrb[0].mxu0
  %1240 = vmatprep.mubr.f32.mxu0 0.0
  %1241 = vmatmul.mubr.f32.gmra.mrb[0].mxu0 %v535
  %v1242 = vpop.f32.mrb[0].mxu0
  %v1243 = vadd.f32 0.0, %v1242
  %v1244 = vpop.f32.mrb[0].mxu0
  %1245 = vdwg.mxu0
  %v1246 = vmax.f32 %v608, 0.0
  %v1247 = vmax.f32 %v613, 0.0
  %v1248 = vmax.f32 %v618, 0.0
  %v1249 = vmax.f32 %v623, 0.0
  %v1250 = vmax.f32 %v628, 0.0
  %v1251 = vmax.f32 %v633, 0.0
  %v1252 = vmax.f32 %v638, 0.0
  %v1253 = vmax.f32 %v643, 0.0
  %v1254 = vmax.f32 %v648, 0.0
  %v1255 = vmax.f32 %v653, 0.0
  %v1256 = vmax.f32 %v658, 0.0
  %v1257 = vmax.f32 %v663, 0.0
  %v1258 = vmax.f32 %v668, 0.0
  %v1259 = vmax.f32 %v673, 0.0
  %v1260 = vmax.f32 %v678, 0.0
  %v1261 = vmax.f32 %v683, 0.0
  %v1262 = vmax.f32 %v688, 0.0
  %v1263 = vmax.f32 %v693, 0.0
  %v1264 = vmax.f32 %v698, 0.0
  %v1265 = vmax.f32 %v703, 0.0
  %v1266 = vmax.f32 %v708, 0.0
  %v1267 = vmax.f32 %v713, 0.0
  %v1268 = vmax.f32 %v718, 0.0
  %v1269 = vmax.f32 %v723, 0.0
  %v1270 = vmax.f32 %v728, 0.0
  %v1271 = vmax.f32 %v733, 0.0
  %v1272 = vmax.f32 %v738, 0.0
  %v1273 = vmax.f32 %v743, 0.0
  %v1274 = vmax.f32 %v748, 0.0
  %v1275 = vmax.f32 %v753, 0.0
  %v1276 = vmax.f32 %v758, 0.0
  %v1277 = vmax.f32 %v763, 0.0
  %v1278 = vmax.f32 %v768, 0.0
  %v1279 = vmax.f32 %v773, 0.0
  %v1280 = vmax.f32 %v778, 0.0
  %v1281 = vmax.f32 %v783, 0.0
  %v1282 = vmax.f32 %v788, 0.0
  %v1283 = vmax.f32 %v793, 0.0
  %v1284 = vmax.f32 %v798, 0.0
  %v1285 = vmax.f32 %v803, 0.0
  %v1286 = vmax.f32 %v808, 0.0
  %v1287 = vmax.f32 %v813, 0.0
  %v1288 = vmax.f32 %v818, 0.0
  %v1289 = vmax.f32 %v823, 0.0
  %v1290 = vmax.f32 %v828, 0.0
  %v1291 = vmax.f32 %v833, 0.0
  %v1292 = vmax.f32 %v838, 0.0
  %v1293 = vmax.f32 %v843, 0.0
  %v1294 = vmax.f32 %v848, 0.0
  %v1295 = vmax.f32 %v853, 0.0
  %v1296 = vmax.f32 %v858, 0.0
  %v1297 = vmax.f32 %v863, 0.0
  %v1298 = vmax.f32 %v868, 0.0
  %v1299 = vmax.f32 %v873, 0.0
  %v1300 = vmax.f32 %v878, 0.0
  %v1301 = vmax.f32 %v883, 0.0
  %v1302 = vmax.f32 %v888, 0.0
  %v1303 = vmax.f32 %v893, 0.0
  %v1304 = vmax.f32 %v898, 0.0
  %v1305 = vmax.f32 %v903, 0.0
  %v1306 = vmax.f32 %v908, 0.0
  %v1307 = vmax.f32 %v913, 0.0
  %v1308 = vmax.f32 %v918, 0.0
  %v1309 = vmax.f32 %v923, 0.0
  %v1310 = vmax.f32 %v928, 0.0
  %v1311 = vmax.f32 %v933, 0.0
  %v1312 = vmax.f32 %v938, 0.0
  %v1313 = vmax.f32 %v943, 0.0
  %v1314 = vmax.f32 %v948, 0.0
  %v1315 = vmax.f32 %v953, 0.0
  %v1316 = vmax.f32 %v958, 0.0
  %v1317 = vmax.f32 %v963, 0.0
  %v1318 = vmax.f32 %v968, 0.0
  %v1319 = vmax.f32 %v973, 0.0
  %v1320 = vmax.f32 %v978, 0.0
  %v1321 = vmax.f32 %v983, 0.0
  %v1322 = vmax.f32 %v988, 0.0
  %v1323 = vmax.f32 %v993, 0.0
  %v1324 = vmax.f32 %v998, 0.0
  %v1325 = vmax.f32 %v1003, 0.0
  %v1326 = vmax.f32 %v1008, 0.0
  %v1327 = vmax.f32 %v1013, 0.0
  %v1328 = vmax.f32 %v1018, 0.0
  %v1329 = vmax.f32 %v1023, 0.0
  %v1330 = vmax.f32 %v1028, 0.0
  %v1331 = vmax.f32 %v1033, 0.0
  %v1332 = vmax.f32 %v1038, 0.0
  %v1333 = vmax.f32 %v1043, 0.0
  %v1334 = vmax.f32 %v1048, 0.0
  %v1335 = vmax.f32 %v1053, 0.0
  %v1336 = vmax.f32 %v1058, 0.0
  %v1337 = vmax.f32 %v1063, 0.0
  %v1338 = vmax.f32 %v1068, 0.0
  %v1339 = vmax.f32 %v1073, 0.0
  %v1340 = vmax.f32 %v1078, 0.0
  %v1341 = vmax.f32 %v1083, 0.0
  %v1342 = vmax.f32 %v1088, 0.0
  %v1343 = vmax.f32 %v1093, 0.0
  %v1344 = vmax.f32 %v1098, 0.0
  %v1345 = vmax.f32 %v1103, 0.0
  %v1346 = vmax.f32 %v1108, 0.0
  %v1347 = vmax.f32 %v1113, 0.0
  %v1348 = vmax.f32 %v1118, 0.0
  %v1349 = vmax.f32 %v1123, 0.0
  %v1350 = vmax.f32 %v1128, 0.0
  %v1351 = vmax.f32 %v1133, 0.0
  %v1352 = vmax.f32 %v1138, 0.0
  %v1353 = vmax.f32 %v1143, 0.0
  %v1354 = vmax.f32 %v1148, 0.0
  %v1355 = vmax.f32 %v1153, 0.0
  %v1356 = vmax.f32 %v1158, 0.0
  %v1357 = vmax.f32 %v1163, 0.0
  %v1358 = vmax.f32 %v1168, 0.0
  %v1359 = vmax.f32 %v1173, 0.0
  %v1360 = vmax.f32 %v1178, 0.0
  %v1361 = vmax.f32 %v1183, 0.0
  %v1362 = vmax.f32 %v1188, 0.0
  %v1363 = vmax.f32 %v1193, 0.0
  %v1364 = vmax.f32 %v1198, 0.0
  %v1365 = vmax.f32 %v1203, 0.0
  %v1366 = vmax.f32 %v1208, 0.0
  %v1367 = vmax.f32 %v1213, 0.0
  %v1368 = vmax.f32 %v1218, 0.0
  %v1369 = vmax.f32 %v1223, 0.0
  %v1370 = vmax.f32 %v1228, 0.0
  %v1371 = vmax.f32 %v1233, 0.0
  %v1372 = vmax.f32 %v1238, 0.0
  %v1373 = vmax.f32 %v1243, 0.0
  %v1374 = vld [vmem:[%s2] sm:$0xff]
  %v1375 = vld [vmem:[%s2 + $0x8] sm:$0xff]
  %v1376 = vld [vmem:[%s2 + $0x10] sm:$0xff]
  %v1377 = vld [vmem:[%s2 + $0x18] sm:$0xff]
  %v1378 = vld [vmem:[%s2 + $0x20] sm:$0xff]
  %v1379 = vld [vmem:[%s2 + $0x28] sm:$0xff]
  %v1380 = vld [vmem:[%s2 + $0x30] sm:$0xff]
  %v1381 = vld [vmem:[%s2 + $0x38] sm:$0xff]
  %v1382 = vld [vmem:[%s2 + $0x40] sm:$0xff]
  %v1383 = vld [vmem:[%s2 + $0x48] sm:$0xff]
  %v1384 = vld [vmem:[%s2 + $0x50] sm:$0xff]
  %v1385 = vld [vmem:[%s2 + $0x58] sm:$0xff]
  %v1386 = vld [vmem:[%s2 + $0x60] sm:$0xff]
  %v1387 = vld [vmem:[%s2 + $0x68] sm:$0xff]
  %v1388 = vld [vmem:[%s2 + $0x70] sm:$0xff]
  %v1389 = vld [vmem:[%s2 + $0x78] sm:$0xff]
  %1390 = vmatprep.subr.mxu0 0.0
  %1391 = vmatpush1.msra.mxu0 %v1374
  %1392 = vmatprep.subr.mxu0 0.0
  %1393 = vmatpush1.msra.mxu0 %v1375
  %1394 = vmatprep.subr.mxu0 0.0
  %1395 = vmatpush1.msra.mxu0 %v1376
  %1396 = vmatprep.subr.mxu0 0.0
  %1397 = vmatpush1.msra.mxu0 %v1377
  %1398 = vmatprep.subr.mxu0 0.0
  %1399 = vmatpush1.msra.mxu0 %v1378
  %1400 = vmatprep.subr.mxu0 0.0
  %1401 = vmatpush1.msra.mxu0 %v1379
  %1402 = vmatprep.subr.mxu0 0.0
  %1403 = vmatpush1.msra.mxu0 %v1380
  %1404 = vmatprep.subr.mxu0 0.0
  %1405 = vmatpush1.msra.mxu0 %v1381
  %1406 = vmatprep.subr.mxu0 0.0
  %1407 = vmatpush1.msra.mxu0 %v1382
  %1408 = vmatprep.subr.mxu0 0.0
  %1409 = vmatpush1.msra.mxu0 %v1383
  %1410 = vmatprep.subr.mxu0 0.0
  %1411 = vmatpush1.msra.mxu0 %v1384
  %1412 = vmatprep.subr.mxu0 0.0
  %1413 = vmatpush1.msra.mxu0 %v1385
  %1414 = vmatprep.subr.mxu0 0.0
  %1415 = vmatpush1.msra.mxu0 %v1386
  %1416 = vmatprep.subr.mxu0 0.0
  %1417 = vmatpush1.msra.mxu0 %v1387
  %1418 = vmatprep.subr.mxu0 0.0
  %1419 = vmatpush1.msra.mxu0 %v1388
  %1420 = vmatprep.subr.mxu0 0.0
  %1421 = vmatpush1.msra.mxu0 %v1389
  %1422 = vmatprep.subr.mxu0 0.0
  %1423 = vmatpush1.msra.mxu0 0.0
  %1424 = vmatprep.subr.mxu0 0.0
  %1425 = vmatpush1.msra.mxu0 0.0
  %1426 = vmatprep.subr.mxu0 0.0
  %1427 = vmatpush1.msra.mxu0 0.0
  %1428 = vmatprep.subr.mxu0 0.0
  %1429 = vmatpush1.msra.mxu0 0.0
  %1430 = vmatprep.subr.mxu0 0.0
  %1431 = vmatpush1.msra.mxu0 0.0
  %1432 = vmatprep.subr.mxu0 0.0
  %1433 = vmatpush1.msra.mxu0 0.0
  %1434 = vmatprep.subr.mxu0 0.0
  %1435 = vmatpush1.msra.mxu0 0.0
  %1436 = vmatprep.subr.mxu0 0.0
  %1437 = vmatpush1.msra.mxu0 0.0
  %1438 = vmatprep.subr.mxu0 0.0
  %1439 = vmatpush1.msra.mxu0 0.0
  %1440 = vmatprep.subr.mxu0 0.0
  %1441 = vmatpush1.msra.mxu0 0.0
  %1442 = vmatprep.subr.mxu0 0.0
  %1443 = vmatpush1.msra.mxu0 0.0
  %1444 = vmatprep.subr.mxu0 0.0
  %1445 = vmatpush1.msra.mxu0 0.0
  %1446 = vmatprep.subr.mxu0 0.0
  %1447 = vmatpush1.msra.mxu0 0.0
  %1448 = vmatprep.subr.mxu0 0.0
  %1449 = vmatpush1.msra.mxu0 0.0
  %1450 = vmatprep.subr.mxu0 0.0
  %1451 = vmatpush1.msra.mxu0 0.0
  %1452 = vmatprep.subr.mxu0 0.0
  %1453 = vmatpush1.msra.mxu0 0.0
  %1454 = vmatprep.mubr.f32.mxu0 0.0
  %1455 = vmatmul.mubr.f32.gmra.mrb[0].mxu0 %v1246
  %v1456 = vpop.f32.mrb[0].mxu0
  %v1457 = vadd.f32 0.0, %v1456
  %v1458 = vpop.f32.mrb[0].mxu0
  %1459 = vmatprep.mubr.f32.mxu0 0.0
  %1460 = vmatmul.mubr.f32.gmra.mrb[0].mxu0 %v1247
  %v1461 = vpop.f32.mrb[0].mxu0
  %v1462 = vadd.f32 0.0, %v1461
  %v1463 = vpop.f32.mrb[0].mxu0
  %1464 = vmatprep.mubr.f32.mxu0 0.0
  %1465 = vmatmul.mubr.f32.gmra.mrb[0].mxu0 %v1248
  %v1466 = vpop.f32.mrb[0].mxu0
  %v1467 = vadd.f32 0.0, %v1466
  %v1468 = vpop.f32.mrb[0].mxu0
  %1469 = vmatprep.mubr.f32.mxu0 0.0
  %1470 = vmatmul.mubr.f32.gmra.mrb[0].mxu0 %v1249
  %v1471 = vpop.f32.mrb[0].mxu0
  %v1472 = vadd.f32 0.0, %v1471
  %v1473 = vpop.f32.mrb[0].mxu0
  %1474 = vmatprep.mubr.f32.mxu0 0.0
  %1475 = vmatmul.mubr.f32.gmra.mrb[0].mxu0 %v1250
  %v1476 = vpop.f32.mrb[0].mxu0
  %v1477 = vadd.f32 0.0, %v1476
  %v1478 = vpop.f32.mrb[0].mxu0
  %1479 = vmatprep.mubr.f32.mxu0 0.0
  %1480 = vmatmul.mubr.f32.gmra.mrb[0].mxu0 %v1251
  %v1481 = vpop.f32.mrb[0].mxu0
  %v1482 = vadd.f32 0.0, %v1481
  %v1483 = vpop.f32.mrb[0].mxu0
  %1484 = vmatprep.mubr.f32.mxu0 0.0
  %1485 = vmatmul.mubr.f32.gmra.mrb[0].mxu0 %v1252
  %v1486 = vpop.f32.mrb[0].mxu0
  %v1487 = vadd.f32 0.0, %v1486
  %v1488 = vpop.f32.mrb[0].mxu0
  %1489 = vmatprep.mubr.f32.mxu0 0.0
  %1490 = vmatmul.mubr.f32.gmra.mrb[0].mxu0 %v1253
  %v1491 = vpop.f32.mrb[0].mxu0
  %v1492 = vadd.f32 0.0, %v1491
  %v1493 = vpop.f32.mrb[0].mxu0
  %1494 = vmatprep.mubr.f32.mxu0 0.0
  %1495 = vmatmul.mubr.f32.gmra.mrb[0].mxu0 %v1254
  %v1496 = vpop.f32.mrb[0].mxu0
  %v1497 = vadd.f32 0.0, %v1496
  %v1498 = vpop.f32.mrb[0].mxu0
  %1499 = vmatprep.mubr.f32.mxu0 0.0
  %1500 = vmatmul.mubr.f32.gmra.mrb[0].mxu0 %v1255
  %v1501 = vpop.f32.mrb[0].mxu0
  %v1502 = vadd.f32 0.0, %v1501
  %v1503 = vpop.f32.mrb[0].mxu0
  %1504 = vmatprep.mubr.f32.mxu0 0.0
  %1505 = vmatmul.mubr.f32.gmra.mrb[0].mxu0 %v1256
  %v1506 = vpop.f32.mrb[0].mxu0
  %v1507 = vadd.f32 0.0, %v1506
  %v1508 = vpop.f32.mrb[0].mxu0
  %1509 = vmatprep.mubr.f32.mxu0 0.0
  %1510 = vmatmul.mubr.f32.gmra.mrb[0].mxu0 %v1257
  %v1511 = vpop.f32.mrb[0].mxu0
  %v1512 = vadd.f32 0.0, %v1511
  %v1513 = vpop.f32.mrb[0].mxu0
  %1514 = vmatprep.mubr.f32.mxu0 0.0
  %1515 = vmatmul.mubr.f32.gmra.mrb[0].mxu0 %v1258
  %v1516 = vpop.f32.mrb[0].mxu0
  %v1517 = vadd.f32 0.0, %v1516
  %v1518 = vpop.f32.mrb[0].mxu0
  %1519 = vmatprep.mubr.f32.mxu0 0.0
  %1520 = vmatmul.mubr.f32.gmra.mrb[0].mxu0 %v1259
  %v1521 = vpop.f32.mrb[0].mxu0
  %v1522 = vadd.f32 0.0, %v1521
  %v1523 = vpop.f32.mrb[0].mxu0
  %1524 = vmatprep.mubr.f32.mxu0 0.0
  %1525 = vmatmul.mubr.f32.gmra.mrb[0].mxu0 %v1260
  %v1526 = vpop.f32.mrb[0].mxu0
  %v1527 = vadd.f32 0.0, %v1526
  %v1528 = vpop.f32.mrb[0].mxu0
  %1529 = vmatprep.mubr.f32.mxu0 0.0
  %1530 = vmatmul.mubr.f32.gmra.mrb[0].mxu0 %v1261
  %v1531 = vpop.f32.mrb[0].mxu0
  %v1532 = vadd.f32 0.0, %v1531
  %v1533 = vpop.f32.mrb[0].mxu0
  %1534 = vmatprep.mubr.f32.mxu0 0.0
  %1535 = vmatmul.mubr.f32.gmra.mrb[0].mxu0 %v1262
  %v1536 = vpop.f32.mrb[0].mxu0
  %v1537 = vadd.f32 0.0, %v1536
  %v1538 = vpop.f32.mrb[0].mxu0
  %1539 = vmatprep.mubr.f32.mxu0 0.0
  %1540 = vmatmul.mubr.f32.gmra.mrb[0].mxu0 %v1263
  %v1541 = vpop.f32.mrb[0].mxu0
  %v1542 = vadd.f32 0.0, %v1541
  %v1543 = vpop.f32.mrb[0].mxu0
  %1544 = vmatprep.mubr.f32.mxu0 0.0
  %1545 = vmatmul.mubr.f32.gmra.mrb[0].mxu0 %v1264
  %v1546 = vpop.f32.mrb[0].mxu0
  %v1547 = vadd.f32 0.0, %v1546
  %v1548 = vpop.f32.mrb[0].mxu0
  %1549 = vmatprep.mubr.f32.mxu0 0.0
  %1550 = vmatmul.mubr.f32.gmra.mrb[0].mxu0 %v1265
  %v1551 = vpop.f32.mrb[0].mxu0
  %v1552 = vadd.f32 0.0, %v1551
  %v1553 = vpop.f32.mrb[0].mxu0
  %1554 = vmatprep.mubr.f32.mxu0 0.0
  %1555 = vmatmul.mubr.f32.gmra.mrb[0].mxu0 %v1266
  %v1556 = vpop.f32.mrb[0].mxu0
  %v1557 = vadd.f32 0.0, %v1556
  %v1558 = vpop.f32.mrb[0].mxu0
  %1559 = vmatprep.mubr.f32.mxu0 0.0
  %1560 = vmatmul.mubr.f32.gmra.mrb[0].mxu0 %v1267
  %v1561 = vpop.f32.mrb[0].mxu0
  %v1562 = vadd.f32 0.0, %v1561
  %v1563 = vpop.f32.mrb[0].mxu0
  %1564 = vmatprep.mubr.f32.mxu0 0.0
  %1565 = vmatmul.mubr.f32.gmra.mrb[0].mxu0 %v1268
  %v1566 = vpop.f32.mrb[0].mxu0
  %v1567 = vadd.f32 0.0, %v1566
  %v1568 = vpop.f32.mrb[0].mxu0
  %1569 = vmatprep.mubr.f32.mxu0 0.0
  %1570 = vmatmul.mubr.f32.gmra.mrb[0].mxu0 %v1269
  %v1571 = vpop.f32.mrb[0].mxu0
  %v1572 = vadd.f32 0.0, %v1571
  %v1573 = vpop.f32.mrb[0].mxu0
  %1574 = vmatprep.mubr.f32.mxu0 0.0
  %1575 = vmatmul.mubr.f32.gmra.mrb[0].mxu0 %v1270
  %v1576 = vpop.f32.mrb[0].mxu0
  %v1577 = vadd.f32 0.0, %v1576
  %v1578 = vpop.f32.mrb[0].mxu0
  %1579 = vmatprep.mubr.f32.mxu0 0.0
  %1580 = vmatmul.mubr.f32.gmra.mrb[0].mxu0 %v1271
  %v1581 = vpop.f32.mrb[0].mxu0
  %v1582 = vadd.f32 0.0, %v1581
  %v1583 = vpop.f32.mrb[0].mxu0
  %1584 = vmatprep.mubr.f32.mxu0 0.0
  %1585 = vmatmul.mubr.f32.gmra.mrb[0].mxu0 %v1272
  %v1586 = vpop.f32.mrb[0].mxu0
  %v1587 = vadd.f32 0.0, %v1586
  %v1588 = vpop.f32.mrb[0].mxu0
  %1589 = vmatprep.mubr.f32.mxu0 0.0
  %1590 = vmatmul.mubr.f32.gmra.mrb[0].mxu0 %v1273
  %v1591 = vpop.f32.mrb[0].mxu0
  %v1592 = vadd.f32 0.0, %v1591
  %v1593 = vpop.f32.mrb[0].mxu0
  %1594 = vmatprep.mubr.f32.mxu0 0.0
  %1595 = vmatmul.mubr.f32.gmra.mrb[0].mxu0 %v1274
  %v1596 = vpop.f32.mrb[0].mxu0
  %v1597 = vadd.f32 0.0, %v1596
  %v1598 = vpop.f32.mrb[0].mxu0
  %1599 = vmatprep.mubr.f32.mxu0 0.0
  %1600 = vmatmul.mubr.f32.gmra.mrb[0].mxu0 %v1275
  %v1601 = vpop.f32.mrb[0].mxu0
  %v1602 = vadd.f32 0.0, %v1601
  %v1603 = vpop.f32.mrb[0].mxu0
  %1604 = vmatprep.mubr.f32.mxu0 0.0
  %1605 = vmatmul.mubr.f32.gmra.mrb[0].mxu0 %v1276
  %v1606 = vpop.f32.mrb[0].mxu0
  %v1607 = vadd.f32 0.0, %v1606
  %v1608 = vpop.f32.mrb[0].mxu0
  %1609 = vmatprep.mubr.f32.mxu0 0.0
  %1610 = vmatmul.mubr.f32.gmra.mrb[0].mxu0 %v1277
  %v1611 = vpop.f32.mrb[0].mxu0
  %v1612 = vadd.f32 0.0, %v1611
  %v1613 = vpop.f32.mrb[0].mxu0
  %1614 = vmatprep.mubr.f32.mxu0 0.0
  %1615 = vmatmul.mubr.f32.gmra.mrb[0].mxu0 %v1278
  %v1616 = vpop.f32.mrb[0].mxu0
  %v1617 = vadd.f32 0.0, %v1616
  %v1618 = vpop.f32.mrb[0].mxu0
  %1619 = vmatprep.mubr.f32.mxu0 0.0
  %1620 = vmatmul.mubr.f32.gmra.mrb[0].mxu0 %v1279
  %v1621 = vpop.f32.mrb[0].mxu0
  %v1622 = vadd.f32 0.0, %v1621
  %v1623 = vpop.f32.mrb[0].mxu0
  %1624 = vmatprep.mubr.f32.mxu0 0.0
  %1625 = vmatmul.mubr.f32.gmra.mrb[0].mxu0 %v1280
  %v1626 = vpop.f32.mrb[0].mxu0
  %v1627 = vadd.f32 0.0, %v1626
  %v1628 = vpop.f32.mrb[0].mxu0
  %1629 = vmatprep.mubr.f32.mxu0 0.0
  %1630 = vmatmul.mubr.f32.gmra.mrb[0].mxu0 %v1281
  %v1631 = vpop.f32.mrb[0].mxu0
  %v1632 = vadd.f32 0.0, %v1631
  %v1633 = vpop.f32.mrb[0].mxu0
  %1634 = vmatprep.mubr.f32.mxu0 0.0
  %1635 = vmatmul.mubr.f32.gmra.mrb[0].mxu0 %v1282
  %v1636 = vpop.f32.mrb[0].mxu0
  %v1637 = vadd.f32 0.0, %v1636
  %v1638 = vpop.f32.mrb[0].mxu0
  %1639 = vmatprep.mubr.f32.mxu0 0.0
  %1640 = vmatmul.mubr.f32.gmra.mrb[0].mxu0 %v1283
  %v1641 = vpop.f32.mrb[0].mxu0
  %v1642 = vadd.f32 0.0, %v1641
  %v1643 = vpop.f32.mrb[0].mxu0
  %1644 = vmatprep.mubr.f32.mxu0 0.0
  %1645 = vmatmul.mubr.f32.gmra.mrb[0].mxu0 %v1284
  %v1646 = vpop.f32.mrb[0].mxu0
  %v1647 = vadd.f32 0.0, %v1646
  %v1648 = vpop.f32.mrb[0].mxu0
  %1649 = vmatprep.mubr.f32.mxu0 0.0
  %1650 = vmatmul.mubr.f32.gmra.mrb[0].mxu0 %v1285
  %v1651 = vpop.f32.mrb[0].mxu0
  %v1652 = vadd.f32 0.0, %v1651
  %v1653 = vpop.f32.mrb[0].mxu0
  %1654 = vmatprep.mubr.f32.mxu0 0.0
  %1655 = vmatmul.mubr.f32.gmra.mrb[0].mxu0 %v1286
  %v1656 = vpop.f32.mrb[0].mxu0
  %v1657 = vadd.f32 0.0, %v1656
  %v1658 = vpop.f32.mrb[0].mxu0
  %1659 = vmatprep.mubr.f32.mxu0 0.0
  %1660 = vmatmul.mubr.f32.gmra.mrb[0].mxu0 %v1287
  %v1661 = vpop.f32.mrb[0].mxu0
  %v1662 = vadd.f32 0.0, %v1661
  %v1663 = vpop.f32.mrb[0].mxu0
  %1664 = vmatprep.mubr.f32.mxu0 0.0
  %1665 = vmatmul.mubr.f32.gmra.mrb[0].mxu0 %v1288
  %v1666 = vpop.f32.mrb[0].mxu0
  %v1667 = vadd.f32 0.0, %v1666
  %v1668 = vpop.f32.mrb[0].mxu0
  %1669 = vmatprep.mubr.f32.mxu0 0.0
  %1670 = vmatmul.mubr.f32.gmra.mrb[0].mxu0 %v1289
  %v1671 = vpop.f32.mrb[0].mxu0
  %v1672 = vadd.f32 0.0, %v1671
  %v1673 = vpop.f32.mrb[0].mxu0
  %1674 = vmatprep.mubr.f32.mxu0 0.0
  %1675 = vmatmul.mubr.f32.gmra.mrb[0].mxu0 %v1290
  %v1676 = vpop.f32.mrb[0].mxu0
  %v1677 = vadd.f32 0.0, %v1676
  %v1678 = vpop.f32.mrb[0].mxu0
  %1679 = vmatprep.mubr.f32.mxu0 0.0
  %1680 = vmatmul.mubr.f32.gmra.mrb[0].mxu0 %v1291
  %v1681 = vpop.f32.mrb[0].mxu0
  %v1682 = vadd.f32 0.0, %v1681
  %v1683 = vpop.f32.mrb[0].mxu0
  %1684 = vmatprep.mubr.f32.mxu0 0.0
  %1685 = vmatmul.mubr.f32.gmra.mrb[0].mxu0 %v1292
  %v1686 = vpop.f32.mrb[0].mxu0
  %v1687 = vadd.f32 0.0, %v1686
  %v1688 = vpop.f32.mrb[0].mxu0
  %1689 = vmatprep.mubr.f32.mxu0 0.0
  %1690 = vmatmul.mubr.f32.gmra.mrb[0].mxu0 %v1293
  %v1691 = vpop.f32.mrb[0].mxu0
  %v1692 = vadd.f32 0.0, %v1691
  %v1693 = vpop.f32.mrb[0].mxu0
  %1694 = vmatprep.mubr.f32.mxu0 0.0
  %1695 = vmatmul.mubr.f32.gmra.mrb[0].mxu0 %v1294
  %v1696 = vpop.f32.mrb[0].mxu0
  %v1697 = vadd.f32 0.0, %v1696
  %v1698 = vpop.f32.mrb[0].mxu0
  %1699 = vmatprep.mubr.f32.mxu0 0.0
  %1700 = vmatmul.mubr.f32.gmra.mrb[0].mxu0 %v1295
  %v1701 = vpop.f32.mrb[0].mxu0
  %v1702 = vadd.f32 0.0, %v1701
  %v1703 = vpop.f32.mrb[0].mxu0
  %1704 = vmatprep.mubr.f32.mxu0 0.0
  %1705 = vmatmul.mubr.f32.gmra.mrb[0].mxu0 %v1296
  %v1706 = vpop.f32.mrb[0].mxu0
  %v1707 = vadd.f32 0.0, %v1706
  %v1708 = vpop.f32.mrb[0].mxu0
  %1709 = vmatprep.mubr.f32.mxu0 0.0
  %1710 = vmatmul.mubr.f32.gmra.mrb[0].mxu0 %v1297
  %v1711 = vpop.f32.mrb[0].mxu0
  %v1712 = vadd.f32 0.0, %v1711
  %v1713 = vpop.f32.mrb[0].mxu0
  %1714 = vmatprep.mubr.f32.mxu0 0.0
  %1715 = vmatmul.mubr.f32.gmra.mrb[0].mxu0 %v1298
  %v1716 = vpop.f32.mrb[0].mxu0
  %v1717 = vadd.f32 0.0, %v1716
  %v1718 = vpop.f32.mrb[0].mxu0
  %1719 = vmatprep.mubr.f32.mxu0 0.0
  %1720 = vmatmul.mubr.f32.gmra.mrb[0].mxu0 %v1299
  %v1721 = vpop.f32.mrb[0].mxu0
  %v1722 = vadd.f32 0.0, %v1721
  %v1723 = vpop.f32.mrb[0].mxu0
  %1724 = vmatprep.mubr.f32.mxu0 0.0
  %1725 = vmatmul.mubr.f32.gmra.mrb[0].mxu0 %v1300
  %v1726 = vpop.f32.mrb[0].mxu0
  %v1727 = vadd.f32 0.0, %v1726
  %v1728 = vpop.f32.mrb[0].mxu0
  %1729 = vmatprep.mubr.f32.mxu0 0.0
  %1730 = vmatmul.mubr.f32.gmra.mrb[0].mxu0 %v1301
  %v1731 = vpop.f32.mrb[0].mxu0
  %v1732 = vadd.f32 0.0, %v1731
  %v1733 = vpop.f32.mrb[0].mxu0
  %1734 = vmatprep.mubr.f32.mxu0 0.0
  %1735 = vmatmul.mubr.f32.gmra.mrb[0].mxu0 %v1302
  %v1736 = vpop.f32.mrb[0].mxu0
  %v1737 = vadd.f32 0.0, %v1736
  %v1738 = vpop.f32.mrb[0].mxu0
  %1739 = vmatprep.mubr.f32.mxu0 0.0
  %1740 = vmatmul.mubr.f32.gmra.mrb[0].mxu0 %v1303
  %v1741 = vpop.f32.mrb[0].mxu0
  %v1742 = vadd.f32 0.0, %v1741
  %v1743 = vpop.f32.mrb[0].mxu0
  %1744 = vmatprep.mubr.f32.mxu0 0.0
  %1745 = vmatmul.mubr.f32.gmra.mrb[0].mxu0 %v1304
  %v1746 = vpop.f32.mrb[0].mxu0
  %v1747 = vadd.f32 0.0, %v1746
  %v1748 = vpop.f32.mrb[0].mxu0
  %1749 = vmatprep.mubr.f32.mxu0 0.0
  %1750 = vmatmul.mubr.f32.gmra.mrb[0].mxu0 %v1305
  %v1751 = vpop.f32.mrb[0].mxu0
  %v1752 = vadd.f32 0.0, %v1751
  %v1753 = vpop.f32.mrb[0].mxu0
  %1754 = vmatprep.mubr.f32.mxu0 0.0
  %1755 = vmatmul.mubr.f32.gmra.mrb[0].mxu0 %v1306
  %v1756 = vpop.f32.mrb[0].mxu0
  %v1757 = vadd.f32 0.0, %v1756
  %v1758 = vpop.f32.mrb[0].mxu0
  %1759 = vmatprep.mubr.f32.mxu0 0.0
  %1760 = vmatmul.mubr.f32.gmra.mrb[0].mxu0 %v1307
  %v1761 = vpop.f32.mrb[0].mxu0
  %v1762 = vadd.f32 0.0, %v1761
  %v1763 = vpop.f32.mrb[0].mxu0
  %1764 = vmatprep.mubr.f32.mxu0 0.0
  %1765 = vmatmul.mubr.f32.gmra.mrb[0].mxu0 %v1308
  %v1766 = vpop.f32.mrb[0].mxu0
  %v1767 = vadd.f32 0.0, %v1766
  %v1768 = vpop.f32.mrb[0].mxu0
  %1769 = vmatprep.mubr.f32.mxu0 0.0
  %1770 = vmatmul.mubr.f32.gmra.mrb[0].mxu0 %v1309
  %v1771 = vpop.f32.mrb[0].mxu0
  %v1772 = vadd.f32 0.0, %v1771
  %v1773 = vpop.f32.mrb[0].mxu0
  %1774 = vmatprep.mubr.f32.mxu0 0.0
  %1775 = vmatmul.mubr.f32.gmra.mrb[0].mxu0 %v1310
  %v1776 = vpop.f32.mrb[0].mxu0
  %v1777 = vadd.f32 0.0, %v1776
  %v1778 = vpop.f32.mrb[0].mxu0
  %1779 = vmatprep.mubr.f32.mxu0 0.0
  %1780 = vmatmul.mubr.f32.gmra.mrb[0].mxu0 %v1311
  %v1781 = vpop.f32.mrb[0].mxu0
  %v1782 = vadd.f32 0.0, %v1781
  %v1783 = vpop.f32.mrb[0].mxu0
  %1784 = vmatprep.mubr.f32.mxu0 0.0
  %1785 = vmatmul.mubr.f32.gmra.mrb[0].mxu0 %v1312
  %v1786 = vpop.f32.mrb[0].mxu0
  %v1787 = vadd.f32 0.0, %v1786
  %v1788 = vpop.f32.mrb[0].mxu0
  %1789 = vmatprep.mubr.f32.mxu0 0.0
  %1790 = vmatmul.mubr.f32.gmra.mrb[0].mxu0 %v1313
  %v1791 = vpop.f32.mrb[0].mxu0
  %v1792 = vadd.f32 0.0, %v1791
  %v1793 = vpop.f32.mrb[0].mxu0
  %1794 = vmatprep.mubr.f32.mxu0 0.0
  %1795 = vmatmul.mubr.f32.gmra.mrb[0].mxu0 %v1314
  %v1796 = vpop.f32.mrb[0].mxu0
  %v1797 = vadd.f32 0.0, %v1796
  %v1798 = vpop.f32.mrb[0].mxu0
  %1799 = vmatprep.mubr.f32.mxu0 0.0
  %1800 = vmatmul.mubr.f32.gmra.mrb[0].mxu0 %v1315
  %v1801 = vpop.f32.mrb[0].mxu0
  %v1802 = vadd.f32 0.0, %v1801
  %v1803 = vpop.f32.mrb[0].mxu0
  %1804 = vmatprep.mubr.f32.mxu0 0.0
  %1805 = vmatmul.mubr.f32.gmra.mrb[0].mxu0 %v1316
  %v1806 = vpop.f32.mrb[0].mxu0
  %v1807 = vadd.f32 0.0, %v1806
  %v1808 = vpop.f32.mrb[0].mxu0
  %1809 = vmatprep.mubr.f32.mxu0 0.0
  %1810 = vmatmul.mubr.f32.gmra.mrb[0].mxu0 %v1317
  %v1811 = vpop.f32.mrb[0].mxu0
  %v1812 = vadd.f32 0.0, %v1811
  %v1813 = vpop.f32.mrb[0].mxu0
  %1814 = vmatprep.mubr.f32.mxu0 0.0
  %1815 = vmatmul.mubr.f32.gmra.mrb[0].mxu0 %v1318
  %v1816 = vpop.f32.mrb[0].mxu0
  %v1817 = vadd.f32 0.0, %v1816
  %v1818 = vpop.f32.mrb[0].mxu0
  %1819 = vmatprep.mubr.f32.mxu0 0.0
  %1820 = vmatmul.mubr.f32.gmra.mrb[0].mxu0 %v1319
  %v1821 = vpop.f32.mrb[0].mxu0
  %v1822 = vadd.f32 0.0, %v1821
  %v1823 = vpop.f32.mrb[0].mxu0
  %1824 = vmatprep.mubr.f32.mxu0 0.0
  %1825 = vmatmul.mubr.f32.gmra.mrb[0].mxu0 %v1320
  %v1826 = vpop.f32.mrb[0].mxu0
  %v1827 = vadd.f32 0.0, %v1826
  %v1828 = vpop.f32.mrb[0].mxu0
  %1829 = vmatprep.mubr.f32.mxu0 0.0
  %1830 = vmatmul.mubr.f32.gmra.mrb[0].mxu0 %v1321
  %v1831 = vpop.f32.mrb[0].mxu0
  %v1832 = vadd.f32 0.0, %v1831
  %v1833 = vpop.f32.mrb[0].mxu0
  %1834 = vmatprep.mubr.f32.mxu0 0.0
  %1835 = vmatmul.mubr.f32.gmra.mrb[0].mxu0 %v1322
  %v1836 = vpop.f32.mrb[0].mxu0
  %v1837 = vadd.f32 0.0, %v1836
  %v1838 = vpop.f32.mrb[0].mxu0
  %1839 = vmatprep.mubr.f32.mxu0 0.0
  %1840 = vmatmul.mubr.f32.gmra.mrb[0].mxu0 %v1323
  %v1841 = vpop.f32.mrb[0].mxu0
  %v1842 = vadd.f32 0.0, %v1841
  %v1843 = vpop.f32.mrb[0].mxu0
  %1844 = vmatprep.mubr.f32.mxu0 0.0
  %1845 = vmatmul.mubr.f32.gmra.mrb[0].mxu0 %v1324
  %v1846 = vpop.f32.mrb[0].mxu0
  %v1847 = vadd.f32 0.0, %v1846
  %v1848 = vpop.f32.mrb[0].mxu0
  %1849 = vmatprep.mubr.f32.mxu0 0.0
  %1850 = vmatmul.mubr.f32.gmra.mrb[0].mxu0 %v1325
  %v1851 = vpop.f32.mrb[0].mxu0
  %v1852 = vadd.f32 0.0, %v1851
  %v1853 = vpop.f32.mrb[0].mxu0
  %1854 = vmatprep.mubr.f32.mxu0 0.0
  %1855 = vmatmul.mubr.f32.gmra.mrb[0].mxu0 %v1326
  %v1856 = vpop.f32.mrb[0].mxu0
  %v1857 = vadd.f32 0.0, %v1856
  %v1858 = vpop.f32.mrb[0].mxu0
  %1859 = vmatprep.mubr.f32.mxu0 0.0
  %1860 = vmatmul.mubr.f32.gmra.mrb[0].mxu0 %v1327
  %v1861 = vpop.f32.mrb[0].mxu0
  %v1862 = vadd.f32 0.0, %v1861
  %v1863 = vpop.f32.mrb[0].mxu0
  %1864 = vmatprep.mubr.f32.mxu0 0.0
  %1865 = vmatmul.mubr.f32.gmra.mrb[0].mxu0 %v1328
  %v1866 = vpop.f32.mrb[0].mxu0
  %v1867 = vadd.f32 0.0, %v1866
  %v1868 = vpop.f32.mrb[0].mxu0
  %1869 = vmatprep.mubr.f32.mxu0 0.0
  %1870 = vmatmul.mubr.f32.gmra.mrb[0].mxu0 %v1329
  %v1871 = vpop.f32.mrb[0].mxu0
  %v1872 = vadd.f32 0.0, %v1871
  %v1873 = vpop.f32.mrb[0].mxu0
  %1874 = vmatprep.mubr.f32.mxu0 0.0
  %1875 = vmatmul.mubr.f32.gmra.mrb[0].mxu0 %v1330
  %v1876 = vpop.f32.mrb[0].mxu0
  %v1877 = vadd.f32 0.0, %v1876
  %v1878 = vpop.f32.mrb[0].mxu0
  %1879 = vmatprep.mubr.f32.mxu0 0.0
  %1880 = vmatmul.mubr.f32.gmra.mrb[0].mxu0 %v1331
  %v1881 = vpop.f32.mrb[0].mxu0
  %v1882 = vadd.f32 0.0, %v1881
  %v1883 = vpop.f32.mrb[0].mxu0
  %1884 = vmatprep.mubr.f32.mxu0 0.0
  %1885 = vmatmul.mubr.f32.gmra.mrb[0].mxu0 %v1332
  %v1886 = vpop.f32.mrb[0].mxu0
  %v1887 = vadd.f32 0.0, %v1886
  %v1888 = vpop.f32.mrb[0].mxu0
  %1889 = vmatprep.mubr.f32.mxu0 0.0
  %1890 = vmatmul.mubr.f32.gmra.mrb[0].mxu0 %v1333
  %v1891 = vpop.f32.mrb[0].mxu0
  %v1892 = vadd.f32 0.0, %v1891
  %v1893 = vpop.f32.mrb[0].mxu0
  %1894 = vmatprep.mubr.f32.mxu0 0.0
  %1895 = vmatmul.mubr.f32.gmra.mrb[0].mxu0 %v1334
  %v1896 = vpop.f32.mrb[0].mxu0
  %v1897 = vadd.f32 0.0, %v1896
  %v1898 = vpop.f32.mrb[0].mxu0
  %1899 = vmatprep.mubr.f32.mxu0 0.0
  %1900 = vmatmul.mubr.f32.gmra.mrb[0].mxu0 %v1335
  %v1901 = vpop.f32.mrb[0].mxu0
  %v1902 = vadd.f32 0.0, %v1901
  %v1903 = vpop.f32.mrb[0].mxu0
  %1904 = vmatprep.mubr.f32.mxu0 0.0
  %1905 = vmatmul.mubr.f32.gmra.mrb[0].mxu0 %v1336
  %v1906 = vpop.f32.mrb[0].mxu0
  %v1907 = vadd.f32 0.0, %v1906
  %v1908 = vpop.f32.mrb[0].mxu0
  %1909 = vmatprep.mubr.f32.mxu0 0.0
  %1910 = vmatmul.mubr.f32.gmra.mrb[0].mxu0 %v1337
  %v1911 = vpop.f32.mrb[0].mxu0
  %v1912 = vadd.f32 0.0, %v1911
  %v1913 = vpop.f32.mrb[0].mxu0
  %1914 = vmatprep.mubr.f32.mxu0 0.0
  %1915 = vmatmul.mubr.f32.gmra.mrb[0].mxu0 %v1338
  %v1916 = vpop.f32.mrb[0].mxu0
  %v1917 = vadd.f32 0.0, %v1916
  %v1918 = vpop.f32.mrb[0].mxu0
  %1919 = vmatprep.mubr.f32.mxu0 0.0
  %1920 = vmatmul.mubr.f32.gmra.mrb[0].mxu0 %v1339
  %v1921 = vpop.f32.mrb[0].mxu0
  %v1922 = vadd.f32 0.0, %v1921
  %v1923 = vpop.f32.mrb[0].mxu0
  %1924 = vmatprep.mubr.f32.mxu0 0.0
  %1925 = vmatmul.mubr.f32.gmra.mrb[0].mxu0 %v1340
  %v1926 = vpop.f32.mrb[0].mxu0
  %v1927 = vadd.f32 0.0, %v1926
  %v1928 = vpop.f32.mrb[0].mxu0
  %1929 = vmatprep.mubr.f32.mxu0 0.0
  %1930 = vmatmul.mubr.f32.gmra.mrb[0].mxu0 %v1341
  %v1931 = vpop.f32.mrb[0].mxu0
  %v1932 = vadd.f32 0.0, %v1931
  %v1933 = vpop.f32.mrb[0].mxu0
  %1934 = vmatprep.mubr.f32.mxu0 0.0
  %1935 = vmatmul.mubr.f32.gmra.mrb[0].mxu0 %v1342
  %v1936 = vpop.f32.mrb[0].mxu0
  %v1937 = vadd.f32 0.0, %v1936
  %v1938 = vpop.f32.mrb[0].mxu0
  %1939 = vmatprep.mubr.f32.mxu0 0.0
  %1940 = vmatmul.mubr.f32.gmra.mrb[0].mxu0 %v1343
  %v1941 = vpop.f32.mrb[0].mxu0
  %v1942 = vadd.f32 0.0, %v1941
  %v1943 = vpop.f32.mrb[0].mxu0
  %1944 = vmatprep.mubr.f32.mxu0 0.0
  %1945 = vmatmul.mubr.f32.gmra.mrb[0].mxu0 %v1344
  %v1946 = vpop.f32.mrb[0].mxu0
  %v1947 = vadd.f32 0.0, %v1946
  %v1948 = vpop.f32.mrb[0].mxu0
  %1949 = vmatprep.mubr.f32.mxu0 0.0
  %1950 = vmatmul.mubr.f32.gmra.mrb[0].mxu0 %v1345
  %v1951 = vpop.f32.mrb[0].mxu0
  %v1952 = vadd.f32 0.0, %v1951
  %v1953 = vpop.f32.mrb[0].mxu0
  %1954 = vmatprep.mubr.f32.mxu0 0.0
  %1955 = vmatmul.mubr.f32.gmra.mrb[0].mxu0 %v1346
  %v1956 = vpop.f32.mrb[0].mxu0
  %v1957 = vadd.f32 0.0, %v1956
  %v1958 = vpop.f32.mrb[0].mxu0
  %1959 = vmatprep.mubr.f32.mxu0 0.0
  %1960 = vmatmul.mubr.f32.gmra.mrb[0].mxu0 %v1347
  %v1961 = vpop.f32.mrb[0].mxu0
  %v1962 = vadd.f32 0.0, %v1961
  %v1963 = vpop.f32.mrb[0].mxu0
  %1964 = vmatprep.mubr.f32.mxu0 0.0
  %1965 = vmatmul.mubr.f32.gmra.mrb[0].mxu0 %v1348
  %v1966 = vpop.f32.mrb[0].mxu0
  %v1967 = vadd.f32 0.0, %v1966
  %v1968 = vpop.f32.mrb[0].mxu0
  %1969 = vmatprep.mubr.f32.mxu0 0.0
  %1970 = vmatmul.mubr.f32.gmra.mrb[0].mxu0 %v1349
  %v1971 = vpop.f32.mrb[0].mxu0
  %v1972 = vadd.f32 0.0, %v1971
  %v1973 = vpop.f32.mrb[0].mxu0
  %1974 = vmatprep.mubr.f32.mxu0 0.0
  %1975 = vmatmul.mubr.f32.gmra.mrb[0].mxu0 %v1350
  %v1976 = vpop.f32.mrb[0].mxu0
  %v1977 = vadd.f32 0.0, %v1976
  %v1978 = vpop.f32.mrb[0].mxu0
  %1979 = vmatprep.mubr.f32.mxu0 0.0
  %1980 = vmatmul.mubr.f32.gmra.mrb[0].mxu0 %v1351
  %v1981 = vpop.f32.mrb[0].mxu0
  %v1982 = vadd.f32 0.0, %v1981
  %v1983 = vpop.f32.mrb[0].mxu0
  %1984 = vmatprep.mubr.f32.mxu0 0.0
  %1985 = vmatmul.mubr.f32.gmra.mrb[0].mxu0 %v1352
  %v1986 = vpop.f32.mrb[0].mxu0
  %v1987 = vadd.f32 0.0, %v1986
  %v1988 = vpop.f32.mrb[0].mxu0
  %1989 = vmatprep.mubr.f32.mxu0 0.0
  %1990 = vmatmul.mubr.f32.gmra.mrb[0].mxu0 %v1353
  %v1991 = vpop.f32.mrb[0].mxu0
  %v1992 = vadd.f32 0.0, %v1991
  %v1993 = vpop.f32.mrb[0].mxu0
  %1994 = vmatprep.mubr.f32.mxu0 0.0
  %1995 = vmatmul.mubr.f32.gmra.mrb[0].mxu0 %v1354
  %v1996 = vpop.f32.mrb[0].mxu0
  %v1997 = vadd.f32 0.0, %v1996
  %v1998 = vpop.f32.mrb[0].mxu0
  %1999 = vmatprep.mubr.f32.mxu0 0.0
  %2000 = vmatmul.mubr.f32.gmra.mrb[0].mxu0 %v1355
  %v2001 = vpop.f32.mrb[0].mxu0
  %v2002 = vadd.f32 0.0, %v2001
  %v2003 = vpop.f32.mrb[0].mxu0
  %2004 = vmatprep.mubr.f32.mxu0 0.0
  %2005 = vmatmul.mubr.f32.gmra.mrb[0].mxu0 %v1356
  %v2006 = vpop.f32.mrb[0].mxu0
  %v2007 = vadd.f32 0.0, %v2006
  %v2008 = vpop.f32.mrb[0].mxu0
  %2009 = vmatprep.mubr.f32.mxu0 0.0
  %2010 = vmatmul.mubr.f32.gmra.mrb[0].mxu0 %v1357
  %v2011 = vpop.f32.mrb[0].mxu0
  %v2012 = vadd.f32 0.0, %v2011
  %v2013 = vpop.f32.mrb[0].mxu0
  %2014 = vmatprep.mubr.f32.mxu0 0.0
  %2015 = vmatmul.mubr.f32.gmra.mrb[0].mxu0 %v1358
  %v2016 = vpop.f32.mrb[0].mxu0
  %v2017 = vadd.f32 0.0, %v2016
  %v2018 = vpop.f32.mrb[0].mxu0
  %2019 = vmatprep.mubr.f32.mxu0 0.0
  %2020 = vmatmul.mubr.f32.gmra.mrb[0].mxu0 %v1359
  %v2021 = vpop.f32.mrb[0].mxu0
  %v2022 = vadd.f32 0.0, %v2021
  %v2023 = vpop.f32.mrb[0].mxu0
  %2024 = vmatprep.mubr.f32.mxu0 0.0
  %2025 = vmatmul.mubr.f32.gmra.mrb[0].mxu0 %v1360
  %v2026 = vpop.f32.mrb[0].mxu0
  %v2027 = vadd.f32 0.0, %v2026
  %v2028 = vpop.f32.mrb[0].mxu0
  %2029 = vmatprep.mubr.f32.mxu0 0.0
  %2030 = vmatmul.mubr.f32.gmra.mrb[0].mxu0 %v1361
  %v2031 = vpop.f32.mrb[0].mxu0
  %v2032 = vadd.f32 0.0, %v2031
  %v2033 = vpop.f32.mrb[0].mxu0
  %2034 = vmatprep.mubr.f32.mxu0 0.0
  %2035 = vmatmul.mubr.f32.gmra.mrb[0].mxu0 %v1362
  %v2036 = vpop.f32.mrb[0].mxu0
  %v2037 = vadd.f32 0.0, %v2036
  %v2038 = vpop.f32.mrb[0].mxu0
  %2039 = vmatprep.mubr.f32.mxu0 0.0
  %2040 = vmatmul.mubr.f32.gmra.mrb[0].mxu0 %v1363
  %v2041 = vpop.f32.mrb[0].mxu0
  %v2042 = vadd.f32 0.0, %v2041
  %v2043 = vpop.f32.mrb[0].mxu0
  %2044 = vmatprep.mubr.f32.mxu0 0.0
  %2045 = vmatmul.mubr.f32.gmra.mrb[0].mxu0 %v1364
  %v2046 = vpop.f32.mrb[0].mxu0
  %v2047 = vadd.f32 0.0, %v2046
  %v2048 = vpop.f32.mrb[0].mxu0
  %2049 = vmatprep.mubr.f32.mxu0 0.0
  %2050 = vmatmul.mubr.f32.gmra.mrb[0].mxu0 %v1365
  %v2051 = vpop.f32.mrb[0].mxu0
  %v2052 = vadd.f32 0.0, %v2051
  %v2053 = vpop.f32.mrb[0].mxu0
  %2054 = vmatprep.mubr.f32.mxu0 0.0
  %2055 = vmatmul.mubr.f32.gmra.mrb[0].mxu0 %v1366
  %v2056 = vpop.f32.mrb[0].mxu0
  %v2057 = vadd.f32 0.0, %v2056
  %v2058 = vpop.f32.mrb[0].mxu0
  %2059 = vmatprep.mubr.f32.mxu0 0.0
  %2060 = vmatmul.mubr.f32.gmra.mrb[0].mxu0 %v1367
  %v2061 = vpop.f32.mrb[0].mxu0
  %v2062 = vadd.f32 0.0, %v2061
  %v2063 = vpop.f32.mrb[0].mxu0
  %2064 = vmatprep.mubr.f32.mxu0 0.0
  %2065 = vmatmul.mubr.f32.gmra.mrb[0].mxu0 %v1368
  %v2066 = vpop.f32.mrb[0].mxu0
  %v2067 = vadd.f32 0.0, %v2066
  %v2068 = vpop.f32.mrb[0].mxu0
  %2069 = vmatprep.mubr.f32.mxu0 0.0
  %2070 = vmatmul.mubr.f32.gmra.mrb[0].mxu0 %v1369
  %v2071 = vpop.f32.mrb[0].mxu0
  %v2072 = vadd.f32 0.0, %v2071
  %v2073 = vpop.f32.mrb[0].mxu0
  %2074 = vmatprep.mubr.f32.mxu0 0.0
  %2075 = vmatmul.mubr.f32.gmra.mrb[0].mxu0 %v1370
  %v2076 = vpop.f32.mrb[0].mxu0
  %v2077 = vadd.f32 0.0, %v2076
  %v2078 = vpop.f32.mrb[0].mxu0
  %2079 = vmatprep.mubr.f32.mxu0 0.0
  %2080 = vmatmul.mubr.f32.gmra.mrb[0].mxu0 %v1371
  %v2081 = vpop.f32.mrb[0].mxu0
  %v2082 = vadd.f32 0.0, %v2081
  %v2083 = vpop.f32.mrb[0].mxu0
  %2084 = vmatprep.mubr.f32.mxu0 0.0
  %2085 = vmatmul.mubr.f32.gmra.mrb[0].mxu0 %v1372
  %v2086 = vpop.f32.mrb[0].mxu0
  %v2087 = vadd.f32 0.0, %v2086
  %v2088 = vpop.f32.mrb[0].mxu0
  %2089 = vmatprep.mubr.f32.mxu0 0.0
  %2090 = vmatmul.mubr.f32.gmra.mrb[0].mxu0 %v1373
  %v2091 = vpop.f32.mrb[0].mxu0
  %v2092 = vadd.f32 0.0, %v2091
  %v2093 = vpop.f32.mrb[0].mxu0
  %2094 = vdwg.mxu0
  %v2095 = vlaneseq
  %v2096 = vand.u32 %v2095, 127
  %vm2097 = vcmp.eq.s32.totalorder %v2096, 7
  %v2098 = vmax.f32 %v1457, 0.0
  %v2099 = vmax.f32 %v1462, 0.0
  %v2100 = vmax.f32 %v1467, 0.0
  %v2101 = vmax.f32 %v1472, 0.0
  %v2102 = vmax.f32 %v1477, 0.0
  %v2103 = vmax.f32 %v1482, 0.0
  %v2104 = vmax.f32 %v1487, 0.0
  %v2105 = vmax.f32 %v1492, 0.0
  %v2106 = vmax.f32 %v1497, 0.0
  %v2107 = vmax.f32 %v1502, 0.0
  %v2108 = vmax.f32 %v1507, 0.0
  %v2109 = vmax.f32 %v1512, 0.0
  %v2110 = vmax.f32 %v1517, 0.0
  %v2111 = vmax.f32 %v1522, 0.0
  %v2112 = vmax.f32 %v1527, 0.0
  %v2113 = vmax.f32 %v1532, 0.0
  %v2114 = vmax.f32 %v1537, 0.0
  %v2115 = vmax.f32 %v1542, 0.0
  %v2116 = vmax.f32 %v1547, 0.0
  %v2117 = vmax.f32 %v1552, 0.0
  %v2118 = vmax.f32 %v1557, 0.0
  %v2119 = vmax.f32 %v1562, 0.0
  %v2120 = vmax.f32 %v1567, 0.0
  %v2121 = vmax.f32 %v1572, 0.0
  %v2122 = vmax.f32 %v1577, 0.0
  %v2123 = vmax.f32 %v1582, 0.0
  %v2124 = vmax.f32 %v1587, 0.0
  %v2125 = vmax.f32 %v1592, 0.0
  %v2126 = vmax.f32 %v1597, 0.0
  %v2127 = vmax.f32 %v1602, 0.0
  %v2128 = vmax.f32 %v1607, 0.0
  %v2129 = vmax.f32 %v1612, 0.0
  %v2130 = vmax.f32 %v1617, 0.0
  %v2131 = vmax.f32 %v1622, 0.0
  %v2132 = vmax.f32 %v1627, 0.0
  %v2133 = vmax.f32 %v1632, 0.0
  %v2134 = vmax.f32 %v1637, 0.0
  %v2135 = vmax.f32 %v1642, 0.0
  %v2136 = vmax.f32 %v1647, 0.0
  %v2137 = vmax.f32 %v1652, 0.0
  %v2138 = vmax.f32 %v1657, 0.0
  %v2139 = vmax.f32 %v1662, 0.0
  %v2140 = vmax.f32 %v1667, 0.0
  %v2141 = vmax.f32 %v1672, 0.0
  %v2142 = vmax.f32 %v1677, 0.0
  %v2143 = vmax.f32 %v1682, 0.0
  %v2144 = vmax.f32 %v1687, 0.0
  %v2145 = vmax.f32 %v1692, 0.0
  %v2146 = vmax.f32 %v1697, 0.0
  %v2147 = vmax.f32 %v1702, 0.0
  %v2148 = vmax.f32 %v1707, 0.0
  %v2149 = vmax.f32 %v1712, 0.0
  %v2150 = vmax.f32 %v1717, 0.0
  %v2151 = vmax.f32 %v1722, 0.0
  %v2152 = vmax.f32 %v1727, 0.0
  %v2153 = vmax.f32 %v1732, 0.0
  %v2154 = vmax.f32 %v1737, 0.0
  %v2155 = vmax.f32 %v1742, 0.0
  %v2156 = vmax.f32 %v1747, 0.0
  %v2157 = vmax.f32 %v1752, 0.0
  %v2158 = vmax.f32 %v1757, 0.0
  %v2159 = vmax.f32 %v1762, 0.0
  %v2160 = vmax.f32 %v1767, 0.0
  %v2161 = vmax.f32 %v1772, 0.0
  %v2162 = vmax.f32 %v1777, 0.0
  %v2163 = vmax.f32 %v1782, 0.0
  %v2164 = vmax.f32 %v1787, 0.0
  %v2165 = vmax.f32 %v1792, 0.0
  %v2166 = vmax.f32 %v1797, 0.0
  %v2167 = vmax.f32 %v1802, 0.0
  %v2168 = vmax.f32 %v1807, 0.0
  %v2169 = vmax.f32 %v1812, 0.0
  %v2170 = vmax.f32 %v1817, 0.0
  %v2171 = vmax.f32 %v1822, 0.0
  %v2172 = vmax.f32 %v1827, 0.0
  %v2173 = vmax.f32 %v1832, 0.0
  %v2174 = vmax.f32 %v1837, 0.0
  %v2175 = vmax.f32 %v1842, 0.0
  %v2176 = vmax.f32 %v1847, 0.0
  %v2177 = vmax.f32 %v1852, 0.0
  %v2178 = vmax.f32 %v1857, 0.0
  %v2179 = vmax.f32 %v1862, 0.0
  %v2180 = vmax.f32 %v1867, 0.0
  %v2181 = vmax.f32 %v1872, 0.0
  %v2182 = vmax.f32 %v1877, 0.0
  %v2183 = vmax.f32 %v1882, 0.0
  %v2184 = vmax.f32 %v1887, 0.0
  %v2185 = vmax.f32 %v1892, 0.0
  %v2186 = vmax.f32 %v1897, 0.0
  %v2187 = vmax.f32 %v1902, 0.0
  %v2188 = vmax.f32 %v1907, 0.0
  %v2189 = vmax.f32 %v1912, 0.0
  %v2190 = vmax.f32 %v1917, 0.0
  %v2191 = vmax.f32 %v1922, 0.0
  %v2192 = vmax.f32 %v1927, 0.0
  %v2193 = vmax.f32 %v1932, 0.0
  %v2194 = vmax.f32 %v1937, 0.0
  %v2195 = vmax.f32 %v1942, 0.0
  %v2196 = vmax.f32 %v1947, 0.0
  %v2197 = vmax.f32 %v1952, 0.0
  %v2198 = vmax.f32 %v1957, 0.0
  %v2199 = vmax.f32 %v1962, 0.0
  %v2200 = vmax.f32 %v1967, 0.0
  %v2201 = vmax.f32 %v1972, 0.0
  %v2202 = vmax.f32 %v1977, 0.0
  %v2203 = vmax.f32 %v1982, 0.0
  %v2204 = vmax.f32 %v1987, 0.0
  %v2205 = vmax.f32 %v1992, 0.0
  %v2206 = vmax.f32 %v1997, 0.0
  %v2207 = vmax.f32 %v2002, 0.0
  %v2208 = vmax.f32 %v2007, 0.0
  %v2209 = vmax.f32 %v2012, 0.0
  %v2210 = vmax.f32 %v2017, 0.0
  %v2211 = vmax.f32 %v2022, 0.0
  %v2212 = vmax.f32 %v2027, 0.0
  %v2213 = vmax.f32 %v2032, 0.0
  %v2214 = vmax.f32 %v2037, 0.0
  %v2215 = vmax.f32 %v2042, 0.0
  %v2216 = vmax.f32 %v2047, 0.0
  %v2217 = vmax.f32 %v2052, 0.0
  %v2218 = vmax.f32 %v2057, 0.0
  %v2219 = vmax.f32 %v2062, 0.0
  %v2220 = vmax.f32 %v2067, 0.0
  %v2221 = vmax.f32 %v2072, 0.0
  %v2222 = vmax.f32 %v2077, 0.0
  %v2223 = vmax.f32 %v2082, 0.0
  %v2224 = vmax.f32 %v2087, 0.0
  %v2225 = vmax.f32 %v2092, 0.0
  %v2226 = vsel %vm2097, %v2098, %v1457
  %v2227 = vsel %vm2097, %v2099, %v1462
  %v2228 = vsel %vm2097, %v2100, %v1467
  %v2229 = vsel %vm2097, %v2101, %v1472
  %v2230 = vsel %vm2097, %v2102, %v1477
  %v2231 = vsel %vm2097, %v2103, %v1482
  %v2232 = vsel %vm2097, %v2104, %v1487
  %v2233 = vsel %vm2097, %v2105, %v1492
  %v2234 = vsel %vm2097, %v2106, %v1497
  %v2235 = vsel %vm2097, %v2107, %v1502
  %v2236 = vsel %vm2097, %v2108, %v1507
  %v2237 = vsel %vm2097, %v2109, %v1512
  %v2238 = vsel %vm2097, %v2110, %v1517
  %v2239 = vsel %vm2097, %v2111, %v1522
  %v2240 = vsel %vm2097, %v2112, %v1527
  %v2241 = vsel %vm2097, %v2113, %v1532
  %v2242 = vsel %vm2097, %v2114, %v1537
  %v2243 = vsel %vm2097, %v2115, %v1542
  %v2244 = vsel %vm2097, %v2116, %v1547
  %v2245 = vsel %vm2097, %v2117, %v1552
  %v2246 = vsel %vm2097, %v2118, %v1557
  %v2247 = vsel %vm2097, %v2119, %v1562
  %v2248 = vsel %vm2097, %v2120, %v1567
  %v2249 = vsel %vm2097, %v2121, %v1572
  %v2250 = vsel %vm2097, %v2122, %v1577
  %v2251 = vsel %vm2097, %v2123, %v1582
  %v2252 = vsel %vm2097, %v2124, %v1587
  %v2253 = vsel %vm2097, %v2125, %v1592
  %v2254 = vsel %vm2097, %v2126, %v1597
  %v2255 = vsel %vm2097, %v2127, %v1602
  %v2256 = vsel %vm2097, %v2128, %v1607
  %v2257 = vsel %vm2097, %v2129, %v1612
  %v2258 = vsel %vm2097, %v2130, %v1617
  %v2259 = vsel %vm2097, %v2131, %v1622
  %v2260 = vsel %vm2097, %v2132, %v1627
  %v2261 = vsel %vm2097, %v2133, %v1632
  %v2262 = vsel %vm2097, %v2134, %v1637
  %v2263 = vsel %vm2097, %v2135, %v1642
  %v2264 = vsel %vm2097, %v2136, %v1647
  %v2265 = vsel %vm2097, %v2137, %v1652
  %v2266 = vsel %vm2097, %v2138, %v1657
  %v2267 = vsel %vm2097, %v2139, %v1662
  %v2268 = vsel %vm2097, %v2140, %v1667
  %v2269 = vsel %vm2097, %v2141, %v1672
  %v2270 = vsel %vm2097, %v2142, %v1677
  %v2271 = vsel %vm2097, %v2143, %v1682
  %v2272 = vsel %vm2097, %v2144, %v1687
  %v2273 = vsel %vm2097, %v2145, %v1692
  %v2274 = vsel %vm2097, %v2146, %v1697
  %v2275 = vsel %vm2097, %v2147, %v1702
  %v2276 = vsel %vm2097, %v2148, %v1707
  %v2277 = vsel %vm2097, %v2149, %v1712
  %v2278 = vsel %vm2097, %v2150, %v1717
  %v2279 = vsel %vm2097, %v2151, %v1722
  %v2280 = vsel %vm2097, %v2152, %v1727
  %v2281 = vsel %vm2097, %v2153, %v1732
  %v2282 = vsel %vm2097, %v2154, %v1737
  %v2283 = vsel %vm2097, %v2155, %v1742
  %v2284 = vsel %vm2097, %v2156, %v1747
  %v2285 = vsel %vm2097, %v2157, %v1752
  %v2286 = vsel %vm2097, %v2158, %v1757
  %v2287 = vsel %vm2097, %v2159, %v1762
  %v2288 = vsel %vm2097, %v2160, %v1767
  %v2289 = vsel %vm2097, %v2161, %v1772
  %v2290 = vsel %vm2097, %v2162, %v1777
  %v2291 = vsel %vm2097, %v2163, %v1782
  %v2292 = vsel %vm2097, %v2164, %v1787
  %v2293 = vsel %vm2097, %v2165, %v1792
  %v2294 = vsel %vm2097, %v2166, %v1797
  %v2295 = vsel %vm2097, %v2167, %v1802
  %v2296 = vsel %vm2097, %v2168, %v1807
  %v2297 = vsel %vm2097, %v2169, %v1812
  %v2298 = vsel %vm2097, %v2170, %v1817
  %v2299 = vsel %vm2097, %v2171, %v1822
  %v2300 = vsel %vm2097, %v2172, %v1827
  %v2301 = vsel %vm2097, %v2173, %v1832
  %v2302 = vsel %vm2097, %v2174, %v1837
  %v2303 = vsel %vm2097, %v2175, %v1842
  %v2304 = vsel %vm2097, %v2176, %v1847
  %v2305 = vsel %vm2097, %v2177, %v1852
  %v2306 = vsel %vm2097, %v2178, %v1857
  %v2307 = vsel %vm2097, %v2179, %v1862
  %v2308 = vsel %vm2097, %v2180, %v1867
  %v2309 = vsel %vm2097, %v2181, %v1872
  %v2310 = vsel %vm2097, %v2182, %v1877
  %v2311 = vsel %vm2097, %v2183, %v1882
  %v2312 = vsel %vm2097, %v2184, %v1887
  %v2313 = vsel %vm2097, %v2185, %v1892
  %v2314 = vsel %vm2097, %v2186, %v1897
  %v2315 = vsel %vm2097, %v2187, %v1902
  %v2316 = vsel %vm2097, %v2188, %v1907
  %v2317 = vsel %vm2097, %v2189, %v1912
  %v2318 = vsel %vm2097, %v2190, %v1917
  %v2319 = vsel %vm2097, %v2191, %v1922
  %v2320 = vsel %vm2097, %v2192, %v1927
  %v2321 = vsel %vm2097, %v2193, %v1932
  %v2322 = vsel %vm2097, %v2194, %v1937
  %v2323 = vsel %vm2097, %v2195, %v1942
  %v2324 = vsel %vm2097, %v2196, %v1947
  %v2325 = vsel %vm2097, %v2197, %v1952
  %v2326 = vsel %vm2097, %v2198, %v1957
  %v2327 = vsel %vm2097, %v2199, %v1962
  %v2328 = vsel %vm2097, %v2200, %v1967
  %v2329 = vsel %vm2097, %v2201, %v1972
  %v2330 = vsel %vm2097, %v2202, %v1977
  %v2331 = vsel %vm2097, %v2203, %v1982
  %v2332 = vsel %vm2097, %v2204, %v1987
  %v2333 = vsel %vm2097, %v2205, %v1992
  %v2334 = vsel %vm2097, %v2206, %v1997
  %v2335 = vsel %vm2097, %v2207, %v2002
  %v2336 = vsel %vm2097, %v2208, %v2007
  %v2337 = vsel %vm2097, %v2209, %v2012
  %v2338 = vsel %vm2097, %v2210, %v2017
  %v2339 = vsel %vm2097, %v2211, %v2022
  %v2340 = vsel %vm2097, %v2212, %v2027
  %v2341 = vsel %vm2097, %v2213, %v2032
  %v2342 = vsel %vm2097, %v2214, %v2037
  %v2343 = vsel %vm2097, %v2215, %v2042
  %v2344 = vsel %vm2097, %v2216, %v2047
  %v2345 = vsel %vm2097, %v2217, %v2052
  %v2346 = vsel %vm2097, %v2218, %v2057
  %v2347 = vsel %vm2097, %v2219, %v2062
  %v2348 = vsel %vm2097, %v2220, %v2067
  %v2349 = vsel %vm2097, %v2221, %v2072
  %v2350 = vsel %vm2097, %v2222, %v2077
  %v2351 = vsel %vm2097, %v2223, %v2082
  %v2352 = vsel %vm2097, %v2224, %v2087
  %v2353 = vsel %vm2097, %v2225, %v2092
  %v2354 = vld [vmem:[%s3] sm:$0xff]
  %v2355 = vld [vmem:[%s3 + $0x8] sm:$0xff]
  %v2356 = vld [vmem:[%s3 + $0x10] sm:$0xff]
  %v2357 = vld [vmem:[%s3 + $0x18] sm:$0xff]
  %v2358 = vld [vmem:[%s3 + $0x20] sm:$0xff]
  %v2359 = vld [vmem:[%s3 + $0x28] sm:$0xff]
  %v2360 = vld [vmem:[%s3 + $0x30] sm:$0xff]
  %v2361 = vld [vmem:[%s3 + $0x38] sm:$0xff]
  %v2362 = vld [vmem:[%s3 + $0x40] sm:$0xff]
  %v2363 = vld [vmem:[%s3 + $0x48] sm:$0xff]
  %v2364 = vld [vmem:[%s3 + $0x50] sm:$0xff]
  %v2365 = vld [vmem:[%s3 + $0x58] sm:$0xff]
  %v2366 = vld [vmem:[%s3 + $0x60] sm:$0xff]
  %v2367 = vld [vmem:[%s3 + $0x68] sm:$0xff]
  %v2368 = vld [vmem:[%s3 + $0x70] sm:$0xff]
  %v2369 = vld [vmem:[%s3 + $0x78] sm:$0xff]
  %2370 = vmatprep.subr.mxu0 0.0
  %2371 = vmatpush1.msra.mxu0 %v2354
  %2372 = vmatprep.subr.mxu0 0.0
  %2373 = vmatpush1.msra.mxu0 %v2355
  %2374 = vmatprep.subr.mxu0 0.0
  %2375 = vmatpush1.msra.mxu0 %v2356
  %2376 = vmatprep.subr.mxu0 0.0
  %2377 = vmatpush1.msra.mxu0 %v2357
  %2378 = vmatprep.subr.mxu0 0.0
  %2379 = vmatpush1.msra.mxu0 %v2358
  %2380 = vmatprep.subr.mxu0 0.0
  %2381 = vmatpush1.msra.mxu0 %v2359
  %2382 = vmatprep.subr.mxu0 0.0
  %2383 = vmatpush1.msra.mxu0 %v2360
  %2384 = vmatprep.subr.mxu0 0.0
  %2385 = vmatpush1.msra.mxu0 %v2361
  %2386 = vmatprep.subr.mxu0 0.0
  %2387 = vmatpush1.msra.mxu0 %v2362
  %2388 = vmatprep.subr.mxu0 0.0
  %2389 = vmatpush1.msra.mxu0 %v2363
  %2390 = vmatprep.subr.mxu0 0.0
  %2391 = vmatpush1.msra.mxu0 %v2364
  %2392 = vmatprep.subr.mxu0 0.0
  %2393 = vmatpush1.msra.mxu0 %v2365
  %2394 = vmatprep.subr.mxu0 0.0
  %2395 = vmatpush1.msra.mxu0 %v2366
  %2396 = vmatprep.subr.mxu0 0.0
  %2397 = vmatpush1.msra.mxu0 %v2367
  %2398 = vmatprep.subr.mxu0 0.0
  %2399 = vmatpush1.msra.mxu0 %v2368
  %2400 = vmatprep.subr.mxu0 0.0
  %2401 = vmatpush1.msra.mxu0 %v2369
  %2402 = vmatprep.subr.mxu0 0.0
  %2403 = vmatpush1.msra.mxu0 0.0
  %2404 = vmatprep.subr.mxu0 0.0
  %2405 = vmatpush1.msra.mxu0 0.0
  %2406 = vmatprep.subr.mxu0 0.0
  %2407 = vmatpush1.msra.mxu0 0.0
  %2408 = vmatprep.subr.mxu0 0.0
  %2409 = vmatpush1.msra.mxu0 0.0
  %2410 = vmatprep.subr.mxu0 0.0
  %2411 = vmatpush1.msra.mxu0 0.0
  %2412 = vmatprep.subr.mxu0 0.0
  %2413 = vmatpush1.msra.mxu0 0.0
  %2414 = vmatprep.subr.mxu0 0.0
  %2415 = vmatpush1.msra.mxu0 0.0
  %2416 = vmatprep.subr.mxu0 0.0
  %2417 = vmatpush1.msra.mxu0 0.0
  %2418 = vmatprep.subr.mxu0 0.0
  %2419 = vmatpush1.msra.mxu0 0.0
  %2420 = vmatprep.subr.mxu0 0.0
  %2421 = vmatpush1.msra.mxu0 0.0
  %2422 = vmatprep.subr.mxu0 0.0
  %2423 = vmatpush1.msra.mxu0 0.0
  %2424 = vmatprep.subr.mxu0 0.0
  %2425 = vmatpush1.msra.mxu0 0.0
  %2426 = vmatprep.subr.mxu0 0.0
  %2427 = vmatpush1.msra.mxu0 0.0
  %2428 = vmatprep.subr.mxu0 0.0
  %2429 = vmatpush1.msra.mxu0 0.0
  %2430 = vmatprep.subr.mxu0 0.0
  %2431 = vmatpush1.msra.mxu0 0.0
  %2432 = vmatprep.subr.mxu0 0.0
  %2433 = vmatpush1.msra.mxu0 0.0
  %2434 = vmatprep.mubr.f32.mxu0 0.0
  %2435 = vmatmul.mubr.f32.gmra.mrb[0].mxu0 %v2226
  %v2436 = vpop.f32.mrb[0].mxu0
  %v2437 = vadd.f32 0.0, %v2436
  %v2438 = vpop.f32.mrb[0].mxu0
  %2439 = vmatprep.mubr.f32.mxu0 0.0
  %2440 = vmatmul.mubr.f32.gmra.mrb[0].mxu0 %v2227
  %v2441 = vpop.f32.mrb[0].mxu0
  %v2442 = vadd.f32 0.0, %v2441
  %v2443 = vpop.f32.mrb[0].mxu0
  %2444 = vmatprep.mubr.f32.mxu0 0.0
  %2445 = vmatmul.mubr.f32.gmra.mrb[0].mxu0 %v2228
  %v2446 = vpop.f32.mrb[0].mxu0
  %v2447 = vadd.f32 0.0, %v2446
  %v2448 = vpop.f32.mrb[0].mxu0
  %2449 = vmatprep.mubr.f32.mxu0 0.0
  %2450 = vmatmul.mubr.f32.gmra.mrb[0].mxu0 %v2229
  %v2451 = vpop.f32.mrb[0].mxu0
  %v2452 = vadd.f32 0.0, %v2451
  %v2453 = vpop.f32.mrb[0].mxu0
  %2454 = vmatprep.mubr.f32.mxu0 0.0
  %2455 = vmatmul.mubr.f32.gmra.mrb[0].mxu0 %v2230
  %v2456 = vpop.f32.mrb[0].mxu0
  %v2457 = vadd.f32 0.0, %v2456
  %v2458 = vpop.f32.mrb[0].mxu0
  %2459 = vmatprep.mubr.f32.mxu0 0.0
  %2460 = vmatmul.mubr.f32.gmra.mrb[0].mxu0 %v2231
  %v2461 = vpop.f32.mrb[0].mxu0
  %v2462 = vadd.f32 0.0, %v2461
  %v2463 = vpop.f32.mrb[0].mxu0
  %2464 = vmatprep.mubr.f32.mxu0 0.0
  %2465 = vmatmul.mubr.f32.gmra.mrb[0].mxu0 %v2232
  %v2466 = vpop.f32.mrb[0].mxu0
  %v2467 = vadd.f32 0.0, %v2466
  %v2468 = vpop.f32.mrb[0].mxu0
  %2469 = vmatprep.mubr.f32.mxu0 0.0
  %2470 = vmatmul.mubr.f32.gmra.mrb[0].mxu0 %v2233
  %v2471 = vpop.f32.mrb[0].mxu0
  %v2472 = vadd.f32 0.0, %v2471
  %v2473 = vpop.f32.mrb[0].mxu0
  %2474 = vmatprep.mubr.f32.mxu0 0.0
  %2475 = vmatmul.mubr.f32.gmra.mrb[0].mxu0 %v2234
  %v2476 = vpop.f32.mrb[0].mxu0
  %v2477 = vadd.f32 0.0, %v2476
  %v2478 = vpop.f32.mrb[0].mxu0
  %2479 = vmatprep.mubr.f32.mxu0 0.0
  %2480 = vmatmul.mubr.f32.gmra.mrb[0].mxu0 %v2235
  %v2481 = vpop.f32.mrb[0].mxu0
  %v2482 = vadd.f32 0.0, %v2481
  %v2483 = vpop.f32.mrb[0].mxu0
  %2484 = vmatprep.mubr.f32.mxu0 0.0
  %2485 = vmatmul.mubr.f32.gmra.mrb[0].mxu0 %v2236
  %v2486 = vpop.f32.mrb[0].mxu0
  %v2487 = vadd.f32 0.0, %v2486
  %v2488 = vpop.f32.mrb[0].mxu0
  %2489 = vmatprep.mubr.f32.mxu0 0.0
  %2490 = vmatmul.mubr.f32.gmra.mrb[0].mxu0 %v2237
  %v2491 = vpop.f32.mrb[0].mxu0
  %v2492 = vadd.f32 0.0, %v2491
  %v2493 = vpop.f32.mrb[0].mxu0
  %2494 = vmatprep.mubr.f32.mxu0 0.0
  %2495 = vmatmul.mubr.f32.gmra.mrb[0].mxu0 %v2238
  %v2496 = vpop.f32.mrb[0].mxu0
  %v2497 = vadd.f32 0.0, %v2496
  %v2498 = vpop.f32.mrb[0].mxu0
  %2499 = vmatprep.mubr.f32.mxu0 0.0
  %2500 = vmatmul.mubr.f32.gmra.mrb[0].mxu0 %v2239
  %v2501 = vpop.f32.mrb[0].mxu0
  %v2502 = vadd.f32 0.0, %v2501
  %v2503 = vpop.f32.mrb[0].mxu0
  %2504 = vmatprep.mubr.f32.mxu0 0.0
  %2505 = vmatmul.mubr.f32.gmra.mrb[0].mxu0 %v2240
  %v2506 = vpop.f32.mrb[0].mxu0
  %v2507 = vadd.f32 0.0, %v2506
  %v2508 = vpop.f32.mrb[0].mxu0
  %2509 = vmatprep.mubr.f32.mxu0 0.0
  %2510 = vmatmul.mubr.f32.gmra.mrb[0].mxu0 %v2241
  %v2511 = vpop.f32.mrb[0].mxu0
  %v2512 = vadd.f32 0.0, %v2511
  %v2513 = vpop.f32.mrb[0].mxu0
  %2514 = vmatprep.mubr.f32.mxu0 0.0
  %2515 = vmatmul.mubr.f32.gmra.mrb[0].mxu0 %v2242
  %v2516 = vpop.f32.mrb[0].mxu0
  %v2517 = vadd.f32 0.0, %v2516
  %v2518 = vpop.f32.mrb[0].mxu0
  %2519 = vmatprep.mubr.f32.mxu0 0.0
  %2520 = vmatmul.mubr.f32.gmra.mrb[0].mxu0 %v2243
  %v2521 = vpop.f32.mrb[0].mxu0
  %v2522 = vadd.f32 0.0, %v2521
  %v2523 = vpop.f32.mrb[0].mxu0
  %2524 = vmatprep.mubr.f32.mxu0 0.0
  %2525 = vmatmul.mubr.f32.gmra.mrb[0].mxu0 %v2244
  %v2526 = vpop.f32.mrb[0].mxu0
  %v2527 = vadd.f32 0.0, %v2526
  %v2528 = vpop.f32.mrb[0].mxu0
  %2529 = vmatprep.mubr.f32.mxu0 0.0
  %2530 = vmatmul.mubr.f32.gmra.mrb[0].mxu0 %v2245
  %v2531 = vpop.f32.mrb[0].mxu0
  %v2532 = vadd.f32 0.0, %v2531
  %v2533 = vpop.f32.mrb[0].mxu0
  %2534 = vmatprep.mubr.f32.mxu0 0.0
  %2535 = vmatmul.mubr.f32.gmra.mrb[0].mxu0 %v2246
  %v2536 = vpop.f32.mrb[0].mxu0
  %v2537 = vadd.f32 0.0, %v2536
  %v2538 = vpop.f32.mrb[0].mxu0
  %2539 = vmatprep.mubr.f32.mxu0 0.0
  %2540 = vmatmul.mubr.f32.gmra.mrb[0].mxu0 %v2247
  %v2541 = vpop.f32.mrb[0].mxu0
  %v2542 = vadd.f32 0.0, %v2541
  %v2543 = vpop.f32.mrb[0].mxu0
  %2544 = vmatprep.mubr.f32.mxu0 0.0
  %2545 = vmatmul.mubr.f32.gmra.mrb[0].mxu0 %v2248
  %v2546 = vpop.f32.mrb[0].mxu0
  %v2547 = vadd.f32 0.0, %v2546
  %v2548 = vpop.f32.mrb[0].mxu0
  %2549 = vmatprep.mubr.f32.mxu0 0.0
  %2550 = vmatmul.mubr.f32.gmra.mrb[0].mxu0 %v2249
  %v2551 = vpop.f32.mrb[0].mxu0
  %v2552 = vadd.f32 0.0, %v2551
  %v2553 = vpop.f32.mrb[0].mxu0
  %2554 = vmatprep.mubr.f32.mxu0 0.0
  %2555 = vmatmul.mubr.f32.gmra.mrb[0].mxu0 %v2250
  %v2556 = vpop.f32.mrb[0].mxu0
  %v2557 = vadd.f32 0.0, %v2556
  %v2558 = vpop.f32.mrb[0].mxu0
  %2559 = vmatprep.mubr.f32.mxu0 0.0
  %2560 = vmatmul.mubr.f32.gmra.mrb[0].mxu0 %v2251
  %v2561 = vpop.f32.mrb[0].mxu0
  %v2562 = vadd.f32 0.0, %v2561
  %v2563 = vpop.f32.mrb[0].mxu0
  %2564 = vmatprep.mubr.f32.mxu0 0.0
  %2565 = vmatmul.mubr.f32.gmra.mrb[0].mxu0 %v2252
  %v2566 = vpop.f32.mrb[0].mxu0
  %v2567 = vadd.f32 0.0, %v2566
  %v2568 = vpop.f32.mrb[0].mxu0
  %2569 = vmatprep.mubr.f32.mxu0 0.0
  %2570 = vmatmul.mubr.f32.gmra.mrb[0].mxu0 %v2253
  %v2571 = vpop.f32.mrb[0].mxu0
  %v2572 = vadd.f32 0.0, %v2571
  %v2573 = vpop.f32.mrb[0].mxu0
  %2574 = vmatprep.mubr.f32.mxu0 0.0
  %2575 = vmatmul.mubr.f32.gmra.mrb[0].mxu0 %v2254
  %v2576 = vpop.f32.mrb[0].mxu0
  %v2577 = vadd.f32 0.0, %v2576
  %v2578 = vpop.f32.mrb[0].mxu0
  %2579 = vmatprep.mubr.f32.mxu0 0.0
  %2580 = vmatmul.mubr.f32.gmra.mrb[0].mxu0 %v2255
  %v2581 = vpop.f32.mrb[0].mxu0
  %v2582 = vadd.f32 0.0, %v2581
  %v2583 = vpop.f32.mrb[0].mxu0
  %2584 = vmatprep.mubr.f32.mxu0 0.0
  %2585 = vmatmul.mubr.f32.gmra.mrb[0].mxu0 %v2256
  %v2586 = vpop.f32.mrb[0].mxu0
  %v2587 = vadd.f32 0.0, %v2586
  %v2588 = vpop.f32.mrb[0].mxu0
  %2589 = vmatprep.mubr.f32.mxu0 0.0
  %2590 = vmatmul.mubr.f32.gmra.mrb[0].mxu0 %v2257
  %v2591 = vpop.f32.mrb[0].mxu0
  %v2592 = vadd.f32 0.0, %v2591
  %v2593 = vpop.f32.mrb[0].mxu0
  %2594 = vmatprep.mubr.f32.mxu0 0.0
  %2595 = vmatmul.mubr.f32.gmra.mrb[0].mxu0 %v2258
  %v2596 = vpop.f32.mrb[0].mxu0
  %v2597 = vadd.f32 0.0, %v2596
  %v2598 = vpop.f32.mrb[0].mxu0
  %2599 = vmatprep.mubr.f32.mxu0 0.0
  %2600 = vmatmul.mubr.f32.gmra.mrb[0].mxu0 %v2259
  %v2601 = vpop.f32.mrb[0].mxu0
  %v2602 = vadd.f32 0.0, %v2601
  %v2603 = vpop.f32.mrb[0].mxu0
  %2604 = vmatprep.mubr.f32.mxu0 0.0
  %2605 = vmatmul.mubr.f32.gmra.mrb[0].mxu0 %v2260
  %v2606 = vpop.f32.mrb[0].mxu0
  %v2607 = vadd.f32 0.0, %v2606
  %v2608 = vpop.f32.mrb[0].mxu0
  %2609 = vmatprep.mubr.f32.mxu0 0.0
  %2610 = vmatmul.mubr.f32.gmra.mrb[0].mxu0 %v2261
  %v2611 = vpop.f32.mrb[0].mxu0
  %v2612 = vadd.f32 0.0, %v2611
  %v2613 = vpop.f32.mrb[0].mxu0
  %2614 = vmatprep.mubr.f32.mxu0 0.0
  %2615 = vmatmul.mubr.f32.gmra.mrb[0].mxu0 %v2262
  %v2616 = vpop.f32.mrb[0].mxu0
  %v2617 = vadd.f32 0.0, %v2616
  %v2618 = vpop.f32.mrb[0].mxu0
  %2619 = vmatprep.mubr.f32.mxu0 0.0
  %2620 = vmatmul.mubr.f32.gmra.mrb[0].mxu0 %v2263
  %v2621 = vpop.f32.mrb[0].mxu0
  %v2622 = vadd.f32 0.0, %v2621
  %v2623 = vpop.f32.mrb[0].mxu0
  %2624 = vmatprep.mubr.f32.mxu0 0.0
  %2625 = vmatmul.mubr.f32.gmra.mrb[0].mxu0 %v2264
  %v2626 = vpop.f32.mrb[0].mxu0
  %v2627 = vadd.f32 0.0, %v2626
  %v2628 = vpop.f32.mrb[0].mxu0
  %2629 = vmatprep.mubr.f32.mxu0 0.0
  %2630 = vmatmul.mubr.f32.gmra.mrb[0].mxu0 %v2265
  %v2631 = vpop.f32.mrb[0].mxu0
  %v2632 = vadd.f32 0.0, %v2631
  %v2633 = vpop.f32.mrb[0].mxu0
  %2634 = vmatprep.mubr.f32.mxu0 0.0
  %2635 = vmatmul.mubr.f32.gmra.mrb[0].mxu0 %v2266
  %v2636 = vpop.f32.mrb[0].mxu0
  %v2637 = vadd.f32 0.0, %v2636
  %v2638 = vpop.f32.mrb[0].mxu0
  %2639 = vmatprep.mubr.f32.mxu0 0.0
  %2640 = vmatmul.mubr.f32.gmra.mrb[0].mxu0 %v2267
  %v2641 = vpop.f32.mrb[0].mxu0
  %v2642 = vadd.f32 0.0, %v2641
  %v2643 = vpop.f32.mrb[0].mxu0
  %2644 = vmatprep.mubr.f32.mxu0 0.0
  %2645 = vmatmul.mubr.f32.gmra.mrb[0].mxu0 %v2268
  %v2646 = vpop.f32.mrb[0].mxu0
  %v2647 = vadd.f32 0.0, %v2646
  %v2648 = vpop.f32.mrb[0].mxu0
  %2649 = vmatprep.mubr.f32.mxu0 0.0
  %2650 = vmatmul.mubr.f32.gmra.mrb[0].mxu0 %v2269
  %v2651 = vpop.f32.mrb[0].mxu0
  %v2652 = vadd.f32 0.0, %v2651
  %v2653 = vpop.f32.mrb[0].mxu0
  %2654 = vmatprep.mubr.f32.mxu0 0.0
  %2655 = vmatmul.mubr.f32.gmra.mrb[0].mxu0 %v2270
  %v2656 = vpop.f32.mrb[0].mxu0
  %v2657 = vadd.f32 0.0, %v2656
  %v2658 = vpop.f32.mrb[0].mxu0
  %2659 = vmatprep.mubr.f32.mxu0 0.0
  %2660 = vmatmul.mubr.f32.gmra.mrb[0].mxu0 %v2271
  %v2661 = vpop.f32.mrb[0].mxu0
  %v2662 = vadd.f32 0.0, %v2661
  %v2663 = vpop.f32.mrb[0].mxu0
  %2664 = vmatprep.mubr.f32.mxu0 0.0
  %2665 = vmatmul.mubr.f32.gmra.mrb[0].mxu0 %v2272
  %v2666 = vpop.f32.mrb[0].mxu0
  %v2667 = vadd.f32 0.0, %v2666
  %v2668 = vpop.f32.mrb[0].mxu0
  %2669 = vmatprep.mubr.f32.mxu0 0.0
  %2670 = vmatmul.mubr.f32.gmra.mrb[0].mxu0 %v2273
  %v2671 = vpop.f32.mrb[0].mxu0
  %v2672 = vadd.f32 0.0, %v2671
  %v2673 = vpop.f32.mrb[0].mxu0
  %2674 = vmatprep.mubr.f32.mxu0 0.0
  %2675 = vmatmul.mubr.f32.gmra.mrb[0].mxu0 %v2274
  %v2676 = vpop.f32.mrb[0].mxu0
  %v2677 = vadd.f32 0.0, %v2676
  %v2678 = vpop.f32.mrb[0].mxu0
  %2679 = vmatprep.mubr.f32.mxu0 0.0
  %2680 = vmatmul.mubr.f32.gmra.mrb[0].mxu0 %v2275
  %v2681 = vpop.f32.mrb[0].mxu0
  %v2682 = vadd.f32 0.0, %v2681
  %v2683 = vpop.f32.mrb[0].mxu0
  %2684 = vmatprep.mubr.f32.mxu0 0.0
  %2685 = vmatmul.mubr.f32.gmra.mrb[0].mxu0 %v2276
  %v2686 = vpop.f32.mrb[0].mxu0
  %v2687 = vadd.f32 0.0, %v2686
  %v2688 = vpop.f32.mrb[0].mxu0
  %2689 = vmatprep.mubr.f32.mxu0 0.0
  %2690 = vmatmul.mubr.f32.gmra.mrb[0].mxu0 %v2277
  %v2691 = vpop.f32.mrb[0].mxu0
  %v2692 = vadd.f32 0.0, %v2691
  %v2693 = vpop.f32.mrb[0].mxu0
  %2694 = vmatprep.mubr.f32.mxu0 0.0
  %2695 = vmatmul.mubr.f32.gmra.mrb[0].mxu0 %v2278
  %v2696 = vpop.f32.mrb[0].mxu0
  %v2697 = vadd.f32 0.0, %v2696
  %v2698 = vpop.f32.mrb[0].mxu0
  %2699 = vmatprep.mubr.f32.mxu0 0.0
  %2700 = vmatmul.mubr.f32.gmra.mrb[0].mxu0 %v2279
  %v2701 = vpop.f32.mrb[0].mxu0
  %v2702 = vadd.f32 0.0, %v2701
  %v2703 = vpop.f32.mrb[0].mxu0
  %2704 = vmatprep.mubr.f32.mxu0 0.0
  %2705 = vmatmul.mubr.f32.gmra.mrb[0].mxu0 %v2280
  %v2706 = vpop.f32.mrb[0].mxu0
  %v2707 = vadd.f32 0.0, %v2706
  %v2708 = vpop.f32.mrb[0].mxu0
  %2709 = vmatprep.mubr.f32.mxu0 0.0
  %2710 = vmatmul.mubr.f32.gmra.mrb[0].mxu0 %v2281
  %v2711 = vpop.f32.mrb[0].mxu0
  %v2712 = vadd.f32 0.0, %v2711
  %v2713 = vpop.f32.mrb[0].mxu0
  %2714 = vmatprep.mubr.f32.mxu0 0.0
  %2715 = vmatmul.mubr.f32.gmra.mrb[0].mxu0 %v2282
  %v2716 = vpop.f32.mrb[0].mxu0
  %v2717 = vadd.f32 0.0, %v2716
  %v2718 = vpop.f32.mrb[0].mxu0
  %2719 = vmatprep.mubr.f32.mxu0 0.0
  %2720 = vmatmul.mubr.f32.gmra.mrb[0].mxu0 %v2283
  %v2721 = vpop.f32.mrb[0].mxu0
  %v2722 = vadd.f32 0.0, %v2721
  %v2723 = vpop.f32.mrb[0].mxu0
  %2724 = vmatprep.mubr.f32.mxu0 0.0
  %2725 = vmatmul.mubr.f32.gmra.mrb[0].mxu0 %v2284
  %v2726 = vpop.f32.mrb[0].mxu0
  %v2727 = vadd.f32 0.0, %v2726
  %v2728 = vpop.f32.mrb[0].mxu0
  %2729 = vmatprep.mubr.f32.mxu0 0.0
  %2730 = vmatmul.mubr.f32.gmra.mrb[0].mxu0 %v2285
  %v2731 = vpop.f32.mrb[0].mxu0
  %v2732 = vadd.f32 0.0, %v2731
  %v2733 = vpop.f32.mrb[0].mxu0
  %2734 = vmatprep.mubr.f32.mxu0 0.0
  %2735 = vmatmul.mubr.f32.gmra.mrb[0].mxu0 %v2286
  %v2736 = vpop.f32.mrb[0].mxu0
  %v2737 = vadd.f32 0.0, %v2736
  %v2738 = vpop.f32.mrb[0].mxu0
  %2739 = vmatprep.mubr.f32.mxu0 0.0
  %2740 = vmatmul.mubr.f32.gmra.mrb[0].mxu0 %v2287
  %v2741 = vpop.f32.mrb[0].mxu0
  %v2742 = vadd.f32 0.0, %v2741
  %v2743 = vpop.f32.mrb[0].mxu0
  %2744 = vmatprep.mubr.f32.mxu0 0.0
  %2745 = vmatmul.mubr.f32.gmra.mrb[0].mxu0 %v2288
  %v2746 = vpop.f32.mrb[0].mxu0
  %v2747 = vadd.f32 0.0, %v2746
  %v2748 = vpop.f32.mrb[0].mxu0
  %2749 = vmatprep.mubr.f32.mxu0 0.0
  %2750 = vmatmul.mubr.f32.gmra.mrb[0].mxu0 %v2289
  %v2751 = vpop.f32.mrb[0].mxu0
  %v2752 = vadd.f32 0.0, %v2751
  %v2753 = vpop.f32.mrb[0].mxu0
  %2754 = vmatprep.mubr.f32.mxu0 0.0
  %2755 = vmatmul.mubr.f32.gmra.mrb[0].mxu0 %v2290
  %v2756 = vpop.f32.mrb[0].mxu0
  %v2757 = vadd.f32 0.0, %v2756
  %v2758 = vpop.f32.mrb[0].mxu0
  %2759 = vmatprep.mubr.f32.mxu0 0.0
  %2760 = vmatmul.mubr.f32.gmra.mrb[0].mxu0 %v2291
  %v2761 = vpop.f32.mrb[0].mxu0
  %v2762 = vadd.f32 0.0, %v2761
  %v2763 = vpop.f32.mrb[0].mxu0
  %2764 = vmatprep.mubr.f32.mxu0 0.0
  %2765 = vmatmul.mubr.f32.gmra.mrb[0].mxu0 %v2292
  %v2766 = vpop.f32.mrb[0].mxu0
  %v2767 = vadd.f32 0.0, %v2766
  %v2768 = vpop.f32.mrb[0].mxu0
  %2769 = vmatprep.mubr.f32.mxu0 0.0
  %2770 = vmatmul.mubr.f32.gmra.mrb[0].mxu0 %v2293
  %v2771 = vpop.f32.mrb[0].mxu0
  %v2772 = vadd.f32 0.0, %v2771
  %v2773 = vpop.f32.mrb[0].mxu0
  %2774 = vmatprep.mubr.f32.mxu0 0.0
  %2775 = vmatmul.mubr.f32.gmra.mrb[0].mxu0 %v2294
  %v2776 = vpop.f32.mrb[0].mxu0
  %v2777 = vadd.f32 0.0, %v2776
  %v2778 = vpop.f32.mrb[0].mxu0
  %2779 = vmatprep.mubr.f32.mxu0 0.0
  %2780 = vmatmul.mubr.f32.gmra.mrb[0].mxu0 %v2295
  %v2781 = vpop.f32.mrb[0].mxu0
  %v2782 = vadd.f32 0.0, %v2781
  %v2783 = vpop.f32.mrb[0].mxu0
  %2784 = vmatprep.mubr.f32.mxu0 0.0
  %2785 = vmatmul.mubr.f32.gmra.mrb[0].mxu0 %v2296
  %v2786 = vpop.f32.mrb[0].mxu0
  %v2787 = vadd.f32 0.0, %v2786
  %v2788 = vpop.f32.mrb[0].mxu0
  %2789 = vmatprep.mubr.f32.mxu0 0.0
  %2790 = vmatmul.mubr.f32.gmra.mrb[0].mxu0 %v2297
  %v2791 = vpop.f32.mrb[0].mxu0
  %v2792 = vadd.f32 0.0, %v2791
  %v2793 = vpop.f32.mrb[0].mxu0
  %2794 = vmatprep.mubr.f32.mxu0 0.0
  %2795 = vmatmul.mubr.f32.gmra.mrb[0].mxu0 %v2298
  %v2796 = vpop.f32.mrb[0].mxu0
  %v2797 = vadd.f32 0.0, %v2796
  %v2798 = vpop.f32.mrb[0].mxu0
  %2799 = vmatprep.mubr.f32.mxu0 0.0
  %2800 = vmatmul.mubr.f32.gmra.mrb[0].mxu0 %v2299
  %v2801 = vpop.f32.mrb[0].mxu0
  %v2802 = vadd.f32 0.0, %v2801
  %v2803 = vpop.f32.mrb[0].mxu0
  %2804 = vmatprep.mubr.f32.mxu0 0.0
  %2805 = vmatmul.mubr.f32.gmra.mrb[0].mxu0 %v2300
  %v2806 = vpop.f32.mrb[0].mxu0
  %v2807 = vadd.f32 0.0, %v2806
  %v2808 = vpop.f32.mrb[0].mxu0
  %2809 = vmatprep.mubr.f32.mxu0 0.0
  %2810 = vmatmul.mubr.f32.gmra.mrb[0].mxu0 %v2301
  %v2811 = vpop.f32.mrb[0].mxu0
  %v2812 = vadd.f32 0.0, %v2811
  %v2813 = vpop.f32.mrb[0].mxu0
  %2814 = vmatprep.mubr.f32.mxu0 0.0
  %2815 = vmatmul.mubr.f32.gmra.mrb[0].mxu0 %v2302
  %v2816 = vpop.f32.mrb[0].mxu0
  %v2817 = vadd.f32 0.0, %v2816
  %v2818 = vpop.f32.mrb[0].mxu0
  %2819 = vmatprep.mubr.f32.mxu0 0.0
  %2820 = vmatmul.mubr.f32.gmra.mrb[0].mxu0 %v2303
  %v2821 = vpop.f32.mrb[0].mxu0
  %v2822 = vadd.f32 0.0, %v2821
  %v2823 = vpop.f32.mrb[0].mxu0
  %2824 = vmatprep.mubr.f32.mxu0 0.0
  %2825 = vmatmul.mubr.f32.gmra.mrb[0].mxu0 %v2304
  %v2826 = vpop.f32.mrb[0].mxu0
  %v2827 = vadd.f32 0.0, %v2826
  %v2828 = vpop.f32.mrb[0].mxu0
  %2829 = vmatprep.mubr.f32.mxu0 0.0
  %2830 = vmatmul.mubr.f32.gmra.mrb[0].mxu0 %v2305
  %v2831 = vpop.f32.mrb[0].mxu0
  %v2832 = vadd.f32 0.0, %v2831
  %v2833 = vpop.f32.mrb[0].mxu0
  %2834 = vmatprep.mubr.f32.mxu0 0.0
  %2835 = vmatmul.mubr.f32.gmra.mrb[0].mxu0 %v2306
  %v2836 = vpop.f32.mrb[0].mxu0
  %v2837 = vadd.f32 0.0, %v2836
  %v2838 = vpop.f32.mrb[0].mxu0
  %2839 = vmatprep.mubr.f32.mxu0 0.0
  %2840 = vmatmul.mubr.f32.gmra.mrb[0].mxu0 %v2307
  %v2841 = vpop.f32.mrb[0].mxu0
  %v2842 = vadd.f32 0.0, %v2841
  %v2843 = vpop.f32.mrb[0].mxu0
  %2844 = vmatprep.mubr.f32.mxu0 0.0
  %2845 = vmatmul.mubr.f32.gmra.mrb[0].mxu0 %v2308
  %v2846 = vpop.f32.mrb[0].mxu0
  %v2847 = vadd.f32 0.0, %v2846
  %v2848 = vpop.f32.mrb[0].mxu0
  %2849 = vmatprep.mubr.f32.mxu0 0.0
  %2850 = vmatmul.mubr.f32.gmra.mrb[0].mxu0 %v2309
  %v2851 = vpop.f32.mrb[0].mxu0
  %v2852 = vadd.f32 0.0, %v2851
  %v2853 = vpop.f32.mrb[0].mxu0
  %2854 = vmatprep.mubr.f32.mxu0 0.0
  %2855 = vmatmul.mubr.f32.gmra.mrb[0].mxu0 %v2310
  %v2856 = vpop.f32.mrb[0].mxu0
  %v2857 = vadd.f32 0.0, %v2856
  %v2858 = vpop.f32.mrb[0].mxu0
  %2859 = vmatprep.mubr.f32.mxu0 0.0
  %2860 = vmatmul.mubr.f32.gmra.mrb[0].mxu0 %v2311
  %v2861 = vpop.f32.mrb[0].mxu0
  %v2862 = vadd.f32 0.0, %v2861
  %v2863 = vpop.f32.mrb[0].mxu0
  %2864 = vmatprep.mubr.f32.mxu0 0.0
  %2865 = vmatmul.mubr.f32.gmra.mrb[0].mxu0 %v2312
  %v2866 = vpop.f32.mrb[0].mxu0
  %v2867 = vadd.f32 0.0, %v2866
  %v2868 = vpop.f32.mrb[0].mxu0
  %2869 = vmatprep.mubr.f32.mxu0 0.0
  %2870 = vmatmul.mubr.f32.gmra.mrb[0].mxu0 %v2313
  %v2871 = vpop.f32.mrb[0].mxu0
  %v2872 = vadd.f32 0.0, %v2871
  %v2873 = vpop.f32.mrb[0].mxu0
  %2874 = vmatprep.mubr.f32.mxu0 0.0
  %2875 = vmatmul.mubr.f32.gmra.mrb[0].mxu0 %v2314
  %v2876 = vpop.f32.mrb[0].mxu0
  %v2877 = vadd.f32 0.0, %v2876
  %v2878 = vpop.f32.mrb[0].mxu0
  %2879 = vmatprep.mubr.f32.mxu0 0.0
  %2880 = vmatmul.mubr.f32.gmra.mrb[0].mxu0 %v2315
  %v2881 = vpop.f32.mrb[0].mxu0
  %v2882 = vadd.f32 0.0, %v2881
  %v2883 = vpop.f32.mrb[0].mxu0
  %2884 = vmatprep.mubr.f32.mxu0 0.0
  %2885 = vmatmul.mubr.f32.gmra.mrb[0].mxu0 %v2316
  %v2886 = vpop.f32.mrb[0].mxu0
  %v2887 = vadd.f32 0.0, %v2886
  %v2888 = vpop.f32.mrb[0].mxu0
  %2889 = vmatprep.mubr.f32.mxu0 0.0
  %2890 = vmatmul.mubr.f32.gmra.mrb[0].mxu0 %v2317
  %v2891 = vpop.f32.mrb[0].mxu0
  %v2892 = vadd.f32 0.0, %v2891
  %v2893 = vpop.f32.mrb[0].mxu0
  %2894 = vmatprep.mubr.f32.mxu0 0.0
  %2895 = vmatmul.mubr.f32.gmra.mrb[0].mxu0 %v2318
  %v2896 = vpop.f32.mrb[0].mxu0
  %v2897 = vadd.f32 0.0, %v2896
  %v2898 = vpop.f32.mrb[0].mxu0
  %2899 = vmatprep.mubr.f32.mxu0 0.0
  %2900 = vmatmul.mubr.f32.gmra.mrb[0].mxu0 %v2319
  %v2901 = vpop.f32.mrb[0].mxu0
  %v2902 = vadd.f32 0.0, %v2901
  %v2903 = vpop.f32.mrb[0].mxu0
  %2904 = vmatprep.mubr.f32.mxu0 0.0
  %2905 = vmatmul.mubr.f32.gmra.mrb[0].mxu0 %v2320
  %v2906 = vpop.f32.mrb[0].mxu0
  %v2907 = vadd.f32 0.0, %v2906
  %v2908 = vpop.f32.mrb[0].mxu0
  %2909 = vmatprep.mubr.f32.mxu0 0.0
  %2910 = vmatmul.mubr.f32.gmra.mrb[0].mxu0 %v2321
  %v2911 = vpop.f32.mrb[0].mxu0
  %v2912 = vadd.f32 0.0, %v2911
  %v2913 = vpop.f32.mrb[0].mxu0
  %2914 = vmatprep.mubr.f32.mxu0 0.0
  %2915 = vmatmul.mubr.f32.gmra.mrb[0].mxu0 %v2322
  %v2916 = vpop.f32.mrb[0].mxu0
  %v2917 = vadd.f32 0.0, %v2916
  %v2918 = vpop.f32.mrb[0].mxu0
  %2919 = vmatprep.mubr.f32.mxu0 0.0
  %2920 = vmatmul.mubr.f32.gmra.mrb[0].mxu0 %v2323
  %v2921 = vpop.f32.mrb[0].mxu0
  %v2922 = vadd.f32 0.0, %v2921
  %v2923 = vpop.f32.mrb[0].mxu0
  %2924 = vmatprep.mubr.f32.mxu0 0.0
  %2925 = vmatmul.mubr.f32.gmra.mrb[0].mxu0 %v2324
  %v2926 = vpop.f32.mrb[0].mxu0
  %v2927 = vadd.f32 0.0, %v2926
  %v2928 = vpop.f32.mrb[0].mxu0
  %2929 = vmatprep.mubr.f32.mxu0 0.0
  %2930 = vmatmul.mubr.f32.gmra.mrb[0].mxu0 %v2325
  %v2931 = vpop.f32.mrb[0].mxu0
  %v2932 = vadd.f32 0.0, %v2931
  %v2933 = vpop.f32.mrb[0].mxu0
  %2934 = vmatprep.mubr.f32.mxu0 0.0
  %2935 = vmatmul.mubr.f32.gmra.mrb[0].mxu0 %v2326
  %v2936 = vpop.f32.mrb[0].mxu0
  %v2937 = vadd.f32 0.0, %v2936
  %v2938 = vpop.f32.mrb[0].mxu0
  %2939 = vmatprep.mubr.f32.mxu0 0.0
  %2940 = vmatmul.mubr.f32.gmra.mrb[0].mxu0 %v2327
  %v2941 = vpop.f32.mrb[0].mxu0
  %v2942 = vadd.f32 0.0, %v2941
  %v2943 = vpop.f32.mrb[0].mxu0
  %2944 = vmatprep.mubr.f32.mxu0 0.0
  %2945 = vmatmul.mubr.f32.gmra.mrb[0].mxu0 %v2328
  %v2946 = vpop.f32.mrb[0].mxu0
  %v2947 = vadd.f32 0.0, %v2946
  %v2948 = vpop.f32.mrb[0].mxu0
  %2949 = vmatprep.mubr.f32.mxu0 0.0
  %2950 = vmatmul.mubr.f32.gmra.mrb[0].mxu0 %v2329
  %v2951 = vpop.f32.mrb[0].mxu0
  %v2952 = vadd.f32 0.0, %v2951
  %v2953 = vpop.f32.mrb[0].mxu0
  %2954 = vmatprep.mubr.f32.mxu0 0.0
  %2955 = vmatmul.mubr.f32.gmra.mrb[0].mxu0 %v2330
  %v2956 = vpop.f32.mrb[0].mxu0
  %v2957 = vadd.f32 0.0, %v2956
  %v2958 = vpop.f32.mrb[0].mxu0
  %2959 = vmatprep.mubr.f32.mxu0 0.0
  %2960 = vmatmul.mubr.f32.gmra.mrb[0].mxu0 %v2331
  %v2961 = vpop.f32.mrb[0].mxu0
  %v2962 = vadd.f32 0.0, %v2961
  %v2963 = vpop.f32.mrb[0].mxu0
  %2964 = vmatprep.mubr.f32.mxu0 0.0
  %2965 = vmatmul.mubr.f32.gmra.mrb[0].mxu0 %v2332
  %v2966 = vpop.f32.mrb[0].mxu0
  %v2967 = vadd.f32 0.0, %v2966
  %v2968 = vpop.f32.mrb[0].mxu0
  %2969 = vmatprep.mubr.f32.mxu0 0.0
  %2970 = vmatmul.mubr.f32.gmra.mrb[0].mxu0 %v2333
  %v2971 = vpop.f32.mrb[0].mxu0
  %v2972 = vadd.f32 0.0, %v2971
  %v2973 = vpop.f32.mrb[0].mxu0
  %2974 = vmatprep.mubr.f32.mxu0 0.0
  %2975 = vmatmul.mubr.f32.gmra.mrb[0].mxu0 %v2334
  %v2976 = vpop.f32.mrb[0].mxu0
  %v2977 = vadd.f32 0.0, %v2976
  %v2978 = vpop.f32.mrb[0].mxu0
  %2979 = vmatprep.mubr.f32.mxu0 0.0
  %2980 = vmatmul.mubr.f32.gmra.mrb[0].mxu0 %v2335
  %v2981 = vpop.f32.mrb[0].mxu0
  %v2982 = vadd.f32 0.0, %v2981
  %v2983 = vpop.f32.mrb[0].mxu0
  %2984 = vmatprep.mubr.f32.mxu0 0.0
  %2985 = vmatmul.mubr.f32.gmra.mrb[0].mxu0 %v2336
  %v2986 = vpop.f32.mrb[0].mxu0
  %v2987 = vadd.f32 0.0, %v2986
  %v2988 = vpop.f32.mrb[0].mxu0
  %2989 = vmatprep.mubr.f32.mxu0 0.0
  %2990 = vmatmul.mubr.f32.gmra.mrb[0].mxu0 %v2337
  %v2991 = vpop.f32.mrb[0].mxu0
  %v2992 = vadd.f32 0.0, %v2991
  %v2993 = vpop.f32.mrb[0].mxu0
  %2994 = vmatprep.mubr.f32.mxu0 0.0
  %2995 = vmatmul.mubr.f32.gmra.mrb[0].mxu0 %v2338
  %v2996 = vpop.f32.mrb[0].mxu0
  %v2997 = vadd.f32 0.0, %v2996
  %v2998 = vpop.f32.mrb[0].mxu0
  %2999 = vmatprep.mubr.f32.mxu0 0.0
  %3000 = vmatmul.mubr.f32.gmra.mrb[0].mxu0 %v2339
  %v3001 = vpop.f32.mrb[0].mxu0
  %v3002 = vadd.f32 0.0, %v3001
  %v3003 = vpop.f32.mrb[0].mxu0
  %3004 = vmatprep.mubr.f32.mxu0 0.0
  %3005 = vmatmul.mubr.f32.gmra.mrb[0].mxu0 %v2340
  %v3006 = vpop.f32.mrb[0].mxu0
  %v3007 = vadd.f32 0.0, %v3006
  %v3008 = vpop.f32.mrb[0].mxu0
  %3009 = vmatprep.mubr.f32.mxu0 0.0
  %3010 = vmatmul.mubr.f32.gmra.mrb[0].mxu0 %v2341
  %v3011 = vpop.f32.mrb[0].mxu0
  %v3012 = vadd.f32 0.0, %v3011
  %v3013 = vpop.f32.mrb[0].mxu0
  %3014 = vmatprep.mubr.f32.mxu0 0.0
  %3015 = vmatmul.mubr.f32.gmra.mrb[0].mxu0 %v2342
  %v3016 = vpop.f32.mrb[0].mxu0
  %v3017 = vadd.f32 0.0, %v3016
  %v3018 = vpop.f32.mrb[0].mxu0
  %3019 = vmatprep.mubr.f32.mxu0 0.0
  %3020 = vmatmul.mubr.f32.gmra.mrb[0].mxu0 %v2343
  %v3021 = vpop.f32.mrb[0].mxu0
  %v3022 = vadd.f32 0.0, %v3021
  %v3023 = vpop.f32.mrb[0].mxu0
  %3024 = vmatprep.mubr.f32.mxu0 0.0
  %3025 = vmatmul.mubr.f32.gmra.mrb[0].mxu0 %v2344
  %v3026 = vpop.f32.mrb[0].mxu0
  %v3027 = vadd.f32 0.0, %v3026
  %v3028 = vpop.f32.mrb[0].mxu0
  %3029 = vmatprep.mubr.f32.mxu0 0.0
  %3030 = vmatmul.mubr.f32.gmra.mrb[0].mxu0 %v2345
  %v3031 = vpop.f32.mrb[0].mxu0
  %v3032 = vadd.f32 0.0, %v3031
  %v3033 = vpop.f32.mrb[0].mxu0
  %3034 = vmatprep.mubr.f32.mxu0 0.0
  %3035 = vmatmul.mubr.f32.gmra.mrb[0].mxu0 %v2346
  %v3036 = vpop.f32.mrb[0].mxu0
  %v3037 = vadd.f32 0.0, %v3036
  %v3038 = vpop.f32.mrb[0].mxu0
  %3039 = vmatprep.mubr.f32.mxu0 0.0
  %3040 = vmatmul.mubr.f32.gmra.mrb[0].mxu0 %v2347
  %v3041 = vpop.f32.mrb[0].mxu0
  %v3042 = vadd.f32 0.0, %v3041
  %v3043 = vpop.f32.mrb[0].mxu0
  %3044 = vmatprep.mubr.f32.mxu0 0.0
  %3045 = vmatmul.mubr.f32.gmra.mrb[0].mxu0 %v2348
  %v3046 = vpop.f32.mrb[0].mxu0
  %v3047 = vadd.f32 0.0, %v3046
  %v3048 = vpop.f32.mrb[0].mxu0
  %3049 = vmatprep.mubr.f32.mxu0 0.0
  %3050 = vmatmul.mubr.f32.gmra.mrb[0].mxu0 %v2349
  %v3051 = vpop.f32.mrb[0].mxu0
  %v3052 = vadd.f32 0.0, %v3051
  %v3053 = vpop.f32.mrb[0].mxu0
  %3054 = vmatprep.mubr.f32.mxu0 0.0
  %3055 = vmatmul.mubr.f32.gmra.mrb[0].mxu0 %v2350
  %v3056 = vpop.f32.mrb[0].mxu0
  %v3057 = vadd.f32 0.0, %v3056
  %v3058 = vpop.f32.mrb[0].mxu0
  %3059 = vmatprep.mubr.f32.mxu0 0.0
  %3060 = vmatmul.mubr.f32.gmra.mrb[0].mxu0 %v2351
  %v3061 = vpop.f32.mrb[0].mxu0
  %v3062 = vadd.f32 0.0, %v3061
  %v3063 = vpop.f32.mrb[0].mxu0
  %3064 = vmatprep.mubr.f32.mxu0 0.0
  %3065 = vmatmul.mubr.f32.gmra.mrb[0].mxu0 %v2352
  %v3066 = vpop.f32.mrb[0].mxu0
  %v3067 = vadd.f32 0.0, %v3066
  %v3068 = vpop.f32.mrb[0].mxu0
  %3069 = vmatprep.mubr.f32.mxu0 0.0
  %3070 = vmatmul.mubr.f32.gmra.mrb[0].mxu0 %v2353
  %v3071 = vpop.f32.mrb[0].mxu0
  %v3072 = vadd.f32 0.0, %v3071
  %v3073 = vpop.f32.mrb[0].mxu0
  %3074 = vdwg.mxu0
  %v3075 = vmax.f32 %v2437, 0.0
  %v3076 = vmax.f32 %v2442, 0.0
  %v3077 = vmax.f32 %v2447, 0.0
  %v3078 = vmax.f32 %v2452, 0.0
  %v3079 = vmax.f32 %v2457, 0.0
  %v3080 = vmax.f32 %v2462, 0.0
  %v3081 = vmax.f32 %v2467, 0.0
  %v3082 = vmax.f32 %v2472, 0.0
  %v3083 = vmax.f32 %v2477, 0.0
  %v3084 = vmax.f32 %v2482, 0.0
  %v3085 = vmax.f32 %v2487, 0.0
  %v3086 = vmax.f32 %v2492, 0.0
  %v3087 = vmax.f32 %v2497, 0.0
  %v3088 = vmax.f32 %v2502, 0.0
  %v3089 = vmax.f32 %v2507, 0.0
  %v3090 = vmax.f32 %v2512, 0.0
  %v3091 = vmax.f32 %v2517, 0.0
  %v3092 = vmax.f32 %v2522, 0.0
  %v3093 = vmax.f32 %v2527, 0.0
  %v3094 = vmax.f32 %v2532, 0.0
  %v3095 = vmax.f32 %v2537, 0.0
  %v3096 = vmax.f32 %v2542, 0.0
  %v3097 = vmax.f32 %v2547, 0.0
  %v3098 = vmax.f32 %v2552, 0.0
  %v3099 = vmax.f32 %v2557, 0.0
  %v3100 = vmax.f32 %v2562, 0.0
  %v3101 = vmax.f32 %v2567, 0.0
  %v3102 = vmax.f32 %v2572, 0.0
  %v3103 = vmax.f32 %v2577, 0.0
  %v3104 = vmax.f32 %v2582, 0.0
  %v3105 = vmax.f32 %v2587, 0.0
  %v3106 = vmax.f32 %v2592, 0.0
  %v3107 = vmax.f32 %v2597, 0.0
  %v3108 = vmax.f32 %v2602, 0.0
  %v3109 = vmax.f32 %v2607, 0.0
  %v3110 = vmax.f32 %v2612, 0.0
  %v3111 = vmax.f32 %v2617, 0.0
  %v3112 = vmax.f32 %v2622, 0.0
  %v3113 = vmax.f32 %v2627, 0.0
  %v3114 = vmax.f32 %v2632, 0.0
  %v3115 = vmax.f32 %v2637, 0.0
  %v3116 = vmax.f32 %v2642, 0.0
  %v3117 = vmax.f32 %v2647, 0.0
  %v3118 = vmax.f32 %v2652, 0.0
  %v3119 = vmax.f32 %v2657, 0.0
  %v3120 = vmax.f32 %v2662, 0.0
  %v3121 = vmax.f32 %v2667, 0.0
  %v3122 = vmax.f32 %v2672, 0.0
  %v3123 = vmax.f32 %v2677, 0.0
  %v3124 = vmax.f32 %v2682, 0.0
  %v3125 = vmax.f32 %v2687, 0.0
  %v3126 = vmax.f32 %v2692, 0.0
  %v3127 = vmax.f32 %v2697, 0.0
  %v3128 = vmax.f32 %v2702, 0.0
  %v3129 = vmax.f32 %v2707, 0.0
  %v3130 = vmax.f32 %v2712, 0.0
  %v3131 = vmax.f32 %v2717, 0.0
  %v3132 = vmax.f32 %v2722, 0.0
  %v3133 = vmax.f32 %v2727, 0.0
  %v3134 = vmax.f32 %v2732, 0.0
  %v3135 = vmax.f32 %v2737, 0.0
  %v3136 = vmax.f32 %v2742, 0.0
  %v3137 = vmax.f32 %v2747, 0.0
  %v3138 = vmax.f32 %v2752, 0.0
  %v3139 = vmax.f32 %v2757, 0.0
  %v3140 = vmax.f32 %v2762, 0.0
  %v3141 = vmax.f32 %v2767, 0.0
  %v3142 = vmax.f32 %v2772, 0.0
  %v3143 = vmax.f32 %v2777, 0.0
  %v3144 = vmax.f32 %v2782, 0.0
  %v3145 = vmax.f32 %v2787, 0.0
  %v3146 = vmax.f32 %v2792, 0.0
  %v3147 = vmax.f32 %v2797, 0.0
  %v3148 = vmax.f32 %v2802, 0.0
  %v3149 = vmax.f32 %v2807, 0.0
  %v3150 = vmax.f32 %v2812, 0.0
  %v3151 = vmax.f32 %v2817, 0.0
  %v3152 = vmax.f32 %v2822, 0.0
  %v3153 = vmax.f32 %v2827, 0.0
  %v3154 = vmax.f32 %v2832, 0.0
  %v3155 = vmax.f32 %v2837, 0.0
  %v3156 = vmax.f32 %v2842, 0.0
  %v3157 = vmax.f32 %v2847, 0.0
  %v3158 = vmax.f32 %v2852, 0.0
  %v3159 = vmax.f32 %v2857, 0.0
  %v3160 = vmax.f32 %v2862, 0.0
  %v3161 = vmax.f32 %v2867, 0.0
  %v3162 = vmax.f32 %v2872, 0.0
  %v3163 = vmax.f32 %v2877, 0.0
  %v3164 = vmax.f32 %v2882, 0.0
  %v3165 = vmax.f32 %v2887, 0.0
  %v3166 = vmax.f32 %v2892, 0.0
  %v3167 = vmax.f32 %v2897, 0.0
  %v3168 = vmax.f32 %v2902, 0.0
  %v3169 = vmax.f32 %v2907, 0.0
  %v3170 = vmax.f32 %v2912, 0.0
  %v3171 = vmax.f32 %v2917, 0.0
  %v3172 = vmax.f32 %v2922, 0.0
  %v3173 = vmax.f32 %v2927, 0.0
  %v3174 = vmax.f32 %v2932, 0.0
  %v3175 = vmax.f32 %v2937, 0.0
  %v3176 = vmax.f32 %v2942, 0.0
  %v3177 = vmax.f32 %v2947, 0.0
  %v3178 = vmax.f32 %v2952, 0.0
  %v3179 = vmax.f32 %v2957, 0.0
  %v3180 = vmax.f32 %v2962, 0.0
  %v3181 = vmax.f32 %v2967, 0.0
  %v3182 = vmax.f32 %v2972, 0.0
  %v3183 = vmax.f32 %v2977, 0.0
  %v3184 = vmax.f32 %v2982, 0.0
  %v3185 = vmax.f32 %v2987, 0.0
  %v3186 = vmax.f32 %v2992, 0.0
  %v3187 = vmax.f32 %v2997, 0.0
  %v3188 = vmax.f32 %v3002, 0.0
  %v3189 = vmax.f32 %v3007, 0.0
  %v3190 = vmax.f32 %v3012, 0.0
  %v3191 = vmax.f32 %v3017, 0.0
  %v3192 = vmax.f32 %v3022, 0.0
  %v3193 = vmax.f32 %v3027, 0.0
  %v3194 = vmax.f32 %v3032, 0.0
  %v3195 = vmax.f32 %v3037, 0.0
  %v3196 = vmax.f32 %v3042, 0.0
  %v3197 = vmax.f32 %v3047, 0.0
  %v3198 = vmax.f32 %v3052, 0.0
  %v3199 = vmax.f32 %v3057, 0.0
  %v3200 = vmax.f32 %v3062, 0.0
  %v3201 = vmax.f32 %v3067, 0.0
  %v3202 = vmax.f32 %v3072, 0.0
  %v3203 = vld [vmem:[%s4] sm:$0xff]
  %v3204 = vld [vmem:[%s4 + $0x8] sm:$0xff]
  %v3205 = vld [vmem:[%s4 + $0x10] sm:$0xff]
  %v3206 = vld [vmem:[%s4 + $0x18] sm:$0xff]
  %v3207 = vld [vmem:[%s4 + $0x20] sm:$0xff]
  %v3208 = vld [vmem:[%s4 + $0x28] sm:$0xff]
  %v3209 = vld [vmem:[%s4 + $0x30] sm:$0xff]
  %v3210 = vld [vmem:[%s4 + $0x38] sm:$0xff]
  %v3211 = vld [vmem:[%s4 + $0x40] sm:$0xff]
  %v3212 = vld [vmem:[%s4 + $0x48] sm:$0xff]
  %v3213 = vld [vmem:[%s4 + $0x50] sm:$0xff]
  %v3214 = vld [vmem:[%s4 + $0x58] sm:$0xff]
  %v3215 = vld [vmem:[%s4 + $0x60] sm:$0xff]
  %v3216 = vld [vmem:[%s4 + $0x68] sm:$0xff]
  %v3217 = vld [vmem:[%s4 + $0x70] sm:$0xff]
  %v3218 = vld [vmem:[%s4 + $0x78] sm:$0xff]
  %3219 = vmatprep.subr.mxu0 0.0
  %3220 = vmatpush1.msra.mxu0 %v3203
  %3221 = vmatprep.subr.mxu0 0.0
  %3222 = vmatpush1.msra.mxu0 %v3204
  %3223 = vmatprep.subr.mxu0 0.0
  %3224 = vmatpush1.msra.mxu0 %v3205
  %3225 = vmatprep.subr.mxu0 0.0
  %3226 = vmatpush1.msra.mxu0 %v3206
  %3227 = vmatprep.subr.mxu0 0.0
  %3228 = vmatpush1.msra.mxu0 %v3207
  %3229 = vmatprep.subr.mxu0 0.0
  %3230 = vmatpush1.msra.mxu0 %v3208
  %3231 = vmatprep.subr.mxu0 0.0
  %3232 = vmatpush1.msra.mxu0 %v3209
  %3233 = vmatprep.subr.mxu0 0.0
  %3234 = vmatpush1.msra.mxu0 %v3210
  %3235 = vmatprep.subr.mxu0 0.0
  %3236 = vmatpush1.msra.mxu0 %v3211
  %3237 = vmatprep.subr.mxu0 0.0
  %3238 = vmatpush1.msra.mxu0 %v3212
  %3239 = vmatprep.subr.mxu0 0.0
  %3240 = vmatpush1.msra.mxu0 %v3213
  %3241 = vmatprep.subr.mxu0 0.0
  %3242 = vmatpush1.msra.mxu0 %v3214
  %3243 = vmatprep.subr.mxu0 0.0
  %3244 = vmatpush1.msra.mxu0 %v3215
  %3245 = vmatprep.subr.mxu0 0.0
  %3246 = vmatpush1.msra.mxu0 %v3216
  %3247 = vmatprep.subr.mxu0 0.0
  %3248 = vmatpush1.msra.mxu0 %v3217
  %3249 = vmatprep.subr.mxu0 0.0
  %3250 = vmatpush1.msra.mxu0 %v3218
  %3251 = vmatprep.subr.mxu0 0.0
  %3252 = vmatpush1.msra.mxu0 0.0
  %3253 = vmatprep.subr.mxu0 0.0
  %3254 = vmatpush1.msra.mxu0 0.0
  %3255 = vmatprep.subr.mxu0 0.0
  %3256 = vmatpush1.msra.mxu0 0.0
  %3257 = vmatprep.subr.mxu0 0.0
  %3258 = vmatpush1.msra.mxu0 0.0
  %3259 = vmatprep.subr.mxu0 0.0
  %3260 = vmatpush1.msra.mxu0 0.0
  %3261 = vmatprep.subr.mxu0 0.0
  %3262 = vmatpush1.msra.mxu0 0.0
  %3263 = vmatprep.subr.mxu0 0.0
  %3264 = vmatpush1.msra.mxu0 0.0
  %3265 = vmatprep.subr.mxu0 0.0
  %3266 = vmatpush1.msra.mxu0 0.0
  %3267 = vmatprep.subr.mxu0 0.0
  %3268 = vmatpush1.msra.mxu0 0.0
  %3269 = vmatprep.subr.mxu0 0.0
  %3270 = vmatpush1.msra.mxu0 0.0
  %3271 = vmatprep.subr.mxu0 0.0
  %3272 = vmatpush1.msra.mxu0 0.0
  %3273 = vmatprep.subr.mxu0 0.0
  %3274 = vmatpush1.msra.mxu0 0.0
  %3275 = vmatprep.subr.mxu0 0.0
  %3276 = vmatpush1.msra.mxu0 0.0
  %3277 = vmatprep.subr.mxu0 0.0
  %3278 = vmatpush1.msra.mxu0 0.0
  %3279 = vmatprep.subr.mxu0 0.0
  %3280 = vmatpush1.msra.mxu0 0.0
  %3281 = vmatprep.subr.mxu0 0.0
  %3282 = vmatpush1.msra.mxu0 0.0
  %3283 = vmatprep.mubr.f32.mxu0 0.0
  %3284 = vmatmul.mubr.f32.gmra.mrb[0].mxu0 %v3075
  %v3285 = vpop.f32.mrb[0].mxu0
  %v3286 = vadd.f32 0.0, %v3285
  %v3287 = vpop.f32.mrb[0].mxu0
  %3288 = vmatprep.mubr.f32.mxu0 0.0
  %3289 = vmatmul.mubr.f32.gmra.mrb[0].mxu0 %v3076
  %v3290 = vpop.f32.mrb[0].mxu0
  %v3291 = vadd.f32 0.0, %v3290
  %v3292 = vpop.f32.mrb[0].mxu0
  %3293 = vmatprep.mubr.f32.mxu0 0.0
  %3294 = vmatmul.mubr.f32.gmra.mrb[0].mxu0 %v3077
  %v3295 = vpop.f32.mrb[0].mxu0
  %v3296 = vadd.f32 0.0, %v3295
  %v3297 = vpop.f32.mrb[0].mxu0
  %3298 = vmatprep.mubr.f32.mxu0 0.0
  %3299 = vmatmul.mubr.f32.gmra.mrb[0].mxu0 %v3078
  %v3300 = vpop.f32.mrb[0].mxu0
  %v3301 = vadd.f32 0.0, %v3300
  %v3302 = vpop.f32.mrb[0].mxu0
  %3303 = vmatprep.mubr.f32.mxu0 0.0
  %3304 = vmatmul.mubr.f32.gmra.mrb[0].mxu0 %v3079
  %v3305 = vpop.f32.mrb[0].mxu0
  %v3306 = vadd.f32 0.0, %v3305
  %v3307 = vpop.f32.mrb[0].mxu0
  %3308 = vmatprep.mubr.f32.mxu0 0.0
  %3309 = vmatmul.mubr.f32.gmra.mrb[0].mxu0 %v3080
  %v3310 = vpop.f32.mrb[0].mxu0
  %v3311 = vadd.f32 0.0, %v3310
  %v3312 = vpop.f32.mrb[0].mxu0
  %3313 = vmatprep.mubr.f32.mxu0 0.0
  %3314 = vmatmul.mubr.f32.gmra.mrb[0].mxu0 %v3081
  %v3315 = vpop.f32.mrb[0].mxu0
  %v3316 = vadd.f32 0.0, %v3315
  %v3317 = vpop.f32.mrb[0].mxu0
  %3318 = vmatprep.mubr.f32.mxu0 0.0
  %3319 = vmatmul.mubr.f32.gmra.mrb[0].mxu0 %v3082
  %v3320 = vpop.f32.mrb[0].mxu0
  %v3321 = vadd.f32 0.0, %v3320
  %v3322 = vpop.f32.mrb[0].mxu0
  %3323 = vmatprep.mubr.f32.mxu0 0.0
  %3324 = vmatmul.mubr.f32.gmra.mrb[0].mxu0 %v3083
  %v3325 = vpop.f32.mrb[0].mxu0
  %v3326 = vadd.f32 0.0, %v3325
  %v3327 = vpop.f32.mrb[0].mxu0
  %3328 = vmatprep.mubr.f32.mxu0 0.0
  %3329 = vmatmul.mubr.f32.gmra.mrb[0].mxu0 %v3084
  %v3330 = vpop.f32.mrb[0].mxu0
  %v3331 = vadd.f32 0.0, %v3330
  %v3332 = vpop.f32.mrb[0].mxu0
  %3333 = vmatprep.mubr.f32.mxu0 0.0
  %3334 = vmatmul.mubr.f32.gmra.mrb[0].mxu0 %v3085
  %v3335 = vpop.f32.mrb[0].mxu0
  %v3336 = vadd.f32 0.0, %v3335
  %v3337 = vpop.f32.mrb[0].mxu0
  %3338 = vmatprep.mubr.f32.mxu0 0.0
  %3339 = vmatmul.mubr.f32.gmra.mrb[0].mxu0 %v3086
  %v3340 = vpop.f32.mrb[0].mxu0
  %v3341 = vadd.f32 0.0, %v3340
  %v3342 = vpop.f32.mrb[0].mxu0
  %3343 = vmatprep.mubr.f32.mxu0 0.0
  %3344 = vmatmul.mubr.f32.gmra.mrb[0].mxu0 %v3087
  %v3345 = vpop.f32.mrb[0].mxu0
  %v3346 = vadd.f32 0.0, %v3345
  %v3347 = vpop.f32.mrb[0].mxu0
  %3348 = vmatprep.mubr.f32.mxu0 0.0
  %3349 = vmatmul.mubr.f32.gmra.mrb[0].mxu0 %v3088
  %v3350 = vpop.f32.mrb[0].mxu0
  %v3351 = vadd.f32 0.0, %v3350
  %v3352 = vpop.f32.mrb[0].mxu0
  %3353 = vmatprep.mubr.f32.mxu0 0.0
  %3354 = vmatmul.mubr.f32.gmra.mrb[0].mxu0 %v3089
  %v3355 = vpop.f32.mrb[0].mxu0
  %v3356 = vadd.f32 0.0, %v3355
  %v3357 = vpop.f32.mrb[0].mxu0
  %3358 = vmatprep.mubr.f32.mxu0 0.0
  %3359 = vmatmul.mubr.f32.gmra.mrb[0].mxu0 %v3090
  %v3360 = vpop.f32.mrb[0].mxu0
  %v3361 = vadd.f32 0.0, %v3360
  %v3362 = vpop.f32.mrb[0].mxu0
  %3363 = vmatprep.mubr.f32.mxu0 0.0
  %3364 = vmatmul.mubr.f32.gmra.mrb[0].mxu0 %v3091
  %v3365 = vpop.f32.mrb[0].mxu0
  %v3366 = vadd.f32 0.0, %v3365
  %v3367 = vpop.f32.mrb[0].mxu0
  %3368 = vmatprep.mubr.f32.mxu0 0.0
  %3369 = vmatmul.mubr.f32.gmra.mrb[0].mxu0 %v3092
  %v3370 = vpop.f32.mrb[0].mxu0
  %v3371 = vadd.f32 0.0, %v3370
  %v3372 = vpop.f32.mrb[0].mxu0
  %3373 = vmatprep.mubr.f32.mxu0 0.0
  %3374 = vmatmul.mubr.f32.gmra.mrb[0].mxu0 %v3093
  %v3375 = vpop.f32.mrb[0].mxu0
  %v3376 = vadd.f32 0.0, %v3375
  %v3377 = vpop.f32.mrb[0].mxu0
  %3378 = vmatprep.mubr.f32.mxu0 0.0
  %3379 = vmatmul.mubr.f32.gmra.mrb[0].mxu0 %v3094
  %v3380 = vpop.f32.mrb[0].mxu0
  %v3381 = vadd.f32 0.0, %v3380
  %v3382 = vpop.f32.mrb[0].mxu0
  %3383 = vmatprep.mubr.f32.mxu0 0.0
  %3384 = vmatmul.mubr.f32.gmra.mrb[0].mxu0 %v3095
  %v3385 = vpop.f32.mrb[0].mxu0
  %v3386 = vadd.f32 0.0, %v3385
  %v3387 = vpop.f32.mrb[0].mxu0
  %3388 = vmatprep.mubr.f32.mxu0 0.0
  %3389 = vmatmul.mubr.f32.gmra.mrb[0].mxu0 %v3096
  %v3390 = vpop.f32.mrb[0].mxu0
  %v3391 = vadd.f32 0.0, %v3390
  %v3392 = vpop.f32.mrb[0].mxu0
  %3393 = vmatprep.mubr.f32.mxu0 0.0
  %3394 = vmatmul.mubr.f32.gmra.mrb[0].mxu0 %v3097
  %v3395 = vpop.f32.mrb[0].mxu0
  %v3396 = vadd.f32 0.0, %v3395
  %v3397 = vpop.f32.mrb[0].mxu0
  %3398 = vmatprep.mubr.f32.mxu0 0.0
  %3399 = vmatmul.mubr.f32.gmra.mrb[0].mxu0 %v3098
  %v3400 = vpop.f32.mrb[0].mxu0
  %v3401 = vadd.f32 0.0, %v3400
  %v3402 = vpop.f32.mrb[0].mxu0
  %3403 = vmatprep.mubr.f32.mxu0 0.0
  %3404 = vmatmul.mubr.f32.gmra.mrb[0].mxu0 %v3099
  %v3405 = vpop.f32.mrb[0].mxu0
  %v3406 = vadd.f32 0.0, %v3405
  %v3407 = vpop.f32.mrb[0].mxu0
  %3408 = vmatprep.mubr.f32.mxu0 0.0
  %3409 = vmatmul.mubr.f32.gmra.mrb[0].mxu0 %v3100
  %v3410 = vpop.f32.mrb[0].mxu0
  %v3411 = vadd.f32 0.0, %v3410
  %v3412 = vpop.f32.mrb[0].mxu0
  %3413 = vmatprep.mubr.f32.mxu0 0.0
  %3414 = vmatmul.mubr.f32.gmra.mrb[0].mxu0 %v3101
  %v3415 = vpop.f32.mrb[0].mxu0
  %v3416 = vadd.f32 0.0, %v3415
  %v3417 = vpop.f32.mrb[0].mxu0
  %3418 = vmatprep.mubr.f32.mxu0 0.0
  %3419 = vmatmul.mubr.f32.gmra.mrb[0].mxu0 %v3102
  %v3420 = vpop.f32.mrb[0].mxu0
  %v3421 = vadd.f32 0.0, %v3420
  %v3422 = vpop.f32.mrb[0].mxu0
  %3423 = vmatprep.mubr.f32.mxu0 0.0
  %3424 = vmatmul.mubr.f32.gmra.mrb[0].mxu0 %v3103
  %v3425 = vpop.f32.mrb[0].mxu0
  %v3426 = vadd.f32 0.0, %v3425
  %v3427 = vpop.f32.mrb[0].mxu0
  %3428 = vmatprep.mubr.f32.mxu0 0.0
  %3429 = vmatmul.mubr.f32.gmra.mrb[0].mxu0 %v3104
  %v3430 = vpop.f32.mrb[0].mxu0
  %v3431 = vadd.f32 0.0, %v3430
  %v3432 = vpop.f32.mrb[0].mxu0
  %3433 = vmatprep.mubr.f32.mxu0 0.0
  %3434 = vmatmul.mubr.f32.gmra.mrb[0].mxu0 %v3105
  %v3435 = vpop.f32.mrb[0].mxu0
  %v3436 = vadd.f32 0.0, %v3435
  %v3437 = vpop.f32.mrb[0].mxu0
  %3438 = vmatprep.mubr.f32.mxu0 0.0
  %3439 = vmatmul.mubr.f32.gmra.mrb[0].mxu0 %v3106
  %v3440 = vpop.f32.mrb[0].mxu0
  %v3441 = vadd.f32 0.0, %v3440
  %v3442 = vpop.f32.mrb[0].mxu0
  %3443 = vmatprep.mubr.f32.mxu0 0.0
  %3444 = vmatmul.mubr.f32.gmra.mrb[0].mxu0 %v3107
  %v3445 = vpop.f32.mrb[0].mxu0
  %v3446 = vadd.f32 0.0, %v3445
  %v3447 = vpop.f32.mrb[0].mxu0
  %3448 = vmatprep.mubr.f32.mxu0 0.0
  %3449 = vmatmul.mubr.f32.gmra.mrb[0].mxu0 %v3108
  %v3450 = vpop.f32.mrb[0].mxu0
  %v3451 = vadd.f32 0.0, %v3450
  %v3452 = vpop.f32.mrb[0].mxu0
  %3453 = vmatprep.mubr.f32.mxu0 0.0
  %3454 = vmatmul.mubr.f32.gmra.mrb[0].mxu0 %v3109
  %v3455 = vpop.f32.mrb[0].mxu0
  %v3456 = vadd.f32 0.0, %v3455
  %v3457 = vpop.f32.mrb[0].mxu0
  %3458 = vmatprep.mubr.f32.mxu0 0.0
  %3459 = vmatmul.mubr.f32.gmra.mrb[0].mxu0 %v3110
  %v3460 = vpop.f32.mrb[0].mxu0
  %v3461 = vadd.f32 0.0, %v3460
  %v3462 = vpop.f32.mrb[0].mxu0
  %3463 = vmatprep.mubr.f32.mxu0 0.0
  %3464 = vmatmul.mubr.f32.gmra.mrb[0].mxu0 %v3111
  %v3465 = vpop.f32.mrb[0].mxu0
  %v3466 = vadd.f32 0.0, %v3465
  %v3467 = vpop.f32.mrb[0].mxu0
  %3468 = vmatprep.mubr.f32.mxu0 0.0
  %3469 = vmatmul.mubr.f32.gmra.mrb[0].mxu0 %v3112
  %v3470 = vpop.f32.mrb[0].mxu0
  %v3471 = vadd.f32 0.0, %v3470
  %v3472 = vpop.f32.mrb[0].mxu0
  %3473 = vmatprep.mubr.f32.mxu0 0.0
  %3474 = vmatmul.mubr.f32.gmra.mrb[0].mxu0 %v3113
  %v3475 = vpop.f32.mrb[0].mxu0
  %v3476 = vadd.f32 0.0, %v3475
  %v3477 = vpop.f32.mrb[0].mxu0
  %3478 = vmatprep.mubr.f32.mxu0 0.0
  %3479 = vmatmul.mubr.f32.gmra.mrb[0].mxu0 %v3114
  %v3480 = vpop.f32.mrb[0].mxu0
  %v3481 = vadd.f32 0.0, %v3480
  %v3482 = vpop.f32.mrb[0].mxu0
  %3483 = vmatprep.mubr.f32.mxu0 0.0
  %3484 = vmatmul.mubr.f32.gmra.mrb[0].mxu0 %v3115
  %v3485 = vpop.f32.mrb[0].mxu0
  %v3486 = vadd.f32 0.0, %v3485
  %v3487 = vpop.f32.mrb[0].mxu0
  %3488 = vmatprep.mubr.f32.mxu0 0.0
  %3489 = vmatmul.mubr.f32.gmra.mrb[0].mxu0 %v3116
  %v3490 = vpop.f32.mrb[0].mxu0
  %v3491 = vadd.f32 0.0, %v3490
  %v3492 = vpop.f32.mrb[0].mxu0
  %3493 = vmatprep.mubr.f32.mxu0 0.0
  %3494 = vmatmul.mubr.f32.gmra.mrb[0].mxu0 %v3117
  %v3495 = vpop.f32.mrb[0].mxu0
  %v3496 = vadd.f32 0.0, %v3495
  %v3497 = vpop.f32.mrb[0].mxu0
  %3498 = vmatprep.mubr.f32.mxu0 0.0
  %3499 = vmatmul.mubr.f32.gmra.mrb[0].mxu0 %v3118
  %v3500 = vpop.f32.mrb[0].mxu0
  %v3501 = vadd.f32 0.0, %v3500
  %v3502 = vpop.f32.mrb[0].mxu0
  %3503 = vmatprep.mubr.f32.mxu0 0.0
  %3504 = vmatmul.mubr.f32.gmra.mrb[0].mxu0 %v3119
  %v3505 = vpop.f32.mrb[0].mxu0
  %v3506 = vadd.f32 0.0, %v3505
  %v3507 = vpop.f32.mrb[0].mxu0
  %3508 = vmatprep.mubr.f32.mxu0 0.0
  %3509 = vmatmul.mubr.f32.gmra.mrb[0].mxu0 %v3120
  %v3510 = vpop.f32.mrb[0].mxu0
  %v3511 = vadd.f32 0.0, %v3510
  %v3512 = vpop.f32.mrb[0].mxu0
  %3513 = vmatprep.mubr.f32.mxu0 0.0
  %3514 = vmatmul.mubr.f32.gmra.mrb[0].mxu0 %v3121
  %v3515 = vpop.f32.mrb[0].mxu0
  %v3516 = vadd.f32 0.0, %v3515
  %v3517 = vpop.f32.mrb[0].mxu0
  %3518 = vmatprep.mubr.f32.mxu0 0.0
  %3519 = vmatmul.mubr.f32.gmra.mrb[0].mxu0 %v3122
  %v3520 = vpop.f32.mrb[0].mxu0
  %v3521 = vadd.f32 0.0, %v3520
  %v3522 = vpop.f32.mrb[0].mxu0
  %3523 = vmatprep.mubr.f32.mxu0 0.0
  %3524 = vmatmul.mubr.f32.gmra.mrb[0].mxu0 %v3123
  %v3525 = vpop.f32.mrb[0].mxu0
  %v3526 = vadd.f32 0.0, %v3525
  %v3527 = vpop.f32.mrb[0].mxu0
  %3528 = vmatprep.mubr.f32.mxu0 0.0
  %3529 = vmatmul.mubr.f32.gmra.mrb[0].mxu0 %v3124
  %v3530 = vpop.f32.mrb[0].mxu0
  %v3531 = vadd.f32 0.0, %v3530
  %v3532 = vpop.f32.mrb[0].mxu0
  %3533 = vmatprep.mubr.f32.mxu0 0.0
  %3534 = vmatmul.mubr.f32.gmra.mrb[0].mxu0 %v3125
  %v3535 = vpop.f32.mrb[0].mxu0
  %v3536 = vadd.f32 0.0, %v3535
  %v3537 = vpop.f32.mrb[0].mxu0
  %3538 = vmatprep.mubr.f32.mxu0 0.0
  %3539 = vmatmul.mubr.f32.gmra.mrb[0].mxu0 %v3126
  %v3540 = vpop.f32.mrb[0].mxu0
  %v3541 = vadd.f32 0.0, %v3540
  %v3542 = vpop.f32.mrb[0].mxu0
  %3543 = vmatprep.mubr.f32.mxu0 0.0
  %3544 = vmatmul.mubr.f32.gmra.mrb[0].mxu0 %v3127
  %v3545 = vpop.f32.mrb[0].mxu0
  %v3546 = vadd.f32 0.0, %v3545
  %v3547 = vpop.f32.mrb[0].mxu0
  %3548 = vmatprep.mubr.f32.mxu0 0.0
  %3549 = vmatmul.mubr.f32.gmra.mrb[0].mxu0 %v3128
  %v3550 = vpop.f32.mrb[0].mxu0
  %v3551 = vadd.f32 0.0, %v3550
  %v3552 = vpop.f32.mrb[0].mxu0
  %3553 = vmatprep.mubr.f32.mxu0 0.0
  %3554 = vmatmul.mubr.f32.gmra.mrb[0].mxu0 %v3129
  %v3555 = vpop.f32.mrb[0].mxu0
  %v3556 = vadd.f32 0.0, %v3555
  %v3557 = vpop.f32.mrb[0].mxu0
  %3558 = vmatprep.mubr.f32.mxu0 0.0
  %3559 = vmatmul.mubr.f32.gmra.mrb[0].mxu0 %v3130
  %v3560 = vpop.f32.mrb[0].mxu0
  %v3561 = vadd.f32 0.0, %v3560
  %v3562 = vpop.f32.mrb[0].mxu0
  %3563 = vmatprep.mubr.f32.mxu0 0.0
  %3564 = vmatmul.mubr.f32.gmra.mrb[0].mxu0 %v3131
  %v3565 = vpop.f32.mrb[0].mxu0
  %v3566 = vadd.f32 0.0, %v3565
  %v3567 = vpop.f32.mrb[0].mxu0
  %3568 = vmatprep.mubr.f32.mxu0 0.0
  %3569 = vmatmul.mubr.f32.gmra.mrb[0].mxu0 %v3132
  %v3570 = vpop.f32.mrb[0].mxu0
  %v3571 = vadd.f32 0.0, %v3570
  %v3572 = vpop.f32.mrb[0].mxu0
  %3573 = vmatprep.mubr.f32.mxu0 0.0
  %3574 = vmatmul.mubr.f32.gmra.mrb[0].mxu0 %v3133
  %v3575 = vpop.f32.mrb[0].mxu0
  %v3576 = vadd.f32 0.0, %v3575
  %v3577 = vpop.f32.mrb[0].mxu0
  %3578 = vmatprep.mubr.f32.mxu0 0.0
  %3579 = vmatmul.mubr.f32.gmra.mrb[0].mxu0 %v3134
  %v3580 = vpop.f32.mrb[0].mxu0
  %v3581 = vadd.f32 0.0, %v3580
  %v3582 = vpop.f32.mrb[0].mxu0
  %3583 = vmatprep.mubr.f32.mxu0 0.0
  %3584 = vmatmul.mubr.f32.gmra.mrb[0].mxu0 %v3135
  %v3585 = vpop.f32.mrb[0].mxu0
  %v3586 = vadd.f32 0.0, %v3585
  %v3587 = vpop.f32.mrb[0].mxu0
  %3588 = vmatprep.mubr.f32.mxu0 0.0
  %3589 = vmatmul.mubr.f32.gmra.mrb[0].mxu0 %v3136
  %v3590 = vpop.f32.mrb[0].mxu0
  %v3591 = vadd.f32 0.0, %v3590
  %v3592 = vpop.f32.mrb[0].mxu0
  %3593 = vmatprep.mubr.f32.mxu0 0.0
  %3594 = vmatmul.mubr.f32.gmra.mrb[0].mxu0 %v3137
  %v3595 = vpop.f32.mrb[0].mxu0
  %v3596 = vadd.f32 0.0, %v3595
  %v3597 = vpop.f32.mrb[0].mxu0
  %3598 = vmatprep.mubr.f32.mxu0 0.0
  %3599 = vmatmul.mubr.f32.gmra.mrb[0].mxu0 %v3138
  %v3600 = vpop.f32.mrb[0].mxu0
  %v3601 = vadd.f32 0.0, %v3600
  %v3602 = vpop.f32.mrb[0].mxu0
  %3603 = vmatprep.mubr.f32.mxu0 0.0
  %3604 = vmatmul.mubr.f32.gmra.mrb[0].mxu0 %v3139
  %v3605 = vpop.f32.mrb[0].mxu0
  %v3606 = vadd.f32 0.0, %v3605
  %v3607 = vpop.f32.mrb[0].mxu0
  %3608 = vmatprep.mubr.f32.mxu0 0.0
  %3609 = vmatmul.mubr.f32.gmra.mrb[0].mxu0 %v3140
  %v3610 = vpop.f32.mrb[0].mxu0
  %v3611 = vadd.f32 0.0, %v3610
  %v3612 = vpop.f32.mrb[0].mxu0
  %3613 = vmatprep.mubr.f32.mxu0 0.0
  %3614 = vmatmul.mubr.f32.gmra.mrb[0].mxu0 %v3141
  %v3615 = vpop.f32.mrb[0].mxu0
  %v3616 = vadd.f32 0.0, %v3615
  %v3617 = vpop.f32.mrb[0].mxu0
  %3618 = vmatprep.mubr.f32.mxu0 0.0
  %3619 = vmatmul.mubr.f32.gmra.mrb[0].mxu0 %v3142
  %v3620 = vpop.f32.mrb[0].mxu0
  %v3621 = vadd.f32 0.0, %v3620
  %v3622 = vpop.f32.mrb[0].mxu0
  %3623 = vmatprep.mubr.f32.mxu0 0.0
  %3624 = vmatmul.mubr.f32.gmra.mrb[0].mxu0 %v3143
  %v3625 = vpop.f32.mrb[0].mxu0
  %v3626 = vadd.f32 0.0, %v3625
  %v3627 = vpop.f32.mrb[0].mxu0
  %3628 = vmatprep.mubr.f32.mxu0 0.0
  %3629 = vmatmul.mubr.f32.gmra.mrb[0].mxu0 %v3144
  %v3630 = vpop.f32.mrb[0].mxu0
  %v3631 = vadd.f32 0.0, %v3630
  %v3632 = vpop.f32.mrb[0].mxu0
  %3633 = vmatprep.mubr.f32.mxu0 0.0
  %3634 = vmatmul.mubr.f32.gmra.mrb[0].mxu0 %v3145
  %v3635 = vpop.f32.mrb[0].mxu0
  %v3636 = vadd.f32 0.0, %v3635
  %v3637 = vpop.f32.mrb[0].mxu0
  %3638 = vmatprep.mubr.f32.mxu0 0.0
  %3639 = vmatmul.mubr.f32.gmra.mrb[0].mxu0 %v3146
  %v3640 = vpop.f32.mrb[0].mxu0
  %v3641 = vadd.f32 0.0, %v3640
  %v3642 = vpop.f32.mrb[0].mxu0
  %3643 = vmatprep.mubr.f32.mxu0 0.0
  %3644 = vmatmul.mubr.f32.gmra.mrb[0].mxu0 %v3147
  %v3645 = vpop.f32.mrb[0].mxu0
  %v3646 = vadd.f32 0.0, %v3645
  %v3647 = vpop.f32.mrb[0].mxu0
  %3648 = vmatprep.mubr.f32.mxu0 0.0
  %3649 = vmatmul.mubr.f32.gmra.mrb[0].mxu0 %v3148
  %v3650 = vpop.f32.mrb[0].mxu0
  %v3651 = vadd.f32 0.0, %v3650
  %v3652 = vpop.f32.mrb[0].mxu0
  %3653 = vmatprep.mubr.f32.mxu0 0.0
  %3654 = vmatmul.mubr.f32.gmra.mrb[0].mxu0 %v3149
  %v3655 = vpop.f32.mrb[0].mxu0
  %v3656 = vadd.f32 0.0, %v3655
  %v3657 = vpop.f32.mrb[0].mxu0
  %3658 = vmatprep.mubr.f32.mxu0 0.0
  %3659 = vmatmul.mubr.f32.gmra.mrb[0].mxu0 %v3150
  %v3660 = vpop.f32.mrb[0].mxu0
  %v3661 = vadd.f32 0.0, %v3660
  %v3662 = vpop.f32.mrb[0].mxu0
  %3663 = vmatprep.mubr.f32.mxu0 0.0
  %3664 = vmatmul.mubr.f32.gmra.mrb[0].mxu0 %v3151
  %v3665 = vpop.f32.mrb[0].mxu0
  %v3666 = vadd.f32 0.0, %v3665
  %v3667 = vpop.f32.mrb[0].mxu0
  %3668 = vmatprep.mubr.f32.mxu0 0.0
  %3669 = vmatmul.mubr.f32.gmra.mrb[0].mxu0 %v3152
  %v3670 = vpop.f32.mrb[0].mxu0
  %v3671 = vadd.f32 0.0, %v3670
  %v3672 = vpop.f32.mrb[0].mxu0
  %3673 = vmatprep.mubr.f32.mxu0 0.0
  %3674 = vmatmul.mubr.f32.gmra.mrb[0].mxu0 %v3153
  %v3675 = vpop.f32.mrb[0].mxu0
  %v3676 = vadd.f32 0.0, %v3675
  %v3677 = vpop.f32.mrb[0].mxu0
  %3678 = vmatprep.mubr.f32.mxu0 0.0
  %3679 = vmatmul.mubr.f32.gmra.mrb[0].mxu0 %v3154
  %v3680 = vpop.f32.mrb[0].mxu0
  %v3681 = vadd.f32 0.0, %v3680
  %v3682 = vpop.f32.mrb[0].mxu0
  %3683 = vmatprep.mubr.f32.mxu0 0.0
  %3684 = vmatmul.mubr.f32.gmra.mrb[0].mxu0 %v3155
  %v3685 = vpop.f32.mrb[0].mxu0
  %v3686 = vadd.f32 0.0, %v3685
  %v3687 = vpop.f32.mrb[0].mxu0
  %3688 = vmatprep.mubr.f32.mxu0 0.0
  %3689 = vmatmul.mubr.f32.gmra.mrb[0].mxu0 %v3156
  %v3690 = vpop.f32.mrb[0].mxu0
  %v3691 = vadd.f32 0.0, %v3690
  %v3692 = vpop.f32.mrb[0].mxu0
  %3693 = vmatprep.mubr.f32.mxu0 0.0
  %3694 = vmatmul.mubr.f32.gmra.mrb[0].mxu0 %v3157
  %v3695 = vpop.f32.mrb[0].mxu0
  %v3696 = vadd.f32 0.0, %v3695
  %v3697 = vpop.f32.mrb[0].mxu0
  %3698 = vmatprep.mubr.f32.mxu0 0.0
  %3699 = vmatmul.mubr.f32.gmra.mrb[0].mxu0 %v3158
  %v3700 = vpop.f32.mrb[0].mxu0
  %v3701 = vadd.f32 0.0, %v3700
  %v3702 = vpop.f32.mrb[0].mxu0
  %3703 = vmatprep.mubr.f32.mxu0 0.0
  %3704 = vmatmul.mubr.f32.gmra.mrb[0].mxu0 %v3159
  %v3705 = vpop.f32.mrb[0].mxu0
  %v3706 = vadd.f32 0.0, %v3705
  %v3707 = vpop.f32.mrb[0].mxu0
  %3708 = vmatprep.mubr.f32.mxu0 0.0
  %3709 = vmatmul.mubr.f32.gmra.mrb[0].mxu0 %v3160
  %v3710 = vpop.f32.mrb[0].mxu0
  %v3711 = vadd.f32 0.0, %v3710
  %v3712 = vpop.f32.mrb[0].mxu0
  %3713 = vmatprep.mubr.f32.mxu0 0.0
  %3714 = vmatmul.mubr.f32.gmra.mrb[0].mxu0 %v3161
  %v3715 = vpop.f32.mrb[0].mxu0
  %v3716 = vadd.f32 0.0, %v3715
  %v3717 = vpop.f32.mrb[0].mxu0
  %3718 = vmatprep.mubr.f32.mxu0 0.0
  %3719 = vmatmul.mubr.f32.gmra.mrb[0].mxu0 %v3162
  %v3720 = vpop.f32.mrb[0].mxu0
  %v3721 = vadd.f32 0.0, %v3720
  %v3722 = vpop.f32.mrb[0].mxu0
  %3723 = vmatprep.mubr.f32.mxu0 0.0
  %3724 = vmatmul.mubr.f32.gmra.mrb[0].mxu0 %v3163
  %v3725 = vpop.f32.mrb[0].mxu0
  %v3726 = vadd.f32 0.0, %v3725
  %v3727 = vpop.f32.mrb[0].mxu0
  %3728 = vmatprep.mubr.f32.mxu0 0.0
  %3729 = vmatmul.mubr.f32.gmra.mrb[0].mxu0 %v3164
  %v3730 = vpop.f32.mrb[0].mxu0
  %v3731 = vadd.f32 0.0, %v3730
  %v3732 = vpop.f32.mrb[0].mxu0
  %3733 = vmatprep.mubr.f32.mxu0 0.0
  %3734 = vmatmul.mubr.f32.gmra.mrb[0].mxu0 %v3165
  %v3735 = vpop.f32.mrb[0].mxu0
  %v3736 = vadd.f32 0.0, %v3735
  %v3737 = vpop.f32.mrb[0].mxu0
  %3738 = vmatprep.mubr.f32.mxu0 0.0
  %3739 = vmatmul.mubr.f32.gmra.mrb[0].mxu0 %v3166
  %v3740 = vpop.f32.mrb[0].mxu0
  %v3741 = vadd.f32 0.0, %v3740
  %v3742 = vpop.f32.mrb[0].mxu0
  %3743 = vmatprep.mubr.f32.mxu0 0.0
  %3744 = vmatmul.mubr.f32.gmra.mrb[0].mxu0 %v3167
  %v3745 = vpop.f32.mrb[0].mxu0
  %v3746 = vadd.f32 0.0, %v3745
  %v3747 = vpop.f32.mrb[0].mxu0
  %3748 = vmatprep.mubr.f32.mxu0 0.0
  %3749 = vmatmul.mubr.f32.gmra.mrb[0].mxu0 %v3168
  %v3750 = vpop.f32.mrb[0].mxu0
  %v3751 = vadd.f32 0.0, %v3750
  %v3752 = vpop.f32.mrb[0].mxu0
  %3753 = vmatprep.mubr.f32.mxu0 0.0
  %3754 = vmatmul.mubr.f32.gmra.mrb[0].mxu0 %v3169
  %v3755 = vpop.f32.mrb[0].mxu0
  %v3756 = vadd.f32 0.0, %v3755
  %v3757 = vpop.f32.mrb[0].mxu0
  %3758 = vmatprep.mubr.f32.mxu0 0.0
  %3759 = vmatmul.mubr.f32.gmra.mrb[0].mxu0 %v3170
  %v3760 = vpop.f32.mrb[0].mxu0
  %v3761 = vadd.f32 0.0, %v3760
  %v3762 = vpop.f32.mrb[0].mxu0
  %3763 = vmatprep.mubr.f32.mxu0 0.0
  %3764 = vmatmul.mubr.f32.gmra.mrb[0].mxu0 %v3171
  %v3765 = vpop.f32.mrb[0].mxu0
  %v3766 = vadd.f32 0.0, %v3765
  %v3767 = vpop.f32.mrb[0].mxu0
  %3768 = vmatprep.mubr.f32.mxu0 0.0
  %3769 = vmatmul.mubr.f32.gmra.mrb[0].mxu0 %v3172
  %v3770 = vpop.f32.mrb[0].mxu0
  %v3771 = vadd.f32 0.0, %v3770
  %v3772 = vpop.f32.mrb[0].mxu0
  %3773 = vmatprep.mubr.f32.mxu0 0.0
  %3774 = vmatmul.mubr.f32.gmra.mrb[0].mxu0 %v3173
  %v3775 = vpop.f32.mrb[0].mxu0
  %v3776 = vadd.f32 0.0, %v3775
  %v3777 = vpop.f32.mrb[0].mxu0
  %3778 = vmatprep.mubr.f32.mxu0 0.0
  %3779 = vmatmul.mubr.f32.gmra.mrb[0].mxu0 %v3174
  %v3780 = vpop.f32.mrb[0].mxu0
  %v3781 = vadd.f32 0.0, %v3780
  %v3782 = vpop.f32.mrb[0].mxu0
  %3783 = vmatprep.mubr.f32.mxu0 0.0
  %3784 = vmatmul.mubr.f32.gmra.mrb[0].mxu0 %v3175
  %v3785 = vpop.f32.mrb[0].mxu0
  %v3786 = vadd.f32 0.0, %v3785
  %v3787 = vpop.f32.mrb[0].mxu0
  %3788 = vmatprep.mubr.f32.mxu0 0.0
  %3789 = vmatmul.mubr.f32.gmra.mrb[0].mxu0 %v3176
  %v3790 = vpop.f32.mrb[0].mxu0
  %v3791 = vadd.f32 0.0, %v3790
  %v3792 = vpop.f32.mrb[0].mxu0
  %3793 = vmatprep.mubr.f32.mxu0 0.0
  %3794 = vmatmul.mubr.f32.gmra.mrb[0].mxu0 %v3177
  %v3795 = vpop.f32.mrb[0].mxu0
  %v3796 = vadd.f32 0.0, %v3795
  %v3797 = vpop.f32.mrb[0].mxu0
  %3798 = vmatprep.mubr.f32.mxu0 0.0
  %3799 = vmatmul.mubr.f32.gmra.mrb[0].mxu0 %v3178
  %v3800 = vpop.f32.mrb[0].mxu0
  %v3801 = vadd.f32 0.0, %v3800
  %v3802 = vpop.f32.mrb[0].mxu0
  %3803 = vmatprep.mubr.f32.mxu0 0.0
  %3804 = vmatmul.mubr.f32.gmra.mrb[0].mxu0 %v3179
  %v3805 = vpop.f32.mrb[0].mxu0
  %v3806 = vadd.f32 0.0, %v3805
  %v3807 = vpop.f32.mrb[0].mxu0
  %3808 = vmatprep.mubr.f32.mxu0 0.0
  %3809 = vmatmul.mubr.f32.gmra.mrb[0].mxu0 %v3180
  %v3810 = vpop.f32.mrb[0].mxu0
  %v3811 = vadd.f32 0.0, %v3810
  %v3812 = vpop.f32.mrb[0].mxu0
  %3813 = vmatprep.mubr.f32.mxu0 0.0
  %3814 = vmatmul.mubr.f32.gmra.mrb[0].mxu0 %v3181
  %v3815 = vpop.f32.mrb[0].mxu0
  %v3816 = vadd.f32 0.0, %v3815
  %v3817 = vpop.f32.mrb[0].mxu0
  %3818 = vmatprep.mubr.f32.mxu0 0.0
  %3819 = vmatmul.mubr.f32.gmra.mrb[0].mxu0 %v3182
  %v3820 = vpop.f32.mrb[0].mxu0
  %v3821 = vadd.f32 0.0, %v3820
  %v3822 = vpop.f32.mrb[0].mxu0
  %3823 = vmatprep.mubr.f32.mxu0 0.0
  %3824 = vmatmul.mubr.f32.gmra.mrb[0].mxu0 %v3183
  %v3825 = vpop.f32.mrb[0].mxu0
  %v3826 = vadd.f32 0.0, %v3825
  %v3827 = vpop.f32.mrb[0].mxu0
  %3828 = vmatprep.mubr.f32.mxu0 0.0
  %3829 = vmatmul.mubr.f32.gmra.mrb[0].mxu0 %v3184
  %v3830 = vpop.f32.mrb[0].mxu0
  %v3831 = vadd.f32 0.0, %v3830
  %v3832 = vpop.f32.mrb[0].mxu0
  %3833 = vmatprep.mubr.f32.mxu0 0.0
  %3834 = vmatmul.mubr.f32.gmra.mrb[0].mxu0 %v3185
  %v3835 = vpop.f32.mrb[0].mxu0
  %v3836 = vadd.f32 0.0, %v3835
  %v3837 = vpop.f32.mrb[0].mxu0
  %3838 = vmatprep.mubr.f32.mxu0 0.0
  %3839 = vmatmul.mubr.f32.gmra.mrb[0].mxu0 %v3186
  %v3840 = vpop.f32.mrb[0].mxu0
  %v3841 = vadd.f32 0.0, %v3840
  %v3842 = vpop.f32.mrb[0].mxu0
  %3843 = vmatprep.mubr.f32.mxu0 0.0
  %3844 = vmatmul.mubr.f32.gmra.mrb[0].mxu0 %v3187
  %v3845 = vpop.f32.mrb[0].mxu0
  %v3846 = vadd.f32 0.0, %v3845
  %v3847 = vpop.f32.mrb[0].mxu0
  %3848 = vmatprep.mubr.f32.mxu0 0.0
  %3849 = vmatmul.mubr.f32.gmra.mrb[0].mxu0 %v3188
  %v3850 = vpop.f32.mrb[0].mxu0
  %v3851 = vadd.f32 0.0, %v3850
  %v3852 = vpop.f32.mrb[0].mxu0
  %3853 = vmatprep.mubr.f32.mxu0 0.0
  %3854 = vmatmul.mubr.f32.gmra.mrb[0].mxu0 %v3189
  %v3855 = vpop.f32.mrb[0].mxu0
  %v3856 = vadd.f32 0.0, %v3855
  %v3857 = vpop.f32.mrb[0].mxu0
  %3858 = vmatprep.mubr.f32.mxu0 0.0
  %3859 = vmatmul.mubr.f32.gmra.mrb[0].mxu0 %v3190
  %v3860 = vpop.f32.mrb[0].mxu0
  %v3861 = vadd.f32 0.0, %v3860
  %v3862 = vpop.f32.mrb[0].mxu0
  %3863 = vmatprep.mubr.f32.mxu0 0.0
  %3864 = vmatmul.mubr.f32.gmra.mrb[0].mxu0 %v3191
  %v3865 = vpop.f32.mrb[0].mxu0
  %v3866 = vadd.f32 0.0, %v3865
  %v3867 = vpop.f32.mrb[0].mxu0
  %3868 = vmatprep.mubr.f32.mxu0 0.0
  %3869 = vmatmul.mubr.f32.gmra.mrb[0].mxu0 %v3192
  %v3870 = vpop.f32.mrb[0].mxu0
  %v3871 = vadd.f32 0.0, %v3870
  %v3872 = vpop.f32.mrb[0].mxu0
  %3873 = vmatprep.mubr.f32.mxu0 0.0
  %3874 = vmatmul.mubr.f32.gmra.mrb[0].mxu0 %v3193
  %v3875 = vpop.f32.mrb[0].mxu0
  %v3876 = vadd.f32 0.0, %v3875
  %v3877 = vpop.f32.mrb[0].mxu0
  %3878 = vmatprep.mubr.f32.mxu0 0.0
  %3879 = vmatmul.mubr.f32.gmra.mrb[0].mxu0 %v3194
  %v3880 = vpop.f32.mrb[0].mxu0
  %v3881 = vadd.f32 0.0, %v3880
  %v3882 = vpop.f32.mrb[0].mxu0
  %3883 = vmatprep.mubr.f32.mxu0 0.0
  %3884 = vmatmul.mubr.f32.gmra.mrb[0].mxu0 %v3195
  %v3885 = vpop.f32.mrb[0].mxu0
  %v3886 = vadd.f32 0.0, %v3885
  %v3887 = vpop.f32.mrb[0].mxu0
  %3888 = vmatprep.mubr.f32.mxu0 0.0
  %3889 = vmatmul.mubr.f32.gmra.mrb[0].mxu0 %v3196
  %v3890 = vpop.f32.mrb[0].mxu0
  %v3891 = vadd.f32 0.0, %v3890
  %v3892 = vpop.f32.mrb[0].mxu0
  %3893 = vmatprep.mubr.f32.mxu0 0.0
  %3894 = vmatmul.mubr.f32.gmra.mrb[0].mxu0 %v3197
  %v3895 = vpop.f32.mrb[0].mxu0
  %v3896 = vadd.f32 0.0, %v3895
  %v3897 = vpop.f32.mrb[0].mxu0
  %3898 = vmatprep.mubr.f32.mxu0 0.0
  %3899 = vmatmul.mubr.f32.gmra.mrb[0].mxu0 %v3198
  %v3900 = vpop.f32.mrb[0].mxu0
  %v3901 = vadd.f32 0.0, %v3900
  %v3902 = vpop.f32.mrb[0].mxu0
  %3903 = vmatprep.mubr.f32.mxu0 0.0
  %3904 = vmatmul.mubr.f32.gmra.mrb[0].mxu0 %v3199
  %v3905 = vpop.f32.mrb[0].mxu0
  %v3906 = vadd.f32 0.0, %v3905
  %v3907 = vpop.f32.mrb[0].mxu0
  %3908 = vmatprep.mubr.f32.mxu0 0.0
  %3909 = vmatmul.mubr.f32.gmra.mrb[0].mxu0 %v3200
  %v3910 = vpop.f32.mrb[0].mxu0
  %v3911 = vadd.f32 0.0, %v3910
  %v3912 = vpop.f32.mrb[0].mxu0
  %3913 = vmatprep.mubr.f32.mxu0 0.0
  %3914 = vmatmul.mubr.f32.gmra.mrb[0].mxu0 %v3201
  %v3915 = vpop.f32.mrb[0].mxu0
  %v3916 = vadd.f32 0.0, %v3915
  %v3917 = vpop.f32.mrb[0].mxu0
  %3918 = vmatprep.mubr.f32.mxu0 0.0
  %3919 = vmatmul.mubr.f32.gmra.mrb[0].mxu0 %v3202
  %v3920 = vpop.f32.mrb[0].mxu0
  %v3921 = vadd.f32 0.0, %v3920
  %v3922 = vpop.f32.mrb[0].mxu0
  %3923 = vdwg.mxu0
  %v3924 = vadd.f32 %v2226, %v3286
  %v3925 = vadd.f32 %v2227, %v3291
  %v3926 = vadd.f32 %v2228, %v3296
  %v3927 = vadd.f32 %v2229, %v3301
  %v3928 = vadd.f32 %v2230, %v3306
  %v3929 = vadd.f32 %v2231, %v3311
  %v3930 = vadd.f32 %v2232, %v3316
  %v3931 = vadd.f32 %v2233, %v3321
  %v3932 = vadd.f32 %v2234, %v3326
  %v3933 = vadd.f32 %v2235, %v3331
  %v3934 = vadd.f32 %v2236, %v3336
  %v3935 = vadd.f32 %v2237, %v3341
  %v3936 = vadd.f32 %v2238, %v3346
  %v3937 = vadd.f32 %v2239, %v3351
  %v3938 = vadd.f32 %v2240, %v3356
  %v3939 = vadd.f32 %v2241, %v3361
  %v3940 = vadd.f32 %v2242, %v3366
  %v3941 = vadd.f32 %v2243, %v3371
  %v3942 = vadd.f32 %v2244, %v3376
  %v3943 = vadd.f32 %v2245, %v3381
  %v3944 = vadd.f32 %v2246, %v3386
  %v3945 = vadd.f32 %v2247, %v3391
  %v3946 = vadd.f32 %v2248, %v3396
  %v3947 = vadd.f32 %v2249, %v3401
  %v3948 = vadd.f32 %v2250, %v3406
  %v3949 = vadd.f32 %v2251, %v3411
  %v3950 = vadd.f32 %v2252, %v3416
  %v3951 = vadd.f32 %v2253, %v3421
  %v3952 = vadd.f32 %v2254, %v3426
  %v3953 = vadd.f32 %v2255, %v3431
  %v3954 = vadd.f32 %v2256, %v3436
  %v3955 = vadd.f32 %v2257, %v3441
  %v3956 = vadd.f32 %v2258, %v3446
  %v3957 = vadd.f32 %v2259, %v3451
  %v3958 = vadd.f32 %v2260, %v3456
  %v3959 = vadd.f32 %v2261, %v3461
  %v3960 = vadd.f32 %v2262, %v3466
  %v3961 = vadd.f32 %v2263, %v3471
  %v3962 = vadd.f32 %v2264, %v3476
  %v3963 = vadd.f32 %v2265, %v3481
  %v3964 = vadd.f32 %v2266, %v3486
  %v3965 = vadd.f32 %v2267, %v3491
  %v3966 = vadd.f32 %v2268, %v3496
  %v3967 = vadd.f32 %v2269, %v3501
  %v3968 = vadd.f32 %v2270, %v3506
  %v3969 = vadd.f32 %v2271, %v3511
  %v3970 = vadd.f32 %v2272, %v3516
  %v3971 = vadd.f32 %v2273, %v3521
  %v3972 = vadd.f32 %v2274, %v3526
  %v3973 = vadd.f32 %v2275, %v3531
  %v3974 = vadd.f32 %v2276, %v3536
  %v3975 = vadd.f32 %v2277, %v3541
  %v3976 = vadd.f32 %v2278, %v3546
  %v3977 = vadd.f32 %v2279, %v3551
  %v3978 = vadd.f32 %v2280, %v3556
  %v3979 = vadd.f32 %v2281, %v3561
  %v3980 = vadd.f32 %v2282, %v3566
  %v3981 = vadd.f32 %v2283, %v3571
  %v3982 = vadd.f32 %v2284, %v3576
  %v3983 = vadd.f32 %v2285, %v3581
  %v3984 = vadd.f32 %v2286, %v3586
  %v3985 = vadd.f32 %v2287, %v3591
  %v3986 = vadd.f32 %v2288, %v3596
  %v3987 = vadd.f32 %v2289, %v3601
  %v3988 = vadd.f32 %v2290, %v3606
  %v3989 = vadd.f32 %v2291, %v3611
  %v3990 = vadd.f32 %v2292, %v3616
  %v3991 = vadd.f32 %v2293, %v3621
  %v3992 = vadd.f32 %v2294, %v3626
  %v3993 = vadd.f32 %v2295, %v3631
  %v3994 = vadd.f32 %v2296, %v3636
  %v3995 = vadd.f32 %v2297, %v3641
  %v3996 = vadd.f32 %v2298, %v3646
  %v3997 = vadd.f32 %v2299, %v3651
  %v3998 = vadd.f32 %v2300, %v3656
  %v3999 = vadd.f32 %v2301, %v3661
  %v4000 = vadd.f32 %v2302, %v3666
  %v4001 = vadd.f32 %v2303, %v3671
  %v4002 = vadd.f32 %v2304, %v3676
  %v4003 = vadd.f32 %v2305, %v3681
  %v4004 = vadd.f32 %v2306, %v3686
  %v4005 = vadd.f32 %v2307, %v3691
  %v4006 = vadd.f32 %v2308, %v3696
  %v4007 = vadd.f32 %v2309, %v3701
  %v4008 = vadd.f32 %v2310, %v3706
  %v4009 = vadd.f32 %v2311, %v3711
  %v4010 = vadd.f32 %v2312, %v3716
  %v4011 = vadd.f32 %v2313, %v3721
  %v4012 = vadd.f32 %v2314, %v3726
  %v4013 = vadd.f32 %v2315, %v3731
  %v4014 = vadd.f32 %v2316, %v3736
  %v4015 = vadd.f32 %v2317, %v3741
  %v4016 = vadd.f32 %v2318, %v3746
  %v4017 = vadd.f32 %v2319, %v3751
  %v4018 = vadd.f32 %v2320, %v3756
  %v4019 = vadd.f32 %v2321, %v3761
  %v4020 = vadd.f32 %v2322, %v3766
  %v4021 = vadd.f32 %v2323, %v3771
  %v4022 = vadd.f32 %v2324, %v3776
  %v4023 = vadd.f32 %v2325, %v3781
  %v4024 = vadd.f32 %v2326, %v3786
  %v4025 = vadd.f32 %v2327, %v3791
  %v4026 = vadd.f32 %v2328, %v3796
  %v4027 = vadd.f32 %v2329, %v3801
  %v4028 = vadd.f32 %v2330, %v3806
  %v4029 = vadd.f32 %v2331, %v3811
  %v4030 = vadd.f32 %v2332, %v3816
  %v4031 = vadd.f32 %v2333, %v3821
  %v4032 = vadd.f32 %v2334, %v3826
  %v4033 = vadd.f32 %v2335, %v3831
  %v4034 = vadd.f32 %v2336, %v3836
  %v4035 = vadd.f32 %v2337, %v3841
  %v4036 = vadd.f32 %v2338, %v3846
  %v4037 = vadd.f32 %v2339, %v3851
  %v4038 = vadd.f32 %v2340, %v3856
  %v4039 = vadd.f32 %v2341, %v3861
  %v4040 = vadd.f32 %v2342, %v3866
  %v4041 = vadd.f32 %v2343, %v3871
  %v4042 = vadd.f32 %v2344, %v3876
  %v4043 = vadd.f32 %v2345, %v3881
  %v4044 = vadd.f32 %v2346, %v3886
  %v4045 = vadd.f32 %v2347, %v3891
  %v4046 = vadd.f32 %v2348, %v3896
  %v4047 = vadd.f32 %v2349, %v3901
  %v4048 = vadd.f32 %v2350, %v3906
  %v4049 = vadd.f32 %v2351, %v3911
  %v4050 = vadd.f32 %v2352, %v3916
  %v4051 = vadd.f32 %v2353, %v3921
  %v4052 = vpack.c.bf16 %v3925, %v3924
  %v4053 = vpack.c.bf16 %v3927, %v3926
  %v4054 = vpack.c.bf16 %v3929, %v3928
  %v4055 = vpack.c.bf16 %v3931, %v3930
  %v4056 = vpack.c.bf16 %v3933, %v3932
  %v4057 = vpack.c.bf16 %v3935, %v3934
  %v4058 = vpack.c.bf16 %v3937, %v3936
  %v4059 = vpack.c.bf16 %v3939, %v3938
  %v4060 = vpack.c.bf16 %v3941, %v3940
  %v4061 = vpack.c.bf16 %v3943, %v3942
  %v4062 = vpack.c.bf16 %v3945, %v3944
  %v4063 = vpack.c.bf16 %v3947, %v3946
  %v4064 = vpack.c.bf16 %v3949, %v3948
  %v4065 = vpack.c.bf16 %v3951, %v3950
  %v4066 = vpack.c.bf16 %v3953, %v3952
  %v4067 = vpack.c.bf16 %v3955, %v3954
  %v4068 = vpack.c.bf16 %v3957, %v3956
  %v4069 = vpack.c.bf16 %v3959, %v3958
  %v4070 = vpack.c.bf16 %v3961, %v3960
  %v4071 = vpack.c.bf16 %v3963, %v3962
  %v4072 = vpack.c.bf16 %v3965, %v3964
  %v4073 = vpack.c.bf16 %v3967, %v3966
  %v4074 = vpack.c.bf16 %v3969, %v3968
  %v4075 = vpack.c.bf16 %v3971, %v3970
  %v4076 = vpack.c.bf16 %v3973, %v3972
  %v4077 = vpack.c.bf16 %v3975, %v3974
  %v4078 = vpack.c.bf16 %v3977, %v3976
  %v4079 = vpack.c.bf16 %v3979, %v3978
  %v4080 = vpack.c.bf16 %v3981, %v3980
  %v4081 = vpack.c.bf16 %v3983, %v3982
  %v4082 = vpack.c.bf16 %v3985, %v3984
  %v4083 = vpack.c.bf16 %v3987, %v3986
  %v4084 = vpack.c.bf16 %v3989, %v3988
  %v4085 = vpack.c.bf16 %v3991, %v3990
  %v4086 = vpack.c.bf16 %v3993, %v3992
  %v4087 = vpack.c.bf16 %v3995, %v3994
  %v4088 = vpack.c.bf16 %v3997, %v3996
  %v4089 = vpack.c.bf16 %v3999, %v3998
  %v4090 = vpack.c.bf16 %v4001, %v4000
  %v4091 = vpack.c.bf16 %v4003, %v4002
  %v4092 = vpack.c.bf16 %v4005, %v4004
  %v4093 = vpack.c.bf16 %v4007, %v4006
  %v4094 = vpack.c.bf16 %v4009, %v4008
  %v4095 = vpack.c.bf16 %v4011, %v4010
  %v4096 = vpack.c.bf16 %v4013, %v4012
  %v4097 = vpack.c.bf16 %v4015, %v4014
  %v4098 = vpack.c.bf16 %v4017, %v4016
  %v4099 = vpack.c.bf16 %v4019, %v4018
  %v4100 = vpack.c.bf16 %v4021, %v4020
  %v4101 = vpack.c.bf16 %v4023, %v4022
  %v4102 = vpack.c.bf16 %v4025, %v4024
  %v4103 = vpack.c.bf16 %v4027, %v4026
  %v4104 = vpack.c.bf16 %v4029, %v4028
  %v4105 = vpack.c.bf16 %v4031, %v4030
  %v4106 = vpack.c.bf16 %v4033, %v4032
  %v4107 = vpack.c.bf16 %v4035, %v4034
  %v4108 = vpack.c.bf16 %v4037, %v4036
  %v4109 = vpack.c.bf16 %v4039, %v4038
  %v4110 = vpack.c.bf16 %v4041, %v4040
  %v4111 = vpack.c.bf16 %v4043, %v4042
  %v4112 = vpack.c.bf16 %v4045, %v4044
  %v4113 = vpack.c.bf16 %v4047, %v4046
  %v4114 = vpack.c.bf16 %v4049, %v4048
  %v4115 = vpack.c.bf16 %v4051, %v4050
  %v4180 = vunpack.c.l.b16 %v4052
  %v4181 = vunpack.c.h.b16 %v4052
  %v4182 = vunpack.c.l.b16 %v4053
  %v4183 = vunpack.c.h.b16 %v4053
  %v4184 = vunpack.c.l.b16 %v4054
  %v4185 = vunpack.c.h.b16 %v4054
  %v4186 = vunpack.c.l.b16 %v4055
  %v4187 = vunpack.c.h.b16 %v4055
  %v4188 = vunpack.c.l.b16 %v4056
  %v4189 = vunpack.c.h.b16 %v4056
  %v4190 = vunpack.c.l.b16 %v4057
  %v4191 = vunpack.c.h.b16 %v4057
  %v4192 = vunpack.c.l.b16 %v4058
  %v4193 = vunpack.c.h.b16 %v4058
  %v4194 = vunpack.c.l.b16 %v4059
  %v4195 = vunpack.c.h.b16 %v4059
  %v4196 = vunpack.c.l.b16 %v4060
  %v4197 = vunpack.c.h.b16 %v4060
  %v4198 = vunpack.c.l.b16 %v4061
  %v4199 = vunpack.c.h.b16 %v4061
  %v4200 = vunpack.c.l.b16 %v4062
  %v4201 = vunpack.c.h.b16 %v4062
  %v4202 = vunpack.c.l.b16 %v4063
  %v4203 = vunpack.c.h.b16 %v4063
  %v4204 = vunpack.c.l.b16 %v4064
  %v4205 = vunpack.c.h.b16 %v4064
  %v4206 = vunpack.c.l.b16 %v4065
  %v4207 = vunpack.c.h.b16 %v4065
  %v4208 = vunpack.c.l.b16 %v4066
  %v4209 = vunpack.c.h.b16 %v4066
  %v4210 = vunpack.c.l.b16 %v4067
  %v4211 = vunpack.c.h.b16 %v4067
  %v4212 = vunpack.c.l.b16 %v4068
  %v4213 = vunpack.c.h.b16 %v4068
  %v4214 = vunpack.c.l.b16 %v4069
  %v4215 = vunpack.c.h.b16 %v4069
  %v4216 = vunpack.c.l.b16 %v4070
  %v4217 = vunpack.c.h.b16 %v4070
  %v4218 = vunpack.c.l.b16 %v4071
  %v4219 = vunpack.c.h.b16 %v4071
  %v4220 = vunpack.c.l.b16 %v4072
  %v4221 = vunpack.c.h.b16 %v4072
  %v4222 = vunpack.c.l.b16 %v4073
  %v4223 = vunpack.c.h.b16 %v4073
  %v4224 = vunpack.c.l.b16 %v4074
  %v4225 = vunpack.c.h.b16 %v4074
  %v4226 = vunpack.c.l.b16 %v4075
  %v4227 = vunpack.c.h.b16 %v4075
  %v4228 = vunpack.c.l.b16 %v4076
  %v4229 = vunpack.c.h.b16 %v4076
  %v4230 = vunpack.c.l.b16 %v4077
  %v4231 = vunpack.c.h.b16 %v4077
  %v4232 = vunpack.c.l.b16 %v4078
  %v4233 = vunpack.c.h.b16 %v4078
  %v4234 = vunpack.c.l.b16 %v4079
  %v4235 = vunpack.c.h.b16 %v4079
  %v4236 = vunpack.c.l.b16 %v4080
  %v4237 = vunpack.c.h.b16 %v4080
  %v4238 = vunpack.c.l.b16 %v4081
  %v4239 = vunpack.c.h.b16 %v4081
  %v4240 = vunpack.c.l.b16 %v4082
  %v4241 = vunpack.c.h.b16 %v4082
  %v4242 = vunpack.c.l.b16 %v4083
  %v4243 = vunpack.c.h.b16 %v4083
  %v4244 = vunpack.c.l.b16 %v4084
  %v4245 = vunpack.c.h.b16 %v4084
  %v4246 = vunpack.c.l.b16 %v4085
  %v4247 = vunpack.c.h.b16 %v4085
  %v4248 = vunpack.c.l.b16 %v4086
  %v4249 = vunpack.c.h.b16 %v4086
  %v4250 = vunpack.c.l.b16 %v4087
  %v4251 = vunpack.c.h.b16 %v4087
  %v4252 = vunpack.c.l.b16 %v4088
  %v4253 = vunpack.c.h.b16 %v4088
  %v4254 = vunpack.c.l.b16 %v4089
  %v4255 = vunpack.c.h.b16 %v4089
  %v4256 = vunpack.c.l.b16 %v4090
  %v4257 = vunpack.c.h.b16 %v4090
  %v4258 = vunpack.c.l.b16 %v4091
  %v4259 = vunpack.c.h.b16 %v4091
  %v4260 = vunpack.c.l.b16 %v4092
  %v4261 = vunpack.c.h.b16 %v4092
  %v4262 = vunpack.c.l.b16 %v4093
  %v4263 = vunpack.c.h.b16 %v4093
  %v4264 = vunpack.c.l.b16 %v4094
  %v4265 = vunpack.c.h.b16 %v4094
  %v4266 = vunpack.c.l.b16 %v4095
  %v4267 = vunpack.c.h.b16 %v4095
  %v4268 = vunpack.c.l.b16 %v4096
  %v4269 = vunpack.c.h.b16 %v4096
  %v4270 = vunpack.c.l.b16 %v4097
  %v4271 = vunpack.c.h.b16 %v4097
  %v4272 = vunpack.c.l.b16 %v4098
  %v4273 = vunpack.c.h.b16 %v4098
  %v4274 = vunpack.c.l.b16 %v4099
  %v4275 = vunpack.c.h.b16 %v4099
  %v4276 = vunpack.c.l.b16 %v4100
  %v4277 = vunpack.c.h.b16 %v4100
  %v4278 = vunpack.c.l.b16 %v4101
  %v4279 = vunpack.c.h.b16 %v4101
  %v4280 = vunpack.c.l.b16 %v4102
  %v4281 = vunpack.c.h.b16 %v4102
  %v4282 = vunpack.c.l.b16 %v4103
  %v4283 = vunpack.c.h.b16 %v4103
  %v4284 = vunpack.c.l.b16 %v4104
  %v4285 = vunpack.c.h.b16 %v4104
  %v4286 = vunpack.c.l.b16 %v4105
  %v4287 = vunpack.c.h.b16 %v4105
  %v4288 = vunpack.c.l.b16 %v4106
  %v4289 = vunpack.c.h.b16 %v4106
  %v4290 = vunpack.c.l.b16 %v4107
  %v4291 = vunpack.c.h.b16 %v4107
  %v4292 = vunpack.c.l.b16 %v4108
  %v4293 = vunpack.c.h.b16 %v4108
  %v4294 = vunpack.c.l.b16 %v4109
  %v4295 = vunpack.c.h.b16 %v4109
  %v4296 = vunpack.c.l.b16 %v4110
  %v4297 = vunpack.c.h.b16 %v4110
  %v4298 = vunpack.c.l.b16 %v4111
  %v4299 = vunpack.c.h.b16 %v4111
  %v4300 = vunpack.c.l.b16 %v4112
  %v4301 = vunpack.c.h.b16 %v4112
  %v4302 = vunpack.c.l.b16 %v4113
  %v4303 = vunpack.c.h.b16 %v4113
  %v4304 = vunpack.c.l.b16 %v4114
  %v4305 = vunpack.c.h.b16 %v4114
  %v4306 = vunpack.c.l.b16 %v4115
  %v4307 = vunpack.c.h.b16 %v4115
  %v4308 = vpack.c.b16 %v4180, %v4180
  %v4309 = vpack.c.b16 %v4181, %v4181
  %v4310 = vpack.c.b16 %v4182, %v4182
  %v4311 = vpack.c.b16 %v4183, %v4183
  %v4312 = vpack.c.b16 %v4184, %v4184
  %v4313 = vpack.c.b16 %v4185, %v4185
  %v4314 = vpack.c.b16 %v4186, %v4186
  %v4315 = vpack.c.b16 %v4187, %v4187
  %v4316 = vpack.c.b16 %v4188, %v4188
  %v4317 = vpack.c.b16 %v4189, %v4189
  %v4318 = vpack.c.b16 %v4190, %v4190
  %v4319 = vpack.c.b16 %v4191, %v4191
  %v4320 = vpack.c.b16 %v4192, %v4192
  %v4321 = vpack.c.b16 %v4193, %v4193
  %v4322 = vpack.c.b16 %v4194, %v4194
  %v4323 = vpack.c.b16 %v4195, %v4195
  %v4324 = vpack.c.b16 %v4196, %v4196
  %v4325 = vpack.c.b16 %v4197, %v4197
  %v4326 = vpack.c.b16 %v4198, %v4198
  %v4327 = vpack.c.b16 %v4199, %v4199
  %v4328 = vpack.c.b16 %v4200, %v4200
  %v4329 = vpack.c.b16 %v4201, %v4201
  %v4330 = vpack.c.b16 %v4202, %v4202
  %v4331 = vpack.c.b16 %v4203, %v4203
  %v4332 = vpack.c.b16 %v4204, %v4204
  %v4333 = vpack.c.b16 %v4205, %v4205
  %v4334 = vpack.c.b16 %v4206, %v4206
  %v4335 = vpack.c.b16 %v4207, %v4207
  %v4336 = vpack.c.b16 %v4208, %v4208
  %v4337 = vpack.c.b16 %v4209, %v4209
  %v4338 = vpack.c.b16 %v4210, %v4210
  %v4339 = vpack.c.b16 %v4211, %v4211
  %v4340 = vpack.c.b16 %v4212, %v4212
  %v4341 = vpack.c.b16 %v4213, %v4213
  %v4342 = vpack.c.b16 %v4214, %v4214
  %v4343 = vpack.c.b16 %v4215, %v4215
  %v4344 = vpack.c.b16 %v4216, %v4216
  %v4345 = vpack.c.b16 %v4217, %v4217
  %v4346 = vpack.c.b16 %v4218, %v4218
  %v4347 = vpack.c.b16 %v4219, %v4219
  %v4348 = vpack.c.b16 %v4220, %v4220
  %v4349 = vpack.c.b16 %v4221, %v4221
  %v4350 = vpack.c.b16 %v4222, %v4222
  %v4351 = vpack.c.b16 %v4223, %v4223
  %v4352 = vpack.c.b16 %v4224, %v4224
  %v4353 = vpack.c.b16 %v4225, %v4225
  %v4354 = vpack.c.b16 %v4226, %v4226
  %v4355 = vpack.c.b16 %v4227, %v4227
  %v4356 = vpack.c.b16 %v4228, %v4228
  %v4357 = vpack.c.b16 %v4229, %v4229
  %v4358 = vpack.c.b16 %v4230, %v4230
  %v4359 = vpack.c.b16 %v4231, %v4231
  %v4360 = vpack.c.b16 %v4232, %v4232
  %v4361 = vpack.c.b16 %v4233, %v4233
  %v4362 = vpack.c.b16 %v4234, %v4234
  %v4363 = vpack.c.b16 %v4235, %v4235
  %v4364 = vpack.c.b16 %v4236, %v4236
  %v4365 = vpack.c.b16 %v4237, %v4237
  %v4366 = vpack.c.b16 %v4238, %v4238
  %v4367 = vpack.c.b16 %v4239, %v4239
  %v4368 = vpack.c.b16 %v4240, %v4240
  %v4369 = vpack.c.b16 %v4241, %v4241
  %v4370 = vpack.c.b16 %v4242, %v4242
  %v4371 = vpack.c.b16 %v4243, %v4243
  %v4372 = vpack.c.b16 %v4244, %v4244
  %v4373 = vpack.c.b16 %v4245, %v4245
  %v4374 = vpack.c.b16 %v4246, %v4246
  %v4375 = vpack.c.b16 %v4247, %v4247
  %v4376 = vpack.c.b16 %v4248, %v4248
  %v4377 = vpack.c.b16 %v4249, %v4249
  %v4378 = vpack.c.b16 %v4250, %v4250
  %v4379 = vpack.c.b16 %v4251, %v4251
  %v4380 = vpack.c.b16 %v4252, %v4252
  %v4381 = vpack.c.b16 %v4253, %v4253
  %v4382 = vpack.c.b16 %v4254, %v4254
  %v4383 = vpack.c.b16 %v4255, %v4255
  %v4384 = vpack.c.b16 %v4256, %v4256
  %v4385 = vpack.c.b16 %v4257, %v4257
  %v4386 = vpack.c.b16 %v4258, %v4258
  %v4387 = vpack.c.b16 %v4259, %v4259
  %v4388 = vpack.c.b16 %v4260, %v4260
  %v4389 = vpack.c.b16 %v4261, %v4261
  %v4390 = vpack.c.b16 %v4262, %v4262
  %v4391 = vpack.c.b16 %v4263, %v4263
  %v4392 = vpack.c.b16 %v4264, %v4264
  %v4393 = vpack.c.b16 %v4265, %v4265
  %v4394 = vpack.c.b16 %v4266, %v4266
  %v4395 = vpack.c.b16 %v4267, %v4267
  %v4396 = vpack.c.b16 %v4268, %v4268
  %v4397 = vpack.c.b16 %v4269, %v4269
  %v4398 = vpack.c.b16 %v4270, %v4270
  %v4399 = vpack.c.b16 %v4271, %v4271
  %v4400 = vpack.c.b16 %v4272, %v4272
  %v4401 = vpack.c.b16 %v4273, %v4273
  %v4402 = vpack.c.b16 %v4274, %v4274
  %v4403 = vpack.c.b16 %v4275, %v4275
  %v4404 = vpack.c.b16 %v4276, %v4276
  %v4405 = vpack.c.b16 %v4277, %v4277
  %v4406 = vpack.c.b16 %v4278, %v4278
  %v4407 = vpack.c.b16 %v4279, %v4279
  %v4408 = vpack.c.b16 %v4280, %v4280
  %v4409 = vpack.c.b16 %v4281, %v4281
  %v4410 = vpack.c.b16 %v4282, %v4282
  %v4411 = vpack.c.b16 %v4283, %v4283
  %v4412 = vpack.c.b16 %v4284, %v4284
  %v4413 = vpack.c.b16 %v4285, %v4285
  %v4414 = vpack.c.b16 %v4286, %v4286
  %v4415 = vpack.c.b16 %v4287, %v4287
  %v4416 = vpack.c.b16 %v4288, %v4288
  %v4417 = vpack.c.b16 %v4289, %v4289
  %v4418 = vpack.c.b16 %v4290, %v4290
  %v4419 = vpack.c.b16 %v4291, %v4291
  %v4420 = vpack.c.b16 %v4292, %v4292
  %v4421 = vpack.c.b16 %v4293, %v4293
  %v4422 = vpack.c.b16 %v4294, %v4294
  %v4423 = vpack.c.b16 %v4295, %v4295
  %v4424 = vpack.c.b16 %v4296, %v4296
  %v4425 = vpack.c.b16 %v4297, %v4297
  %v4426 = vpack.c.b16 %v4298, %v4298
  %v4427 = vpack.c.b16 %v4299, %v4299
  %v4428 = vpack.c.b16 %v4300, %v4300
  %v4429 = vpack.c.b16 %v4301, %v4301
  %v4430 = vpack.c.b16 %v4302, %v4302
  %v4431 = vpack.c.b16 %v4303, %v4303
  %v4432 = vpack.c.b16 %v4304, %v4304
  %v4433 = vpack.c.b16 %v4305, %v4305
  %v4434 = vpack.c.b16 %v4306, %v4306
  %v4435 = vpack.c.b16 %v4307, %v4307
  %4564 = vst [vmem:[%s5] sm:$0xf] %v4308
  %4565 = vst [vmem:[%s5 + $0x4] sm:$0xf] %v4309
  %4566 = vst [vmem:[%s5 + $0x8] sm:$0xf] %v4310
  %4567 = vst [vmem:[%s5 + $0xc] sm:$0xf] %v4311
  %4568 = vst [vmem:[%s5 + $0x10] sm:$0xf] %v4312
  %4569 = vst [vmem:[%s5 + $0x14] sm:$0xf] %v4313
  %4570 = vst [vmem:[%s5 + $0x18] sm:$0xf] %v4314
  %4571 = vst [vmem:[%s5 + $0x1c] sm:$0xf] %v4315
  %4572 = vst [vmem:[%s5 + $0x20] sm:$0xf] %v4316
  %4573 = vst [vmem:[%s5 + $0x24] sm:$0xf] %v4317
  %4574 = vst [vmem:[%s5 + $0x28] sm:$0xf] %v4318
  %4575 = vst [vmem:[%s5 + $0x2c] sm:$0xf] %v4319
  %4576 = vst [vmem:[%s5 + $0x30] sm:$0xf] %v4320
  %4577 = vst [vmem:[%s5 + $0x34] sm:$0xf] %v4321
  %4578 = vst [vmem:[%s5 + $0x38] sm:$0xf] %v4322
  %4579 = vst [vmem:[%s5 + $0x3c] sm:$0xf] %v4323
  %4580 = vst [vmem:[%s5 + $0x40] sm:$0xf] %v4324
  %4581 = vst [vmem:[%s5 + $0x44] sm:$0xf] %v4325
  %4582 = vst [vmem:[%s5 + $0x48] sm:$0xf] %v4326
  %4583 = vst [vmem:[%s5 + $0x4c] sm:$0xf] %v4327
  %4584 = vst [vmem:[%s5 + $0x50] sm:$0xf] %v4328
  %4585 = vst [vmem:[%s5 + $0x54] sm:$0xf] %v4329
  %4586 = vst [vmem:[%s5 + $0x58] sm:$0xf] %v4330
  %4587 = vst [vmem:[%s5 + $0x5c] sm:$0xf] %v4331
  %4588 = vst [vmem:[%s5 + $0x60] sm:$0xf] %v4332
  %4589 = vst [vmem:[%s5 + $0x64] sm:$0xf] %v4333
  %4590 = vst [vmem:[%s5 + $0x68] sm:$0xf] %v4334
  %4591 = vst [vmem:[%s5 + $0x6c] sm:$0xf] %v4335
  %4592 = vst [vmem:[%s5 + $0x70] sm:$0xf] %v4336
  %4593 = vst [vmem:[%s5 + $0x74] sm:$0xf] %v4337
  %4594 = vst [vmem:[%s5 + $0x78] sm:$0xf] %v4338
  %4595 = vst [vmem:[%s5 + $0x7c] sm:$0xf] %v4339
  %4596 = vst [vmem:[%s5 + $0x80] sm:$0xf] %v4340
  %4597 = vst [vmem:[%s5 + $0x84] sm:$0xf] %v4341
  %4598 = vst [vmem:[%s5 + $0x88] sm:$0xf] %v4342
  %4599 = vst [vmem:[%s5 + $0x8c] sm:$0xf] %v4343
  %4600 = vst [vmem:[%s5 + $0x90] sm:$0xf] %v4344
  %4601 = vst [vmem:[%s5 + $0x94] sm:$0xf] %v4345
  %4602 = vst [vmem:[%s5 + $0x98] sm:$0xf] %v4346
  %4603 = vst [vmem:[%s5 + $0x9c] sm:$0xf] %v4347
  %4604 = vst [vmem:[%s5 + $0xa0] sm:$0xf] %v4348
  %4605 = vst [vmem:[%s5 + $0xa4] sm:$0xf] %v4349
  %4606 = vst [vmem:[%s5 + $0xa8] sm:$0xf] %v4350
  %4607 = vst [vmem:[%s5 + $0xac] sm:$0xf] %v4351
  %4608 = vst [vmem:[%s5 + $0xb0] sm:$0xf] %v4352
  %4609 = vst [vmem:[%s5 + $0xb4] sm:$0xf] %v4353
  %4610 = vst [vmem:[%s5 + $0xb8] sm:$0xf] %v4354
  %4611 = vst [vmem:[%s5 + $0xbc] sm:$0xf] %v4355
  %4612 = vst [vmem:[%s5 + $0xc0] sm:$0xf] %v4356
  %4613 = vst [vmem:[%s5 + $0xc4] sm:$0xf] %v4357
  %4614 = vst [vmem:[%s5 + $0xc8] sm:$0xf] %v4358
  %4615 = vst [vmem:[%s5 + $0xcc] sm:$0xf] %v4359
  %4616 = vst [vmem:[%s5 + $0xd0] sm:$0xf] %v4360
  %4617 = vst [vmem:[%s5 + $0xd4] sm:$0xf] %v4361
  %4618 = vst [vmem:[%s5 + $0xd8] sm:$0xf] %v4362
  %4619 = vst [vmem:[%s5 + $0xdc] sm:$0xf] %v4363
  %4620 = vst [vmem:[%s5 + $0xe0] sm:$0xf] %v4364
  %4621 = vst [vmem:[%s5 + $0xe4] sm:$0xf] %v4365
  %4622 = vst [vmem:[%s5 + $0xe8] sm:$0xf] %v4366
  %4623 = vst [vmem:[%s5 + $0xec] sm:$0xf] %v4367
  %4624 = vst [vmem:[%s5 + $0xf0] sm:$0xf] %v4368
  %4625 = vst [vmem:[%s5 + $0xf4] sm:$0xf] %v4369
  %4626 = vst [vmem:[%s5 + $0xf8] sm:$0xf] %v4370
  %4627 = vst [vmem:[%s5 + $0xfc] sm:$0xf] %v4371
  %4628 = vst [vmem:[%s5 + $0x100] sm:$0xf] %v4372
  %4629 = vst [vmem:[%s5 + $0x104] sm:$0xf] %v4373
  %4630 = vst [vmem:[%s5 + $0x108] sm:$0xf] %v4374
  %4631 = vst [vmem:[%s5 + $0x10c] sm:$0xf] %v4375
  %4632 = vst [vmem:[%s5 + $0x110] sm:$0xf] %v4376
  %4633 = vst [vmem:[%s5 + $0x114] sm:$0xf] %v4377
  %4634 = vst [vmem:[%s5 + $0x118] sm:$0xf] %v4378
  %4635 = vst [vmem:[%s5 + $0x11c] sm:$0xf] %v4379
  %4636 = vst [vmem:[%s5 + $0x120] sm:$0xf] %v4380
  %4637 = vst [vmem:[%s5 + $0x124] sm:$0xf] %v4381
  %4638 = vst [vmem:[%s5 + $0x128] sm:$0xf] %v4382
  %4639 = vst [vmem:[%s5 + $0x12c] sm:$0xf] %v4383
  %4640 = vst [vmem:[%s5 + $0x130] sm:$0xf] %v4384
  %4641 = vst [vmem:[%s5 + $0x134] sm:$0xf] %v4385
  %4642 = vst [vmem:[%s5 + $0x138] sm:$0xf] %v4386
  %4643 = vst [vmem:[%s5 + $0x13c] sm:$0xf] %v4387
  %4644 = vst [vmem:[%s5 + $0x140] sm:$0xf] %v4388
  %4645 = vst [vmem:[%s5 + $0x144] sm:$0xf] %v4389
  %4646 = vst [vmem:[%s5 + $0x148] sm:$0xf] %v4390
  %4647 = vst [vmem:[%s5 + $0x14c] sm:$0xf] %v4391
  %4648 = vst [vmem:[%s5 + $0x150] sm:$0xf] %v4392
  %4649 = vst [vmem:[%s5 + $0x154] sm:$0xf] %v4393
  %4650 = vst [vmem:[%s5 + $0x158] sm:$0xf] %v4394
  %4651 = vst [vmem:[%s5 + $0x15c] sm:$0xf] %v4395
  %4652 = vst [vmem:[%s5 + $0x160] sm:$0xf] %v4396
  %4653 = vst [vmem:[%s5 + $0x164] sm:$0xf] %v4397
  %4654 = vst [vmem:[%s5 + $0x168] sm:$0xf] %v4398
  %4655 = vst [vmem:[%s5 + $0x16c] sm:$0xf] %v4399
  %4656 = vst [vmem:[%s5 + $0x170] sm:$0xf] %v4400
  %4657 = vst [vmem:[%s5 + $0x174] sm:$0xf] %v4401
  %4658 = vst [vmem:[%s5 + $0x178] sm:$0xf] %v4402
  %4659 = vst [vmem:[%s5 + $0x17c] sm:$0xf] %v4403
  %4660 = vst [vmem:[%s5 + $0x180] sm:$0xf] %v4404
  %4661 = vst [vmem:[%s5 + $0x184] sm:$0xf] %v4405
  %4662 = vst [vmem:[%s5 + $0x188] sm:$0xf] %v4406
  %4663 = vst [vmem:[%s5 + $0x18c] sm:$0xf] %v4407
  %4664 = vst [vmem:[%s5 + $0x190] sm:$0xf] %v4408
  %4665 = vst [vmem:[%s5 + $0x194] sm:$0xf] %v4409
  %4666 = vst [vmem:[%s5 + $0x198] sm:$0xf] %v4410
  %4667 = vst [vmem:[%s5 + $0x19c] sm:$0xf] %v4411
  %4668 = vst [vmem:[%s5 + $0x1a0] sm:$0xf] %v4412
  %4669 = vst [vmem:[%s5 + $0x1a4] sm:$0xf] %v4413
  %4670 = vst [vmem:[%s5 + $0x1a8] sm:$0xf] %v4414
  %4671 = vst [vmem:[%s5 + $0x1ac] sm:$0xf] %v4415
  %4672 = vst [vmem:[%s5 + $0x1b0] sm:$0xf] %v4416
  %4673 = vst [vmem:[%s5 + $0x1b4] sm:$0xf] %v4417
  %4674 = vst [vmem:[%s5 + $0x1b8] sm:$0xf] %v4418
  %4675 = vst [vmem:[%s5 + $0x1bc] sm:$0xf] %v4419
  %4676 = vst [vmem:[%s5 + $0x1c0] sm:$0xf] %v4420
  %4677 = vst [vmem:[%s5 + $0x1c4] sm:$0xf] %v4421
  %4678 = vst [vmem:[%s5 + $0x1c8] sm:$0xf] %v4422
  %4679 = vst [vmem:[%s5 + $0x1cc] sm:$0xf] %v4423
  %4680 = vst [vmem:[%s5 + $0x1d0] sm:$0xf] %v4424
  %4681 = vst [vmem:[%s5 + $0x1d4] sm:$0xf] %v4425
  %4682 = vst [vmem:[%s5 + $0x1d8] sm:$0xf] %v4426
  %4683 = vst [vmem:[%s5 + $0x1dc] sm:$0xf] %v4427
  %4684 = vst [vmem:[%s5 + $0x1e0] sm:$0xf] %v4428
  %4685 = vst [vmem:[%s5 + $0x1e4] sm:$0xf] %v4429
  %4686 = vst [vmem:[%s5 + $0x1e8] sm:$0xf] %v4430
  %4687 = vst [vmem:[%s5 + $0x1ec] sm:$0xf] %v4431
  %4688 = vst [vmem:[%s5 + $0x1f0] sm:$0xf] %v4432
  %4689 = vst [vmem:[%s5 + $0x1f4] sm:$0xf] %v4433
  %4690 = vst [vmem:[%s5 + $0x1f8] sm:$0xf] %v4434
  %4691 = vst [vmem:[%s5 + $0x1fc] sm:$0xf] %v4435
  %v4692 = vmax.f32 %v2226, 0.0
  %v4693 = vmax.f32 %v2227, 0.0
  %v4694 = vmax.f32 %v2228, 0.0
  %v4695 = vmax.f32 %v2229, 0.0
  %v4696 = vmax.f32 %v2230, 0.0
  %v4697 = vmax.f32 %v2231, 0.0
  %v4698 = vmax.f32 %v2232, 0.0
  %v4699 = vmax.f32 %v2233, 0.0
  %v4700 = vmax.f32 %v2234, 0.0
  %v4701 = vmax.f32 %v2235, 0.0
  %v4702 = vmax.f32 %v2236, 0.0
  %v4703 = vmax.f32 %v2237, 0.0
  %v4704 = vmax.f32 %v2238, 0.0
  %v4705 = vmax.f32 %v2239, 0.0
  %v4706 = vmax.f32 %v2240, 0.0
  %v4707 = vmax.f32 %v2241, 0.0
  %v4708 = vmax.f32 %v2242, 0.0
  %v4709 = vmax.f32 %v2243, 0.0
  %v4710 = vmax.f32 %v2244, 0.0
  %v4711 = vmax.f32 %v2245, 0.0
  %v4712 = vmax.f32 %v2246, 0.0
  %v4713 = vmax.f32 %v2247, 0.0
  %v4714 = vmax.f32 %v2248, 0.0
  %v4715 = vmax.f32 %v2249, 0.0
  %v4716 = vmax.f32 %v2250, 0.0
  %v4717 = vmax.f32 %v2251, 0.0
  %v4718 = vmax.f32 %v2252, 0.0
  %v4719 = vmax.f32 %v2253, 0.0
  %v4720 = vmax.f32 %v2254, 0.0
  %v4721 = vmax.f32 %v2255, 0.0
  %v4722 = vmax.f32 %v2256, 0.0
  %v4723 = vmax.f32 %v2257, 0.0
  %v4724 = vmax.f32 %v2258, 0.0
  %v4725 = vmax.f32 %v2259, 0.0
  %v4726 = vmax.f32 %v2260, 0.0
  %v4727 = vmax.f32 %v2261, 0.0
  %v4728 = vmax.f32 %v2262, 0.0
  %v4729 = vmax.f32 %v2263, 0.0
  %v4730 = vmax.f32 %v2264, 0.0
  %v4731 = vmax.f32 %v2265, 0.0
  %v4732 = vmax.f32 %v2266, 0.0
  %v4733 = vmax.f32 %v2267, 0.0
  %v4734 = vmax.f32 %v2268, 0.0
  %v4735 = vmax.f32 %v2269, 0.0
  %v4736 = vmax.f32 %v2270, 0.0
  %v4737 = vmax.f32 %v2271, 0.0
  %v4738 = vmax.f32 %v2272, 0.0
  %v4739 = vmax.f32 %v2273, 0.0
  %v4740 = vmax.f32 %v2274, 0.0
  %v4741 = vmax.f32 %v2275, 0.0
  %v4742 = vmax.f32 %v2276, 0.0
  %v4743 = vmax.f32 %v2277, 0.0
  %v4744 = vmax.f32 %v2278, 0.0
  %v4745 = vmax.f32 %v2279, 0.0
  %v4746 = vmax.f32 %v2280, 0.0
  %v4747 = vmax.f32 %v2281, 0.0
  %v4748 = vmax.f32 %v2282, 0.0
  %v4749 = vmax.f32 %v2283, 0.0
  %v4750 = vmax.f32 %v2284, 0.0
  %v4751 = vmax.f32 %v2285, 0.0
  %v4752 = vmax.f32 %v2286, 0.0
  %v4753 = vmax.f32 %v2287, 0.0
  %v4754 = vmax.f32 %v2288, 0.0
  %v4755 = vmax.f32 %v2289, 0.0
  %v4756 = vmax.f32 %v2290, 0.0
  %v4757 = vmax.f32 %v2291, 0.0
  %v4758 = vmax.f32 %v2292, 0.0
  %v4759 = vmax.f32 %v2293, 0.0
  %v4760 = vmax.f32 %v2294, 0.0
  %v4761 = vmax.f32 %v2295, 0.0
  %v4762 = vmax.f32 %v2296, 0.0
  %v4763 = vmax.f32 %v2297, 0.0
  %v4764 = vmax.f32 %v2298, 0.0
  %v4765 = vmax.f32 %v2299, 0.0
  %v4766 = vmax.f32 %v2300, 0.0
  %v4767 = vmax.f32 %v2301, 0.0
  %v4768 = vmax.f32 %v2302, 0.0
  %v4769 = vmax.f32 %v2303, 0.0
  %v4770 = vmax.f32 %v2304, 0.0
  %v4771 = vmax.f32 %v2305, 0.0
  %v4772 = vmax.f32 %v2306, 0.0
  %v4773 = vmax.f32 %v2307, 0.0
  %v4774 = vmax.f32 %v2308, 0.0
  %v4775 = vmax.f32 %v2309, 0.0
  %v4776 = vmax.f32 %v2310, 0.0
  %v4777 = vmax.f32 %v2311, 0.0
  %v4778 = vmax.f32 %v2312, 0.0
  %v4779 = vmax.f32 %v2313, 0.0
  %v4780 = vmax.f32 %v2314, 0.0
  %v4781 = vmax.f32 %v2315, 0.0
  %v4782 = vmax.f32 %v2316, 0.0
  %v4783 = vmax.f32 %v2317, 0.0
  %v4784 = vmax.f32 %v2318, 0.0
  %v4785 = vmax.f32 %v2319, 0.0
  %v4786 = vmax.f32 %v2320, 0.0
  %v4787 = vmax.f32 %v2321, 0.0
  %v4788 = vmax.f32 %v2322, 0.0
  %v4789 = vmax.f32 %v2323, 0.0
  %v4790 = vmax.f32 %v2324, 0.0
  %v4791 = vmax.f32 %v2325, 0.0
  %v4792 = vmax.f32 %v2326, 0.0
  %v4793 = vmax.f32 %v2327, 0.0
  %v4794 = vmax.f32 %v2328, 0.0
  %v4795 = vmax.f32 %v2329, 0.0
  %v4796 = vmax.f32 %v2330, 0.0
  %v4797 = vmax.f32 %v2331, 0.0
  %v4798 = vmax.f32 %v2332, 0.0
  %v4799 = vmax.f32 %v2333, 0.0
  %v4800 = vmax.f32 %v2334, 0.0
  %v4801 = vmax.f32 %v2335, 0.0
  %v4802 = vmax.f32 %v2336, 0.0
  %v4803 = vmax.f32 %v2337, 0.0
  %v4804 = vmax.f32 %v2338, 0.0
  %v4805 = vmax.f32 %v2339, 0.0
  %v4806 = vmax.f32 %v2340, 0.0
  %v4807 = vmax.f32 %v2341, 0.0
  %v4808 = vmax.f32 %v2342, 0.0
  %v4809 = vmax.f32 %v2343, 0.0
  %v4810 = vmax.f32 %v2344, 0.0
  %v4811 = vmax.f32 %v2345, 0.0
  %v4812 = vmax.f32 %v2346, 0.0
  %v4813 = vmax.f32 %v2347, 0.0
  %v4814 = vmax.f32 %v2348, 0.0
  %v4815 = vmax.f32 %v2349, 0.0
  %v4816 = vmax.f32 %v2350, 0.0
  %v4817 = vmax.f32 %v2351, 0.0
  %v4818 = vmax.f32 %v2352, 0.0
  %v4819 = vmax.f32 %v2353, 0.0
  %v4820 = vadd.f32 %v4692, 1.0
  %v4821 = vlog2.pop %v4820
  %v4822 = vmul.f32 %v4821, 0.6931472
  %v4823 = vmul.f32 -0.5, %v4692
  %v4824 = vadd.f32 %v4823, 1.0
  %v4825 = vmul.f32 %v4824, %v4692
  %v4826 = vand.u32 2147483647, %v4692
  %vm4827 = vcmp.lt.f32.partialorder %v4826, 0.0004427343
  %v4828 = vsel %vm4827, %v4825, %v4822
  %v4829 = vadd.f32 %v4693, 1.0
  %v4830 = vlog2.pop %v4829
  %v4831 = vmul.f32 %v4830, 0.6931472
  %v4832 = vmul.f32 -0.5, %v4693
  %v4833 = vadd.f32 %v4832, 1.0
  %v4834 = vmul.f32 %v4833, %v4693
  %v4835 = vand.u32 2147483647, %v4693
  %vm4836 = vcmp.lt.f32.partialorder %v4835, 0.0004427343
  %v4837 = vsel %vm4836, %v4834, %v4831
  %v4838 = vadd.f32 %v4694, 1.0
  %v4839 = vlog2.pop %v4838
  %v4840 = vmul.f32 %v4839, 0.6931472
  %v4841 = vmul.f32 -0.5, %v4694
  %v4842 = vadd.f32 %v4841, 1.0
  %v4843 = vmul.f32 %v4842, %v4694
  %v4844 = vand.u32 2147483647, %v4694
  %vm4845 = vcmp.lt.f32.partialorder %v4844, 0.0004427343
  %v4846 = vsel %vm4845, %v4843, %v4840
  %v4847 = vadd.f32 %v4695, 1.0
  %v4848 = vlog2.pop %v4847
  %v4849 = vmul.f32 %v4848, 0.6931472
  %v4850 = vmul.f32 -0.5, %v4695
  %v4851 = vadd.f32 %v4850, 1.0
  %v4852 = vmul.f32 %v4851, %v4695
  %v4853 = vand.u32 2147483647, %v4695
  %vm4854 = vcmp.lt.f32.partialorder %v4853, 0.0004427343
  %v4855 = vsel %vm4854, %v4852, %v4849
  %v4856 = vadd.f32 %v4696, 1.0
  %v4857 = vlog2.pop %v4856
  %v4858 = vmul.f32 %v4857, 0.6931472
  %v4859 = vmul.f32 -0.5, %v4696
  %v4860 = vadd.f32 %v4859, 1.0
  %v4861 = vmul.f32 %v4860, %v4696
  %v4862 = vand.u32 2147483647, %v4696
  %vm4863 = vcmp.lt.f32.partialorder %v4862, 0.0004427343
  %v4864 = vsel %vm4863, %v4861, %v4858
  %v4865 = vadd.f32 %v4697, 1.0
  %v4866 = vlog2.pop %v4865
  %v4867 = vmul.f32 %v4866, 0.6931472
  %v4868 = vmul.f32 -0.5, %v4697
  %v4869 = vadd.f32 %v4868, 1.0
  %v4870 = vmul.f32 %v4869, %v4697
  %v4871 = vand.u32 2147483647, %v4697
  %vm4872 = vcmp.lt.f32.partialorder %v4871, 0.0004427343
  %v4873 = vsel %vm4872, %v4870, %v4867
  %v4874 = vadd.f32 %v4698, 1.0
  %v4875 = vlog2.pop %v4874
  %v4876 = vmul.f32 %v4875, 0.6931472
  %v4877 = vmul.f32 -0.5, %v4698
  %v4878 = vadd.f32 %v4877, 1.0
  %v4879 = vmul.f32 %v4878, %v4698
  %v4880 = vand.u32 2147483647, %v4698
  %vm4881 = vcmp.lt.f32.partialorder %v4880, 0.0004427343
  %v4882 = vsel %vm4881, %v4879, %v4876
  %v4883 = vadd.f32 %v4699, 1.0
  %v4884 = vlog2.pop %v4883
  %v4885 = vmul.f32 %v4884, 0.6931472
  %v4886 = vmul.f32 -0.5, %v4699
  %v4887 = vadd.f32 %v4886, 1.0
  %v4888 = vmul.f32 %v4887, %v4699
  %v4889 = vand.u32 2147483647, %v4699
  %vm4890 = vcmp.lt.f32.partialorder %v4889, 0.0004427343
  %v4891 = vsel %vm4890, %v4888, %v4885
  %v4892 = vadd.f32 %v4700, 1.0
  %v4893 = vlog2.pop %v4892
  %v4894 = vmul.f32 %v4893, 0.6931472
  %v4895 = vmul.f32 -0.5, %v4700
  %v4896 = vadd.f32 %v4895, 1.0
  %v4897 = vmul.f32 %v4896, %v4700
  %v4898 = vand.u32 2147483647, %v4700
  %vm4899 = vcmp.lt.f32.partialorder %v4898, 0.0004427343
  %v4900 = vsel %vm4899, %v4897, %v4894
  %v4901 = vadd.f32 %v4701, 1.0
  %v4902 = vlog2.pop %v4901
  %v4903 = vmul.f32 %v4902, 0.6931472
  %v4904 = vmul.f32 -0.5, %v4701
  %v4905 = vadd.f32 %v4904, 1.0
  %v4906 = vmul.f32 %v4905, %v4701
  %v4907 = vand.u32 2147483647, %v4701
  %vm4908 = vcmp.lt.f32.partialorder %v4907, 0.0004427343
  %v4909 = vsel %vm4908, %v4906, %v4903
  %v4910 = vadd.f32 %v4702, 1.0
  %v4911 = vlog2.pop %v4910
  %v4912 = vmul.f32 %v4911, 0.6931472
  %v4913 = vmul.f32 -0.5, %v4702
  %v4914 = vadd.f32 %v4913, 1.0
  %v4915 = vmul.f32 %v4914, %v4702
  %v4916 = vand.u32 2147483647, %v4702
  %vm4917 = vcmp.lt.f32.partialorder %v4916, 0.0004427343
  %v4918 = vsel %vm4917, %v4915, %v4912
  %v4919 = vadd.f32 %v4703, 1.0
  %v4920 = vlog2.pop %v4919
  %v4921 = vmul.f32 %v4920, 0.6931472
  %v4922 = vmul.f32 -0.5, %v4703
  %v4923 = vadd.f32 %v4922, 1.0
  %v4924 = vmul.f32 %v4923, %v4703
  %v4925 = vand.u32 2147483647, %v4703
  %vm4926 = vcmp.lt.f32.partialorder %v4925, 0.0004427343
  %v4927 = vsel %vm4926, %v4924, %v4921
  %v4928 = vadd.f32 %v4704, 1.0
  %v4929 = vlog2.pop %v4928
  %v4930 = vmul.f32 %v4929, 0.6931472
  %v4931 = vmul.f32 -0.5, %v4704
  %v4932 = vadd.f32 %v4931, 1.0
  %v4933 = vmul.f32 %v4932, %v4704
  %v4934 = vand.u32 2147483647, %v4704
  %vm4935 = vcmp.lt.f32.partialorder %v4934, 0.0004427343
  %v4936 = vsel %vm4935, %v4933, %v4930
  %v4937 = vadd.f32 %v4705, 1.0
  %v4938 = vlog2.pop %v4937
  %v4939 = vmul.f32 %v4938, 0.6931472
  %v4940 = vmul.f32 -0.5, %v4705
  %v4941 = vadd.f32 %v4940, 1.0
  %v4942 = vmul.f32 %v4941, %v4705
  %v4943 = vand.u32 2147483647, %v4705
  %vm4944 = vcmp.lt.f32.partialorder %v4943, 0.0004427343
  %v4945 = vsel %vm4944, %v4942, %v4939
  %v4946 = vadd.f32 %v4706, 1.0
  %v4947 = vlog2.pop %v4946
  %v4948 = vmul.f32 %v4947, 0.6931472
  %v4949 = vmul.f32 -0.5, %v4706
  %v4950 = vadd.f32 %v4949, 1.0
  %v4951 = vmul.f32 %v4950, %v4706
  %v4952 = vand.u32 2147483647, %v4706
  %vm4953 = vcmp.lt.f32.partialorder %v4952, 0.0004427343
  %v4954 = vsel %vm4953, %v4951, %v4948
  %v4955 = vadd.f32 %v4707, 1.0
  %v4956 = vlog2.pop %v4955
  %v4957 = vmul.f32 %v4956, 0.6931472
  %v4958 = vmul.f32 -0.5, %v4707
  %v4959 = vadd.f32 %v4958, 1.0
  %v4960 = vmul.f32 %v4959, %v4707
  %v4961 = vand.u32 2147483647, %v4707
  %vm4962 = vcmp.lt.f32.partialorder %v4961, 0.0004427343
  %v4963 = vsel %vm4962, %v4960, %v4957
  %v4964 = vadd.f32 %v4708, 1.0
  %v4965 = vlog2.pop %v4964
  %v4966 = vmul.f32 %v4965, 0.6931472
  %v4967 = vmul.f32 -0.5, %v4708
  %v4968 = vadd.f32 %v4967, 1.0
  %v4969 = vmul.f32 %v4968, %v4708
  %v4970 = vand.u32 2147483647, %v4708
  %vm4971 = vcmp.lt.f32.partialorder %v4970, 0.0004427343
  %v4972 = vsel %vm4971, %v4969, %v4966
  %v4973 = vadd.f32 %v4709, 1.0
  %v4974 = vlog2.pop %v4973
  %v4975 = vmul.f32 %v4974, 0.6931472
  %v4976 = vmul.f32 -0.5, %v4709
  %v4977 = vadd.f32 %v4976, 1.0
  %v4978 = vmul.f32 %v4977, %v4709
  %v4979 = vand.u32 2147483647, %v4709
  %vm4980 = vcmp.lt.f32.partialorder %v4979, 0.0004427343
  %v4981 = vsel %vm4980, %v4978, %v4975
  %v4982 = vadd.f32 %v4710, 1.0
  %v4983 = vlog2.pop %v4982
  %v4984 = vmul.f32 %v4983, 0.6931472
  %v4985 = vmul.f32 -0.5, %v4710
  %v4986 = vadd.f32 %v4985, 1.0
  %v4987 = vmul.f32 %v4986, %v4710
  %v4988 = vand.u32 2147483647, %v4710
  %vm4989 = vcmp.lt.f32.partialorder %v4988, 0.0004427343
  %v4990 = vsel %vm4989, %v4987, %v4984
  %v4991 = vadd.f32 %v4711, 1.0
  %v4992 = vlog2.pop %v4991
  %v4993 = vmul.f32 %v4992, 0.6931472
  %v4994 = vmul.f32 -0.5, %v4711
  %v4995 = vadd.f32 %v4994, 1.0
  %v4996 = vmul.f32 %v4995, %v4711
  %v4997 = vand.u32 2147483647, %v4711
  %vm4998 = vcmp.lt.f32.partialorder %v4997, 0.0004427343
  %v4999 = vsel %vm4998, %v4996, %v4993
  %v5000 = vadd.f32 %v4712, 1.0
  %v5001 = vlog2.pop %v5000
  %v5002 = vmul.f32 %v5001, 0.6931472
  %v5003 = vmul.f32 -0.5, %v4712
  %v5004 = vadd.f32 %v5003, 1.0
  %v5005 = vmul.f32 %v5004, %v4712
  %v5006 = vand.u32 2147483647, %v4712
  %vm5007 = vcmp.lt.f32.partialorder %v5006, 0.0004427343
  %v5008 = vsel %vm5007, %v5005, %v5002
  %v5009 = vadd.f32 %v4713, 1.0
  %v5010 = vlog2.pop %v5009
  %v5011 = vmul.f32 %v5010, 0.6931472
  %v5012 = vmul.f32 -0.5, %v4713
  %v5013 = vadd.f32 %v5012, 1.0
  %v5014 = vmul.f32 %v5013, %v4713
  %v5015 = vand.u32 2147483647, %v4713
  %vm5016 = vcmp.lt.f32.partialorder %v5015, 0.0004427343
  %v5017 = vsel %vm5016, %v5014, %v5011
  %v5018 = vadd.f32 %v4714, 1.0
  %v5019 = vlog2.pop %v5018
  %v5020 = vmul.f32 %v5019, 0.6931472
  %v5021 = vmul.f32 -0.5, %v4714
  %v5022 = vadd.f32 %v5021, 1.0
  %v5023 = vmul.f32 %v5022, %v4714
  %v5024 = vand.u32 2147483647, %v4714
  %vm5025 = vcmp.lt.f32.partialorder %v5024, 0.0004427343
  %v5026 = vsel %vm5025, %v5023, %v5020
  %v5027 = vadd.f32 %v4715, 1.0
  %v5028 = vlog2.pop %v5027
  %v5029 = vmul.f32 %v5028, 0.6931472
  %v5030 = vmul.f32 -0.5, %v4715
  %v5031 = vadd.f32 %v5030, 1.0
  %v5032 = vmul.f32 %v5031, %v4715
  %v5033 = vand.u32 2147483647, %v4715
  %vm5034 = vcmp.lt.f32.partialorder %v5033, 0.0004427343
  %v5035 = vsel %vm5034, %v5032, %v5029
  %v5036 = vadd.f32 %v4716, 1.0
  %v5037 = vlog2.pop %v5036
  %v5038 = vmul.f32 %v5037, 0.6931472
  %v5039 = vmul.f32 -0.5, %v4716
  %v5040 = vadd.f32 %v5039, 1.0
  %v5041 = vmul.f32 %v5040, %v4716
  %v5042 = vand.u32 2147483647, %v4716
  %vm5043 = vcmp.lt.f32.partialorder %v5042, 0.0004427343
  %v5044 = vsel %vm5043, %v5041, %v5038
  %v5045 = vadd.f32 %v4717, 1.0
  %v5046 = vlog2.pop %v5045
  %v5047 = vmul.f32 %v5046, 0.6931472
  %v5048 = vmul.f32 -0.5, %v4717
  %v5049 = vadd.f32 %v5048, 1.0
  %v5050 = vmul.f32 %v5049, %v4717
  %v5051 = vand.u32 2147483647, %v4717
  %vm5052 = vcmp.lt.f32.partialorder %v5051, 0.0004427343
  %v5053 = vsel %vm5052, %v5050, %v5047
  %v5054 = vadd.f32 %v4718, 1.0
  %v5055 = vlog2.pop %v5054
  %v5056 = vmul.f32 %v5055, 0.6931472
  %v5057 = vmul.f32 -0.5, %v4718
  %v5058 = vadd.f32 %v5057, 1.0
  %v5059 = vmul.f32 %v5058, %v4718
  %v5060 = vand.u32 2147483647, %v4718
  %vm5061 = vcmp.lt.f32.partialorder %v5060, 0.0004427343
  %v5062 = vsel %vm5061, %v5059, %v5056
  %v5063 = vadd.f32 %v4719, 1.0
  %v5064 = vlog2.pop %v5063
  %v5065 = vmul.f32 %v5064, 0.6931472
  %v5066 = vmul.f32 -0.5, %v4719
  %v5067 = vadd.f32 %v5066, 1.0
  %v5068 = vmul.f32 %v5067, %v4719
  %v5069 = vand.u32 2147483647, %v4719
  %vm5070 = vcmp.lt.f32.partialorder %v5069, 0.0004427343
  %v5071 = vsel %vm5070, %v5068, %v5065
  %v5072 = vadd.f32 %v4720, 1.0
  %v5073 = vlog2.pop %v5072
  %v5074 = vmul.f32 %v5073, 0.6931472
  %v5075 = vmul.f32 -0.5, %v4720
  %v5076 = vadd.f32 %v5075, 1.0
  %v5077 = vmul.f32 %v5076, %v4720
  %v5078 = vand.u32 2147483647, %v4720
  %vm5079 = vcmp.lt.f32.partialorder %v5078, 0.0004427343
  %v5080 = vsel %vm5079, %v5077, %v5074
  %v5081 = vadd.f32 %v4721, 1.0
  %v5082 = vlog2.pop %v5081
  %v5083 = vmul.f32 %v5082, 0.6931472
  %v5084 = vmul.f32 -0.5, %v4721
  %v5085 = vadd.f32 %v5084, 1.0
  %v5086 = vmul.f32 %v5085, %v4721
  %v5087 = vand.u32 2147483647, %v4721
  %vm5088 = vcmp.lt.f32.partialorder %v5087, 0.0004427343
  %v5089 = vsel %vm5088, %v5086, %v5083
  %v5090 = vadd.f32 %v4722, 1.0
  %v5091 = vlog2.pop %v5090
  %v5092 = vmul.f32 %v5091, 0.6931472
  %v5093 = vmul.f32 -0.5, %v4722
  %v5094 = vadd.f32 %v5093, 1.0
  %v5095 = vmul.f32 %v5094, %v4722
  %v5096 = vand.u32 2147483647, %v4722
  %vm5097 = vcmp.lt.f32.partialorder %v5096, 0.0004427343
  %v5098 = vsel %vm5097, %v5095, %v5092
  %v5099 = vadd.f32 %v4723, 1.0
  %v5100 = vlog2.pop %v5099
  %v5101 = vmul.f32 %v5100, 0.6931472
  %v5102 = vmul.f32 -0.5, %v4723
  %v5103 = vadd.f32 %v5102, 1.0
  %v5104 = vmul.f32 %v5103, %v4723
  %v5105 = vand.u32 2147483647, %v4723
  %vm5106 = vcmp.lt.f32.partialorder %v5105, 0.0004427343
  %v5107 = vsel %vm5106, %v5104, %v5101
  %v5108 = vadd.f32 %v4724, 1.0
  %v5109 = vlog2.pop %v5108
  %v5110 = vmul.f32 %v5109, 0.6931472
  %v5111 = vmul.f32 -0.5, %v4724
  %v5112 = vadd.f32 %v5111, 1.0
  %v5113 = vmul.f32 %v5112, %v4724
  %v5114 = vand.u32 2147483647, %v4724
  %vm5115 = vcmp.lt.f32.partialorder %v5114, 0.0004427343
  %v5116 = vsel %vm5115, %v5113, %v5110
  %v5117 = vadd.f32 %v4725, 1.0
  %v5118 = vlog2.pop %v5117
  %v5119 = vmul.f32 %v5118, 0.6931472
  %v5120 = vmul.f32 -0.5, %v4725
  %v5121 = vadd.f32 %v5120, 1.0
  %v5122 = vmul.f32 %v5121, %v4725
  %v5123 = vand.u32 2147483647, %v4725
  %vm5124 = vcmp.lt.f32.partialorder %v5123, 0.0004427343
  %v5125 = vsel %vm5124, %v5122, %v5119
  %v5126 = vadd.f32 %v4726, 1.0
  %v5127 = vlog2.pop %v5126
  %v5128 = vmul.f32 %v5127, 0.6931472
  %v5129 = vmul.f32 -0.5, %v4726
  %v5130 = vadd.f32 %v5129, 1.0
  %v5131 = vmul.f32 %v5130, %v4726
  %v5132 = vand.u32 2147483647, %v4726
  %vm5133 = vcmp.lt.f32.partialorder %v5132, 0.0004427343
  %v5134 = vsel %vm5133, %v5131, %v5128
  %v5135 = vadd.f32 %v4727, 1.0
  %v5136 = vlog2.pop %v5135
  %v5137 = vmul.f32 %v5136, 0.6931472
  %v5138 = vmul.f32 -0.5, %v4727
  %v5139 = vadd.f32 %v5138, 1.0
  %v5140 = vmul.f32 %v5139, %v4727
  %v5141 = vand.u32 2147483647, %v4727
  %vm5142 = vcmp.lt.f32.partialorder %v5141, 0.0004427343
  %v5143 = vsel %vm5142, %v5140, %v5137
  %v5144 = vadd.f32 %v4728, 1.0
  %v5145 = vlog2.pop %v5144
  %v5146 = vmul.f32 %v5145, 0.6931472
  %v5147 = vmul.f32 -0.5, %v4728
  %v5148 = vadd.f32 %v5147, 1.0
  %v5149 = vmul.f32 %v5148, %v4728
  %v5150 = vand.u32 2147483647, %v4728
  %vm5151 = vcmp.lt.f32.partialorder %v5150, 0.0004427343
  %v5152 = vsel %vm5151, %v5149, %v5146
  %v5153 = vadd.f32 %v4729, 1.0
  %v5154 = vlog2.pop %v5153
  %v5155 = vmul.f32 %v5154, 0.6931472
  %v5156 = vmul.f32 -0.5, %v4729
  %v5157 = vadd.f32 %v5156, 1.0
  %v5158 = vmul.f32 %v5157, %v4729
  %v5159 = vand.u32 2147483647, %v4729
  %vm5160 = vcmp.lt.f32.partialorder %v5159, 0.0004427343
  %v5161 = vsel %vm5160, %v5158, %v5155
  %v5162 = vadd.f32 %v4730, 1.0
  %v5163 = vlog2.pop %v5162
  %v5164 = vmul.f32 %v5163, 0.6931472
  %v5165 = vmul.f32 -0.5, %v4730
  %v5166 = vadd.f32 %v5165, 1.0
  %v5167 = vmul.f32 %v5166, %v4730
  %v5168 = vand.u32 2147483647, %v4730
  %vm5169 = vcmp.lt.f32.partialorder %v5168, 0.0004427343
  %v5170 = vsel %vm5169, %v5167, %v5164
  %v5171 = vadd.f32 %v4731, 1.0
  %v5172 = vlog2.pop %v5171
  %v5173 = vmul.f32 %v5172, 0.6931472
  %v5174 = vmul.f32 -0.5, %v4731
  %v5175 = vadd.f32 %v5174, 1.0
  %v5176 = vmul.f32 %v5175, %v4731
  %v5177 = vand.u32 2147483647, %v4731
  %vm5178 = vcmp.lt.f32.partialorder %v5177, 0.0004427343
  %v5179 = vsel %vm5178, %v5176, %v5173
  %v5180 = vadd.f32 %v4732, 1.0
  %v5181 = vlog2.pop %v5180
  %v5182 = vmul.f32 %v5181, 0.6931472
  %v5183 = vmul.f32 -0.5, %v4732
  %v5184 = vadd.f32 %v5183, 1.0
  %v5185 = vmul.f32 %v5184, %v4732
  %v5186 = vand.u32 2147483647, %v4732
  %vm5187 = vcmp.lt.f32.partialorder %v5186, 0.0004427343
  %v5188 = vsel %vm5187, %v5185, %v5182
  %v5189 = vadd.f32 %v4733, 1.0
  %v5190 = vlog2.pop %v5189
  %v5191 = vmul.f32 %v5190, 0.6931472
  %v5192 = vmul.f32 -0.5, %v4733
  %v5193 = vadd.f32 %v5192, 1.0
  %v5194 = vmul.f32 %v5193, %v4733
  %v5195 = vand.u32 2147483647, %v4733
  %vm5196 = vcmp.lt.f32.partialorder %v5195, 0.0004427343
  %v5197 = vsel %vm5196, %v5194, %v5191
  %v5198 = vadd.f32 %v4734, 1.0
  %v5199 = vlog2.pop %v5198
  %v5200 = vmul.f32 %v5199, 0.6931472
  %v5201 = vmul.f32 -0.5, %v4734
  %v5202 = vadd.f32 %v5201, 1.0
  %v5203 = vmul.f32 %v5202, %v4734
  %v5204 = vand.u32 2147483647, %v4734
  %vm5205 = vcmp.lt.f32.partialorder %v5204, 0.0004427343
  %v5206 = vsel %vm5205, %v5203, %v5200
  %v5207 = vadd.f32 %v4735, 1.0
  %v5208 = vlog2.pop %v5207
  %v5209 = vmul.f32 %v5208, 0.6931472
  %v5210 = vmul.f32 -0.5, %v4735
  %v5211 = vadd.f32 %v5210, 1.0
  %v5212 = vmul.f32 %v5211, %v4735
  %v5213 = vand.u32 2147483647, %v4735
  %vm5214 = vcmp.lt.f32.partialorder %v5213, 0.0004427343
  %v5215 = vsel %vm5214, %v5212, %v5209
  %v5216 = vadd.f32 %v4736, 1.0
  %v5217 = vlog2.pop %v5216
  %v5218 = vmul.f32 %v5217, 0.6931472
  %v5219 = vmul.f32 -0.5, %v4736
  %v5220 = vadd.f32 %v5219, 1.0
  %v5221 = vmul.f32 %v5220, %v4736
  %v5222 = vand.u32 2147483647, %v4736
  %vm5223 = vcmp.lt.f32.partialorder %v5222, 0.0004427343
  %v5224 = vsel %vm5223, %v5221, %v5218
  %v5225 = vadd.f32 %v4737, 1.0
  %v5226 = vlog2.pop %v5225
  %v5227 = vmul.f32 %v5226, 0.6931472
  %v5228 = vmul.f32 -0.5, %v4737
  %v5229 = vadd.f32 %v5228, 1.0
  %v5230 = vmul.f32 %v5229, %v4737
  %v5231 = vand.u32 2147483647, %v4737
  %vm5232 = vcmp.lt.f32.partialorder %v5231, 0.0004427343
  %v5233 = vsel %vm5232, %v5230, %v5227
  %v5234 = vadd.f32 %v4738, 1.0
  %v5235 = vlog2.pop %v5234
  %v5236 = vmul.f32 %v5235, 0.6931472
  %v5237 = vmul.f32 -0.5, %v4738
  %v5238 = vadd.f32 %v5237, 1.0
  %v5239 = vmul.f32 %v5238, %v4738
  %v5240 = vand.u32 2147483647, %v4738
  %vm5241 = vcmp.lt.f32.partialorder %v5240, 0.0004427343
  %v5242 = vsel %vm5241, %v5239, %v5236
  %v5243 = vadd.f32 %v4739, 1.0
  %v5244 = vlog2.pop %v5243
  %v5245 = vmul.f32 %v5244, 0.6931472
  %v5246 = vmul.f32 -0.5, %v4739
  %v5247 = vadd.f32 %v5246, 1.0
  %v5248 = vmul.f32 %v5247, %v4739
  %v5249 = vand.u32 2147483647, %v4739
  %vm5250 = vcmp.lt.f32.partialorder %v5249, 0.0004427343
  %v5251 = vsel %vm5250, %v5248, %v5245
  %v5252 = vadd.f32 %v4740, 1.0
  %v5253 = vlog2.pop %v5252
  %v5254 = vmul.f32 %v5253, 0.6931472
  %v5255 = vmul.f32 -0.5, %v4740
  %v5256 = vadd.f32 %v5255, 1.0
  %v5257 = vmul.f32 %v5256, %v4740
  %v5258 = vand.u32 2147483647, %v4740
  %vm5259 = vcmp.lt.f32.partialorder %v5258, 0.0004427343
  %v5260 = vsel %vm5259, %v5257, %v5254
  %v5261 = vadd.f32 %v4741, 1.0
  %v5262 = vlog2.pop %v5261
  %v5263 = vmul.f32 %v5262, 0.6931472
  %v5264 = vmul.f32 -0.5, %v4741
  %v5265 = vadd.f32 %v5264, 1.0
  %v5266 = vmul.f32 %v5265, %v4741
  %v5267 = vand.u32 2147483647, %v4741
  %vm5268 = vcmp.lt.f32.partialorder %v5267, 0.0004427343
  %v5269 = vsel %vm5268, %v5266, %v5263
  %v5270 = vadd.f32 %v4742, 1.0
  %v5271 = vlog2.pop %v5270
  %v5272 = vmul.f32 %v5271, 0.6931472
  %v5273 = vmul.f32 -0.5, %v4742
  %v5274 = vadd.f32 %v5273, 1.0
  %v5275 = vmul.f32 %v5274, %v4742
  %v5276 = vand.u32 2147483647, %v4742
  %vm5277 = vcmp.lt.f32.partialorder %v5276, 0.0004427343
  %v5278 = vsel %vm5277, %v5275, %v5272
  %v5279 = vadd.f32 %v4743, 1.0
  %v5280 = vlog2.pop %v5279
  %v5281 = vmul.f32 %v5280, 0.6931472
  %v5282 = vmul.f32 -0.5, %v4743
  %v5283 = vadd.f32 %v5282, 1.0
  %v5284 = vmul.f32 %v5283, %v4743
  %v5285 = vand.u32 2147483647, %v4743
  %vm5286 = vcmp.lt.f32.partialorder %v5285, 0.0004427343
  %v5287 = vsel %vm5286, %v5284, %v5281
  %v5288 = vadd.f32 %v4744, 1.0
  %v5289 = vlog2.pop %v5288
  %v5290 = vmul.f32 %v5289, 0.6931472
  %v5291 = vmul.f32 -0.5, %v4744
  %v5292 = vadd.f32 %v5291, 1.0
  %v5293 = vmul.f32 %v5292, %v4744
  %v5294 = vand.u32 2147483647, %v4744
  %vm5295 = vcmp.lt.f32.partialorder %v5294, 0.0004427343
  %v5296 = vsel %vm5295, %v5293, %v5290
  %v5297 = vadd.f32 %v4745, 1.0
  %v5298 = vlog2.pop %v5297
  %v5299 = vmul.f32 %v5298, 0.6931472
  %v5300 = vmul.f32 -0.5, %v4745
  %v5301 = vadd.f32 %v5300, 1.0
  %v5302 = vmul.f32 %v5301, %v4745
  %v5303 = vand.u32 2147483647, %v4745
  %vm5304 = vcmp.lt.f32.partialorder %v5303, 0.0004427343
  %v5305 = vsel %vm5304, %v5302, %v5299
  %v5306 = vadd.f32 %v4746, 1.0
  %v5307 = vlog2.pop %v5306
  %v5308 = vmul.f32 %v5307, 0.6931472
  %v5309 = vmul.f32 -0.5, %v4746
  %v5310 = vadd.f32 %v5309, 1.0
  %v5311 = vmul.f32 %v5310, %v4746
  %v5312 = vand.u32 2147483647, %v4746
  %vm5313 = vcmp.lt.f32.partialorder %v5312, 0.0004427343
  %v5314 = vsel %vm5313, %v5311, %v5308
  %v5315 = vadd.f32 %v4747, 1.0
  %v5316 = vlog2.pop %v5315
  %v5317 = vmul.f32 %v5316, 0.6931472
  %v5318 = vmul.f32 -0.5, %v4747
  %v5319 = vadd.f32 %v5318, 1.0
  %v5320 = vmul.f32 %v5319, %v4747
  %v5321 = vand.u32 2147483647, %v4747
  %vm5322 = vcmp.lt.f32.partialorder %v5321, 0.0004427343
  %v5323 = vsel %vm5322, %v5320, %v5317
  %v5324 = vadd.f32 %v4748, 1.0
  %v5325 = vlog2.pop %v5324
  %v5326 = vmul.f32 %v5325, 0.6931472
  %v5327 = vmul.f32 -0.5, %v4748
  %v5328 = vadd.f32 %v5327, 1.0
  %v5329 = vmul.f32 %v5328, %v4748
  %v5330 = vand.u32 2147483647, %v4748
  %vm5331 = vcmp.lt.f32.partialorder %v5330, 0.0004427343
  %v5332 = vsel %vm5331, %v5329, %v5326
  %v5333 = vadd.f32 %v4749, 1.0
  %v5334 = vlog2.pop %v5333
  %v5335 = vmul.f32 %v5334, 0.6931472
  %v5336 = vmul.f32 -0.5, %v4749
  %v5337 = vadd.f32 %v5336, 1.0
  %v5338 = vmul.f32 %v5337, %v4749
  %v5339 = vand.u32 2147483647, %v4749
  %vm5340 = vcmp.lt.f32.partialorder %v5339, 0.0004427343
  %v5341 = vsel %vm5340, %v5338, %v5335
  %v5342 = vadd.f32 %v4750, 1.0
  %v5343 = vlog2.pop %v5342
  %v5344 = vmul.f32 %v5343, 0.6931472
  %v5345 = vmul.f32 -0.5, %v4750
  %v5346 = vadd.f32 %v5345, 1.0
  %v5347 = vmul.f32 %v5346, %v4750
  %v5348 = vand.u32 2147483647, %v4750
  %vm5349 = vcmp.lt.f32.partialorder %v5348, 0.0004427343
  %v5350 = vsel %vm5349, %v5347, %v5344
  %v5351 = vadd.f32 %v4751, 1.0
  %v5352 = vlog2.pop %v5351
  %v5353 = vmul.f32 %v5352, 0.6931472
  %v5354 = vmul.f32 -0.5, %v4751
  %v5355 = vadd.f32 %v5354, 1.0
  %v5356 = vmul.f32 %v5355, %v4751
  %v5357 = vand.u32 2147483647, %v4751
  %vm5358 = vcmp.lt.f32.partialorder %v5357, 0.0004427343
  %v5359 = vsel %vm5358, %v5356, %v5353
  %v5360 = vadd.f32 %v4752, 1.0
  %v5361 = vlog2.pop %v5360
  %v5362 = vmul.f32 %v5361, 0.6931472
  %v5363 = vmul.f32 -0.5, %v4752
  %v5364 = vadd.f32 %v5363, 1.0
  %v5365 = vmul.f32 %v5364, %v4752
  %v5366 = vand.u32 2147483647, %v4752
  %vm5367 = vcmp.lt.f32.partialorder %v5366, 0.0004427343
  %v5368 = vsel %vm5367, %v5365, %v5362
  %v5369 = vadd.f32 %v4753, 1.0
  %v5370 = vlog2.pop %v5369
  %v5371 = vmul.f32 %v5370, 0.6931472
  %v5372 = vmul.f32 -0.5, %v4753
  %v5373 = vadd.f32 %v5372, 1.0
  %v5374 = vmul.f32 %v5373, %v4753
  %v5375 = vand.u32 2147483647, %v4753
  %vm5376 = vcmp.lt.f32.partialorder %v5375, 0.0004427343
  %v5377 = vsel %vm5376, %v5374, %v5371
  %v5378 = vadd.f32 %v4754, 1.0
  %v5379 = vlog2.pop %v5378
  %v5380 = vmul.f32 %v5379, 0.6931472
  %v5381 = vmul.f32 -0.5, %v4754
  %v5382 = vadd.f32 %v5381, 1.0
  %v5383 = vmul.f32 %v5382, %v4754
  %v5384 = vand.u32 2147483647, %v4754
  %vm5385 = vcmp.lt.f32.partialorder %v5384, 0.0004427343
  %v5386 = vsel %vm5385, %v5383, %v5380
  %v5387 = vadd.f32 %v4755, 1.0
  %v5388 = vlog2.pop %v5387
  %v5389 = vmul.f32 %v5388, 0.6931472
  %v5390 = vmul.f32 -0.5, %v4755
  %v5391 = vadd.f32 %v5390, 1.0
  %v5392 = vmul.f32 %v5391, %v4755
  %v5393 = vand.u32 2147483647, %v4755
  %vm5394 = vcmp.lt.f32.partialorder %v5393, 0.0004427343
  %v5395 = vsel %vm5394, %v5392, %v5389
  %v5396 = vadd.f32 %v4756, 1.0
  %v5397 = vlog2.pop %v5396
  %v5398 = vmul.f32 %v5397, 0.6931472
  %v5399 = vmul.f32 -0.5, %v4756
  %v5400 = vadd.f32 %v5399, 1.0
  %v5401 = vmul.f32 %v5400, %v4756
  %v5402 = vand.u32 2147483647, %v4756
  %vm5403 = vcmp.lt.f32.partialorder %v5402, 0.0004427343
  %v5404 = vsel %vm5403, %v5401, %v5398
  %v5405 = vadd.f32 %v4757, 1.0
  %v5406 = vlog2.pop %v5405
  %v5407 = vmul.f32 %v5406, 0.6931472
  %v5408 = vmul.f32 -0.5, %v4757
  %v5409 = vadd.f32 %v5408, 1.0
  %v5410 = vmul.f32 %v5409, %v4757
  %v5411 = vand.u32 2147483647, %v4757
  %vm5412 = vcmp.lt.f32.partialorder %v5411, 0.0004427343
  %v5413 = vsel %vm5412, %v5410, %v5407
  %v5414 = vadd.f32 %v4758, 1.0
  %v5415 = vlog2.pop %v5414
  %v5416 = vmul.f32 %v5415, 0.6931472
  %v5417 = vmul.f32 -0.5, %v4758
  %v5418 = vadd.f32 %v5417, 1.0
  %v5419 = vmul.f32 %v5418, %v4758
  %v5420 = vand.u32 2147483647, %v4758
  %vm5421 = vcmp.lt.f32.partialorder %v5420, 0.0004427343
  %v5422 = vsel %vm5421, %v5419, %v5416
  %v5423 = vadd.f32 %v4759, 1.0
  %v5424 = vlog2.pop %v5423
  %v5425 = vmul.f32 %v5424, 0.6931472
  %v5426 = vmul.f32 -0.5, %v4759
  %v5427 = vadd.f32 %v5426, 1.0
  %v5428 = vmul.f32 %v5427, %v4759
  %v5429 = vand.u32 2147483647, %v4759
  %vm5430 = vcmp.lt.f32.partialorder %v5429, 0.0004427343
  %v5431 = vsel %vm5430, %v5428, %v5425
  %v5432 = vadd.f32 %v4760, 1.0
  %v5433 = vlog2.pop %v5432
  %v5434 = vmul.f32 %v5433, 0.6931472
  %v5435 = vmul.f32 -0.5, %v4760
  %v5436 = vadd.f32 %v5435, 1.0
  %v5437 = vmul.f32 %v5436, %v4760
  %v5438 = vand.u32 2147483647, %v4760
  %vm5439 = vcmp.lt.f32.partialorder %v5438, 0.0004427343
  %v5440 = vsel %vm5439, %v5437, %v5434
  %v5441 = vadd.f32 %v4761, 1.0
  %v5442 = vlog2.pop %v5441
  %v5443 = vmul.f32 %v5442, 0.6931472
  %v5444 = vmul.f32 -0.5, %v4761
  %v5445 = vadd.f32 %v5444, 1.0
  %v5446 = vmul.f32 %v5445, %v4761
  %v5447 = vand.u32 2147483647, %v4761
  %vm5448 = vcmp.lt.f32.partialorder %v5447, 0.0004427343
  %v5449 = vsel %vm5448, %v5446, %v5443
  %v5450 = vadd.f32 %v4762, 1.0
  %v5451 = vlog2.pop %v5450
  %v5452 = vmul.f32 %v5451, 0.6931472
  %v5453 = vmul.f32 -0.5, %v4762
  %v5454 = vadd.f32 %v5453, 1.0
  %v5455 = vmul.f32 %v5454, %v4762
  %v5456 = vand.u32 2147483647, %v4762
  %vm5457 = vcmp.lt.f32.partialorder %v5456, 0.0004427343
  %v5458 = vsel %vm5457, %v5455, %v5452
  %v5459 = vadd.f32 %v4763, 1.0
  %v5460 = vlog2.pop %v5459
  %v5461 = vmul.f32 %v5460, 0.6931472
  %v5462 = vmul.f32 -0.5, %v4763
  %v5463 = vadd.f32 %v5462, 1.0
  %v5464 = vmul.f32 %v5463, %v4763
  %v5465 = vand.u32 2147483647, %v4763
  %vm5466 = vcmp.lt.f32.partialorder %v5465, 0.0004427343
  %v5467 = vsel %vm5466, %v5464, %v5461
  %v5468 = vadd.f32 %v4764, 1.0
  %v5469 = vlog2.pop %v5468
  %v5470 = vmul.f32 %v5469, 0.6931472
  %v5471 = vmul.f32 -0.5, %v4764
  %v5472 = vadd.f32 %v5471, 1.0
  %v5473 = vmul.f32 %v5472, %v4764
  %v5474 = vand.u32 2147483647, %v4764
  %vm5475 = vcmp.lt.f32.partialorder %v5474, 0.0004427343
  %v5476 = vsel %vm5475, %v5473, %v5470
  %v5477 = vadd.f32 %v4765, 1.0
  %v5478 = vlog2.pop %v5477
  %v5479 = vmul.f32 %v5478, 0.6931472
  %v5480 = vmul.f32 -0.5, %v4765
  %v5481 = vadd.f32 %v5480, 1.0
  %v5482 = vmul.f32 %v5481, %v4765
  %v5483 = vand.u32 2147483647, %v4765
  %vm5484 = vcmp.lt.f32.partialorder %v5483, 0.0004427343
  %v5485 = vsel %vm5484, %v5482, %v5479
  %v5486 = vadd.f32 %v4766, 1.0
  %v5487 = vlog2.pop %v5486
  %v5488 = vmul.f32 %v5487, 0.6931472
  %v5489 = vmul.f32 -0.5, %v4766
  %v5490 = vadd.f32 %v5489, 1.0
  %v5491 = vmul.f32 %v5490, %v4766
  %v5492 = vand.u32 2147483647, %v4766
  %vm5493 = vcmp.lt.f32.partialorder %v5492, 0.0004427343
  %v5494 = vsel %vm5493, %v5491, %v5488
  %v5495 = vadd.f32 %v4767, 1.0
  %v5496 = vlog2.pop %v5495
  %v5497 = vmul.f32 %v5496, 0.6931472
  %v5498 = vmul.f32 -0.5, %v4767
  %v5499 = vadd.f32 %v5498, 1.0
  %v5500 = vmul.f32 %v5499, %v4767
  %v5501 = vand.u32 2147483647, %v4767
  %vm5502 = vcmp.lt.f32.partialorder %v5501, 0.0004427343
  %v5503 = vsel %vm5502, %v5500, %v5497
  %v5504 = vadd.f32 %v4768, 1.0
  %v5505 = vlog2.pop %v5504
  %v5506 = vmul.f32 %v5505, 0.6931472
  %v5507 = vmul.f32 -0.5, %v4768
  %v5508 = vadd.f32 %v5507, 1.0
  %v5509 = vmul.f32 %v5508, %v4768
  %v5510 = vand.u32 2147483647, %v4768
  %vm5511 = vcmp.lt.f32.partialorder %v5510, 0.0004427343
  %v5512 = vsel %vm5511, %v5509, %v5506
  %v5513 = vadd.f32 %v4769, 1.0
  %v5514 = vlog2.pop %v5513
  %v5515 = vmul.f32 %v5514, 0.6931472
  %v5516 = vmul.f32 -0.5, %v4769
  %v5517 = vadd.f32 %v5516, 1.0
  %v5518 = vmul.f32 %v5517, %v4769
  %v5519 = vand.u32 2147483647, %v4769
  %vm5520 = vcmp.lt.f32.partialorder %v5519, 0.0004427343
  %v5521 = vsel %vm5520, %v5518, %v5515
  %v5522 = vadd.f32 %v4770, 1.0
  %v5523 = vlog2.pop %v5522
  %v5524 = vmul.f32 %v5523, 0.6931472
  %v5525 = vmul.f32 -0.5, %v4770
  %v5526 = vadd.f32 %v5525, 1.0
  %v5527 = vmul.f32 %v5526, %v4770
  %v5528 = vand.u32 2147483647, %v4770
  %vm5529 = vcmp.lt.f32.partialorder %v5528, 0.0004427343
  %v5530 = vsel %vm5529, %v5527, %v5524
  %v5531 = vadd.f32 %v4771, 1.0
  %v5532 = vlog2.pop %v5531
  %v5533 = vmul.f32 %v5532, 0.6931472
  %v5534 = vmul.f32 -0.5, %v4771
  %v5535 = vadd.f32 %v5534, 1.0
  %v5536 = vmul.f32 %v5535, %v4771
  %v5537 = vand.u32 2147483647, %v4771
  %vm5538 = vcmp.lt.f32.partialorder %v5537, 0.0004427343
  %v5539 = vsel %vm5538, %v5536, %v5533
  %v5540 = vadd.f32 %v4772, 1.0
  %v5541 = vlog2.pop %v5540
  %v5542 = vmul.f32 %v5541, 0.6931472
  %v5543 = vmul.f32 -0.5, %v4772
  %v5544 = vadd.f32 %v5543, 1.0
  %v5545 = vmul.f32 %v5544, %v4772
  %v5546 = vand.u32 2147483647, %v4772
  %vm5547 = vcmp.lt.f32.partialorder %v5546, 0.0004427343
  %v5548 = vsel %vm5547, %v5545, %v5542
  %v5549 = vadd.f32 %v4773, 1.0
  %v5550 = vlog2.pop %v5549
  %v5551 = vmul.f32 %v5550, 0.6931472
  %v5552 = vmul.f32 -0.5, %v4773
  %v5553 = vadd.f32 %v5552, 1.0
  %v5554 = vmul.f32 %v5553, %v4773
  %v5555 = vand.u32 2147483647, %v4773
  %vm5556 = vcmp.lt.f32.partialorder %v5555, 0.0004427343
  %v5557 = vsel %vm5556, %v5554, %v5551
  %v5558 = vadd.f32 %v4774, 1.0
  %v5559 = vlog2.pop %v5558
  %v5560 = vmul.f32 %v5559, 0.6931472
  %v5561 = vmul.f32 -0.5, %v4774
  %v5562 = vadd.f32 %v5561, 1.0
  %v5563 = vmul.f32 %v5562, %v4774
  %v5564 = vand.u32 2147483647, %v4774
  %vm5565 = vcmp.lt.f32.partialorder %v5564, 0.0004427343
  %v5566 = vsel %vm5565, %v5563, %v5560
  %v5567 = vadd.f32 %v4775, 1.0
  %v5568 = vlog2.pop %v5567
  %v5569 = vmul.f32 %v5568, 0.6931472
  %v5570 = vmul.f32 -0.5, %v4775
  %v5571 = vadd.f32 %v5570, 1.0
  %v5572 = vmul.f32 %v5571, %v4775
  %v5573 = vand.u32 2147483647, %v4775
  %vm5574 = vcmp.lt.f32.partialorder %v5573, 0.0004427343
  %v5575 = vsel %vm5574, %v5572, %v5569
  %v5576 = vadd.f32 %v4776, 1.0
  %v5577 = vlog2.pop %v5576
  %v5578 = vmul.f32 %v5577, 0.6931472
  %v5579 = vmul.f32 -0.5, %v4776
  %v5580 = vadd.f32 %v5579, 1.0
  %v5581 = vmul.f32 %v5580, %v4776
  %v5582 = vand.u32 2147483647, %v4776
  %vm5583 = vcmp.lt.f32.partialorder %v5582, 0.0004427343
  %v5584 = vsel %vm5583, %v5581, %v5578
  %v5585 = vadd.f32 %v4777, 1.0
  %v5586 = vlog2.pop %v5585
  %v5587 = vmul.f32 %v5586, 0.6931472
  %v5588 = vmul.f32 -0.5, %v4777
  %v5589 = vadd.f32 %v5588, 1.0
  %v5590 = vmul.f32 %v5589, %v4777
  %v5591 = vand.u32 2147483647, %v4777
  %vm5592 = vcmp.lt.f32.partialorder %v5591, 0.0004427343
  %v5593 = vsel %vm5592, %v5590, %v5587
  %v5594 = vadd.f32 %v4778, 1.0
  %v5595 = vlog2.pop %v5594
  %v5596 = vmul.f32 %v5595, 0.6931472
  %v5597 = vmul.f32 -0.5, %v4778
  %v5598 = vadd.f32 %v5597, 1.0
  %v5599 = vmul.f32 %v5598, %v4778
  %v5600 = vand.u32 2147483647, %v4778
  %vm5601 = vcmp.lt.f32.partialorder %v5600, 0.0004427343
  %v5602 = vsel %vm5601, %v5599, %v5596
  %v5603 = vadd.f32 %v4779, 1.0
  %v5604 = vlog2.pop %v5603
  %v5605 = vmul.f32 %v5604, 0.6931472
  %v5606 = vmul.f32 -0.5, %v4779
  %v5607 = vadd.f32 %v5606, 1.0
  %v5608 = vmul.f32 %v5607, %v4779
  %v5609 = vand.u32 2147483647, %v4779
  %vm5610 = vcmp.lt.f32.partialorder %v5609, 0.0004427343
  %v5611 = vsel %vm5610, %v5608, %v5605
  %v5612 = vadd.f32 %v4780, 1.0
  %v5613 = vlog2.pop %v5612
  %v5614 = vmul.f32 %v5613, 0.6931472
  %v5615 = vmul.f32 -0.5, %v4780
  %v5616 = vadd.f32 %v5615, 1.0
  %v5617 = vmul.f32 %v5616, %v4780
  %v5618 = vand.u32 2147483647, %v4780
  %vm5619 = vcmp.lt.f32.partialorder %v5618, 0.0004427343
  %v5620 = vsel %vm5619, %v5617, %v5614
  %v5621 = vadd.f32 %v4781, 1.0
  %v5622 = vlog2.pop %v5621
  %v5623 = vmul.f32 %v5622, 0.6931472
  %v5624 = vmul.f32 -0.5, %v4781
  %v5625 = vadd.f32 %v5624, 1.0
  %v5626 = vmul.f32 %v5625, %v4781
  %v5627 = vand.u32 2147483647, %v4781
  %vm5628 = vcmp.lt.f32.partialorder %v5627, 0.0004427343
  %v5629 = vsel %vm5628, %v5626, %v5623
  %v5630 = vadd.f32 %v4782, 1.0
  %v5631 = vlog2.pop %v5630
  %v5632 = vmul.f32 %v5631, 0.6931472
  %v5633 = vmul.f32 -0.5, %v4782
  %v5634 = vadd.f32 %v5633, 1.0
  %v5635 = vmul.f32 %v5634, %v4782
  %v5636 = vand.u32 2147483647, %v4782
  %vm5637 = vcmp.lt.f32.partialorder %v5636, 0.0004427343
  %v5638 = vsel %vm5637, %v5635, %v5632
  %v5639 = vadd.f32 %v4783, 1.0
  %v5640 = vlog2.pop %v5639
  %v5641 = vmul.f32 %v5640, 0.6931472
  %v5642 = vmul.f32 -0.5, %v4783
  %v5643 = vadd.f32 %v5642, 1.0
  %v5644 = vmul.f32 %v5643, %v4783
  %v5645 = vand.u32 2147483647, %v4783
  %vm5646 = vcmp.lt.f32.partialorder %v5645, 0.0004427343
  %v5647 = vsel %vm5646, %v5644, %v5641
  %v5648 = vadd.f32 %v4784, 1.0
  %v5649 = vlog2.pop %v5648
  %v5650 = vmul.f32 %v5649, 0.6931472
  %v5651 = vmul.f32 -0.5, %v4784
  %v5652 = vadd.f32 %v5651, 1.0
  %v5653 = vmul.f32 %v5652, %v4784
  %v5654 = vand.u32 2147483647, %v4784
  %vm5655 = vcmp.lt.f32.partialorder %v5654, 0.0004427343
  %v5656 = vsel %vm5655, %v5653, %v5650
  %v5657 = vadd.f32 %v4785, 1.0
  %v5658 = vlog2.pop %v5657
  %v5659 = vmul.f32 %v5658, 0.6931472
  %v5660 = vmul.f32 -0.5, %v4785
  %v5661 = vadd.f32 %v5660, 1.0
  %v5662 = vmul.f32 %v5661, %v4785
  %v5663 = vand.u32 2147483647, %v4785
  %vm5664 = vcmp.lt.f32.partialorder %v5663, 0.0004427343
  %v5665 = vsel %vm5664, %v5662, %v5659
  %v5666 = vadd.f32 %v4786, 1.0
  %v5667 = vlog2.pop %v5666
  %v5668 = vmul.f32 %v5667, 0.6931472
  %v5669 = vmul.f32 -0.5, %v4786
  %v5670 = vadd.f32 %v5669, 1.0
  %v5671 = vmul.f32 %v5670, %v4786
  %v5672 = vand.u32 2147483647, %v4786
  %vm5673 = vcmp.lt.f32.partialorder %v5672, 0.0004427343
  %v5674 = vsel %vm5673, %v5671, %v5668
  %v5675 = vadd.f32 %v4787, 1.0
  %v5676 = vlog2.pop %v5675
  %v5677 = vmul.f32 %v5676, 0.6931472
  %v5678 = vmul.f32 -0.5, %v4787
  %v5679 = vadd.f32 %v5678, 1.0
  %v5680 = vmul.f32 %v5679, %v4787
  %v5681 = vand.u32 2147483647, %v4787
  %vm5682 = vcmp.lt.f32.partialorder %v5681, 0.0004427343
  %v5683 = vsel %vm5682, %v5680, %v5677
  %v5684 = vadd.f32 %v4788, 1.0
  %v5685 = vlog2.pop %v5684
  %v5686 = vmul.f32 %v5685, 0.6931472
  %v5687 = vmul.f32 -0.5, %v4788
  %v5688 = vadd.f32 %v5687, 1.0
  %v5689 = vmul.f32 %v5688, %v4788
  %v5690 = vand.u32 2147483647, %v4788
  %vm5691 = vcmp.lt.f32.partialorder %v5690, 0.0004427343
  %v5692 = vsel %vm5691, %v5689, %v5686
  %v5693 = vadd.f32 %v4789, 1.0
  %v5694 = vlog2.pop %v5693
  %v5695 = vmul.f32 %v5694, 0.6931472
  %v5696 = vmul.f32 -0.5, %v4789
  %v5697 = vadd.f32 %v5696, 1.0
  %v5698 = vmul.f32 %v5697, %v4789
  %v5699 = vand.u32 2147483647, %v4789
  %vm5700 = vcmp.lt.f32.partialorder %v5699, 0.0004427343
  %v5701 = vsel %vm5700, %v5698, %v5695
  %v5702 = vadd.f32 %v4790, 1.0
  %v5703 = vlog2.pop %v5702
  %v5704 = vmul.f32 %v5703, 0.6931472
  %v5705 = vmul.f32 -0.5, %v4790
  %v5706 = vadd.f32 %v5705, 1.0
  %v5707 = vmul.f32 %v5706, %v4790
  %v5708 = vand.u32 2147483647, %v4790
  %vm5709 = vcmp.lt.f32.partialorder %v5708, 0.0004427343
  %v5710 = vsel %vm5709, %v5707, %v5704
  %v5711 = vadd.f32 %v4791, 1.0
  %v5712 = vlog2.pop %v5711
  %v5713 = vmul.f32 %v5712, 0.6931472
  %v5714 = vmul.f32 -0.5, %v4791
  %v5715 = vadd.f32 %v5714, 1.0
  %v5716 = vmul.f32 %v5715, %v4791
  %v5717 = vand.u32 2147483647, %v4791
  %vm5718 = vcmp.lt.f32.partialorder %v5717, 0.0004427343
  %v5719 = vsel %vm5718, %v5716, %v5713
  %v5720 = vadd.f32 %v4792, 1.0
  %v5721 = vlog2.pop %v5720
  %v5722 = vmul.f32 %v5721, 0.6931472
  %v5723 = vmul.f32 -0.5, %v4792
  %v5724 = vadd.f32 %v5723, 1.0
  %v5725 = vmul.f32 %v5724, %v4792
  %v5726 = vand.u32 2147483647, %v4792
  %vm5727 = vcmp.lt.f32.partialorder %v5726, 0.0004427343
  %v5728 = vsel %vm5727, %v5725, %v5722
  %v5729 = vadd.f32 %v4793, 1.0
  %v5730 = vlog2.pop %v5729
  %v5731 = vmul.f32 %v5730, 0.6931472
  %v5732 = vmul.f32 -0.5, %v4793
  %v5733 = vadd.f32 %v5732, 1.0
  %v5734 = vmul.f32 %v5733, %v4793
  %v5735 = vand.u32 2147483647, %v4793
  %vm5736 = vcmp.lt.f32.partialorder %v5735, 0.0004427343
  %v5737 = vsel %vm5736, %v5734, %v5731
  %v5738 = vadd.f32 %v4794, 1.0
  %v5739 = vlog2.pop %v5738
  %v5740 = vmul.f32 %v5739, 0.6931472
  %v5741 = vmul.f32 -0.5, %v4794
  %v5742 = vadd.f32 %v5741, 1.0
  %v5743 = vmul.f32 %v5742, %v4794
  %v5744 = vand.u32 2147483647, %v4794
  %vm5745 = vcmp.lt.f32.partialorder %v5744, 0.0004427343
  %v5746 = vsel %vm5745, %v5743, %v5740
  %v5747 = vadd.f32 %v4795, 1.0
  %v5748 = vlog2.pop %v5747
  %v5749 = vmul.f32 %v5748, 0.6931472
  %v5750 = vmul.f32 -0.5, %v4795
  %v5751 = vadd.f32 %v5750, 1.0
  %v5752 = vmul.f32 %v5751, %v4795
  %v5753 = vand.u32 2147483647, %v4795
  %vm5754 = vcmp.lt.f32.partialorder %v5753, 0.0004427343
  %v5755 = vsel %vm5754, %v5752, %v5749
  %v5756 = vadd.f32 %v4796, 1.0
  %v5757 = vlog2.pop %v5756
  %v5758 = vmul.f32 %v5757, 0.6931472
  %v5759 = vmul.f32 -0.5, %v4796
  %v5760 = vadd.f32 %v5759, 1.0
  %v5761 = vmul.f32 %v5760, %v4796
  %v5762 = vand.u32 2147483647, %v4796
  %vm5763 = vcmp.lt.f32.partialorder %v5762, 0.0004427343
  %v5764 = vsel %vm5763, %v5761, %v5758
  %v5765 = vadd.f32 %v4797, 1.0
  %v5766 = vlog2.pop %v5765
  %v5767 = vmul.f32 %v5766, 0.6931472
  %v5768 = vmul.f32 -0.5, %v4797
  %v5769 = vadd.f32 %v5768, 1.0
  %v5770 = vmul.f32 %v5769, %v4797
  %v5771 = vand.u32 2147483647, %v4797
  %vm5772 = vcmp.lt.f32.partialorder %v5771, 0.0004427343
  %v5773 = vsel %vm5772, %v5770, %v5767
  %v5774 = vadd.f32 %v4798, 1.0
  %v5775 = vlog2.pop %v5774
  %v5776 = vmul.f32 %v5775, 0.6931472
  %v5777 = vmul.f32 -0.5, %v4798
  %v5778 = vadd.f32 %v5777, 1.0
  %v5779 = vmul.f32 %v5778, %v4798
  %v5780 = vand.u32 2147483647, %v4798
  %vm5781 = vcmp.lt.f32.partialorder %v5780, 0.0004427343
  %v5782 = vsel %vm5781, %v5779, %v5776
  %v5783 = vadd.f32 %v4799, 1.0
  %v5784 = vlog2.pop %v5783
  %v5785 = vmul.f32 %v5784, 0.6931472
  %v5786 = vmul.f32 -0.5, %v4799
  %v5787 = vadd.f32 %v5786, 1.0
  %v5788 = vmul.f32 %v5787, %v4799
  %v5789 = vand.u32 2147483647, %v4799
  %vm5790 = vcmp.lt.f32.partialorder %v5789, 0.0004427343
  %v5791 = vsel %vm5790, %v5788, %v5785
  %v5792 = vadd.f32 %v4800, 1.0
  %v5793 = vlog2.pop %v5792
  %v5794 = vmul.f32 %v5793, 0.6931472
  %v5795 = vmul.f32 -0.5, %v4800
  %v5796 = vadd.f32 %v5795, 1.0
  %v5797 = vmul.f32 %v5796, %v4800
  %v5798 = vand.u32 2147483647, %v4800
  %vm5799 = vcmp.lt.f32.partialorder %v5798, 0.0004427343
  %v5800 = vsel %vm5799, %v5797, %v5794
  %v5801 = vadd.f32 %v4801, 1.0
  %v5802 = vlog2.pop %v5801
  %v5803 = vmul.f32 %v5802, 0.6931472
  %v5804 = vmul.f32 -0.5, %v4801
  %v5805 = vadd.f32 %v5804, 1.0
  %v5806 = vmul.f32 %v5805, %v4801
  %v5807 = vand.u32 2147483647, %v4801
  %vm5808 = vcmp.lt.f32.partialorder %v5807, 0.0004427343
  %v5809 = vsel %vm5808, %v5806, %v5803
  %v5810 = vadd.f32 %v4802, 1.0
  %v5811 = vlog2.pop %v5810
  %v5812 = vmul.f32 %v5811, 0.6931472
  %v5813 = vmul.f32 -0.5, %v4802
  %v5814 = vadd.f32 %v5813, 1.0
  %v5815 = vmul.f32 %v5814, %v4802
  %v5816 = vand.u32 2147483647, %v4802
  %vm5817 = vcmp.lt.f32.partialorder %v5816, 0.0004427343
  %v5818 = vsel %vm5817, %v5815, %v5812
  %v5819 = vadd.f32 %v4803, 1.0
  %v5820 = vlog2.pop %v5819
  %v5821 = vmul.f32 %v5820, 0.6931472
  %v5822 = vmul.f32 -0.5, %v4803
  %v5823 = vadd.f32 %v5822, 1.0
  %v5824 = vmul.f32 %v5823, %v4803
  %v5825 = vand.u32 2147483647, %v4803
  %vm5826 = vcmp.lt.f32.partialorder %v5825, 0.0004427343
  %v5827 = vsel %vm5826, %v5824, %v5821
  %v5828 = vadd.f32 %v4804, 1.0
  %v5829 = vlog2.pop %v5828
  %v5830 = vmul.f32 %v5829, 0.6931472
  %v5831 = vmul.f32 -0.5, %v4804
  %v5832 = vadd.f32 %v5831, 1.0
  %v5833 = vmul.f32 %v5832, %v4804
  %v5834 = vand.u32 2147483647, %v4804
  %vm5835 = vcmp.lt.f32.partialorder %v5834, 0.0004427343
  %v5836 = vsel %vm5835, %v5833, %v5830
  %v5837 = vadd.f32 %v4805, 1.0
  %v5838 = vlog2.pop %v5837
  %v5839 = vmul.f32 %v5838, 0.6931472
  %v5840 = vmul.f32 -0.5, %v4805
  %v5841 = vadd.f32 %v5840, 1.0
  %v5842 = vmul.f32 %v5841, %v4805
  %v5843 = vand.u32 2147483647, %v4805
  %vm5844 = vcmp.lt.f32.partialorder %v5843, 0.0004427343
  %v5845 = vsel %vm5844, %v5842, %v5839
  %v5846 = vadd.f32 %v4806, 1.0
  %v5847 = vlog2.pop %v5846
  %v5848 = vmul.f32 %v5847, 0.6931472
  %v5849 = vmul.f32 -0.5, %v4806
  %v5850 = vadd.f32 %v5849, 1.0
  %v5851 = vmul.f32 %v5850, %v4806
  %v5852 = vand.u32 2147483647, %v4806
  %vm5853 = vcmp.lt.f32.partialorder %v5852, 0.0004427343
  %v5854 = vsel %vm5853, %v5851, %v5848
  %v5855 = vadd.f32 %v4807, 1.0
  %v5856 = vlog2.pop %v5855
  %v5857 = vmul.f32 %v5856, 0.6931472
  %v5858 = vmul.f32 -0.5, %v4807
  %v5859 = vadd.f32 %v5858, 1.0
  %v5860 = vmul.f32 %v5859, %v4807
  %v5861 = vand.u32 2147483647, %v4807
  %vm5862 = vcmp.lt.f32.partialorder %v5861, 0.0004427343
  %v5863 = vsel %vm5862, %v5860, %v5857
  %v5864 = vadd.f32 %v4808, 1.0
  %v5865 = vlog2.pop %v5864
  %v5866 = vmul.f32 %v5865, 0.6931472
  %v5867 = vmul.f32 -0.5, %v4808
  %v5868 = vadd.f32 %v5867, 1.0
  %v5869 = vmul.f32 %v5868, %v4808
  %v5870 = vand.u32 2147483647, %v4808
  %vm5871 = vcmp.lt.f32.partialorder %v5870, 0.0004427343
  %v5872 = vsel %vm5871, %v5869, %v5866
  %v5873 = vadd.f32 %v4809, 1.0
  %v5874 = vlog2.pop %v5873
  %v5875 = vmul.f32 %v5874, 0.6931472
  %v5876 = vmul.f32 -0.5, %v4809
  %v5877 = vadd.f32 %v5876, 1.0
  %v5878 = vmul.f32 %v5877, %v4809
  %v5879 = vand.u32 2147483647, %v4809
  %vm5880 = vcmp.lt.f32.partialorder %v5879, 0.0004427343
  %v5881 = vsel %vm5880, %v5878, %v5875
  %v5882 = vadd.f32 %v4810, 1.0
  %v5883 = vlog2.pop %v5882
  %v5884 = vmul.f32 %v5883, 0.6931472
  %v5885 = vmul.f32 -0.5, %v4810
  %v5886 = vadd.f32 %v5885, 1.0
  %v5887 = vmul.f32 %v5886, %v4810
  %v5888 = vand.u32 2147483647, %v4810
  %vm5889 = vcmp.lt.f32.partialorder %v5888, 0.0004427343
  %v5890 = vsel %vm5889, %v5887, %v5884
  %v5891 = vadd.f32 %v4811, 1.0
  %v5892 = vlog2.pop %v5891
  %v5893 = vmul.f32 %v5892, 0.6931472
  %v5894 = vmul.f32 -0.5, %v4811
  %v5895 = vadd.f32 %v5894, 1.0
  %v5896 = vmul.f32 %v5895, %v4811
  %v5897 = vand.u32 2147483647, %v4811
  %vm5898 = vcmp.lt.f32.partialorder %v5897, 0.0004427343
  %v5899 = vsel %vm5898, %v5896, %v5893
  %v5900 = vadd.f32 %v4812, 1.0
  %v5901 = vlog2.pop %v5900
  %v5902 = vmul.f32 %v5901, 0.6931472
  %v5903 = vmul.f32 -0.5, %v4812
  %v5904 = vadd.f32 %v5903, 1.0
  %v5905 = vmul.f32 %v5904, %v4812
  %v5906 = vand.u32 2147483647, %v4812
  %vm5907 = vcmp.lt.f32.partialorder %v5906, 0.0004427343
  %v5908 = vsel %vm5907, %v5905, %v5902
  %v5909 = vadd.f32 %v4813, 1.0
  %v5910 = vlog2.pop %v5909
  %v5911 = vmul.f32 %v5910, 0.6931472
  %v5912 = vmul.f32 -0.5, %v4813
  %v5913 = vadd.f32 %v5912, 1.0
  %v5914 = vmul.f32 %v5913, %v4813
  %v5915 = vand.u32 2147483647, %v4813
  %vm5916 = vcmp.lt.f32.partialorder %v5915, 0.0004427343
  %v5917 = vsel %vm5916, %v5914, %v5911
  %v5918 = vadd.f32 %v4814, 1.0
  %v5919 = vlog2.pop %v5918
  %v5920 = vmul.f32 %v5919, 0.6931472
  %v5921 = vmul.f32 -0.5, %v4814
  %v5922 = vadd.f32 %v5921, 1.0
  %v5923 = vmul.f32 %v5922, %v4814
  %v5924 = vand.u32 2147483647, %v4814
  %vm5925 = vcmp.lt.f32.partialorder %v5924, 0.0004427343
  %v5926 = vsel %vm5925, %v5923, %v5920
  %v5927 = vadd.f32 %v4815, 1.0
  %v5928 = vlog2.pop %v5927
  %v5929 = vmul.f32 %v5928, 0.6931472
  %v5930 = vmul.f32 -0.5, %v4815
  %v5931 = vadd.f32 %v5930, 1.0
  %v5932 = vmul.f32 %v5931, %v4815
  %v5933 = vand.u32 2147483647, %v4815
  %vm5934 = vcmp.lt.f32.partialorder %v5933, 0.0004427343
  %v5935 = vsel %vm5934, %v5932, %v5929
  %v5936 = vadd.f32 %v4816, 1.0
  %v5937 = vlog2.pop %v5936
  %v5938 = vmul.f32 %v5937, 0.6931472
  %v5939 = vmul.f32 -0.5, %v4816
  %v5940 = vadd.f32 %v5939, 1.0
  %v5941 = vmul.f32 %v5940, %v4816
  %v5942 = vand.u32 2147483647, %v4816
  %vm5943 = vcmp.lt.f32.partialorder %v5942, 0.0004427343
  %v5944 = vsel %vm5943, %v5941, %v5938
  %v5945 = vadd.f32 %v4817, 1.0
  %v5946 = vlog2.pop %v5945
  %v5947 = vmul.f32 %v5946, 0.6931472
  %v5948 = vmul.f32 -0.5, %v4817
  %v5949 = vadd.f32 %v5948, 1.0
  %v5950 = vmul.f32 %v5949, %v4817
  %v5951 = vand.u32 2147483647, %v4817
  %vm5952 = vcmp.lt.f32.partialorder %v5951, 0.0004427343
  %v5953 = vsel %vm5952, %v5950, %v5947
  %v5954 = vadd.f32 %v4818, 1.0
  %v5955 = vlog2.pop %v5954
  %v5956 = vmul.f32 %v5955, 0.6931472
  %v5957 = vmul.f32 -0.5, %v4818
  %v5958 = vadd.f32 %v5957, 1.0
  %v5959 = vmul.f32 %v5958, %v4818
  %v5960 = vand.u32 2147483647, %v4818
  %vm5961 = vcmp.lt.f32.partialorder %v5960, 0.0004427343
  %v5962 = vsel %vm5961, %v5959, %v5956
  %v5963 = vadd.f32 %v4819, 1.0
  %v5964 = vlog2.pop %v5963
  %v5965 = vmul.f32 %v5964, 0.6931472
  %v5966 = vmul.f32 -0.5, %v4819
  %v5967 = vadd.f32 %v5966, 1.0
  %v5968 = vmul.f32 %v5967, %v4819
  %v5969 = vand.u32 2147483647, %v4819
  %vm5970 = vcmp.lt.f32.partialorder %v5969, 0.0004427343
  %v5971 = vsel %vm5970, %v5968, %v5965
  %v5972 = vsel %vm2097, %v4828, %v2226
  %v5973 = vsel %vm2097, %v4837, %v2227
  %v5974 = vsel %vm2097, %v4846, %v2228
  %v5975 = vsel %vm2097, %v4855, %v2229
  %v5976 = vsel %vm2097, %v4864, %v2230
  %v5977 = vsel %vm2097, %v4873, %v2231
  %v5978 = vsel %vm2097, %v4882, %v2232
  %v5979 = vsel %vm2097, %v4891, %v2233
  %v5980 = vsel %vm2097, %v4900, %v2234
  %v5981 = vsel %vm2097, %v4909, %v2235
  %v5982 = vsel %vm2097, %v4918, %v2236
  %v5983 = vsel %vm2097, %v4927, %v2237
  %v5984 = vsel %vm2097, %v4936, %v2238
  %v5985 = vsel %vm2097, %v4945, %v2239
  %v5986 = vsel %vm2097, %v4954, %v2240
  %v5987 = vsel %vm2097, %v4963, %v2241
  %v5988 = vsel %vm2097, %v4972, %v2242
  %v5989 = vsel %vm2097, %v4981, %v2243
  %v5990 = vsel %vm2097, %v4990, %v2244
  %v5991 = vsel %vm2097, %v4999, %v2245
  %v5992 = vsel %vm2097, %v5008, %v2246
  %v5993 = vsel %vm2097, %v5017, %v2247
  %v5994 = vsel %vm2097, %v5026, %v2248
  %v5995 = vsel %vm2097, %v5035, %v2249
  %v5996 = vsel %vm2097, %v5044, %v2250
  %v5997 = vsel %vm2097, %v5053, %v2251
  %v5998 = vsel %vm2097, %v5062, %v2252
  %v5999 = vsel %vm2097, %v5071, %v2253
  %v6000 = vsel %vm2097, %v5080, %v2254
  %v6001 = vsel %vm2097, %v5089, %v2255
  %v6002 = vsel %vm2097, %v5098, %v2256
  %v6003 = vsel %vm2097, %v5107, %v2257
  %v6004 = vsel %vm2097, %v5116, %v2258
  %v6005 = vsel %vm2097, %v5125, %v2259
  %v6006 = vsel %vm2097, %v5134, %v2260
  %v6007 = vsel %vm2097, %v5143, %v2261
  %v6008 = vsel %vm2097, %v5152, %v2262
  %v6009 = vsel %vm2097, %v5161, %v2263
  %v6010 = vsel %vm2097, %v5170, %v2264
  %v6011 = vsel %vm2097, %v5179, %v2265
  %v6012 = vsel %vm2097, %v5188, %v2266
  %v6013 = vsel %vm2097, %v5197, %v2267
  %v6014 = vsel %vm2097, %v5206, %v2268
  %v6015 = vsel %vm2097, %v5215, %v2269
  %v6016 = vsel %vm2097, %v5224, %v2270
  %v6017 = vsel %vm2097, %v5233, %v2271
  %v6018 = vsel %vm2097, %v5242, %v2272
  %v6019 = vsel %vm2097, %v5251, %v2273
  %v6020 = vsel %vm2097, %v5260, %v2274
  %v6021 = vsel %vm2097, %v5269, %v2275
  %v6022 = vsel %vm2097, %v5278, %v2276
  %v6023 = vsel %vm2097, %v5287, %v2277
  %v6024 = vsel %vm2097, %v5296, %v2278
  %v6025 = vsel %vm2097, %v5305, %v2279
  %v6026 = vsel %vm2097, %v5314, %v2280
  %v6027 = vsel %vm2097, %v5323, %v2281
  %v6028 = vsel %vm2097, %v5332, %v2282
  %v6029 = vsel %vm2097, %v5341, %v2283
  %v6030 = vsel %vm2097, %v5350, %v2284
  %v6031 = vsel %vm2097, %v5359, %v2285
  %v6032 = vsel %vm2097, %v5368, %v2286
  %v6033 = vsel %vm2097, %v5377, %v2287
  %v6034 = vsel %vm2097, %v5386, %v2288
  %v6035 = vsel %vm2097, %v5395, %v2289
  %v6036 = vsel %vm2097, %v5404, %v2290
  %v6037 = vsel %vm2097, %v5413, %v2291
  %v6038 = vsel %vm2097, %v5422, %v2292
  %v6039 = vsel %vm2097, %v5431, %v2293
  %v6040 = vsel %vm2097, %v5440, %v2294
  %v6041 = vsel %vm2097, %v5449, %v2295
  %v6042 = vsel %vm2097, %v5458, %v2296
  %v6043 = vsel %vm2097, %v5467, %v2297
  %v6044 = vsel %vm2097, %v5476, %v2298
  %v6045 = vsel %vm2097, %v5485, %v2299
  %v6046 = vsel %vm2097, %v5494, %v2300
  %v6047 = vsel %vm2097, %v5503, %v2301
  %v6048 = vsel %vm2097, %v5512, %v2302
  %v6049 = vsel %vm2097, %v5521, %v2303
  %v6050 = vsel %vm2097, %v5530, %v2304
  %v6051 = vsel %vm2097, %v5539, %v2305
  %v6052 = vsel %vm2097, %v5548, %v2306
  %v6053 = vsel %vm2097, %v5557, %v2307
  %v6054 = vsel %vm2097, %v5566, %v2308
  %v6055 = vsel %vm2097, %v5575, %v2309
  %v6056 = vsel %vm2097, %v5584, %v2310
  %v6057 = vsel %vm2097, %v5593, %v2311
  %v6058 = vsel %vm2097, %v5602, %v2312
  %v6059 = vsel %vm2097, %v5611, %v2313
  %v6060 = vsel %vm2097, %v5620, %v2314
  %v6061 = vsel %vm2097, %v5629, %v2315
  %v6062 = vsel %vm2097, %v5638, %v2316
  %v6063 = vsel %vm2097, %v5647, %v2317
  %v6064 = vsel %vm2097, %v5656, %v2318
  %v6065 = vsel %vm2097, %v5665, %v2319
  %v6066 = vsel %vm2097, %v5674, %v2320
  %v6067 = vsel %vm2097, %v5683, %v2321
  %v6068 = vsel %vm2097, %v5692, %v2322
  %v6069 = vsel %vm2097, %v5701, %v2323
  %v6070 = vsel %vm2097, %v5710, %v2324
  %v6071 = vsel %vm2097, %v5719, %v2325
  %v6072 = vsel %vm2097, %v5728, %v2326
  %v6073 = vsel %vm2097, %v5737, %v2327
  %v6074 = vsel %vm2097, %v5746, %v2328
  %v6075 = vsel %vm2097, %v5755, %v2329
  %v6076 = vsel %vm2097, %v5764, %v2330
  %v6077 = vsel %vm2097, %v5773, %v2331
  %v6078 = vsel %vm2097, %v5782, %v2332
  %v6079 = vsel %vm2097, %v5791, %v2333
  %v6080 = vsel %vm2097, %v5800, %v2334
  %v6081 = vsel %vm2097, %v5809, %v2335
  %v6082 = vsel %vm2097, %v5818, %v2336
  %v6083 = vsel %vm2097, %v5827, %v2337
  %v6084 = vsel %vm2097, %v5836, %v2338
  %v6085 = vsel %vm2097, %v5845, %v2339
  %v6086 = vsel %vm2097, %v5854, %v2340
  %v6087 = vsel %vm2097, %v5863, %v2341
  %v6088 = vsel %vm2097, %v5872, %v2342
  %v6089 = vsel %vm2097, %v5881, %v2343
  %v6090 = vsel %vm2097, %v5890, %v2344
  %v6091 = vsel %vm2097, %v5899, %v2345
  %v6092 = vsel %vm2097, %v5908, %v2346
  %v6093 = vsel %vm2097, %v5917, %v2347
  %v6094 = vsel %vm2097, %v5926, %v2348
  %v6095 = vsel %vm2097, %v5935, %v2349
  %v6096 = vsel %vm2097, %v5944, %v2350
  %v6097 = vsel %vm2097, %v5953, %v2351
  %v6098 = vsel %vm2097, %v5962, %v2352
  %v6099 = vsel %vm2097, %v5971, %v2353
  %v6100 = vsub.f32 %v5972, %v22
  %v6101 = vsub.f32 %v5973, %v23
  %v6102 = vsub.f32 %v5974, %v24
  %v6103 = vsub.f32 %v5975, %v25
  %v6104 = vsub.f32 %v5976, %v26
  %v6105 = vsub.f32 %v5977, %v27
  %v6106 = vsub.f32 %v5978, %v28
  %v6107 = vsub.f32 %v5979, %v29
  %v6108 = vsub.f32 %v5980, %v30
  %v6109 = vsub.f32 %v5981, %v31
  %v6110 = vsub.f32 %v5982, %v32
  %v6111 = vsub.f32 %v5983, %v33
  %v6112 = vsub.f32 %v5984, %v34
  %v6113 = vsub.f32 %v5985, %v35
  %v6114 = vsub.f32 %v5986, %v36
  %v6115 = vsub.f32 %v5987, %v37
  %v6116 = vsub.f32 %v5988, %v38
  %v6117 = vsub.f32 %v5989, %v39
  %v6118 = vsub.f32 %v5990, %v40
  %v6119 = vsub.f32 %v5991, %v41
  %v6120 = vsub.f32 %v5992, %v42
  %v6121 = vsub.f32 %v5993, %v43
  %v6122 = vsub.f32 %v5994, %v44
  %v6123 = vsub.f32 %v5995, %v45
  %v6124 = vsub.f32 %v5996, %v46
  %v6125 = vsub.f32 %v5997, %v47
  %v6126 = vsub.f32 %v5998, %v48
  %v6127 = vsub.f32 %v5999, %v49
  %v6128 = vsub.f32 %v6000, %v50
  %v6129 = vsub.f32 %v6001, %v51
  %v6130 = vsub.f32 %v6002, %v52
  %v6131 = vsub.f32 %v6003, %v53
  %v6132 = vsub.f32 %v6004, %v54
  %v6133 = vsub.f32 %v6005, %v55
  %v6134 = vsub.f32 %v6006, %v56
  %v6135 = vsub.f32 %v6007, %v57
  %v6136 = vsub.f32 %v6008, %v58
  %v6137 = vsub.f32 %v6009, %v59
  %v6138 = vsub.f32 %v6010, %v60
  %v6139 = vsub.f32 %v6011, %v61
  %v6140 = vsub.f32 %v6012, %v62
  %v6141 = vsub.f32 %v6013, %v63
  %v6142 = vsub.f32 %v6014, %v64
  %v6143 = vsub.f32 %v6015, %v65
  %v6144 = vsub.f32 %v6016, %v66
  %v6145 = vsub.f32 %v6017, %v67
  %v6146 = vsub.f32 %v6018, %v68
  %v6147 = vsub.f32 %v6019, %v69
  %v6148 = vsub.f32 %v6020, %v70
  %v6149 = vsub.f32 %v6021, %v71
  %v6150 = vsub.f32 %v6022, %v72
  %v6151 = vsub.f32 %v6023, %v73
  %v6152 = vsub.f32 %v6024, %v74
  %v6153 = vsub.f32 %v6025, %v75
  %v6154 = vsub.f32 %v6026, %v76
  %v6155 = vsub.f32 %v6027, %v77
  %v6156 = vsub.f32 %v6028, %v78
  %v6157 = vsub.f32 %v6029, %v79
  %v6158 = vsub.f32 %v6030, %v80
  %v6159 = vsub.f32 %v6031, %v81
  %v6160 = vsub.f32 %v6032, %v82
  %v6161 = vsub.f32 %v6033, %v83
  %v6162 = vsub.f32 %v6034, %v84
  %v6163 = vsub.f32 %v6035, %v85
  %v6164 = vsub.f32 %v6036, %v86
  %v6165 = vsub.f32 %v6037, %v87
  %v6166 = vsub.f32 %v6038, %v88
  %v6167 = vsub.f32 %v6039, %v89
  %v6168 = vsub.f32 %v6040, %v90
  %v6169 = vsub.f32 %v6041, %v91
  %v6170 = vsub.f32 %v6042, %v92
  %v6171 = vsub.f32 %v6043, %v93
  %v6172 = vsub.f32 %v6044, %v94
  %v6173 = vsub.f32 %v6045, %v95
  %v6174 = vsub.f32 %v6046, %v96
  %v6175 = vsub.f32 %v6047, %v97
  %v6176 = vsub.f32 %v6048, %v98
  %v6177 = vsub.f32 %v6049, %v99
  %v6178 = vsub.f32 %v6050, %v100
  %v6179 = vsub.f32 %v6051, %v101
  %v6180 = vsub.f32 %v6052, %v102
  %v6181 = vsub.f32 %v6053, %v103
  %v6182 = vsub.f32 %v6054, %v104
  %v6183 = vsub.f32 %v6055, %v105
  %v6184 = vsub.f32 %v6056, %v106
  %v6185 = vsub.f32 %v6057, %v107
  %v6186 = vsub.f32 %v6058, %v108
  %v6187 = vsub.f32 %v6059, %v109
  %v6188 = vsub.f32 %v6060, %v110
  %v6189 = vsub.f32 %v6061, %v111
  %v6190 = vsub.f32 %v6062, %v112
  %v6191 = vsub.f32 %v6063, %v113
  %v6192 = vsub.f32 %v6064, %v114
  %v6193 = vsub.f32 %v6065, %v115
  %v6194 = vsub.f32 %v6066, %v116
  %v6195 = vsub.f32 %v6067, %v117
  %v6196 = vsub.f32 %v6068, %v118
  %v6197 = vsub.f32 %v6069, %v119
  %v6198 = vsub.f32 %v6070, %v120
  %v6199 = vsub.f32 %v6071, %v121
  %v6200 = vsub.f32 %v6072, %v122
  %v6201 = vsub.f32 %v6073, %v123
  %v6202 = vsub.f32 %v6074, %v124
  %v6203 = vsub.f32 %v6075, %v125
  %v6204 = vsub.f32 %v6076, %v126
  %v6205 = vsub.f32 %v6077, %v127
  %v6206 = vsub.f32 %v6078, %v128
  %v6207 = vsub.f32 %v6079, %v129
  %v6208 = vsub.f32 %v6080, %v130
  %v6209 = vsub.f32 %v6081, %v131
  %v6210 = vsub.f32 %v6082, %v132
  %v6211 = vsub.f32 %v6083, %v133
  %v6212 = vsub.f32 %v6084, %v134
  %v6213 = vsub.f32 %v6085, %v135
  %v6214 = vsub.f32 %v6086, %v136
  %v6215 = vsub.f32 %v6087, %v137
  %v6216 = vsub.f32 %v6088, %v138
  %v6217 = vsub.f32 %v6089, %v139
  %v6218 = vsub.f32 %v6090, %v140
  %v6219 = vsub.f32 %v6091, %v141
  %v6220 = vsub.f32 %v6092, %v142
  %v6221 = vsub.f32 %v6093, %v143
  %v6222 = vsub.f32 %v6094, %v144
  %v6223 = vsub.f32 %v6095, %v145
  %v6224 = vsub.f32 %v6096, %v146
  %v6225 = vsub.f32 %v6097, %v147
  %v6226 = vsub.f32 %v6098, %v148
  %v6227 = vsub.f32 %v6099, %v149
  %v6228 = vmul.f32 %v6100, %v6100
  %v6229 = vmul.f32 %v6101, %v6101
  %v6230 = vmul.f32 %v6102, %v6102
  %v6231 = vmul.f32 %v6103, %v6103
  %v6232 = vmul.f32 %v6104, %v6104
  %v6233 = vmul.f32 %v6105, %v6105
  %v6234 = vmul.f32 %v6106, %v6106
  %v6235 = vmul.f32 %v6107, %v6107
  %v6236 = vmul.f32 %v6108, %v6108
  %v6237 = vmul.f32 %v6109, %v6109
  %v6238 = vmul.f32 %v6110, %v6110
  %v6239 = vmul.f32 %v6111, %v6111
  %v6240 = vmul.f32 %v6112, %v6112
  %v6241 = vmul.f32 %v6113, %v6113
  %v6242 = vmul.f32 %v6114, %v6114
  %v6243 = vmul.f32 %v6115, %v6115
  %v6244 = vmul.f32 %v6116, %v6116
  %v6245 = vmul.f32 %v6117, %v6117
  %v6246 = vmul.f32 %v6118, %v6118
  %v6247 = vmul.f32 %v6119, %v6119
  %v6248 = vmul.f32 %v6120, %v6120
  %v6249 = vmul.f32 %v6121, %v6121
  %v6250 = vmul.f32 %v6122, %v6122
  %v6251 = vmul.f32 %v6123, %v6123
  %v6252 = vmul.f32 %v6124, %v6124
  %v6253 = vmul.f32 %v6125, %v6125
  %v6254 = vmul.f32 %v6126, %v6126
  %v6255 = vmul.f32 %v6127, %v6127
  %v6256 = vmul.f32 %v6128, %v6128
  %v6257 = vmul.f32 %v6129, %v6129
  %v6258 = vmul.f32 %v6130, %v6130
  %v6259 = vmul.f32 %v6131, %v6131
  %v6260 = vmul.f32 %v6132, %v6132
  %v6261 = vmul.f32 %v6133, %v6133
  %v6262 = vmul.f32 %v6134, %v6134
  %v6263 = vmul.f32 %v6135, %v6135
  %v6264 = vmul.f32 %v6136, %v6136
  %v6265 = vmul.f32 %v6137, %v6137
  %v6266 = vmul.f32 %v6138, %v6138
  %v6267 = vmul.f32 %v6139, %v6139
  %v6268 = vmul.f32 %v6140, %v6140
  %v6269 = vmul.f32 %v6141, %v6141
  %v6270 = vmul.f32 %v6142, %v6142
  %v6271 = vmul.f32 %v6143, %v6143
  %v6272 = vmul.f32 %v6144, %v6144
  %v6273 = vmul.f32 %v6145, %v6145
  %v6274 = vmul.f32 %v6146, %v6146
  %v6275 = vmul.f32 %v6147, %v6147
  %v6276 = vmul.f32 %v6148, %v6148
  %v6277 = vmul.f32 %v6149, %v6149
  %v6278 = vmul.f32 %v6150, %v6150
  %v6279 = vmul.f32 %v6151, %v6151
  %v6280 = vmul.f32 %v6152, %v6152
  %v6281 = vmul.f32 %v6153, %v6153
  %v6282 = vmul.f32 %v6154, %v6154
  %v6283 = vmul.f32 %v6155, %v6155
  %v6284 = vmul.f32 %v6156, %v6156
  %v6285 = vmul.f32 %v6157, %v6157
  %v6286 = vmul.f32 %v6158, %v6158
  %v6287 = vmul.f32 %v6159, %v6159
  %v6288 = vmul.f32 %v6160, %v6160
  %v6289 = vmul.f32 %v6161, %v6161
  %v6290 = vmul.f32 %v6162, %v6162
  %v6291 = vmul.f32 %v6163, %v6163
  %v6292 = vmul.f32 %v6164, %v6164
  %v6293 = vmul.f32 %v6165, %v6165
  %v6294 = vmul.f32 %v6166, %v6166
  %v6295 = vmul.f32 %v6167, %v6167
  %v6296 = vmul.f32 %v6168, %v6168
  %v6297 = vmul.f32 %v6169, %v6169
  %v6298 = vmul.f32 %v6170, %v6170
  %v6299 = vmul.f32 %v6171, %v6171
  %v6300 = vmul.f32 %v6172, %v6172
  %v6301 = vmul.f32 %v6173, %v6173
  %v6302 = vmul.f32 %v6174, %v6174
  %v6303 = vmul.f32 %v6175, %v6175
  %v6304 = vmul.f32 %v6176, %v6176
  %v6305 = vmul.f32 %v6177, %v6177
  %v6306 = vmul.f32 %v6178, %v6178
  %v6307 = vmul.f32 %v6179, %v6179
  %v6308 = vmul.f32 %v6180, %v6180
  %v6309 = vmul.f32 %v6181, %v6181
  %v6310 = vmul.f32 %v6182, %v6182
  %v6311 = vmul.f32 %v6183, %v6183
  %v6312 = vmul.f32 %v6184, %v6184
  %v6313 = vmul.f32 %v6185, %v6185
  %v6314 = vmul.f32 %v6186, %v6186
  %v6315 = vmul.f32 %v6187, %v6187
  %v6316 = vmul.f32 %v6188, %v6188
  %v6317 = vmul.f32 %v6189, %v6189
  %v6318 = vmul.f32 %v6190, %v6190
  %v6319 = vmul.f32 %v6191, %v6191
  %v6320 = vmul.f32 %v6192, %v6192
  %v6321 = vmul.f32 %v6193, %v6193
  %v6322 = vmul.f32 %v6194, %v6194
  %v6323 = vmul.f32 %v6195, %v6195
  %v6324 = vmul.f32 %v6196, %v6196
  %v6325 = vmul.f32 %v6197, %v6197
  %v6326 = vmul.f32 %v6198, %v6198
  %v6327 = vmul.f32 %v6199, %v6199
  %v6328 = vmul.f32 %v6200, %v6200
  %v6329 = vmul.f32 %v6201, %v6201
  %v6330 = vmul.f32 %v6202, %v6202
  %v6331 = vmul.f32 %v6203, %v6203
  %v6332 = vmul.f32 %v6204, %v6204
  %v6333 = vmul.f32 %v6205, %v6205
  %v6334 = vmul.f32 %v6206, %v6206
  %v6335 = vmul.f32 %v6207, %v6207
  %v6336 = vmul.f32 %v6208, %v6208
  %v6337 = vmul.f32 %v6209, %v6209
  %v6338 = vmul.f32 %v6210, %v6210
  %v6339 = vmul.f32 %v6211, %v6211
  %v6340 = vmul.f32 %v6212, %v6212
  %v6341 = vmul.f32 %v6213, %v6213
  %v6342 = vmul.f32 %v6214, %v6214
  %v6343 = vmul.f32 %v6215, %v6215
  %v6344 = vmul.f32 %v6216, %v6216
  %v6345 = vmul.f32 %v6217, %v6217
  %v6346 = vmul.f32 %v6218, %v6218
  %v6347 = vmul.f32 %v6219, %v6219
  %v6348 = vmul.f32 %v6220, %v6220
  %v6349 = vmul.f32 %v6221, %v6221
  %v6350 = vmul.f32 %v6222, %v6222
  %v6351 = vmul.f32 %v6223, %v6223
  %v6352 = vmul.f32 %v6224, %v6224
  %v6353 = vmul.f32 %v6225, %v6225
  %v6354 = vmul.f32 %v6226, %v6226
  %v6355 = vmul.f32 %v6227, %v6227
  %vm6356 = vcmask 64512
  %v6357 = vsel %vm6356, %v6228, 0.0
  %v6358 = vsel %vm6356, %v6229, 0.0
  %v6359 = vadd.f32 %v6357, %v6358
  %v6360 = vsel %vm6356, %v6230, 0.0
  %v6361 = vadd.f32 %v6359, %v6360
  %v6362 = vsel %vm6356, %v6231, 0.0
  %v6363 = vadd.f32 %v6361, %v6362
  %v6364 = vsel %vm6356, %v6232, 0.0
  %v6365 = vadd.f32 %v6363, %v6364
  %v6366 = vsel %vm6356, %v6233, 0.0
  %v6367 = vadd.f32 %v6365, %v6366
  %v6368 = vsel %vm6356, %v6234, 0.0
  %v6369 = vadd.f32 %v6367, %v6368
  %v6370 = vsel %vm6356, %v6235, 0.0
  %v6371 = vadd.f32 %v6369, %v6370
  %v6372 = vsel %vm6356, %v6236, 0.0
  %v6373 = vadd.f32 %v6371, %v6372
  %v6374 = vsel %vm6356, %v6237, 0.0
  %v6375 = vadd.f32 %v6373, %v6374
  %v6376 = vsel %vm6356, %v6238, 0.0
  %v6377 = vadd.f32 %v6375, %v6376
  %v6378 = vsel %vm6356, %v6239, 0.0
  %v6379 = vadd.f32 %v6377, %v6378
  %v6380 = vsel %vm6356, %v6240, 0.0
  %v6381 = vadd.f32 %v6379, %v6380
  %v6382 = vsel %vm6356, %v6241, 0.0
  %v6383 = vadd.f32 %v6381, %v6382
  %v6384 = vsel %vm6356, %v6242, 0.0
  %v6385 = vadd.f32 %v6383, %v6384
  %v6386 = vsel %vm6356, %v6243, 0.0
  %v6387 = vadd.f32 %v6385, %v6386
  %v6388 = vsel %vm6356, %v6244, 0.0
  %v6389 = vadd.f32 %v6387, %v6388
  %v6390 = vsel %vm6356, %v6245, 0.0
  %v6391 = vadd.f32 %v6389, %v6390
  %v6392 = vsel %vm6356, %v6246, 0.0
  %v6393 = vadd.f32 %v6391, %v6392
  %v6394 = vsel %vm6356, %v6247, 0.0
  %v6395 = vadd.f32 %v6393, %v6394
  %v6396 = vsel %vm6356, %v6248, 0.0
  %v6397 = vadd.f32 %v6395, %v6396
  %v6398 = vsel %vm6356, %v6249, 0.0
  %v6399 = vadd.f32 %v6397, %v6398
  %v6400 = vsel %vm6356, %v6250, 0.0
  %v6401 = vadd.f32 %v6399, %v6400
  %v6402 = vsel %vm6356, %v6251, 0.0
  %v6403 = vadd.f32 %v6401, %v6402
  %v6404 = vsel %vm6356, %v6252, 0.0
  %v6405 = vadd.f32 %v6403, %v6404
  %v6406 = vsel %vm6356, %v6253, 0.0
  %v6407 = vadd.f32 %v6405, %v6406
  %v6408 = vsel %vm6356, %v6254, 0.0
  %v6409 = vadd.f32 %v6407, %v6408
  %v6410 = vsel %vm6356, %v6255, 0.0
  %v6411 = vadd.f32 %v6409, %v6410
  %v6412 = vsel %vm6356, %v6256, 0.0
  %v6413 = vadd.f32 %v6411, %v6412
  %v6414 = vsel %vm6356, %v6257, 0.0
  %v6415 = vadd.f32 %v6413, %v6414
  %v6416 = vsel %vm6356, %v6258, 0.0
  %v6417 = vadd.f32 %v6415, %v6416
  %v6418 = vsel %vm6356, %v6259, 0.0
  %v6419 = vadd.f32 %v6417, %v6418
  %v6420 = vsel %vm6356, %v6260, 0.0
  %v6421 = vadd.f32 %v6419, %v6420
  %v6422 = vsel %vm6356, %v6261, 0.0
  %v6423 = vadd.f32 %v6421, %v6422
  %v6424 = vsel %vm6356, %v6262, 0.0
  %v6425 = vadd.f32 %v6423, %v6424
  %v6426 = vsel %vm6356, %v6263, 0.0
  %v6427 = vadd.f32 %v6425, %v6426
  %v6428 = vsel %vm6356, %v6264, 0.0
  %v6429 = vadd.f32 %v6427, %v6428
  %v6430 = vsel %vm6356, %v6265, 0.0
  %v6431 = vadd.f32 %v6429, %v6430
  %v6432 = vsel %vm6356, %v6266, 0.0
  %v6433 = vadd.f32 %v6431, %v6432
  %v6434 = vsel %vm6356, %v6267, 0.0
  %v6435 = vadd.f32 %v6433, %v6434
  %v6436 = vsel %vm6356, %v6268, 0.0
  %v6437 = vadd.f32 %v6435, %v6436
  %v6438 = vsel %vm6356, %v6269, 0.0
  %v6439 = vadd.f32 %v6437, %v6438
  %v6440 = vsel %vm6356, %v6270, 0.0
  %v6441 = vadd.f32 %v6439, %v6440
  %v6442 = vsel %vm6356, %v6271, 0.0
  %v6443 = vadd.f32 %v6441, %v6442
  %v6444 = vsel %vm6356, %v6272, 0.0
  %v6445 = vadd.f32 %v6443, %v6444
  %v6446 = vsel %vm6356, %v6273, 0.0
  %v6447 = vadd.f32 %v6445, %v6446
  %v6448 = vsel %vm6356, %v6274, 0.0
  %v6449 = vadd.f32 %v6447, %v6448
  %v6450 = vsel %vm6356, %v6275, 0.0
  %v6451 = vadd.f32 %v6449, %v6450
  %v6452 = vsel %vm6356, %v6276, 0.0
  %v6453 = vadd.f32 %v6451, %v6452
  %v6454 = vsel %vm6356, %v6277, 0.0
  %v6455 = vadd.f32 %v6453, %v6454
  %v6456 = vsel %vm6356, %v6278, 0.0
  %v6457 = vadd.f32 %v6455, %v6456
  %v6458 = vsel %vm6356, %v6279, 0.0
  %v6459 = vadd.f32 %v6457, %v6458
  %v6460 = vsel %vm6356, %v6280, 0.0
  %v6461 = vadd.f32 %v6459, %v6460
  %v6462 = vsel %vm6356, %v6281, 0.0
  %v6463 = vadd.f32 %v6461, %v6462
  %v6464 = vsel %vm6356, %v6282, 0.0
  %v6465 = vadd.f32 %v6463, %v6464
  %v6466 = vsel %vm6356, %v6283, 0.0
  %v6467 = vadd.f32 %v6465, %v6466
  %v6468 = vsel %vm6356, %v6284, 0.0
  %v6469 = vadd.f32 %v6467, %v6468
  %v6470 = vsel %vm6356, %v6285, 0.0
  %v6471 = vadd.f32 %v6469, %v6470
  %v6472 = vsel %vm6356, %v6286, 0.0
  %v6473 = vadd.f32 %v6471, %v6472
  %v6474 = vsel %vm6356, %v6287, 0.0
  %v6475 = vadd.f32 %v6473, %v6474
  %v6476 = vsel %vm6356, %v6288, 0.0
  %v6477 = vadd.f32 %v6475, %v6476
  %v6478 = vsel %vm6356, %v6289, 0.0
  %v6479 = vadd.f32 %v6477, %v6478
  %v6480 = vsel %vm6356, %v6290, 0.0
  %v6481 = vadd.f32 %v6479, %v6480
  %v6482 = vsel %vm6356, %v6291, 0.0
  %v6483 = vadd.f32 %v6481, %v6482
  %v6484 = vsel %vm6356, %v6292, 0.0
  %v6485 = vadd.f32 %v6483, %v6484
  %v6486 = vsel %vm6356, %v6293, 0.0
  %v6487 = vadd.f32 %v6485, %v6486
  %v6488 = vsel %vm6356, %v6294, 0.0
  %v6489 = vadd.f32 %v6487, %v6488
  %v6490 = vsel %vm6356, %v6295, 0.0
  %v6491 = vadd.f32 %v6489, %v6490
  %v6492 = vsel %vm6356, %v6296, 0.0
  %v6493 = vadd.f32 %v6491, %v6492
  %v6494 = vsel %vm6356, %v6297, 0.0
  %v6495 = vadd.f32 %v6493, %v6494
  %v6496 = vsel %vm6356, %v6298, 0.0
  %v6497 = vadd.f32 %v6495, %v6496
  %v6498 = vsel %vm6356, %v6299, 0.0
  %v6499 = vadd.f32 %v6497, %v6498
  %v6500 = vsel %vm6356, %v6300, 0.0
  %v6501 = vadd.f32 %v6499, %v6500
  %v6502 = vsel %vm6356, %v6301, 0.0
  %v6503 = vadd.f32 %v6501, %v6502
  %v6504 = vsel %vm6356, %v6302, 0.0
  %v6505 = vadd.f32 %v6503, %v6504
  %v6506 = vsel %vm6356, %v6303, 0.0
  %v6507 = vadd.f32 %v6505, %v6506
  %v6508 = vsel %vm6356, %v6304, 0.0
  %v6509 = vadd.f32 %v6507, %v6508
  %v6510 = vsel %vm6356, %v6305, 0.0
  %v6511 = vadd.f32 %v6509, %v6510
  %v6512 = vsel %vm6356, %v6306, 0.0
  %v6513 = vadd.f32 %v6511, %v6512
  %v6514 = vsel %vm6356, %v6307, 0.0
  %v6515 = vadd.f32 %v6513, %v6514
  %v6516 = vsel %vm6356, %v6308, 0.0
  %v6517 = vadd.f32 %v6515, %v6516
  %v6518 = vsel %vm6356, %v6309, 0.0
  %v6519 = vadd.f32 %v6517, %v6518
  %v6520 = vsel %vm6356, %v6310, 0.0
  %v6521 = vadd.f32 %v6519, %v6520
  %v6522 = vsel %vm6356, %v6311, 0.0
  %v6523 = vadd.f32 %v6521, %v6522
  %v6524 = vsel %vm6356, %v6312, 0.0
  %v6525 = vadd.f32 %v6523, %v6524
  %v6526 = vsel %vm6356, %v6313, 0.0
  %v6527 = vadd.f32 %v6525, %v6526
  %v6528 = vsel %vm6356, %v6314, 0.0
  %v6529 = vadd.f32 %v6527, %v6528
  %v6530 = vsel %vm6356, %v6315, 0.0
  %v6531 = vadd.f32 %v6529, %v6530
  %v6532 = vsel %vm6356, %v6316, 0.0
  %v6533 = vadd.f32 %v6531, %v6532
  %v6534 = vsel %vm6356, %v6317, 0.0
  %v6535 = vadd.f32 %v6533, %v6534
  %v6536 = vsel %vm6356, %v6318, 0.0
  %v6537 = vadd.f32 %v6535, %v6536
  %v6538 = vsel %vm6356, %v6319, 0.0
  %v6539 = vadd.f32 %v6537, %v6538
  %v6540 = vsel %vm6356, %v6320, 0.0
  %v6541 = vadd.f32 %v6539, %v6540
  %v6542 = vsel %vm6356, %v6321, 0.0
  %v6543 = vadd.f32 %v6541, %v6542
  %v6544 = vsel %vm6356, %v6322, 0.0
  %v6545 = vadd.f32 %v6543, %v6544
  %v6546 = vsel %vm6356, %v6323, 0.0
  %v6547 = vadd.f32 %v6545, %v6546
  %v6548 = vsel %vm6356, %v6324, 0.0
  %v6549 = vadd.f32 %v6547, %v6548
  %v6550 = vsel %vm6356, %v6325, 0.0
  %v6551 = vadd.f32 %v6549, %v6550
  %v6552 = vsel %vm6356, %v6326, 0.0
  %v6553 = vadd.f32 %v6551, %v6552
  %v6554 = vsel %vm6356, %v6327, 0.0
  %v6555 = vadd.f32 %v6553, %v6554
  %v6556 = vsel %vm6356, %v6328, 0.0
  %v6557 = vadd.f32 %v6555, %v6556
  %v6558 = vsel %vm6356, %v6329, 0.0
  %v6559 = vadd.f32 %v6557, %v6558
  %v6560 = vsel %vm6356, %v6330, 0.0
  %v6561 = vadd.f32 %v6559, %v6560
  %v6562 = vsel %vm6356, %v6331, 0.0
  %v6563 = vadd.f32 %v6561, %v6562
  %v6564 = vsel %vm6356, %v6332, 0.0
  %v6565 = vadd.f32 %v6563, %v6564
  %v6566 = vsel %vm6356, %v6333, 0.0
  %v6567 = vadd.f32 %v6565, %v6566
  %v6568 = vsel %vm6356, %v6334, 0.0
  %v6569 = vadd.f32 %v6567, %v6568
  %v6570 = vsel %vm6356, %v6335, 0.0
  %v6571 = vadd.f32 %v6569, %v6570
  %v6572 = vsel %vm6356, %v6336, 0.0
  %v6573 = vadd.f32 %v6571, %v6572
  %v6574 = vsel %vm6356, %v6337, 0.0
  %v6575 = vadd.f32 %v6573, %v6574
  %v6576 = vsel %vm6356, %v6338, 0.0
  %v6577 = vadd.f32 %v6575, %v6576
  %v6578 = vsel %vm6356, %v6339, 0.0
  %v6579 = vadd.f32 %v6577, %v6578
  %v6580 = vsel %vm6356, %v6340, 0.0
  %v6581 = vadd.f32 %v6579, %v6580
  %v6582 = vsel %vm6356, %v6341, 0.0
  %v6583 = vadd.f32 %v6581, %v6582
  %v6584 = vsel %vm6356, %v6342, 0.0
  %v6585 = vadd.f32 %v6583, %v6584
  %v6586 = vsel %vm6356, %v6343, 0.0
  %v6587 = vadd.f32 %v6585, %v6586
  %v6588 = vsel %vm6356, %v6344, 0.0
  %v6589 = vadd.f32 %v6587, %v6588
  %v6590 = vsel %vm6356, %v6345, 0.0
  %v6591 = vadd.f32 %v6589, %v6590
  %v6592 = vsel %vm6356, %v6346, 0.0
  %v6593 = vadd.f32 %v6591, %v6592
  %v6594 = vsel %vm6356, %v6347, 0.0
  %v6595 = vadd.f32 %v6593, %v6594
  %v6596 = vsel %vm6356, %v6348, 0.0
  %v6597 = vadd.f32 %v6595, %v6596
  %v6598 = vsel %vm6356, %v6349, 0.0
  %v6599 = vadd.f32 %v6597, %v6598
  %v6600 = vsel %vm6356, %v6350, 0.0
  %v6601 = vadd.f32 %v6599, %v6600
  %v6602 = vsel %vm6356, %v6351, 0.0
  %v6603 = vadd.f32 %v6601, %v6602
  %v6604 = vsel %vm6356, %v6352, 0.0
  %v6605 = vadd.f32 %v6603, %v6604
  %v6606 = vsel %vm6356, %v6353, 0.0
  %v6607 = vadd.f32 %v6605, %v6606
  %v6608 = vsel %vm6356, %v6354, 0.0
  %v6609 = vadd.f32 %v6607, %v6608
  %v6610 = vsel %vm6356, %v6355, 0.0
  %v6611 = vadd.f32 %v6609, %v6610
  %v6612 = vrot.slane %v6611, 4
  %v6613 = vadd.f32 %v6611, %v6612
  %v6614 = vrot.slane %v6613, 2
  %v6615 = vadd.f32 %v6613, %v6614
  %v6616 = vrot.slane %v6615, 1
  %v6617 = vadd.f32 %v6615, %v6616
  %vm6618 = vcmask 57344
  %6619 = vst.msk [vmem:[%s6] sm:$0x1] %vm6618, %v6617
  // Predicated region
  $region22: #{neuralrecon_forward.1} parent=0 // pred_check
    _
  $region23: #{neuralrecon_forward.1} parent=0 // pred_check_branch
    %6621 = sbr.rel (0) target = $region25
  $region24: #{neuralrecon_forward.1} parent=0 // pred_region
    _
  $region25: #{neuralrecon_forward.1} parent=0 // pred_fallthru
    _
  // Predicated region
  $region26: #{neuralrecon_forward.1} parent=0 // pred_check
    _
  $region27: #{neuralrecon_forward.1} parent=0 // pred_check_branch
    %6623 = sbr.rel (0) target = $region29
  $region28: #{neuralrecon_forward.1} parent=0 // pred_region
    _
  $region29: #{neuralrecon_forward.1} parent=0 // pred_fallthru
    _
  // Predicated region
  $region30: #{neuralrecon_forward.1} parent=0 // pred_check
    _
  $region31: #{neuralrecon_forward.1} parent=0 // pred_check_branch
    %6625 = sbr.rel (0) target = $region33
  $region32: #{neuralrecon_forward.1} parent=0 // pred_region
    _
  $region33: #{neuralrecon_forward.1} parent=0 // pred_fallthru
    _
  // Predicated region
  $region34: #{neuralrecon_forward.1} parent=0 // pred_check
    _
  $region35: #{neuralrecon_forward.1} parent=0 // pred_check_branch
    %6627 = sbr.rel (0) target = $region37
  $region36: #{neuralrecon_forward.1} parent=0 // pred_region
    _
  $region37: #{neuralrecon_forward.1} parent=0 // pred_fallthru
    _

</llo_original>
